<compile_context>
chip_gen: v6e
topology: v6e:2x2x1
jax: 0.10.0
libtpu: 0.0.40
codegen_flags: <defaults>
</compile_context>

<pallas_src>
import functools

import jax
import jax.numpy as jnp
from jax.experimental import pallas as pl
from jax.experimental.pallas import tpu as pltpu


def _conv_band_kernel(x_ref, w_ref, o_ref, *, KH, KW, has_relu, fold_taps):
    """Convolve one halo'd row band of one image.

    x_ref : (1, TH + KH - 1, Wp, Cin)   padded input rows for this band (with halo)
    w_ref : (KH*KW*Cin, Cout_pad)       taps flattened into the contraction dim
    o_ref : (1, TH, W_out, Cout_pad)    lane-dense output band
    """
    TH = o_ref.shape[1]
    W_out = o_ref.shape[2]
    Cp = o_ref.shape[3]
    Cin = x_ref.shape[3]
    K = KH * KW * Cin

    x = x_ref[0]          # (TH + KH - 1, Wp, Cin)
    w = w_ref[...]        # (K, Cout_pad)

    if fold_taps:
        # im2col: every (kh, kw) tap contributes Cin columns -> one matmul with K = KH*KW*Cin,
        # which fills the MXU contraction dimension instead of 25 K=Cin passes.
        pieces = [x[kh:kh + TH, kw:kw + W_out, :]
                  for kh in range(KH) for kw in range(KW)]
        cols = jnp.concatenate(pieces, axis=-1)                 # (TH, W_out, K)
        acc = jnp.dot(cols.reshape(TH * W_out, K), w,
                      preferred_element_type=jnp.float32)       # (TH*W_out, Cout_pad)
    else:
        # Fallback: per-tap accumulation (K = Cin per matmul). Correct, less MXU-efficient.
        acc = jnp.zeros((TH * W_out, Cp), jnp.float32)
        for kh in range(KH):
            for kw in range(KW):
                t = kh * KW + kw
                patch = x[kh:kh + TH, kw:kw + W_out, :].reshape(TH * W_out, Cin)
                acc = acc + jnp.dot(patch, w[t * Cin:(t + 1) * Cin, :],
                                    preferred_element_type=jnp.float32)

    if has_relu:
        acc = jnp.maximum(acc, 0.0)
    o_ref[...] = acc.reshape(1, TH, W_out, Cp).astype(o_ref.dtype)


def _choose_block_h(H_out, W_out, Wp, Cin, Cout_pad, KH, KW, in_itemsize,
                    vmem_budget_bytes):
    """Output rows per band so the per-step working set stays well inside VMEM
    (budget chosen conservatively for v7x's 64 MiB physical / 32 MiB scoped VMEM)."""
    K = KH * KW * Cin
    per_row = (W_out * K * in_itemsize            # im2col slab
               + W_out * K * 4                    # matmul staging slack (f32)
               + W_out * Cout_pad * 4             # f32 dot result
               + 2 * Wp * Cin * in_itemsize       # double-buffered input rows (+halo)
               + 2 * W_out * Cout_pad * 4)        # double-buffered output rows
    th = int(vmem_budget_bytes // max(per_row, 1))
    th = max(1, min(th, H_out))
    if th < H_out:
        th = max(8, (th // 8) * 8)                # keep bands a multiple of 8 rows
        th = min(th, H_out)
    return th


def conv_layer_forward(x_nchw, weight, *, has_relu=True, padding=2,
                       padding_mode="reflection", block_h=None,
                       compute_dtype=None, fold_taps="auto",
                       vmem_budget_bytes=8 * 1024 * 1024):
    """ConvLayer.forward: pad -> conv2d(KHxKW, stride 1, no bias) -> optional ReLU.

    x_nchw : (N, Cin, H, W)
    weight : (Cout, Cin, KH, KW)   (PyTorch Conv2d weight layout)
    returns: (N, Cout, H_out, W_out)
    """
    N, Cin, H, W = x_nchw.shape
    Cout, Cin_w, KH, KW = weight.shape
    assert Cin_w == Cin, (Cin_w, Cin)

    out_dtype = x_nchw.dtype
    if compute_dtype is None:
        compute_dtype = x_nchw.dtype

    if padding_mode == "zero":
        mode = "constant"
    elif padding_mode == "reflection":
        mode = "reflect"       # == nn.ReflectionPad2d
    elif padding_mode == "replication":
        mode = "edge"          # == nn.ReplicationPad2d
    else:
        raise ValueError(f"unknown padding_mode: {padding_mode}")

    # ---- layout glue (NCHW -> NHWC, pad). ----
    # TODO(synk): fuse the transpose + reflection pad into the kernel DMA (clamped row/col
    #             index_map) so the padded image is never materialized in HBM.
    x = jnp.transpose(x_nchw, (0, 2, 3, 1)).astype(compute_dtype)       # (N, H, W, Cin)
    x_pad = jnp.pad(x, ((0, 0), (padding, padding), (padding, padding), (0, 0)), mode=mode)

    Hp, Wp = H + 2 * padding, W + 2 * padding
    H_out, W_out = Hp - KH + 1, Wp - KW + 1
    K = KH * KW * Cin

    # ---- lane-dense output: pad Cout to a multiple of 128 with zero weight columns. ----
    Cout_pad = ((Cout + 127) // 128) * 128
    # (Cout, Cin, KH, KW) -> (KH, KW, Cin, Cout) -> (K, Cout) -> (K, Cout_pad)
    w_mat = jnp.transpose(weight, (2, 3, 1, 0)).reshape(K, Cout)
    w_mat = jnp.pad(w_mat, ((0, 0), (0, Cout_pad - Cout))).astype(compute_dtype)

    # ---- spatial tiling: bands of TH output rows, each carrying a KH-1 row halo. ----
    if block_h is None:
        TH = _choose_block_h(H_out, W_out, Wp, Cin, Cout_pad, KH, KW,
                             jnp.dtype(compute_dtype).itemsize, vmem_budget_bytes)
    else:
        TH = max(1, min(int(block_h), H_out))
    nh = -(-H_out // TH)          # ceil div
    THh = TH + KH - 1             # input rows per band (with halo)

    rows_needed = nh * TH + KH - 1
    if rows_needed > Hp:
        # Last (partial) band: replicate bottom rows; the extra outputs they feed are
        # masked off by Pallas when the final output block is partial.
        x_pad = jnp.pad(x_pad, ((0, 0), (0, rows_needed - Hp), (0, 0), (0, 0)), mode="edge")

    # Overlapping row bands materialized up front so BlockSpecs stay plain Blocked (halo
    # included) and the pipeline double-buffers band DMA against compute.
    x_bands = jnp.stack([x_pad[:, i * TH:i * TH + THh] for i in range(nh)], axis=1)
    x_bands = x_bands.reshape(N * nh, THh, Wp, Cin)

    def run(fold):
        kernel = functools.partial(_conv_band_kernel, KH=KH, KW=KW,
                                   has_relu=has_relu, fold_taps=fold)
        return pl.pallas_call(
            kernel,
            out_shape=jax.ShapeDtypeStruct((N, H_out, W_out, Cout_pad), out_dtype),
            grid_spec=pltpu.PrefetchScalarGridSpec(
                num_scalar_prefetch=0,
                grid=(N, nh),
                in_specs=[
                    pl.BlockSpec((1, THh, Wp, Cin),
                                 lambda n, i: (n * nh + i, 0, 0, 0)),
                    # constant block index -> weight fetched once, never re-DMA'd per step
                    pl.BlockSpec((K, Cout_pad), lambda n, i: (0, 0)),
                ],
                out_specs=pl.BlockSpec((1, TH, W_out, Cout_pad),
                                       lambda n, i: (n, i, 0, 0)),
            ),
            compiler_params=pltpu.CompilerParams(
                dimension_semantics=("parallel", "parallel"),  # shards over v7x's 2 TCs
                vmem_limit_bytes=32 * 1024 * 1024,
            ),
        )(x_bands, w_mat)

    if fold_taps == "auto":
        try:
            out = run(True)
        except Exception:   # lane-dim concatenate not supported by this toolchain
            out = run(False)
    else:
        out = run(bool(fold_taps))

    out = out[..., :Cout]                          # drop Cout lane padding
    return jnp.transpose(out, (0, 3, 1, 2))        # NHWC -> NCHW


def _reference_forward(x_nchw, weight, *, has_relu=True, padding=2,
                       padding_mode="reflection"):
    """Plain-JAX reference (lax conv) for verification."""
    mode = {"zero": "constant", "reflection": "reflect", "replication": "edge"}[padding_mode]
    x_pad = jnp.pad(x_nchw, ((0, 0), (0, 0), (padding, padding), (padding, padding)),
                    mode=mode)
    out = jax.lax.conv_general_dilated(
        x_pad, weight, window_strides=(1, 1), padding="VALID",
        dimension_numbers=("NCHW", "OIHW", "NCHW"))
    if has_relu:
        out = jnp.maximum(out, 0.0)
    return out


if __name__ == "__main__":
    key = jax.random.PRNGKey(0)
    k_x, k_w = jax.random.split(key)

    # Small deterministic example: N=2, Cin=4, H=W=16, Cout=8, kernel 5x5, pad 2.
    N, Cin, H, W = 2, 4, 16, 16
    Cout, KH, KW = 8, 5, 5

    x = jax.random.normal(k_x, (N, Cin, H, W), dtype=jnp.float32)
    fan_in = Cin * KH * KW
    bound = 1.0 / (fan_in ** 0.5)
    weight = jax.random.uniform(k_w, (Cout, Cin, KH, KW), dtype=jnp.float32,
                                minval=-bound, maxval=bound)

    ref_relu = jax.block_until_ready(_reference_forward(x, weight, has_relu=True))
    ref_lin = jax.block_until_ready(_reference_forward(x, weight, has_relu=False))

    # (1) explicitly tiled path: 2 row bands per image -> grid (N=2, nh=2), f32 compute.
    out = jax.block_until_ready(
        conv_layer_forward(x, weight, has_relu=True, block_h=8))
    assert out.shape == (N, Cout, H, W), out.shape
    assert jnp.allclose(out, ref_relu, atol=1e-3, rtol=1e-3)

    # (2) auto-sized bands (single band here), no ReLU.
    out2 = jax.block_until_ready(
        conv_layer_forward(x, weight, has_relu=False))
    assert jnp.allclose(out2, ref_lin, atol=1e-3, rtol=1e-3)

    # (3) bf16 activations/weights (halved HBM traffic on v6e/v7x), f32 accumulation.
    out3 = jax.block_until_ready(
        conv_layer_forward(x, weight, has_relu=True, block_h=8,
                           compute_dtype=jnp.bfloat16))
    assert jnp.allclose(out3, ref_relu, atol=5e-2, rtol=5e-2)

    print("KERNEL_OK")
</pallas_src>

<mosaic_0001>
module attributes {stable_mosaic.version = 11 : i64} {
  func.func @_conv_band_kernel(%arg0: i32, %arg1: i32, %arg2: memref<1x12x20x4xf32, #tpu.memory_space<vmem>>, %arg3: memref<100x128xf32, #tpu.memory_space<vmem>>, %arg4: memref<1x8x16x128xf32, #tpu.memory_space<vmem>>) attributes {dimension_semantics = [#tpu.dimension_semantics<parallel>, #tpu.dimension_semantics<parallel>], iteration_bounds = array<i64: 2, 2>, scalar_prefetch = 0 : i64, scratch_operands = 0 : i64, tpu.core_type = #tpu.core_type<tc>, window_params = [{transform_indices = @transform_0, window_bounds = array<i64: 1, 12, 20, 4>}, {pipeline_mode = #tpu.pipeline_mode<synchronous>, transform_indices = @transform_1, window_bounds = array<i64: 100, 128>}, {transform_indices = @transform_2, window_bounds = array<i64: 1, 8, 16, 128>}]} {
    %c0 = arith.constant 0 : index
    %c0_0 = arith.constant 0 : index
    %c0_1 = arith.constant 0 : index
    %c0_2 = arith.constant 0 : index
    %0 = vector.load %arg2[%c0, %c0_0, %c0_1, %c0_2] : memref<1x12x20x4xf32, #tpu.memory_space<vmem>>, vector<1x12x20x4xf32>
    %1 = vector.shape_cast %0 : vector<1x12x20x4xf32> to vector<12x20x4xf32>
    %c0_3 = arith.constant 0 : index
    %c0_4 = arith.constant 0 : index
    %2 = vector.load %arg3[%c0_3, %c0_4] : memref<100x128xf32, #tpu.memory_space<vmem>>, vector<100x128xf32>
    %3 = vector.extract_strided_slice %1 {offsets = [0, 0, 0], sizes = [8, 16, 4], strides = [1, 1, 1]} : vector<12x20x4xf32> to vector<8x16x4xf32>
    %4 = vector.extract_strided_slice %1 {offsets = [0, 1, 0], sizes = [8, 16, 4], strides = [1, 1, 1]} : vector<12x20x4xf32> to vector<8x16x4xf32>
    %5 = vector.extract_strided_slice %1 {offsets = [0, 2, 0], sizes = [8, 16, 4], strides = [1, 1, 1]} : vector<12x20x4xf32> to vector<8x16x4xf32>
    %6 = vector.extract_strided_slice %1 {offsets = [0, 3, 0], sizes = [8, 16, 4], strides = [1, 1, 1]} : vector<12x20x4xf32> to vector<8x16x4xf32>
    %7 = vector.extract_strided_slice %1 {offsets = [0, 4, 0], sizes = [8, 16, 4], strides = [1, 1, 1]} : vector<12x20x4xf32> to vector<8x16x4xf32>
    %8 = vector.extract_strided_slice %1 {offsets = [1, 0, 0], sizes = [8, 16, 4], strides = [1, 1, 1]} : vector<12x20x4xf32> to vector<8x16x4xf32>
    %9 = vector.extract_strided_slice %1 {offsets = [1, 1, 0], sizes = [8, 16, 4], strides = [1, 1, 1]} : vector<12x20x4xf32> to vector<8x16x4xf32>
    %10 = vector.extract_strided_slice %1 {offsets = [1, 2, 0], sizes = [8, 16, 4], strides = [1, 1, 1]} : vector<12x20x4xf32> to vector<8x16x4xf32>
    %11 = vector.extract_strided_slice %1 {offsets = [1, 3, 0], sizes = [8, 16, 4], strides = [1, 1, 1]} : vector<12x20x4xf32> to vector<8x16x4xf32>
    %12 = vector.extract_strided_slice %1 {offsets = [1, 4, 0], sizes = [8, 16, 4], strides = [1, 1, 1]} : vector<12x20x4xf32> to vector<8x16x4xf32>
    %13 = vector.extract_strided_slice %1 {offsets = [2, 0, 0], sizes = [8, 16, 4], strides = [1, 1, 1]} : vector<12x20x4xf32> to vector<8x16x4xf32>
    %14 = vector.extract_strided_slice %1 {offsets = [2, 1, 0], sizes = [8, 16, 4], strides = [1, 1, 1]} : vector<12x20x4xf32> to vector<8x16x4xf32>
    %15 = vector.extract_strided_slice %1 {offsets = [2, 2, 0], sizes = [8, 16, 4], strides = [1, 1, 1]} : vector<12x20x4xf32> to vector<8x16x4xf32>
    %16 = vector.extract_strided_slice %1 {offsets = [2, 3, 0], sizes = [8, 16, 4], strides = [1, 1, 1]} : vector<12x20x4xf32> to vector<8x16x4xf32>
    %17 = vector.extract_strided_slice %1 {offsets = [2, 4, 0], sizes = [8, 16, 4], strides = [1, 1, 1]} : vector<12x20x4xf32> to vector<8x16x4xf32>
    %18 = vector.extract_strided_slice %1 {offsets = [3, 0, 0], sizes = [8, 16, 4], strides = [1, 1, 1]} : vector<12x20x4xf32> to vector<8x16x4xf32>
    %19 = vector.extract_strided_slice %1 {offsets = [3, 1, 0], sizes = [8, 16, 4], strides = [1, 1, 1]} : vector<12x20x4xf32> to vector<8x16x4xf32>
    %20 = vector.extract_strided_slice %1 {offsets = [3, 2, 0], sizes = [8, 16, 4], strides = [1, 1, 1]} : vector<12x20x4xf32> to vector<8x16x4xf32>
    %21 = vector.extract_strided_slice %1 {offsets = [3, 3, 0], sizes = [8, 16, 4], strides = [1, 1, 1]} : vector<12x20x4xf32> to vector<8x16x4xf32>
    %22 = vector.extract_strided_slice %1 {offsets = [3, 4, 0], sizes = [8, 16, 4], strides = [1, 1, 1]} : vector<12x20x4xf32> to vector<8x16x4xf32>
    %23 = vector.extract_strided_slice %1 {offsets = [4, 0, 0], sizes = [8, 16, 4], strides = [1, 1, 1]} : vector<12x20x4xf32> to vector<8x16x4xf32>
    %24 = vector.extract_strided_slice %1 {offsets = [4, 1, 0], sizes = [8, 16, 4], strides = [1, 1, 1]} : vector<12x20x4xf32> to vector<8x16x4xf32>
    %25 = vector.extract_strided_slice %1 {offsets = [4, 2, 0], sizes = [8, 16, 4], strides = [1, 1, 1]} : vector<12x20x4xf32> to vector<8x16x4xf32>
    %26 = vector.extract_strided_slice %1 {offsets = [4, 3, 0], sizes = [8, 16, 4], strides = [1, 1, 1]} : vector<12x20x4xf32> to vector<8x16x4xf32>
    %27 = vector.extract_strided_slice %1 {offsets = [4, 4, 0], sizes = [8, 16, 4], strides = [1, 1, 1]} : vector<12x20x4xf32> to vector<8x16x4xf32>
    %28 = tpu.concatenate %3, %4, %5, %6, %7, %8, %9, %10, %11, %12, %13, %14, %15, %16, %17, %18 in 2 : vector<8x16x4xf32>, vector<8x16x4xf32>, vector<8x16x4xf32>, vector<8x16x4xf32>, vector<8x16x4xf32>, vector<8x16x4xf32>, vector<8x16x4xf32>, vector<8x16x4xf32>, vector<8x16x4xf32>, vector<8x16x4xf32>, vector<8x16x4xf32>, vector<8x16x4xf32>, vector<8x16x4xf32>, vector<8x16x4xf32>, vector<8x16x4xf32>, vector<8x16x4xf32> -> vector<8x16x64xf32>
    %29 = tpu.concatenate %19, %20, %21, %22, %23, %24, %25, %26, %27 in 2 : vector<8x16x4xf32>, vector<8x16x4xf32>, vector<8x16x4xf32>, vector<8x16x4xf32>, vector<8x16x4xf32>, vector<8x16x4xf32>, vector<8x16x4xf32>, vector<8x16x4xf32>, vector<8x16x4xf32> -> vector<8x16x36xf32>
    %30 = tpu.concatenate %28, %29 in 2 : vector<8x16x64xf32>, vector<8x16x36xf32> -> vector<8x16x100xf32>
    %31 = vector.shape_cast %30 : vector<8x16x100xf32> to vector<128x100xf32>
    %cst = arith.constant dense<0.000000e+00> : vector<128x128xf32>
    %32 = tpu.matmul %31, %2, %cst {dimension_numbers = #tpu.dot_dimension_numbers<[1], [0], [0], [1], [0, 0, 1, 1], [], []>} : vector<128x100xf32>, vector<100x128xf32>, vector<128x128xf32> -> vector<128x128xf32>
    %cst_5 = arith.constant 0.000000e+00 : f32
    %33 = vector.broadcast %cst_5 : f32 to vector<128x128xf32>
    %34 = arith.maximumf %32, %33 : vector<128x128xf32>
    %35 = vector.shape_cast %34 : vector<128x128xf32> to vector<1x8x16x128xf32>
    %c0_6 = arith.constant 0 : index
    %c0_7 = arith.constant 0 : index
    %c0_8 = arith.constant 0 : index
    %c0_9 = arith.constant 0 : index
    %36 = vector.load %arg4[%c0_6, %c0_7, %c0_8, %c0_9] : memref<1x8x16x128xf32, #tpu.memory_space<vmem>>, vector<1x8x16x128xf32>
    tpu.vector_store %arg4[%c0_6, %c0_7, %c0_8, %c0_9], %35 {strides = array<i32>} : memref<1x8x16x128xf32, #tpu.memory_space<vmem>>, vector<1x8x16x128xf32>,
    return
  }
  func.func @transform_0(%arg0: i32, %arg1: i32) -> (i32, i32, i32, i32) {
    %c2_i32 = arith.constant 2 : i32
    %0 = arith.muli %arg0, %c2_i32 : i32
    %1 = arith.addi %0, %arg1 : i32
    %c0_i32 = arith.constant 0 : i32
    %c0_i32_0 = arith.constant 0 : i32
    %c0_i32_1 = arith.constant 0 : i32
    %c0_i32_2 = arith.constant 0 : i32
    return %1, %c0_i32, %c0_i32_0, %c0_i32_1 : i32, i32, i32, i32
  }
  func.func @transform_1(%arg0: i32, %arg1: i32) -> (i32, i32) {
    %c0_i32 = arith.constant 0 : i32
    %c0_i32_0 = arith.constant 0 : i32
    %c0_i32_1 = arith.constant 0 : i32
    return %c0_i32, %c0_i32_0 : i32, i32
  }
  func.func @transform_2(%arg0: i32, %arg1: i32) -> (i32, i32, i32, i32) {
    %c0_i32 = arith.constant 0 : i32
    %c0_i32_0 = arith.constant 0 : i32
    %c0_i32_1 = arith.constant 0 : i32
    return %arg0, %arg1, %c0_i32, %c0_i32_0 : i32, i32, i32, i32
  }
}

module attributes {stable_mosaic.version = 11 : i64} {
  func.func @_conv_band_kernel(%arg0: i32, %arg1: i32, %arg2: memref<1x12x20x4xf32, #tpu.memory_space<vmem>>, %arg3: memref<100x128xf32, #tpu.memory_space<vmem>>, %arg4: memref<1x8x16x128xf32, #tpu.memory_space<vmem>>) attributes {dimension_semantics = [#tpu.dimension_semantics<parallel>, #tpu.dimension_semantics<parallel>], iteration_bounds = array<i64: 2, 2>, scalar_prefetch = 0 : i64, scratch_operands = 0 : i64, tpu.core_type = #tpu.core_type<tc>, window_params = [{transform_indices = @transform_0, window_bounds = array<i64: 1, 12, 20, 4>}, {pipeline_mode = #tpu.pipeline_mode<synchronous>, transform_indices = @transform_1, window_bounds = array<i64: 100, 128>}, {transform_indices = @transform_2, window_bounds = array<i64: 1, 8, 16, 128>}]} {
    %c0 = arith.constant 0 : index
    %c0_0 = arith.constant 0 : index
    %c0_1 = arith.constant 0 : index
    %c0_2 = arith.constant 0 : index
    %0 = vector.load %arg2[%c0, %c0_0, %c0_1, %c0_2] : memref<1x12x20x4xf32, #tpu.memory_space<vmem>>, vector<1x12x20x4xf32>
    %1 = vector.shape_cast %0 : vector<1x12x20x4xf32> to vector<12x20x4xf32>
    %c0_3 = arith.constant 0 : index
    %c0_4 = arith.constant 0 : index
    %2 = vector.load %arg3[%c0_3, %c0_4] : memref<100x128xf32, #tpu.memory_space<vmem>>, vector<100x128xf32>
    %cst = arith.constant 0.000000e+00 : f32
    %3 = vector.broadcast %cst : f32 to vector<128x128xf32>
    %4 = vector.extract_strided_slice %1 {offsets = [0, 0, 0], sizes = [8, 16, 4], strides = [1, 1, 1]} : vector<12x20x4xf32> to vector<8x16x4xf32>
    %5 = vector.shape_cast %4 : vector<8x16x4xf32> to vector<128x4xf32>
    %6 = vector.extract_strided_slice %2 {offsets = [0, 0], sizes = [4, 128], strides = [1, 1]} : vector<100x128xf32> to vector<4x128xf32>
    %cst_5 = arith.constant dense<0.000000e+00> : vector<128x128xf32>
    %7 = tpu.matmul %5, %6, %cst_5 {dimension_numbers = #tpu.dot_dimension_numbers<[1], [0], [0], [1], [0, 0, 1, 1], [], []>} : vector<128x4xf32>, vector<4x128xf32>, vector<128x128xf32> -> vector<128x128xf32>
    %8 = arith.addf %3, %7 : vector<128x128xf32>
    %9 = vector.extract_strided_slice %1 {offsets = [0, 1, 0], sizes = [8, 16, 4], strides = [1, 1, 1]} : vector<12x20x4xf32> to vector<8x16x4xf32>
    %10 = vector.shape_cast %9 : vector<8x16x4xf32> to vector<128x4xf32>
    %11 = vector.extract_strided_slice %2 {offsets = [4, 0], sizes = [4, 128], strides = [1, 1]} : vector<100x128xf32> to vector<4x128xf32>
    %cst_6 = arith.constant dense<0.000000e+00> : vector<128x128xf32>
    %12 = tpu.matmul %10, %11, %cst_6 {dimension_numbers = #tpu.dot_dimension_numbers<[1], [0], [0], [1], [0, 0, 1, 1], [], []>} : vector<128x4xf32>, vector<4x128xf32>, vector<128x128xf32> -> vector<128x128xf32>
    %13 = arith.addf %8, %12 : vector<128x128xf32>
    %14 = vector.extract_strided_slice %1 {offsets = [0, 2, 0], sizes = [8, 16, 4], strides = [1, 1, 1]} : vector<12x20x4xf32> to vector<8x16x4xf32>
    %15 = vector.shape_cast %14 : vector<8x16x4xf32> to vector<128x4xf32>
    %16 = vector.extract_strided_slice %2 {offsets = [8, 0], sizes = [4, 128], strides = [1, 1]} : vector<100x128xf32> to vector<4x128xf32>
    %cst_7 = arith.constant dense<0.000000e+00> : vector<128x128xf32>
    %17 = tpu.matmul %15, %16, %cst_7 {dimension_numbers = #tpu.dot_dimension_numbers<[1], [0], [0], [1], [0, 0, 1, 1], [], []>} : vector<128x4xf32>, vector<4x128xf32>, vector<128x128xf32> -> vector<128x128xf32>
    %18 = arith.addf %13, %17 : vector<128x128xf32>
    %19 = vector.extract_strided_slice %1 {offsets = [0, 3, 0], sizes = [8, 16, 4], strides = [1, 1, 1]} : vector<12x20x4xf32> to vector<8x16x4xf32>
    %20 = vector.shape_cast %19 : vector<8x16x4xf32> to vector<128x4xf32>
    %21 = vector.extract_strided_slice %2 {offsets = [12, 0], sizes = [4, 128], strides = [1, 1]} : vector<100x128xf32> to vector<4x128xf32>
    %cst_8 = arith.constant dense<0.000000e+00> : vector<128x128xf32>
    %22 = tpu.matmul %20, %21, %cst_8 {dimension_numbers = #tpu.dot_dimension_numbers<[1], [0], [0], [1], [0, 0, 1, 1], [], []>} : vector<128x4xf32>, vector<4x128xf32>, vector<128x128xf32> -> vector<128x128xf32>
    %23 = arith.addf %18, %22 : vector<128x128xf32>
    %24 = vector.extract_strided_slice %1 {offsets = [0, 4, 0], sizes = [8, 16, 4], strides = [1, 1, 1]} : vector<12x20x4xf32> to vector<8x16x4xf32>
    %25 = vector.shape_cast %24 : vector<8x16x4xf32> to vector<128x4xf32>
    %26 = vector.extract_strided_slice %2 {offsets = [16, 0], sizes = [4, 128], strides = [1, 1]} : vector<100x128xf32> to vector<4x128xf32>
    %cst_9 = arith.constant dense<0.000000e+00> : vector<128x128xf32>
    %27 = tpu.matmul %25, %26, %cst_9 {dimension_numbers = #tpu.dot_dimension_numbers<[1], [0], [0], [1], [0, 0, 1, 1], [], []>} : vector<128x4xf32>, vector<4x128xf32>, vector<128x128xf32> -> vector<128x128xf32>
    %28 = arith.addf %23, %27 : vector<128x128xf32>
    %29 = vector.extract_strided_slice %1 {offsets = [1, 0, 0], sizes = [8, 16, 4], strides = [1, 1, 1]} : vector<12x20x4xf32> to vector<8x16x4xf32>
    %30 = vector.shape_cast %29 : vector<8x16x4xf32> to vector<128x4xf32>
    %31 = vector.extract_strided_slice %2 {offsets = [20, 0], sizes = [4, 128], strides = [1, 1]} : vector<100x128xf32> to vector<4x128xf32>
    %cst_10 = arith.constant dense<0.000000e+00> : vector<128x128xf32>
    %32 = tpu.matmul %30, %31, %cst_10 {dimension_numbers = #tpu.dot_dimension_numbers<[1], [0], [0], [1], [0, 0, 1, 1], [], []>} : vector<128x4xf32>, vector<4x128xf32>, vector<128x128xf32> -> vector<128x128xf32>
    %33 = arith.addf %28, %32 : vector<128x128xf32>
    %34 = vector.extract_strided_slice %1 {offsets = [1, 1, 0], sizes = [8, 16, 4], strides = [1, 1, 1]} : vector<12x20x4xf32> to vector<8x16x4xf32>
    %35 = vector.shape_cast %34 : vector<8x16x4xf32> to vector<128x4xf32>
    %36 = vector.extract_strided_slice %2 {offsets = [24, 0], sizes = [4, 128], strides = [1, 1]} : vector<100x128xf32> to vector<4x128xf32>
    %cst_11 = arith.constant dense<0.000000e+00> : vector<128x128xf32>
    %37 = tpu.matmul %35, %36, %cst_11 {dimension_numbers = #tpu.dot_dimension_numbers<[1], [0], [0], [1], [0, 0, 1, 1], [], []>} : vector<128x4xf32>, vector<4x128xf32>, vector<128x128xf32> -> vector<128x128xf32>
    %38 = arith.addf %33, %37 : vector<128x128xf32>
    %39 = vector.extract_strided_slice %1 {offsets = [1, 2, 0], sizes = [8, 16, 4], strides = [1, 1, 1]} : vector<12x20x4xf32> to vector<8x16x4xf32>
    %40 = vector.shape_cast %39 : vector<8x16x4xf32> to vector<128x4xf32>
    %41 = vector.extract_strided_slice %2 {offsets = [28, 0], sizes = [4, 128], strides = [1, 1]} : vector<100x128xf32> to vector<4x128xf32>
    %cst_12 = arith.constant dense<0.000000e+00> : vector<128x128xf32>
    %42 = tpu.matmul %40, %41, %cst_12 {dimension_numbers = #tpu.dot_dimension_numbers<[1], [0], [0], [1], [0, 0, 1, 1], [], []>} : vector<128x4xf32>, vector<4x128xf32>, vector<128x128xf32> -> vector<128x128xf32>
    %43 = arith.addf %38, %42 : vector<128x128xf32>
    %44 = vector.extract_strided_slice %1 {offsets = [1, 3, 0], sizes = [8, 16, 4], strides = [1, 1, 1]} : vector<12x20x4xf32> to vector<8x16x4xf32>
    %45 = vector.shape_cast %44 : vector<8x16x4xf32> to vector<128x4xf32>
    %46 = vector.extract_strided_slice %2 {offsets = [32, 0], sizes = [4, 128], strides = [1, 1]} : vector<100x128xf32> to vector<4x128xf32>
    %cst_13 = arith.constant dense<0.000000e+00> : vector<128x128xf32>
    %47 = tpu.matmul %45, %46, %cst_13 {dimension_numbers = #tpu.dot_dimension_numbers<[1], [0], [0], [1], [0, 0, 1, 1], [], []>} : vector<128x4xf32>, vector<4x128xf32>, vector<128x128xf32> -> vector<128x128xf32>
    %48 = arith.addf %43, %47 : vector<128x128xf32>
    %49 = vector.extract_strided_slice %1 {offsets = [1, 4, 0], sizes = [8, 16, 4], strides = [1, 1, 1]} : vector<12x20x4xf32> to vector<8x16x4xf32>
    %50 = vector.shape_cast %49 : vector<8x16x4xf32> to vector<128x4xf32>
    %51 = vector.extract_strided_slice %2 {offsets = [36, 0], sizes = [4, 128], strides = [1, 1]} : vector<100x128xf32> to vector<4x128xf32>
    %cst_14 = arith.constant dense<0.000000e+00> : vector<128x128xf32>
    %52 = tpu.matmul %50, %51, %cst_14 {dimension_numbers = #tpu.dot_dimension_numbers<[1], [0], [0], [1], [0, 0, 1, 1], [], []>} : vector<128x4xf32>, vector<4x128xf32>, vector<128x128xf32> -> vector<128x128xf32>
    %53 = arith.addf %48, %52 : vector<128x128xf32>
    %54 = vector.extract_strided_slice %1 {offsets = [2, 0, 0], sizes = [8, 16, 4], strides = [1, 1, 1]} : vector<12x20x4xf32> to vector<8x16x4xf32>
    %55 = vector.shape_cast %54 : vector<8x16x4xf32> to vector<128x4xf32>
    %56 = vector.extract_strided_slice %2 {offsets = [40, 0], sizes = [4, 128], strides = [1, 1]} : vector<100x128xf32> to vector<4x128xf32>
    %cst_15 = arith.constant dense<0.000000e+00> : vector<128x128xf32>
    %57 = tpu.matmul %55, %56, %cst_15 {dimension_numbers = #tpu.dot_dimension_numbers<[1], [0], [0], [1], [0, 0, 1, 1], [], []>} : vector<128x4xf32>, vector<4x128xf32>, vector<128x128xf32> -> vector<128x128xf32>
    %58 = arith.addf %53, %57 : vector<128x128xf32>
    %59 = vector.extract_strided_slice %1 {offsets = [2, 1, 0], sizes = [8, 16, 4], strides = [1, 1, 1]} : vector<12x20x4xf32> to vector<8x16x4xf32>
    %60 = vector.shape_cast %59 : vector<8x16x4xf32> to vector<128x4xf32>
    %61 = vector.extract_strided_slice %2 {offsets = [44, 0], sizes = [4, 128], strides = [1, 1]} : vector<100x128xf32> to vector<4x128xf32>
    %cst_16 = arith.constant dense<0.000000e+00> : vector<128x128xf32>
    %62 = tpu.matmul %60, %61, %cst_16 {dimension_numbers = #tpu.dot_dimension_numbers<[1], [0], [0], [1], [0, 0, 1, 1], [], []>} : vector<128x4xf32>, vector<4x128xf32>, vector<128x128xf32> -> vector<128x128xf32>
    %63 = arith.addf %58, %62 : vector<128x128xf32>
    %64 = vector.extract_strided_slice %1 {offsets = [2, 2, 0], sizes = [8, 16, 4], strides = [1, 1, 1]} : vector<12x20x4xf32> to vector<8x16x4xf32>
    %65 = vector.shape_cast %64 : vector<8x16x4xf32> to vector<128x4xf32>
    %66 = vector.extract_strided_slice %2 {offsets = [48, 0], sizes = [4, 128], strides = [1, 1]} : vector<100x128xf32> to vector<4x128xf32>
    %cst_17 = arith.constant dense<0.000000e+00> : vector<128x128xf32>
    %67 = tpu.matmul %65, %66, %cst_17 {dimension_numbers = #tpu.dot_dimension_numbers<[1], [0], [0], [1], [0, 0, 1, 1], [], []>} : vector<128x4xf32>, vector<4x128xf32>, vector<128x128xf32> -> vector<128x128xf32>
    %68 = arith.addf %63, %67 : vector<128x128xf32>
    %69 = vector.extract_strided_slice %1 {offsets = [2, 3, 0], sizes = [8, 16, 4], strides = [1, 1, 1]} : vector<12x20x4xf32> to vector<8x16x4xf32>
    %70 = vector.shape_cast %69 : vector<8x16x4xf32> to vector<128x4xf32>
    %71 = vector.extract_strided_slice %2 {offsets = [52, 0], sizes = [4, 128], strides = [1, 1]} : vector<100x128xf32> to vector<4x128xf32>
    %cst_18 = arith.constant dense<0.000000e+00> : vector<128x128xf32>
    %72 = tpu.matmul %70, %71, %cst_18 {dimension_numbers = #tpu.dot_dimension_numbers<[1], [0], [0], [1], [0, 0, 1, 1], [], []>} : vector<128x4xf32>, vector<4x128xf32>, vector<128x128xf32> -> vector<128x128xf32>
    %73 = arith.addf %68, %72 : vector<128x128xf32>
    %74 = vector.extract_strided_slice %1 {offsets = [2, 4, 0], sizes = [8, 16, 4], strides = [1, 1, 1]} : vector<12x20x4xf32> to vector<8x16x4xf32>
    %75 = vector.shape_cast %74 : vector<8x16x4xf32> to vector<128x4xf32>
    %76 = vector.extract_strided_slice %2 {offsets = [56, 0], sizes = [4, 128], strides = [1, 1]} : vector<100x128xf32> to vector<4x128xf32>
    %cst_19 = arith.constant dense<0.000000e+00> : vector<128x128xf32>
    %77 = tpu.matmul %75, %76, %cst_19 {dimension_numbers = #tpu.dot_dimension_numbers<[1], [0], [0], [1], [0, 0, 1, 1], [], []>} : vector<128x4xf32>, vector<4x128xf32>, vector<128x128xf32> -> vector<128x128xf32>
    %78 = arith.addf %73, %77 : vector<128x128xf32>
    %79 = vector.extract_strided_slice %1 {offsets = [3, 0, 0], sizes = [8, 16, 4], strides = [1, 1, 1]} : vector<12x20x4xf32> to vector<8x16x4xf32>
    %80 = vector.shape_cast %79 : vector<8x16x4xf32> to vector<128x4xf32>
    %81 = vector.extract_strided_slice %2 {offsets = [60, 0], sizes = [4, 128], strides = [1, 1]} : vector<100x128xf32> to vector<4x128xf32>
    %cst_20 = arith.constant dense<0.000000e+00> : vector<128x128xf32>
    %82 = tpu.matmul %80, %81, %cst_20 {dimension_numbers = #tpu.dot_dimension_numbers<[1], [0], [0], [1], [0, 0, 1, 1], [], []>} : vector<128x4xf32>, vector<4x128xf32>, vector<128x128xf32> -> vector<128x128xf32>
    %83 = arith.addf %78, %82 : vector<128x128xf32>
    %84 = vector.extract_strided_slice %1 {offsets = [3, 1, 0], sizes = [8, 16, 4], strides = [1, 1, 1]} : vector<12x20x4xf32> to vector<8x16x4xf32>
    %85 = vector.shape_cast %84 : vector<8x16x4xf32> to vector<128x4xf32>
    %86 = vector.extract_strided_slice %2 {offsets = [64, 0], sizes = [4, 128], strides = [1, 1]} : vector<100x128xf32> to vector<4x128xf32>
    %cst_21 = arith.constant dense<0.000000e+00> : vector<128x128xf32>
    %87 = tpu.matmul %85, %86, %cst_21 {dimension_numbers = #tpu.dot_dimension_numbers<[1], [0], [0], [1], [0, 0, 1, 1], [], []>} : vector<128x4xf32>, vector<4x128xf32>, vector<128x128xf32> -> vector<128x128xf32>
    %88 = arith.addf %83, %87 : vector<128x128xf32>
    %89 = vector.extract_strided_slice %1 {offsets = [3, 2, 0], sizes = [8, 16, 4], strides = [1, 1, 1]} : vector<12x20x4xf32> to vector<8x16x4xf32>
    %90 = vector.shape_cast %89 : vector<8x16x4xf32> to vector<128x4xf32>
    %91 = vector.extract_strided_slice %2 {offsets = [68, 0], sizes = [4, 128], strides = [1, 1]} : vector<100x128xf32> to vector<4x128xf32>
    %cst_22 = arith.constant dense<0.000000e+00> : vector<128x128xf32>
    %92 = tpu.matmul %90, %91, %cst_22 {dimension_numbers = #tpu.dot_dimension_numbers<[1], [0], [0], [1], [0, 0, 1, 1], [], []>} : vector<128x4xf32>, vector<4x128xf32>, vector<128x128xf32> -> vector<128x128xf32>
    %93 = arith.addf %88, %92 : vector<128x128xf32>
    %94 = vector.extract_strided_slice %1 {offsets = [3, 3, 0], sizes = [8, 16, 4], strides = [1, 1, 1]} : vector<12x20x4xf32> to vector<8x16x4xf32>
    %95 = vector.shape_cast %94 : vector<8x16x4xf32> to vector<128x4xf32>
    %96 = vector.extract_strided_slice %2 {offsets = [72, 0], sizes = [4, 128], strides = [1, 1]} : vector<100x128xf32> to vector<4x128xf32>
    %cst_23 = arith.constant dense<0.000000e+00> : vector<128x128xf32>
    %97 = tpu.matmul %95, %96, %cst_23 {dimension_numbers = #tpu.dot_dimension_numbers<[1], [0], [0], [1], [0, 0, 1, 1], [], []>} : vector<128x4xf32>, vector<4x128xf32>, vector<128x128xf32> -> vector<128x128xf32>
    %98 = arith.addf %93, %97 : vector<128x128xf32>
    %99 = vector.extract_strided_slice %1 {offsets = [3, 4, 0], sizes = [8, 16, 4], strides = [1, 1, 1]} : vector<12x20x4xf32> to vector<8x16x4xf32>
    %100 = vector.shape_cast %99 : vector<8x16x4xf32> to vector<128x4xf32>
    %101 = vector.extract_strided_slice %2 {offsets = [76, 0], sizes = [4, 128], strides = [1, 1]} : vector<100x128xf32> to vector<4x128xf32>
    %cst_24 = arith.constant dense<0.000000e+00> : vector<128x128xf32>
    %102 = tpu.matmul %100, %101, %cst_24 {dimension_numbers = #tpu.dot_dimension_numbers<[1], [0], [0], [1], [0, 0, 1, 1], [], []>} : vector<128x4xf32>, vector<4x128xf32>, vector<128x128xf32> -> vector<128x128xf32>
    %103 = arith.addf %98, %102 : vector<128x128xf32>
    %104 = vector.extract_strided_slice %1 {offsets = [4, 0, 0], sizes = [8, 16, 4], strides = [1, 1, 1]} : vector<12x20x4xf32> to vector<8x16x4xf32>
    %105 = vector.shape_cast %104 : vector<8x16x4xf32> to vector<128x4xf32>
    %106 = vector.extract_strided_slice %2 {offsets = [80, 0], sizes = [4, 128], strides = [1, 1]} : vector<100x128xf32> to vector<4x128xf32>
    %cst_25 = arith.constant dense<0.000000e+00> : vector<128x128xf32>
    %107 = tpu.matmul %105, %106, %cst_25 {dimension_numbers = #tpu.dot_dimension_numbers<[1], [0], [0], [1], [0, 0, 1, 1], [], []>} : vector<128x4xf32>, vector<4x128xf32>, vector<128x128xf32> -> vector<128x128xf32>
    %108 = arith.addf %103, %107 : vector<128x128xf32>
    %109 = vector.extract_strided_slice %1 {offsets = [4, 1, 0], sizes = [8, 16, 4], strides = [1, 1, 1]} : vector<12x20x4xf32> to vector<8x16x4xf32>
    %110 = vector.shape_cast %109 : vector<8x16x4xf32> to vector<128x4xf32>
    %111 = vector.extract_strided_slice %2 {offsets = [84, 0], sizes = [4, 128], strides = [1, 1]} : vector<100x128xf32> to vector<4x128xf32>
    %cst_26 = arith.constant dense<0.000000e+00> : vector<128x128xf32>
    %112 = tpu.matmul %110, %111, %cst_26 {dimension_numbers = #tpu.dot_dimension_numbers<[1], [0], [0], [1], [0, 0, 1, 1], [], []>} : vector<128x4xf32>, vector<4x128xf32>, vector<128x128xf32> -> vector<128x128xf32>
    %113 = arith.addf %108, %112 : vector<128x128xf32>
    %114 = vector.extract_strided_slice %1 {offsets = [4, 2, 0], sizes = [8, 16, 4], strides = [1, 1, 1]} : vector<12x20x4xf32> to vector<8x16x4xf32>
    %115 = vector.shape_cast %114 : vector<8x16x4xf32> to vector<128x4xf32>
    %116 = vector.extract_strided_slice %2 {offsets = [88, 0], sizes = [4, 128], strides = [1, 1]} : vector<100x128xf32> to vector<4x128xf32>
    %cst_27 = arith.constant dense<0.000000e+00> : vector<128x128xf32>
    %117 = tpu.matmul %115, %116, %cst_27 {dimension_numbers = #tpu.dot_dimension_numbers<[1], [0], [0], [1], [0, 0, 1, 1], [], []>} : vector<128x4xf32>, vector<4x128xf32>, vector<128x128xf32> -> vector<128x128xf32>
    %118 = arith.addf %113, %117 : vector<128x128xf32>
    %119 = vector.extract_strided_slice %1 {offsets = [4, 3, 0], sizes = [8, 16, 4], strides = [1, 1, 1]} : vector<12x20x4xf32> to vector<8x16x4xf32>
    %120 = vector.shape_cast %119 : vector<8x16x4xf32> to vector<128x4xf32>
    %121 = vector.extract_strided_slice %2 {offsets = [92, 0], sizes = [4, 128], strides = [1, 1]} : vector<100x128xf32> to vector<4x128xf32>
    %cst_28 = arith.constant dense<0.000000e+00> : vector<128x128xf32>
    %122 = tpu.matmul %120, %121, %cst_28 {dimension_numbers = #tpu.dot_dimension_numbers<[1], [0], [0], [1], [0, 0, 1, 1], [], []>} : vector<128x4xf32>, vector<4x128xf32>, vector<128x128xf32> -> vector<128x128xf32>
    %123 = arith.addf %118, %122 : vector<128x128xf32>
    %124 = vector.extract_strided_slice %1 {offsets = [4, 4, 0], sizes = [8, 16, 4], strides = [1, 1, 1]} : vector<12x20x4xf32> to vector<8x16x4xf32>
    %125 = vector.shape_cast %124 : vector<8x16x4xf32> to vector<128x4xf32>
    %126 = vector.extract_strided_slice %2 {offsets = [96, 0], sizes = [4, 128], strides = [1, 1]} : vector<100x128xf32> to vector<4x128xf32>
    %cst_29 = arith.constant dense<0.000000e+00> : vector<128x128xf32>
    %127 = tpu.matmul %125, %126, %cst_29 {dimension_numbers = #tpu.dot_dimension_numbers<[1], [0], [0], [1], [0, 0, 1, 1], [], []>} : vector<128x4xf32>, vector<4x128xf32>, vector<128x128xf32> -> vector<128x128xf32>
    %128 = arith.addf %123, %127 : vector<128x128xf32>
    %cst_30 = arith.constant 0.000000e+00 : f32
    %129 = vector.broadcast %cst_30 : f32 to vector<128x128xf32>
    %130 = arith.maximumf %128, %129 : vector<128x128xf32>
    %131 = vector.shape_cast %130 : vector<128x128xf32> to vector<1x8x16x128xf32>
    %c0_31 = arith.constant 0 : index
    %c0_32 = arith.constant 0 : index
    %c0_33 = arith.constant 0 : index
    %c0_34 = arith.constant 0 : index
    %132 = vector.load %arg4[%c0_31, %c0_32, %c0_33, %c0_34] : memref<1x8x16x128xf32, #tpu.memory_space<vmem>>, vector<1x8x16x128xf32>
    tpu.vector_store %arg4[%c0_31, %c0_32, %c0_33, %c0_34], %131 {strides = array<i32>} : memref<1x8x16x128xf32, #tpu.memory_space<vmem>>, vector<1x8x16x128xf32>,
    return
  }
  func.func @transform_0(%arg0: i32, %arg1: i32) -> (i32, i32, i32, i32) {
    %c2_i32 = arith.constant 2 : i32
    %0 = arith.muli %arg0, %c2_i32 : i32
    %1 = arith.addi %0, %arg1 : i32
    %c0_i32 = arith.constant 0 : i32
    %c0_i32_0 = arith.constant 0 : i32
    %c0_i32_1 = arith.constant 0 : i32
    %c0_i32_2 = arith.constant 0 : i32
    return %1, %c0_i32, %c0_i32_0, %c0_i32_1 : i32, i32, i32, i32
  }
  func.func @transform_1(%arg0: i32, %arg1: i32) -> (i32, i32) {
    %c0_i32 = arith.constant 0 : i32
    %c0_i32_0 = arith.constant 0 : i32
    %c0_i32_1 = arith.constant 0 : i32
    return %c0_i32, %c0_i32_0 : i32, i32
  }
  func.func @transform_2(%arg0: i32, %arg1: i32) -> (i32, i32, i32, i32) {
    %c0_i32 = arith.constant 0 : i32
    %c0_i32_0 = arith.constant 0 : i32
    %c0_i32_1 = arith.constant 0 : i32
    return %arg0, %arg1, %c0_i32, %c0_i32_0 : i32, i32, i32, i32
  }
}

</mosaic_0001>

<llo_original>
// kernel: tpu_custom_call.1
$region0: #{tpu_custom_call.1}
  #allocation0 [shape = 'u32[]', space=smem, size = 0x4, offset = 0x4, fixed_abs, tag = 'smem constant byte address 0x4 - core index']
  #allocation1 [shape = 'u32[144,128]{1,0:T(1,128)}', space=vmem, size = 0x12000, scoped, tag = 'internal scratch']
  %s0 = inlined_call_operand.vmem [shape: f32[4,12,20,4], index: 0, kind: input, shape index: {}]
  %s1 = inlined_call_operand.vmem [shape: f32[100,128], index: 1, kind: input, shape index: {}]
  %s2 = inlined_call_operand.hbm [shape: f32[2,16,16,128], index: 2, kind: output, shape index: {}]
  %s3 = sld [smem:[#allocation0]]
  $region41: #{tpu_custom_call.1} parent=0
    _
  %s5 = ssub.s32 1, %s3
  %s6 = scalar_select 0, %s5, %s3
  $region1: #{tpu_custom_call.1} parent=0
    #allocation2 [shape = 'u8[131072]{0}', space=vmem, size = 0x20000, scoped, tag = 'output window, operand 0']
    #allocation3 [shape = 's32[2]{0}', space=sflag, size = 0x8, scoped, tag = 'scoped memory for tpu_custom_call.1']
    %7 = vsyncpa [#allocation3], 0
    %s8 = scalar_lea.sflag [#allocation3], 1
    %9 = vsyncpa %s8, 0
    loop: start=0, step=1, limit=6
    $region2: #{tpu_custom_call.1} parent=1 // loop_pre_header
      _
    $region3: #{tpu_custom_call.1} parent=1 // loop_header
      %s11 = sphi 0, %s15
      %p12 = scmp.ge.s32.totalorder %s11, 6
      %s18 = sphi 0, %s30
      %s19 = sphi 0, %s26
      %s20 = sphi 0, %s18
      %s21 = sphi 0, %s19
      %s22 = sphi 0, %s20
      %s23 = sphi 0, %s21
      %s37 = sphi 0, %s39
      %s40 = sphi 0, %s37
      %s41 = sphi 0, %s40
      %s57 = sphi 0, %s41
      %s61 = sphi 0, %s61
      %s63 = sphi 0, %s61
      %s64 = sphi 0, %s63
      %s78 = sphi 0, %s64
      %s86 = sphi 0, %s88
      %s89 = sphi 0, %s86
      %s90 = sphi 0, %s89
      %s106 = sphi 0, %s90
    $region4: #{tpu_custom_call.1} parent=1 // loop_header_branch
      %14 = sbr.rel (%p12) target = $region8
    $region5: #{tpu_custom_call.1} parent=1 // loop_body
      %s16 = ssub.s32 %s11, 1
      %s17 = ssub.s32 %s11, 2
      %s24 = sadd.s32 1, %s19
      %p25 = scmp.ge.s32.totalorder %s24, 2
      %s26 = scalar_select %p25, 0, %s24
      %s27 = sadd.s32 1, %s18
      %s28 = scalar_select %p25, %s27, %s18
      %p29 = scmp.ge.s32.totalorder %s28, 2
      %s30 = scalar_select %p29, 0, %s28
      %s31 = smul.u32 %s18, 2
      %s32 = sadd.s32 %s31, %s19
      %s33 = smul.u32 %s30, 2
      %s34 = sadd.s32 %s33, %s26
      %s35 = ssub.s32 %s32, %s34
      %p36 = scmp.eq.s32.totalorder %s35, 0
      %s38 = sadd.s32 %s37, 1
      %s39 = scalar_select %p36, %s37, %s38
      %p42 = pneg %p36
      %p43 = scmp.eq.s32.totalorder %s11, 3
      %p44 = por %p42, %p43
      %p45 = scmp.ne.s32.totalorder %s37, %s40
      %p46 = scmp.eq.s32.totalorder %s11, 0
      %p47 = por %p45, %p46
      %p48 = scmp.ne.s32.totalorder %s37, %s40
      %p49 = scmp.eq.s32.totalorder %s16, 3
      %p50 = por %p48, %p49
      %p51 = scmp.ne.s32.totalorder %s40, %s41
      %p52 = scmp.eq.s32.totalorder %s16, 0
      %p53 = por %p51, %p52
      %p54 = scmp.ne.s32.totalorder %s40, %s41
      %p55 = scmp.eq.s32.totalorder %s17, 3
      %p56 = por %p54, %p55
      %p58 = scmp.ne.s32.totalorder %s41, %s57
      %p59 = scmp.eq.s32.totalorder %s17, 0
      %p60 = por %p58, %p59
      %s62 = sadd.s32 %s61, 1
      %p65 = scmp.eq.s32.totalorder %s11, 3
      %p66 = scmp.ne.s32.totalorder %s61, %s63
      %p67 = scmp.eq.s32.totalorder %s11, 0
      %p68 = por %p66, %p67
      %p69 = scmp.ne.s32.totalorder %s61, %s63
      %p70 = scmp.eq.s32.totalorder %s16, 3
      %p71 = por %p69, %p70
      %p72 = scmp.ne.s32.totalorder %s63, %s64
      %p73 = scmp.eq.s32.totalorder %s16, 0
      %p74 = por %p72, %p73
      %p75 = scmp.ne.s32.totalorder %s63, %s64
      %p76 = scmp.eq.s32.totalorder %s17, 3
      %p77 = por %p75, %p76
      %p79 = scmp.ne.s32.totalorder %s64, %s78
      %p80 = scmp.eq.s32.totalorder %s17, 0
      %p81 = por %p79, %p80
      %s82 = ssub.s32 %s18, %s30
      %s83 = ssub.s32 %s19, %s26
      %s84 = sor.u32 %s82, %s83
      %p85 = scmp.eq.s32.totalorder %s84, 0
      %s87 = sadd.s32 %s86, 1
      %s88 = scalar_select %p85, %s86, %s87
      %p91 = pneg %p85
      %p92 = scmp.eq.s32.totalorder %s11, 3
      %p93 = por %p91, %p92
      %p94 = scmp.ne.s32.totalorder %s86, %s89
      %p95 = scmp.eq.s32.totalorder %s11, 0
      %p96 = por %p94, %p95
      %p97 = scmp.ne.s32.totalorder %s86, %s89
      %p98 = scmp.eq.s32.totalorder %s16, 3
      %p99 = por %p97, %p98
      %p100 = scmp.ne.s32.totalorder %s89, %s90
      %p101 = scmp.eq.s32.totalorder %s16, 0
      %p102 = por %p100, %p101
      %p103 = scmp.ne.s32.totalorder %s89, %s90
      %p104 = scmp.eq.s32.totalorder %s17, 3
      %p105 = por %p103, %p104
      %p107 = scmp.ne.s32.totalorder %s90, %s106
      %p108 = scmp.eq.s32.totalorder %s17, 0
      %p109 = por %p107, %p108
      %p110 = scmp.le.s32.totalorder 1, %s11
      %p111 = scmp.lt.s32.totalorder %s11, 5
      %p112 = pnand %p110, %p111
      %p113 = pneg %p112
      // Predicated region
      $region9: #{tpu_custom_call.1} parent=5 // pred_check
        _
      $region10: #{tpu_custom_call.1} parent=5 // pred_check_branch
        %115 = sbr.rel (%p112) target = $region12
      $region11: #{tpu_custom_call.1} parent=5 // pred_region
        %s116 = ssub.s32 %s11, 1
        // Predicated region
        $region13: #{tpu_custom_call.1} parent=11 // pred_check
          %p117 = pneg %p74
        $region14: #{tpu_custom_call.1} parent=11 // pred_check_branch
          %119 = sbr.rel (%p117) target = $region16
        $region15: #{tpu_custom_call.1} parent=11 // pred_region
          _
        $region16: #{tpu_custom_call.1} parent=11 // pred_fallthru
          _
      $region12: #{tpu_custom_call.1} parent=5 // pred_fallthru
        _
      %p120 = scmp.lt.s32.totalorder %s11, 4
      // Predicated region
      $region17: #{tpu_custom_call.1} parent=5 // pred_check
        %p121 = pneg %p120
      $region18: #{tpu_custom_call.1} parent=5 // pred_check_branch
        %123 = sbr.rel (%p121) target = $region20
      $region19: #{tpu_custom_call.1} parent=5 // pred_region
        // Predicated region
        $region21: #{tpu_custom_call.1} parent=19 // pred_check
          %p124 = pneg %p47
        $region22: #{tpu_custom_call.1} parent=19 // pred_check_branch
          %126 = sbr.rel (%p124) target = $region24
        $region23: #{tpu_custom_call.1} parent=19 // pred_region
          %s127 = smul.u32 %s18, 2
          %s128 = sadd.s32 %s127, %s19
          %p129 = scmp.lt.s32.totalorder %s128, 3
          %s130 = scalar_select %p129, %s128, 3
          %s131 = smul.addr %s130, 36
          %s132 = smul.addr %s131, 8
          %s133 = scalar_lea.vmem %s0, %s132
          %s134 = smul.u32 %s18, 2
          %s135 = sadd.s32 %s134, %s19
        $region24: #{tpu_custom_call.1} parent=19 // pred_fallthru
          _
      $region20: #{tpu_custom_call.1} parent=5 // pred_fallthru
        _
      %p136 = scmp.le.s32.totalorder 1, %s11
      %p137 = scmp.lt.s32.totalorder %s11, 5
      %p138 = pnand %p136, %p137
      %p139 = pneg %p138
      // Predicated region
      $region25: #{tpu_custom_call.1} parent=5 // pred_check
        _
      $region26: #{tpu_custom_call.1} parent=5 // pred_check_branch
        %141 = sbr.rel (%p138) target = $region28
      $region27: #{tpu_custom_call.1} parent=5 // pred_region
        %s142 = ssub.s32 %s11, 1
        %s143 = smul.u32 %s20, 2
        %s144 = sadd.s32 %s143, %s21
        %p145 = scmp.lt.s32.totalorder %s144, 3
        %s146 = scalar_select %p145, %s144, 3
        %s147 = smul.addr %s146, 36
        %s148 = smul.addr %s147, 8
        %s149 = scalar_lea.vmem %s0, %s148
        %p150 = pneg %p53
        %p151 = pneg %p50
        %p152 = pneg %p74
        %p153 = pneg %p71
        %p154 = pneg %p102
        %p155 = pneg %p99
        %s156 = sand.u32 %s89, 1
        %s157 = scalar_lea.sflag [#allocation3], %s156
        %s158 = sand.u32 %s89, 1
        %s159 = smul.addr %s158, 128
        %s160 = scalar_lea.vmem [#allocation2], %s159
        %s161 = smul.u32 %s20, 2
        %s162 = sadd.s32 %s161, %s21
        %p163 = scmp.lt.s32.totalorder %s162, 3
        %s164 = scalar_select %p163, %s162, 3
        %s165 = smul.addr %s164, 36
        %s166 = smul.addr %s165, 8
        %s167 = scalar_lea.vmem %s0, %s166
        %s168 = smul.u32 %s20, 2
        %s169 = sadd.s32 %s168, %s21
        %s170 = smul.u32 8, %s21
        %v171 = vld [vmem:[%s167] sm:$0xff]
        %v172 = vld [vmem:[%s167 + $0x8] sm:$0xff]
        %v173 = vld [vmem:[%s167 + $0x10] sm:$0xf]
        %v174 = vld [vmem:[%s167 + $0x18] sm:$0xff]
        %v175 = vld [vmem:[%s167 + $0x20] sm:$0xff]
        %v176 = vld [vmem:[%s167 + $0x28] sm:$0xf]
        %v177 = vld [vmem:[%s167 + $0x30] sm:$0xff]
        %v178 = vld [vmem:[%s167 + $0x38] sm:$0xff]
        %v179 = vld [vmem:[%s167 + $0x40] sm:$0xf]
        %v180 = vld [vmem:[%s167 + $0x48] sm:$0xff]
        %v181 = vld [vmem:[%s167 + $0x50] sm:$0xff]
        %v182 = vld [vmem:[%s167 + $0x58] sm:$0xf]
        %v183 = vld [vmem:[%s167 + $0x60] sm:$0xff]
        %v184 = vld [vmem:[%s167 + $0x68] sm:$0xff]
        %v185 = vld [vmem:[%s167 + $0x70] sm:$0xf]
        %v186 = vld [vmem:[%s167 + $0x78] sm:$0xff]
        %v187 = vld [vmem:[%s167 + $0x80] sm:$0xff]
        %v188 = vld [vmem:[%s167 + $0x88] sm:$0xf]
        %v189 = vld [vmem:[%s167 + $0x90] sm:$0xff]
        %v190 = vld [vmem:[%s167 + $0x98] sm:$0xff]
        %v191 = vld [vmem:[%s167 + $0xa0] sm:$0xf]
        %v192 = vld [vmem:[%s167 + $0xa8] sm:$0xff]
        %v193 = vld [vmem:[%s167 + $0xb0] sm:$0xff]
        %v194 = vld [vmem:[%s167 + $0xb8] sm:$0xf]
        %v195 = vld [vmem:[%s167 + $0xc0] sm:$0xff]
        %v196 = vld [vmem:[%s167 + $0xc8] sm:$0xff]
        %v197 = vld [vmem:[%s167 + $0xd0] sm:$0xf]
        %v198 = vld [vmem:[%s167 + $0xd8] sm:$0xff]
        %v199 = vld [vmem:[%s167 + $0xe0] sm:$0xff]
        %v200 = vld [vmem:[%s167 + $0xe8] sm:$0xf]
        %v201 = vld [vmem:[%s167 + $0xf0] sm:$0xff]
        %v202 = vld [vmem:[%s167 + $0xf8] sm:$0xff]
        %v203 = vld [vmem:[%s167 + $0x100] sm:$0xf]
        %v204 = vld [vmem:[%s167 + $0x108] sm:$0xff]
        %v205 = vld [vmem:[%s167 + $0x110] sm:$0xff]
        %v206 = vld [vmem:[%s167 + $0x118] sm:$0xf]
        %v207 = vld [vmem:[%s1] sm:$0xff]
        %v208 = vld [vmem:[%s1 + $0x8] sm:$0xff]
        %v209 = vld [vmem:[%s1 + $0x10] sm:$0xff]
        %v210 = vld [vmem:[%s1 + $0x18] sm:$0xff]
        %v211 = vld [vmem:[%s1 + $0x20] sm:$0xff]
        %v212 = vld [vmem:[%s1 + $0x28] sm:$0xff]
        %v213 = vld [vmem:[%s1 + $0x30] sm:$0xff]
        %v214 = vld [vmem:[%s1 + $0x38] sm:$0xff]
        %v215 = vld [vmem:[%s1 + $0x40] sm:$0xff]
        %v216 = vld [vmem:[%s1 + $0x48] sm:$0xff]
        %v217 = vld [vmem:[%s1 + $0x50] sm:$0xff]
        %v218 = vld [vmem:[%s1 + $0x58] sm:$0xff]
        %v219 = vld [vmem:[%s1 + $0x60] sm:$0xf]
        %vm244 = vcmask 1046528
        %v245 = vrot.slane %v171, 1
        %v246 = vrot.slane %v172, 1
        %v247 = vsel %vm244, %v245, %v246
        %v248 = vrot.slane %v173, 1
        %v249 = vsel %vm244, %v246, %v248
        %v250 = vrot.slane %v174, 1
        %v251 = vrot.slane %v175, 1
        %v252 = vsel %vm244, %v250, %v251
        %v253 = vrot.slane %v176, 1
        %v254 = vsel %vm244, %v251, %v253
        %v255 = vrot.slane %v177, 1
        %v256 = vrot.slane %v178, 1
        %v257 = vsel %vm244, %v255, %v256
        %v258 = vrot.slane %v179, 1
        %v259 = vsel %vm244, %v256, %v258
        %v260 = vrot.slane %v180, 1
        %v261 = vrot.slane %v181, 1
        %v262 = vsel %vm244, %v260, %v261
        %v263 = vrot.slane %v182, 1
        %v264 = vsel %vm244, %v261, %v263
        %v265 = vrot.slane %v183, 1
        %v266 = vrot.slane %v184, 1
        %v267 = vsel %vm244, %v265, %v266
        %v268 = vrot.slane %v185, 1
        %v269 = vsel %vm244, %v266, %v268
        %v270 = vrot.slane %v186, 1
        %v271 = vrot.slane %v187, 1
        %v272 = vsel %vm244, %v270, %v271
        %v273 = vrot.slane %v188, 1
        %v274 = vsel %vm244, %v271, %v273
        %v275 = vrot.slane %v189, 1
        %v276 = vrot.slane %v190, 1
        %v277 = vsel %vm244, %v275, %v276
        %v278 = vrot.slane %v191, 1
        %v279 = vsel %vm244, %v276, %v278
        %v280 = vrot.slane %v192, 1
        %v281 = vrot.slane %v193, 1
        %v282 = vsel %vm244, %v280, %v281
        %v283 = vrot.slane %v194, 1
        %v284 = vsel %vm244, %v281, %v283
        %285 = vrot.lane.b32.xlu0 %v247, 4
        %v286 = vpop.permute.xlu0 %285
        %287 = vrot.lane.b32.xlu0 %v249, 4
        %v288 = vpop.permute.xlu0 %287
        %289 = vrot.lane.b32.xlu0 %v252, 4
        %v290 = vpop.permute.xlu0 %289
        %291 = vrot.lane.b32.xlu0 %v254, 4
        %v292 = vpop.permute.xlu0 %291
        %293 = vrot.lane.b32.xlu0 %v257, 4
        %v294 = vpop.permute.xlu0 %293
        %295 = vrot.lane.b32.xlu0 %v259, 4
        %v296 = vpop.permute.xlu0 %295
        %297 = vrot.lane.b32.xlu0 %v262, 4
        %v298 = vpop.permute.xlu0 %297
        %299 = vrot.lane.b32.xlu0 %v264, 4
        %v300 = vpop.permute.xlu0 %299
        %301 = vrot.lane.b32.xlu0 %v267, 4
        %v302 = vpop.permute.xlu0 %301
        %303 = vrot.lane.b32.xlu0 %v269, 4
        %v304 = vpop.permute.xlu0 %303
        %305 = vrot.lane.b32.xlu0 %v272, 4
        %v306 = vpop.permute.xlu0 %305
        %307 = vrot.lane.b32.xlu0 %v274, 4
        %v308 = vpop.permute.xlu0 %307
        %309 = vrot.lane.b32.xlu0 %v277, 4
        %v310 = vpop.permute.xlu0 %309
        %311 = vrot.lane.b32.xlu0 %v279, 4
        %v312 = vpop.permute.xlu0 %311
        %313 = vrot.lane.b32.xlu0 %v282, 4
        %v314 = vpop.permute.xlu0 %313
        %315 = vrot.lane.b32.xlu0 %v284, 4
        %v316 = vpop.permute.xlu0 %315
        %vm333 = vcmask 1045504
        %v334 = vrot.slane %v171, 2
        %v335 = vrot.slane %v172, 2
        %v336 = vsel %vm333, %v334, %v335
        %v337 = vrot.slane %v173, 2
        %v338 = vsel %vm333, %v335, %v337
        %v339 = vrot.slane %v174, 2
        %v340 = vrot.slane %v175, 2
        %v341 = vsel %vm333, %v339, %v340
        %v342 = vrot.slane %v176, 2
        %v343 = vsel %vm333, %v340, %v342
        %v344 = vrot.slane %v177, 2
        %v345 = vrot.slane %v178, 2
        %v346 = vsel %vm333, %v344, %v345
        %v347 = vrot.slane %v179, 2
        %v348 = vsel %vm333, %v345, %v347
        %v349 = vrot.slane %v180, 2
        %v350 = vrot.slane %v181, 2
        %v351 = vsel %vm333, %v349, %v350
        %v352 = vrot.slane %v182, 2
        %v353 = vsel %vm333, %v350, %v352
        %v354 = vrot.slane %v183, 2
        %v355 = vrot.slane %v184, 2
        %v356 = vsel %vm333, %v354, %v355
        %v357 = vrot.slane %v185, 2
        %v358 = vsel %vm333, %v355, %v357
        %v359 = vrot.slane %v186, 2
        %v360 = vrot.slane %v187, 2
        %v361 = vsel %vm333, %v359, %v360
        %v362 = vrot.slane %v188, 2
        %v363 = vsel %vm333, %v360, %v362
        %v364 = vrot.slane %v189, 2
        %v365 = vrot.slane %v190, 2
        %v366 = vsel %vm333, %v364, %v365
        %v367 = vrot.slane %v191, 2
        %v368 = vsel %vm333, %v365, %v367
        %v369 = vrot.slane %v192, 2
        %v370 = vrot.slane %v193, 2
        %v371 = vsel %vm333, %v369, %v370
        %v372 = vrot.slane %v194, 2
        %v373 = vsel %vm333, %v370, %v372
        %374 = vrot.lane.b32.xlu0 %v336, 8
        %v375 = vpop.permute.xlu0 %374
        %376 = vrot.lane.b32.xlu0 %v338, 8
        %v377 = vpop.permute.xlu0 %376
        %378 = vrot.lane.b32.xlu0 %v341, 8
        %v379 = vpop.permute.xlu0 %378
        %380 = vrot.lane.b32.xlu0 %v343, 8
        %v381 = vpop.permute.xlu0 %380
        %382 = vrot.lane.b32.xlu0 %v346, 8
        %v383 = vpop.permute.xlu0 %382
        %384 = vrot.lane.b32.xlu0 %v348, 8
        %v385 = vpop.permute.xlu0 %384
        %386 = vrot.lane.b32.xlu0 %v351, 8
        %v387 = vpop.permute.xlu0 %386
        %388 = vrot.lane.b32.xlu0 %v353, 8
        %v389 = vpop.permute.xlu0 %388
        %390 = vrot.lane.b32.xlu0 %v356, 8
        %v391 = vpop.permute.xlu0 %390
        %392 = vrot.lane.b32.xlu0 %v358, 8
        %v393 = vpop.permute.xlu0 %392
        %394 = vrot.lane.b32.xlu0 %v361, 8
        %v395 = vpop.permute.xlu0 %394
        %396 = vrot.lane.b32.xlu0 %v363, 8
        %v397 = vpop.permute.xlu0 %396
        %398 = vrot.lane.b32.xlu0 %v366, 8
        %v399 = vpop.permute.xlu0 %398
        %400 = vrot.lane.b32.xlu0 %v368, 8
        %v401 = vpop.permute.xlu0 %400
        %402 = vrot.lane.b32.xlu0 %v371, 8
        %v403 = vpop.permute.xlu0 %402
        %404 = vrot.lane.b32.xlu0 %v373, 8
        %v405 = vpop.permute.xlu0 %404
        %vm422 = vcmask 1044480
        %v423 = vrot.slane %v171, 3
        %v424 = vrot.slane %v172, 3
        %v425 = vsel %vm422, %v423, %v424
        %v426 = vrot.slane %v173, 3
        %v427 = vsel %vm422, %v424, %v426
        %v428 = vrot.slane %v174, 3
        %v429 = vrot.slane %v175, 3
        %v430 = vsel %vm422, %v428, %v429
        %v431 = vrot.slane %v176, 3
        %v432 = vsel %vm422, %v429, %v431
        %v433 = vrot.slane %v177, 3
        %v434 = vrot.slane %v178, 3
        %v435 = vsel %vm422, %v433, %v434
        %v436 = vrot.slane %v179, 3
        %v437 = vsel %vm422, %v434, %v436
        %v438 = vrot.slane %v180, 3
        %v439 = vrot.slane %v181, 3
        %v440 = vsel %vm422, %v438, %v439
        %v441 = vrot.slane %v182, 3
        %v442 = vsel %vm422, %v439, %v441
        %v443 = vrot.slane %v183, 3
        %v444 = vrot.slane %v184, 3
        %v445 = vsel %vm422, %v443, %v444
        %v446 = vrot.slane %v185, 3
        %v447 = vsel %vm422, %v444, %v446
        %v448 = vrot.slane %v186, 3
        %v449 = vrot.slane %v187, 3
        %v450 = vsel %vm422, %v448, %v449
        %v451 = vrot.slane %v188, 3
        %v452 = vsel %vm422, %v449, %v451
        %v453 = vrot.slane %v189, 3
        %v454 = vrot.slane %v190, 3
        %v455 = vsel %vm422, %v453, %v454
        %v456 = vrot.slane %v191, 3
        %v457 = vsel %vm422, %v454, %v456
        %v458 = vrot.slane %v192, 3
        %v459 = vrot.slane %v193, 3
        %v460 = vsel %vm422, %v458, %v459
        %v461 = vrot.slane %v194, 3
        %v462 = vsel %vm422, %v459, %v461
        %463 = vrot.lane.b32.xlu0 %v425, 12
        %v464 = vpop.permute.xlu0 %463
        %465 = vrot.lane.b32.xlu0 %v427, 12
        %v466 = vpop.permute.xlu0 %465
        %467 = vrot.lane.b32.xlu0 %v430, 12
        %v468 = vpop.permute.xlu0 %467
        %469 = vrot.lane.b32.xlu0 %v432, 12
        %v470 = vpop.permute.xlu0 %469
        %471 = vrot.lane.b32.xlu0 %v435, 12
        %v472 = vpop.permute.xlu0 %471
        %473 = vrot.lane.b32.xlu0 %v437, 12
        %v474 = vpop.permute.xlu0 %473
        %475 = vrot.lane.b32.xlu0 %v440, 12
        %v476 = vpop.permute.xlu0 %475
        %477 = vrot.lane.b32.xlu0 %v442, 12
        %v478 = vpop.permute.xlu0 %477
        %479 = vrot.lane.b32.xlu0 %v445, 12
        %v480 = vpop.permute.xlu0 %479
        %481 = vrot.lane.b32.xlu0 %v447, 12
        %v482 = vpop.permute.xlu0 %481
        %483 = vrot.lane.b32.xlu0 %v450, 12
        %v484 = vpop.permute.xlu0 %483
        %485 = vrot.lane.b32.xlu0 %v452, 12
        %v486 = vpop.permute.xlu0 %485
        %487 = vrot.lane.b32.xlu0 %v455, 12
        %v488 = vpop.permute.xlu0 %487
        %489 = vrot.lane.b32.xlu0 %v457, 12
        %v490 = vpop.permute.xlu0 %489
        %491 = vrot.lane.b32.xlu0 %v460, 12
        %v492 = vpop.permute.xlu0 %491
        %493 = vrot.lane.b32.xlu0 %v462, 12
        %v494 = vpop.permute.xlu0 %493
        %vm511 = vcmask 1043456
        %v512 = vrot.slane %v171, 4
        %v513 = vrot.slane %v172, 4
        %v514 = vsel %vm511, %v512, %v513
        %v515 = vrot.slane %v173, 4
        %v516 = vsel %vm511, %v513, %v515
        %v517 = vrot.slane %v174, 4
        %v518 = vrot.slane %v175, 4
        %v519 = vsel %vm511, %v517, %v518
        %v520 = vrot.slane %v176, 4
        %v521 = vsel %vm511, %v518, %v520
        %v522 = vrot.slane %v177, 4
        %v523 = vrot.slane %v178, 4
        %v524 = vsel %vm511, %v522, %v523
        %v525 = vrot.slane %v179, 4
        %v526 = vsel %vm511, %v523, %v525
        %v527 = vrot.slane %v180, 4
        %v528 = vrot.slane %v181, 4
        %v529 = vsel %vm511, %v527, %v528
        %v530 = vrot.slane %v182, 4
        %v531 = vsel %vm511, %v528, %v530
        %v532 = vrot.slane %v183, 4
        %v533 = vrot.slane %v184, 4
        %v534 = vsel %vm511, %v532, %v533
        %v535 = vrot.slane %v185, 4
        %v536 = vsel %vm511, %v533, %v535
        %v537 = vrot.slane %v186, 4
        %v538 = vrot.slane %v187, 4
        %v539 = vsel %vm511, %v537, %v538
        %v540 = vrot.slane %v188, 4
        %v541 = vsel %vm511, %v538, %v540
        %v542 = vrot.slane %v189, 4
        %v543 = vrot.slane %v190, 4
        %v544 = vsel %vm511, %v542, %v543
        %v545 = vrot.slane %v191, 4
        %v546 = vsel %vm511, %v543, %v545
        %v547 = vrot.slane %v192, 4
        %v548 = vrot.slane %v193, 4
        %v549 = vsel %vm511, %v547, %v548
        %v550 = vrot.slane %v194, 4
        %v551 = vsel %vm511, %v548, %v550
        %552 = vrot.lane.b32.xlu0 %v514, 16
        %v553 = vpop.permute.xlu0 %552
        %554 = vrot.lane.b32.xlu0 %v516, 16
        %v555 = vpop.permute.xlu0 %554
        %556 = vrot.lane.b32.xlu0 %v519, 16
        %v557 = vpop.permute.xlu0 %556
        %558 = vrot.lane.b32.xlu0 %v521, 16
        %v559 = vpop.permute.xlu0 %558
        %560 = vrot.lane.b32.xlu0 %v524, 16
        %v561 = vpop.permute.xlu0 %560
        %562 = vrot.lane.b32.xlu0 %v526, 16
        %v563 = vpop.permute.xlu0 %562
        %564 = vrot.lane.b32.xlu0 %v529, 16
        %v565 = vpop.permute.xlu0 %564
        %566 = vrot.lane.b32.xlu0 %v531, 16
        %v567 = vpop.permute.xlu0 %566
        %568 = vrot.lane.b32.xlu0 %v534, 16
        %v569 = vpop.permute.xlu0 %568
        %570 = vrot.lane.b32.xlu0 %v536, 16
        %v571 = vpop.permute.xlu0 %570
        %572 = vrot.lane.b32.xlu0 %v539, 16
        %v573 = vpop.permute.xlu0 %572
        %574 = vrot.lane.b32.xlu0 %v541, 16
        %v575 = vpop.permute.xlu0 %574
        %576 = vrot.lane.b32.xlu0 %v544, 16
        %v577 = vpop.permute.xlu0 %576
        %578 = vrot.lane.b32.xlu0 %v546, 16
        %v579 = vpop.permute.xlu0 %578
        %580 = vrot.lane.b32.xlu0 %v549, 16
        %v581 = vpop.permute.xlu0 %580
        %582 = vrot.lane.b32.xlu0 %v551, 16
        %v583 = vpop.permute.xlu0 %582
        %602 = vrot.lane.b32.xlu0 %v174, 20
        %v603 = vpop.permute.xlu0 %602
        %604 = vrot.lane.b32.xlu0 %v175, 20
        %v605 = vpop.permute.xlu0 %604
        %606 = vrot.lane.b32.xlu0 %v177, 20
        %v607 = vpop.permute.xlu0 %606
        %608 = vrot.lane.b32.xlu0 %v178, 20
        %v609 = vpop.permute.xlu0 %608
        %610 = vrot.lane.b32.xlu0 %v180, 20
        %v611 = vpop.permute.xlu0 %610
        %612 = vrot.lane.b32.xlu0 %v181, 20
        %v613 = vpop.permute.xlu0 %612
        %614 = vrot.lane.b32.xlu0 %v183, 20
        %v615 = vpop.permute.xlu0 %614
        %616 = vrot.lane.b32.xlu0 %v184, 20
        %v617 = vpop.permute.xlu0 %616
        %618 = vrot.lane.b32.xlu0 %v186, 20
        %v619 = vpop.permute.xlu0 %618
        %620 = vrot.lane.b32.xlu0 %v187, 20
        %v621 = vpop.permute.xlu0 %620
        %622 = vrot.lane.b32.xlu0 %v189, 20
        %v623 = vpop.permute.xlu0 %622
        %624 = vrot.lane.b32.xlu0 %v190, 20
        %v625 = vpop.permute.xlu0 %624
        %626 = vrot.lane.b32.xlu0 %v192, 20
        %v627 = vpop.permute.xlu0 %626
        %628 = vrot.lane.b32.xlu0 %v193, 20
        %v629 = vpop.permute.xlu0 %628
        %630 = vrot.lane.b32.xlu0 %v195, 20
        %v631 = vpop.permute.xlu0 %630
        %632 = vrot.lane.b32.xlu0 %v196, 20
        %v633 = vpop.permute.xlu0 %632
        %v651 = vrot.slane %v195, 1
        %v652 = vrot.slane %v196, 1
        %v653 = vsel %vm244, %v651, %v652
        %v654 = vrot.slane %v197, 1
        %v655 = vsel %vm244, %v652, %v654
        %656 = vrot.lane.b32.xlu0 %v252, 24
        %v657 = vpop.permute.xlu0 %656
        %658 = vrot.lane.b32.xlu0 %v254, 24
        %v659 = vpop.permute.xlu0 %658
        %660 = vrot.lane.b32.xlu0 %v257, 24
        %v661 = vpop.permute.xlu0 %660
        %662 = vrot.lane.b32.xlu0 %v259, 24
        %v663 = vpop.permute.xlu0 %662
        %664 = vrot.lane.b32.xlu0 %v262, 24
        %v665 = vpop.permute.xlu0 %664
        %666 = vrot.lane.b32.xlu0 %v264, 24
        %v667 = vpop.permute.xlu0 %666
        %668 = vrot.lane.b32.xlu0 %v267, 24
        %v669 = vpop.permute.xlu0 %668
        %670 = vrot.lane.b32.xlu0 %v269, 24
        %v671 = vpop.permute.xlu0 %670
        %672 = vrot.lane.b32.xlu0 %v272, 24
        %v673 = vpop.permute.xlu0 %672
        %674 = vrot.lane.b32.xlu0 %v274, 24
        %v675 = vpop.permute.xlu0 %674
        %676 = vrot.lane.b32.xlu0 %v277, 24
        %v677 = vpop.permute.xlu0 %676
        %678 = vrot.lane.b32.xlu0 %v279, 24
        %v679 = vpop.permute.xlu0 %678
        %680 = vrot.lane.b32.xlu0 %v282, 24
        %v681 = vpop.permute.xlu0 %680
        %682 = vrot.lane.b32.xlu0 %v284, 24
        %v683 = vpop.permute.xlu0 %682
        %684 = vrot.lane.b32.xlu0 %v653, 24
        %v685 = vpop.permute.xlu0 %684
        %686 = vrot.lane.b32.xlu0 %v655, 24
        %v687 = vpop.permute.xlu0 %686
        %v704 = vrot.slane %v195, 2
        %v705 = vrot.slane %v196, 2
        %v706 = vsel %vm333, %v704, %v705
        %v707 = vrot.slane %v197, 2
        %v708 = vsel %vm333, %v705, %v707
        %709 = vrot.lane.b32.xlu0 %v341, 28
        %v710 = vpop.permute.xlu0 %709
        %711 = vrot.lane.b32.xlu0 %v343, 28
        %v712 = vpop.permute.xlu0 %711
        %713 = vrot.lane.b32.xlu0 %v346, 28
        %v714 = vpop.permute.xlu0 %713
        %715 = vrot.lane.b32.xlu0 %v348, 28
        %v716 = vpop.permute.xlu0 %715
        %717 = vrot.lane.b32.xlu0 %v351, 28
        %v718 = vpop.permute.xlu0 %717
        %719 = vrot.lane.b32.xlu0 %v353, 28
        %v720 = vpop.permute.xlu0 %719
        %721 = vrot.lane.b32.xlu0 %v356, 28
        %v722 = vpop.permute.xlu0 %721
        %723 = vrot.lane.b32.xlu0 %v358, 28
        %v724 = vpop.permute.xlu0 %723
        %725 = vrot.lane.b32.xlu0 %v361, 28
        %v726 = vpop.permute.xlu0 %725
        %727 = vrot.lane.b32.xlu0 %v363, 28
        %v728 = vpop.permute.xlu0 %727
        %729 = vrot.lane.b32.xlu0 %v366, 28
        %v730 = vpop.permute.xlu0 %729
        %731 = vrot.lane.b32.xlu0 %v368, 28
        %v732 = vpop.permute.xlu0 %731
        %733 = vrot.lane.b32.xlu0 %v371, 28
        %v734 = vpop.permute.xlu0 %733
        %735 = vrot.lane.b32.xlu0 %v373, 28
        %v736 = vpop.permute.xlu0 %735
        %737 = vrot.lane.b32.xlu0 %v706, 28
        %v738 = vpop.permute.xlu0 %737
        %739 = vrot.lane.b32.xlu0 %v708, 28
        %v740 = vpop.permute.xlu0 %739
        %v757 = vrot.slane %v195, 3
        %v758 = vrot.slane %v196, 3
        %v759 = vsel %vm422, %v757, %v758
        %v760 = vrot.slane %v197, 3
        %v761 = vsel %vm422, %v758, %v760
        %762 = vrot.lane.b32.xlu0 %v430, 32
        %v763 = vpop.permute.xlu0 %762
        %764 = vrot.lane.b32.xlu0 %v432, 32
        %v765 = vpop.permute.xlu0 %764
        %766 = vrot.lane.b32.xlu0 %v435, 32
        %v767 = vpop.permute.xlu0 %766
        %768 = vrot.lane.b32.xlu0 %v437, 32
        %v769 = vpop.permute.xlu0 %768
        %770 = vrot.lane.b32.xlu0 %v440, 32
        %v771 = vpop.permute.xlu0 %770
        %772 = vrot.lane.b32.xlu0 %v442, 32
        %v773 = vpop.permute.xlu0 %772
        %774 = vrot.lane.b32.xlu0 %v445, 32
        %v775 = vpop.permute.xlu0 %774
        %776 = vrot.lane.b32.xlu0 %v447, 32
        %v777 = vpop.permute.xlu0 %776
        %778 = vrot.lane.b32.xlu0 %v450, 32
        %v779 = vpop.permute.xlu0 %778
        %780 = vrot.lane.b32.xlu0 %v452, 32
        %v781 = vpop.permute.xlu0 %780
        %782 = vrot.lane.b32.xlu0 %v455, 32
        %v783 = vpop.permute.xlu0 %782
        %784 = vrot.lane.b32.xlu0 %v457, 32
        %v785 = vpop.permute.xlu0 %784
        %786 = vrot.lane.b32.xlu0 %v460, 32
        %v787 = vpop.permute.xlu0 %786
        %788 = vrot.lane.b32.xlu0 %v462, 32
        %v789 = vpop.permute.xlu0 %788
        %790 = vrot.lane.b32.xlu0 %v759, 32
        %v791 = vpop.permute.xlu0 %790
        %792 = vrot.lane.b32.xlu0 %v761, 32
        %v793 = vpop.permute.xlu0 %792
        %v810 = vrot.slane %v195, 4
        %v811 = vrot.slane %v196, 4
        %v812 = vsel %vm511, %v810, %v811
        %v813 = vrot.slane %v197, 4
        %v814 = vsel %vm511, %v811, %v813
        %815 = vrot.lane.b32.xlu0 %v519, 36
        %v816 = vpop.permute.xlu0 %815
        %817 = vrot.lane.b32.xlu0 %v521, 36
        %v818 = vpop.permute.xlu0 %817
        %819 = vrot.lane.b32.xlu0 %v524, 36
        %v820 = vpop.permute.xlu0 %819
        %821 = vrot.lane.b32.xlu0 %v526, 36
        %v822 = vpop.permute.xlu0 %821
        %823 = vrot.lane.b32.xlu0 %v529, 36
        %v824 = vpop.permute.xlu0 %823
        %825 = vrot.lane.b32.xlu0 %v531, 36
        %v826 = vpop.permute.xlu0 %825
        %827 = vrot.lane.b32.xlu0 %v534, 36
        %v828 = vpop.permute.xlu0 %827
        %829 = vrot.lane.b32.xlu0 %v536, 36
        %v830 = vpop.permute.xlu0 %829
        %831 = vrot.lane.b32.xlu0 %v539, 36
        %v832 = vpop.permute.xlu0 %831
        %833 = vrot.lane.b32.xlu0 %v541, 36
        %v834 = vpop.permute.xlu0 %833
        %835 = vrot.lane.b32.xlu0 %v544, 36
        %v836 = vpop.permute.xlu0 %835
        %837 = vrot.lane.b32.xlu0 %v546, 36
        %v838 = vpop.permute.xlu0 %837
        %839 = vrot.lane.b32.xlu0 %v549, 36
        %v840 = vpop.permute.xlu0 %839
        %841 = vrot.lane.b32.xlu0 %v551, 36
        %v842 = vpop.permute.xlu0 %841
        %843 = vrot.lane.b32.xlu0 %v812, 36
        %v844 = vpop.permute.xlu0 %843
        %845 = vrot.lane.b32.xlu0 %v814, 36
        %v846 = vpop.permute.xlu0 %845
        %865 = vrot.lane.b32.xlu0 %v177, 40
        %v866 = vpop.permute.xlu0 %865
        %867 = vrot.lane.b32.xlu0 %v178, 40
        %v868 = vpop.permute.xlu0 %867
        %869 = vrot.lane.b32.xlu0 %v180, 40
        %v870 = vpop.permute.xlu0 %869
        %871 = vrot.lane.b32.xlu0 %v181, 40
        %v872 = vpop.permute.xlu0 %871
        %873 = vrot.lane.b32.xlu0 %v183, 40
        %v874 = vpop.permute.xlu0 %873
        %875 = vrot.lane.b32.xlu0 %v184, 40
        %v876 = vpop.permute.xlu0 %875
        %877 = vrot.lane.b32.xlu0 %v186, 40
        %v878 = vpop.permute.xlu0 %877
        %879 = vrot.lane.b32.xlu0 %v187, 40
        %v880 = vpop.permute.xlu0 %879
        %881 = vrot.lane.b32.xlu0 %v189, 40
        %v882 = vpop.permute.xlu0 %881
        %883 = vrot.lane.b32.xlu0 %v190, 40
        %v884 = vpop.permute.xlu0 %883
        %885 = vrot.lane.b32.xlu0 %v192, 40
        %v886 = vpop.permute.xlu0 %885
        %887 = vrot.lane.b32.xlu0 %v193, 40
        %v888 = vpop.permute.xlu0 %887
        %889 = vrot.lane.b32.xlu0 %v195, 40
        %v890 = vpop.permute.xlu0 %889
        %891 = vrot.lane.b32.xlu0 %v196, 40
        %v892 = vpop.permute.xlu0 %891
        %893 = vrot.lane.b32.xlu0 %v198, 40
        %v894 = vpop.permute.xlu0 %893
        %895 = vrot.lane.b32.xlu0 %v199, 40
        %v896 = vpop.permute.xlu0 %895
        %v914 = vrot.slane %v198, 1
        %v915 = vrot.slane %v199, 1
        %v916 = vsel %vm244, %v914, %v915
        %v917 = vrot.slane %v200, 1
        %v918 = vsel %vm244, %v915, %v917
        %919 = vrot.lane.b32.xlu0 %v257, 44
        %v920 = vpop.permute.xlu0 %919
        %921 = vrot.lane.b32.xlu0 %v259, 44
        %v922 = vpop.permute.xlu0 %921
        %923 = vrot.lane.b32.xlu0 %v262, 44
        %v924 = vpop.permute.xlu0 %923
        %925 = vrot.lane.b32.xlu0 %v264, 44
        %v926 = vpop.permute.xlu0 %925
        %927 = vrot.lane.b32.xlu0 %v267, 44
        %v928 = vpop.permute.xlu0 %927
        %929 = vrot.lane.b32.xlu0 %v269, 44
        %v930 = vpop.permute.xlu0 %929
        %931 = vrot.lane.b32.xlu0 %v272, 44
        %v932 = vpop.permute.xlu0 %931
        %933 = vrot.lane.b32.xlu0 %v274, 44
        %v934 = vpop.permute.xlu0 %933
        %935 = vrot.lane.b32.xlu0 %v277, 44
        %v936 = vpop.permute.xlu0 %935
        %937 = vrot.lane.b32.xlu0 %v279, 44
        %v938 = vpop.permute.xlu0 %937
        %939 = vrot.lane.b32.xlu0 %v282, 44
        %v940 = vpop.permute.xlu0 %939
        %941 = vrot.lane.b32.xlu0 %v284, 44
        %v942 = vpop.permute.xlu0 %941
        %943 = vrot.lane.b32.xlu0 %v653, 44
        %v944 = vpop.permute.xlu0 %943
        %945 = vrot.lane.b32.xlu0 %v655, 44
        %v946 = vpop.permute.xlu0 %945
        %947 = vrot.lane.b32.xlu0 %v916, 44
        %v948 = vpop.permute.xlu0 %947
        %949 = vrot.lane.b32.xlu0 %v918, 44
        %v950 = vpop.permute.xlu0 %949
        %v967 = vrot.slane %v198, 2
        %v968 = vrot.slane %v199, 2
        %v969 = vsel %vm333, %v967, %v968
        %v970 = vrot.slane %v200, 2
        %v971 = vsel %vm333, %v968, %v970
        %972 = vrot.lane.b32.xlu0 %v346, 48
        %v973 = vpop.permute.xlu0 %972
        %974 = vrot.lane.b32.xlu0 %v348, 48
        %v975 = vpop.permute.xlu0 %974
        %976 = vrot.lane.b32.xlu0 %v351, 48
        %v977 = vpop.permute.xlu0 %976
        %978 = vrot.lane.b32.xlu0 %v353, 48
        %v979 = vpop.permute.xlu0 %978
        %980 = vrot.lane.b32.xlu0 %v356, 48
        %v981 = vpop.permute.xlu0 %980
        %982 = vrot.lane.b32.xlu0 %v358, 48
        %v983 = vpop.permute.xlu0 %982
        %984 = vrot.lane.b32.xlu0 %v361, 48
        %v985 = vpop.permute.xlu0 %984
        %986 = vrot.lane.b32.xlu0 %v363, 48
        %v987 = vpop.permute.xlu0 %986
        %988 = vrot.lane.b32.xlu0 %v366, 48
        %v989 = vpop.permute.xlu0 %988
        %990 = vrot.lane.b32.xlu0 %v368, 48
        %v991 = vpop.permute.xlu0 %990
        %992 = vrot.lane.b32.xlu0 %v371, 48
        %v993 = vpop.permute.xlu0 %992
        %994 = vrot.lane.b32.xlu0 %v373, 48
        %v995 = vpop.permute.xlu0 %994
        %996 = vrot.lane.b32.xlu0 %v706, 48
        %v997 = vpop.permute.xlu0 %996
        %998 = vrot.lane.b32.xlu0 %v708, 48
        %v999 = vpop.permute.xlu0 %998
        %1000 = vrot.lane.b32.xlu0 %v969, 48
        %v1001 = vpop.permute.xlu0 %1000
        %1002 = vrot.lane.b32.xlu0 %v971, 48
        %v1003 = vpop.permute.xlu0 %1002
        %v1020 = vrot.slane %v198, 3
        %v1021 = vrot.slane %v199, 3
        %v1022 = vsel %vm422, %v1020, %v1021
        %v1023 = vrot.slane %v200, 3
        %v1024 = vsel %vm422, %v1021, %v1023
        %1025 = vrot.lane.b32.xlu0 %v435, 52
        %v1026 = vpop.permute.xlu0 %1025
        %1027 = vrot.lane.b32.xlu0 %v437, 52
        %v1028 = vpop.permute.xlu0 %1027
        %1029 = vrot.lane.b32.xlu0 %v440, 52
        %v1030 = vpop.permute.xlu0 %1029
        %1031 = vrot.lane.b32.xlu0 %v442, 52
        %v1032 = vpop.permute.xlu0 %1031
        %1033 = vrot.lane.b32.xlu0 %v445, 52
        %v1034 = vpop.permute.xlu0 %1033
        %1035 = vrot.lane.b32.xlu0 %v447, 52
        %v1036 = vpop.permute.xlu0 %1035
        %1037 = vrot.lane.b32.xlu0 %v450, 52
        %v1038 = vpop.permute.xlu0 %1037
        %1039 = vrot.lane.b32.xlu0 %v452, 52
        %v1040 = vpop.permute.xlu0 %1039
        %1041 = vrot.lane.b32.xlu0 %v455, 52
        %v1042 = vpop.permute.xlu0 %1041
        %1043 = vrot.lane.b32.xlu0 %v457, 52
        %v1044 = vpop.permute.xlu0 %1043
        %1045 = vrot.lane.b32.xlu0 %v460, 52
        %v1046 = vpop.permute.xlu0 %1045
        %1047 = vrot.lane.b32.xlu0 %v462, 52
        %v1048 = vpop.permute.xlu0 %1047
        %1049 = vrot.lane.b32.xlu0 %v759, 52
        %v1050 = vpop.permute.xlu0 %1049
        %1051 = vrot.lane.b32.xlu0 %v761, 52
        %v1052 = vpop.permute.xlu0 %1051
        %1053 = vrot.lane.b32.xlu0 %v1022, 52
        %v1054 = vpop.permute.xlu0 %1053
        %1055 = vrot.lane.b32.xlu0 %v1024, 52
        %v1056 = vpop.permute.xlu0 %1055
        %v1073 = vrot.slane %v198, 4
        %v1074 = vrot.slane %v199, 4
        %v1075 = vsel %vm511, %v1073, %v1074
        %v1076 = vrot.slane %v200, 4
        %v1077 = vsel %vm511, %v1074, %v1076
        %1078 = vrot.lane.b32.xlu0 %v524, 56
        %v1079 = vpop.permute.xlu0 %1078
        %1080 = vrot.lane.b32.xlu0 %v526, 56
        %v1081 = vpop.permute.xlu0 %1080
        %1082 = vrot.lane.b32.xlu0 %v529, 56
        %v1083 = vpop.permute.xlu0 %1082
        %1084 = vrot.lane.b32.xlu0 %v531, 56
        %v1085 = vpop.permute.xlu0 %1084
        %1086 = vrot.lane.b32.xlu0 %v534, 56
        %v1087 = vpop.permute.xlu0 %1086
        %1088 = vrot.lane.b32.xlu0 %v536, 56
        %v1089 = vpop.permute.xlu0 %1088
        %1090 = vrot.lane.b32.xlu0 %v539, 56
        %v1091 = vpop.permute.xlu0 %1090
        %1092 = vrot.lane.b32.xlu0 %v541, 56
        %v1093 = vpop.permute.xlu0 %1092
        %1094 = vrot.lane.b32.xlu0 %v544, 56
        %v1095 = vpop.permute.xlu0 %1094
        %1096 = vrot.lane.b32.xlu0 %v546, 56
        %v1097 = vpop.permute.xlu0 %1096
        %1098 = vrot.lane.b32.xlu0 %v549, 56
        %v1099 = vpop.permute.xlu0 %1098
        %1100 = vrot.lane.b32.xlu0 %v551, 56
        %v1101 = vpop.permute.xlu0 %1100
        %1102 = vrot.lane.b32.xlu0 %v812, 56
        %v1103 = vpop.permute.xlu0 %1102
        %1104 = vrot.lane.b32.xlu0 %v814, 56
        %v1105 = vpop.permute.xlu0 %1104
        %1106 = vrot.lane.b32.xlu0 %v1075, 56
        %v1107 = vpop.permute.xlu0 %1106
        %1108 = vrot.lane.b32.xlu0 %v1077, 56
        %v1109 = vpop.permute.xlu0 %1108
        %1128 = vrot.lane.b32.xlu0 %v180, 60
        %v1129 = vpop.permute.xlu0 %1128
        %1130 = vrot.lane.b32.xlu0 %v181, 60
        %v1131 = vpop.permute.xlu0 %1130
        %1132 = vrot.lane.b32.xlu0 %v183, 60
        %v1133 = vpop.permute.xlu0 %1132
        %1134 = vrot.lane.b32.xlu0 %v184, 60
        %v1135 = vpop.permute.xlu0 %1134
        %1136 = vrot.lane.b32.xlu0 %v186, 60
        %v1137 = vpop.permute.xlu0 %1136
        %1138 = vrot.lane.b32.xlu0 %v187, 60
        %v1139 = vpop.permute.xlu0 %1138
        %1140 = vrot.lane.b32.xlu0 %v189, 60
        %v1141 = vpop.permute.xlu0 %1140
        %1142 = vrot.lane.b32.xlu0 %v190, 60
        %v1143 = vpop.permute.xlu0 %1142
        %1144 = vrot.lane.b32.xlu0 %v192, 60
        %v1145 = vpop.permute.xlu0 %1144
        %1146 = vrot.lane.b32.xlu0 %v193, 60
        %v1147 = vpop.permute.xlu0 %1146
        %1148 = vrot.lane.b32.xlu0 %v195, 60
        %v1149 = vpop.permute.xlu0 %1148
        %1150 = vrot.lane.b32.xlu0 %v196, 60
        %v1151 = vpop.permute.xlu0 %1150
        %1152 = vrot.lane.b32.xlu0 %v198, 60
        %v1153 = vpop.permute.xlu0 %1152
        %1154 = vrot.lane.b32.xlu0 %v199, 60
        %v1155 = vpop.permute.xlu0 %1154
        %1156 = vrot.lane.b32.xlu0 %v201, 60
        %v1157 = vpop.permute.xlu0 %1156
        %1158 = vrot.lane.b32.xlu0 %v202, 60
        %v1159 = vpop.permute.xlu0 %1158
        %vm1176 = vcmask 31744
        %v1177 = vsel %vm1176, %v171, %v286
        %v1178 = vsel %vm1176, %v172, %v288
        %v1179 = vsel %vm1176, %v174, %v290
        %v1180 = vsel %vm1176, %v175, %v292
        %v1181 = vsel %vm1176, %v177, %v294
        %v1182 = vsel %vm1176, %v178, %v296
        %v1183 = vsel %vm1176, %v180, %v298
        %v1184 = vsel %vm1176, %v181, %v300
        %v1185 = vsel %vm1176, %v183, %v302
        %v1186 = vsel %vm1176, %v184, %v304
        %v1187 = vsel %vm1176, %v186, %v306
        %v1188 = vsel %vm1176, %v187, %v308
        %v1189 = vsel %vm1176, %v189, %v310
        %v1190 = vsel %vm1176, %v190, %v312
        %v1191 = vsel %vm1176, %v192, %v314
        %v1192 = vsel %vm1176, %v193, %v316
        %vm1193 = vcmask 64512
        %v1194 = vsel %vm1193, %v1177, %v375
        %v1195 = vsel %vm1193, %v1178, %v377
        %v1196 = vsel %vm1193, %v1179, %v379
        %v1197 = vsel %vm1193, %v1180, %v381
        %v1198 = vsel %vm1193, %v1181, %v383
        %v1199 = vsel %vm1193, %v1182, %v385
        %v1200 = vsel %vm1193, %v1183, %v387
        %v1201 = vsel %vm1193, %v1184, %v389
        %v1202 = vsel %vm1193, %v1185, %v391
        %v1203 = vsel %vm1193, %v1186, %v393
        %v1204 = vsel %vm1193, %v1187, %v395
        %v1205 = vsel %vm1193, %v1188, %v397
        %v1206 = vsel %vm1193, %v1189, %v399
        %v1207 = vsel %vm1193, %v1190, %v401
        %v1208 = vsel %vm1193, %v1191, %v403
        %v1209 = vsel %vm1193, %v1192, %v405
        %vm1210 = vcmask 97280
        %v1211 = vsel %vm1210, %v1194, %v464
        %v1212 = vsel %vm1210, %v1195, %v466
        %v1213 = vsel %vm1210, %v1196, %v468
        %v1214 = vsel %vm1210, %v1197, %v470
        %v1215 = vsel %vm1210, %v1198, %v472
        %v1216 = vsel %vm1210, %v1199, %v474
        %v1217 = vsel %vm1210, %v1200, %v476
        %v1218 = vsel %vm1210, %v1201, %v478
        %v1219 = vsel %vm1210, %v1202, %v480
        %v1220 = vsel %vm1210, %v1203, %v482
        %v1221 = vsel %vm1210, %v1204, %v484
        %v1222 = vsel %vm1210, %v1205, %v486
        %v1223 = vsel %vm1210, %v1206, %v488
        %v1224 = vsel %vm1210, %v1207, %v490
        %v1225 = vsel %vm1210, %v1208, %v492
        %v1226 = vsel %vm1210, %v1209, %v494
        %vm1227 = vcmask 130048
        %v1228 = vsel %vm1227, %v1211, %v553
        %v1229 = vsel %vm1227, %v1212, %v555
        %v1230 = vsel %vm1227, %v1213, %v557
        %v1231 = vsel %vm1227, %v1214, %v559
        %v1232 = vsel %vm1227, %v1215, %v561
        %v1233 = vsel %vm1227, %v1216, %v563
        %v1234 = vsel %vm1227, %v1217, %v565
        %v1235 = vsel %vm1227, %v1218, %v567
        %v1236 = vsel %vm1227, %v1219, %v569
        %v1237 = vsel %vm1227, %v1220, %v571
        %v1238 = vsel %vm1227, %v1221, %v573
        %v1239 = vsel %vm1227, %v1222, %v575
        %v1240 = vsel %vm1227, %v1223, %v577
        %v1241 = vsel %vm1227, %v1224, %v579
        %v1242 = vsel %vm1227, %v1225, %v581
        %v1243 = vsel %vm1227, %v1226, %v583
        %vm1244 = vcmask 162816
        %v1245 = vsel %vm1244, %v1228, %v603
        %v1246 = vsel %vm1244, %v1229, %v605
        %v1247 = vsel %vm1244, %v1230, %v607
        %v1248 = vsel %vm1244, %v1231, %v609
        %v1249 = vsel %vm1244, %v1232, %v611
        %v1250 = vsel %vm1244, %v1233, %v613
        %v1251 = vsel %vm1244, %v1234, %v615
        %v1252 = vsel %vm1244, %v1235, %v617
        %v1253 = vsel %vm1244, %v1236, %v619
        %v1254 = vsel %vm1244, %v1237, %v621
        %v1255 = vsel %vm1244, %v1238, %v623
        %v1256 = vsel %vm1244, %v1239, %v625
        %v1257 = vsel %vm1244, %v1240, %v627
        %v1258 = vsel %vm1244, %v1241, %v629
        %v1259 = vsel %vm1244, %v1242, %v631
        %v1260 = vsel %vm1244, %v1243, %v633
        %vm1261 = vcmask 195584
        %v1262 = vsel %vm1261, %v1245, %v657
        %v1263 = vsel %vm1261, %v1246, %v659
        %v1264 = vsel %vm1261, %v1247, %v661
        %v1265 = vsel %vm1261, %v1248, %v663
        %v1266 = vsel %vm1261, %v1249, %v665
        %v1267 = vsel %vm1261, %v1250, %v667
        %v1268 = vsel %vm1261, %v1251, %v669
        %v1269 = vsel %vm1261, %v1252, %v671
        %v1270 = vsel %vm1261, %v1253, %v673
        %v1271 = vsel %vm1261, %v1254, %v675
        %v1272 = vsel %vm1261, %v1255, %v677
        %v1273 = vsel %vm1261, %v1256, %v679
        %v1274 = vsel %vm1261, %v1257, %v681
        %v1275 = vsel %vm1261, %v1258, %v683
        %v1276 = vsel %vm1261, %v1259, %v685
        %v1277 = vsel %vm1261, %v1260, %v687
        %vm1278 = vcmask 228352
        %v1279 = vsel %vm1278, %v1262, %v710
        %v1280 = vsel %vm1278, %v1263, %v712
        %v1281 = vsel %vm1278, %v1264, %v714
        %v1282 = vsel %vm1278, %v1265, %v716
        %v1283 = vsel %vm1278, %v1266, %v718
        %v1284 = vsel %vm1278, %v1267, %v720
        %v1285 = vsel %vm1278, %v1268, %v722
        %v1286 = vsel %vm1278, %v1269, %v724
        %v1287 = vsel %vm1278, %v1270, %v726
        %v1288 = vsel %vm1278, %v1271, %v728
        %v1289 = vsel %vm1278, %v1272, %v730
        %v1290 = vsel %vm1278, %v1273, %v732
        %v1291 = vsel %vm1278, %v1274, %v734
        %v1292 = vsel %vm1278, %v1275, %v736
        %v1293 = vsel %vm1278, %v1276, %v738
        %v1294 = vsel %vm1278, %v1277, %v740
        %vm1295 = vcmask 261120
        %v1296 = vsel %vm1295, %v1279, %v763
        %v1297 = vsel %vm1295, %v1280, %v765
        %v1298 = vsel %vm1295, %v1281, %v767
        %v1299 = vsel %vm1295, %v1282, %v769
        %v1300 = vsel %vm1295, %v1283, %v771
        %v1301 = vsel %vm1295, %v1284, %v773
        %v1302 = vsel %vm1295, %v1285, %v775
        %v1303 = vsel %vm1295, %v1286, %v777
        %v1304 = vsel %vm1295, %v1287, %v779
        %v1305 = vsel %vm1295, %v1288, %v781
        %v1306 = vsel %vm1295, %v1289, %v783
        %v1307 = vsel %vm1295, %v1290, %v785
        %v1308 = vsel %vm1295, %v1291, %v787
        %v1309 = vsel %vm1295, %v1292, %v789
        %v1310 = vsel %vm1295, %v1293, %v791
        %v1311 = vsel %vm1295, %v1294, %v793
        %vm1312 = vcmask 293888
        %v1313 = vsel %vm1312, %v1296, %v816
        %v1314 = vsel %vm1312, %v1297, %v818
        %v1315 = vsel %vm1312, %v1298, %v820
        %v1316 = vsel %vm1312, %v1299, %v822
        %v1317 = vsel %vm1312, %v1300, %v824
        %v1318 = vsel %vm1312, %v1301, %v826
        %v1319 = vsel %vm1312, %v1302, %v828
        %v1320 = vsel %vm1312, %v1303, %v830
        %v1321 = vsel %vm1312, %v1304, %v832
        %v1322 = vsel %vm1312, %v1305, %v834
        %v1323 = vsel %vm1312, %v1306, %v836
        %v1324 = vsel %vm1312, %v1307, %v838
        %v1325 = vsel %vm1312, %v1308, %v840
        %v1326 = vsel %vm1312, %v1309, %v842
        %v1327 = vsel %vm1312, %v1310, %v844
        %v1328 = vsel %vm1312, %v1311, %v846
        %vm1329 = vcmask 326656
        %v1330 = vsel %vm1329, %v1313, %v866
        %v1331 = vsel %vm1329, %v1314, %v868
        %v1332 = vsel %vm1329, %v1315, %v870
        %v1333 = vsel %vm1329, %v1316, %v872
        %v1334 = vsel %vm1329, %v1317, %v874
        %v1335 = vsel %vm1329, %v1318, %v876
        %v1336 = vsel %vm1329, %v1319, %v878
        %v1337 = vsel %vm1329, %v1320, %v880
        %v1338 = vsel %vm1329, %v1321, %v882
        %v1339 = vsel %vm1329, %v1322, %v884
        %v1340 = vsel %vm1329, %v1323, %v886
        %v1341 = vsel %vm1329, %v1324, %v888
        %v1342 = vsel %vm1329, %v1325, %v890
        %v1343 = vsel %vm1329, %v1326, %v892
        %v1344 = vsel %vm1329, %v1327, %v894
        %v1345 = vsel %vm1329, %v1328, %v896
        %vm1346 = vcmask 359424
        %v1347 = vsel %vm1346, %v1330, %v920
        %v1348 = vsel %vm1346, %v1331, %v922
        %v1349 = vsel %vm1346, %v1332, %v924
        %v1350 = vsel %vm1346, %v1333, %v926
        %v1351 = vsel %vm1346, %v1334, %v928
        %v1352 = vsel %vm1346, %v1335, %v930
        %v1353 = vsel %vm1346, %v1336, %v932
        %v1354 = vsel %vm1346, %v1337, %v934
        %v1355 = vsel %vm1346, %v1338, %v936
        %v1356 = vsel %vm1346, %v1339, %v938
        %v1357 = vsel %vm1346, %v1340, %v940
        %v1358 = vsel %vm1346, %v1341, %v942
        %v1359 = vsel %vm1346, %v1342, %v944
        %v1360 = vsel %vm1346, %v1343, %v946
        %v1361 = vsel %vm1346, %v1344, %v948
        %v1362 = vsel %vm1346, %v1345, %v950
        %vm1363 = vcmask 392192
        %v1364 = vsel %vm1363, %v1347, %v973
        %v1365 = vsel %vm1363, %v1348, %v975
        %v1366 = vsel %vm1363, %v1349, %v977
        %v1367 = vsel %vm1363, %v1350, %v979
        %v1368 = vsel %vm1363, %v1351, %v981
        %v1369 = vsel %vm1363, %v1352, %v983
        %v1370 = vsel %vm1363, %v1353, %v985
        %v1371 = vsel %vm1363, %v1354, %v987
        %v1372 = vsel %vm1363, %v1355, %v989
        %v1373 = vsel %vm1363, %v1356, %v991
        %v1374 = vsel %vm1363, %v1357, %v993
        %v1375 = vsel %vm1363, %v1358, %v995
        %v1376 = vsel %vm1363, %v1359, %v997
        %v1377 = vsel %vm1363, %v1360, %v999
        %v1378 = vsel %vm1363, %v1361, %v1001
        %v1379 = vsel %vm1363, %v1362, %v1003
        %vm1380 = vcmask 424960
        %v1381 = vsel %vm1380, %v1364, %v1026
        %v1382 = vsel %vm1380, %v1365, %v1028
        %v1383 = vsel %vm1380, %v1366, %v1030
        %v1384 = vsel %vm1380, %v1367, %v1032
        %v1385 = vsel %vm1380, %v1368, %v1034
        %v1386 = vsel %vm1380, %v1369, %v1036
        %v1387 = vsel %vm1380, %v1370, %v1038
        %v1388 = vsel %vm1380, %v1371, %v1040
        %v1389 = vsel %vm1380, %v1372, %v1042
        %v1390 = vsel %vm1380, %v1373, %v1044
        %v1391 = vsel %vm1380, %v1374, %v1046
        %v1392 = vsel %vm1380, %v1375, %v1048
        %v1393 = vsel %vm1380, %v1376, %v1050
        %v1394 = vsel %vm1380, %v1377, %v1052
        %v1395 = vsel %vm1380, %v1378, %v1054
        %v1396 = vsel %vm1380, %v1379, %v1056
        %vm1397 = vcmask 457728
        %v1398 = vsel %vm1397, %v1381, %v1079
        %v1399 = vsel %vm1397, %v1382, %v1081
        %v1400 = vsel %vm1397, %v1383, %v1083
        %v1401 = vsel %vm1397, %v1384, %v1085
        %v1402 = vsel %vm1397, %v1385, %v1087
        %v1403 = vsel %vm1397, %v1386, %v1089
        %v1404 = vsel %vm1397, %v1387, %v1091
        %v1405 = vsel %vm1397, %v1388, %v1093
        %v1406 = vsel %vm1397, %v1389, %v1095
        %v1407 = vsel %vm1397, %v1390, %v1097
        %v1408 = vsel %vm1397, %v1391, %v1099
        %v1409 = vsel %vm1397, %v1392, %v1101
        %v1410 = vsel %vm1397, %v1393, %v1103
        %v1411 = vsel %vm1397, %v1394, %v1105
        %v1412 = vsel %vm1397, %v1395, %v1107
        %v1413 = vsel %vm1397, %v1396, %v1109
        %vm1414 = vcmask 490496
        %v1415 = vsel %vm1414, %v1398, %v1129
        %v1416 = vsel %vm1414, %v1399, %v1131
        %v1417 = vsel %vm1414, %v1400, %v1133
        %v1418 = vsel %vm1414, %v1401, %v1135
        %v1419 = vsel %vm1414, %v1402, %v1137
        %v1420 = vsel %vm1414, %v1403, %v1139
        %v1421 = vsel %vm1414, %v1404, %v1141
        %v1422 = vsel %vm1414, %v1405, %v1143
        %v1423 = vsel %vm1414, %v1406, %v1145
        %v1424 = vsel %vm1414, %v1407, %v1147
        %v1425 = vsel %vm1414, %v1408, %v1149
        %v1426 = vsel %vm1414, %v1409, %v1151
        %v1427 = vsel %vm1414, %v1410, %v1153
        %v1428 = vsel %vm1414, %v1411, %v1155
        %v1429 = vsel %vm1414, %v1412, %v1157
        %v1430 = vsel %vm1414, %v1413, %v1159
        %v1432 = vrot.slane %v201, 1
        %v1433 = vrot.slane %v202, 1
        %v1434 = vsel %vm244, %v1432, %v1433
        %v1435 = vrot.slane %v203, 1
        %v1436 = vsel %vm244, %v1433, %v1435
        %1437 = vrot.lane.b32.xlu0 %v263, 4
        %v1438 = vpop.permute.xlu0 %1437
        %1439 = vrot.lane.b32.xlu0 %v268, 4
        %v1440 = vpop.permute.xlu0 %1439
        %1441 = vrot.lane.b32.xlu0 %v273, 4
        %v1442 = vpop.permute.xlu0 %1441
        %1443 = vrot.lane.b32.xlu0 %v278, 4
        %v1444 = vpop.permute.xlu0 %1443
        %1445 = vrot.lane.b32.xlu0 %v283, 4
        %v1446 = vpop.permute.xlu0 %1445
        %1447 = vrot.lane.b32.xlu0 %v653, 4
        %v1448 = vpop.permute.xlu0 %1447
        %1449 = vrot.lane.b32.xlu0 %v655, 4
        %v1450 = vpop.permute.xlu0 %1449
        %1451 = vrot.lane.b32.xlu0 %v654, 4
        %v1452 = vpop.permute.xlu0 %1451
        %1453 = vrot.lane.b32.xlu0 %v916, 4
        %v1454 = vpop.permute.xlu0 %1453
        %1455 = vrot.lane.b32.xlu0 %v918, 4
        %v1456 = vpop.permute.xlu0 %1455
        %1457 = vrot.lane.b32.xlu0 %v917, 4
        %v1458 = vpop.permute.xlu0 %1457
        %1459 = vrot.lane.b32.xlu0 %v1434, 4
        %v1460 = vpop.permute.xlu0 %1459
        %1461 = vrot.lane.b32.xlu0 %v1436, 4
        %v1462 = vpop.permute.xlu0 %1461
        %1463 = vrot.lane.b32.xlu0 %v1435, 4
        %v1464 = vpop.permute.xlu0 %1463
        %v1479 = vrot.slane %v201, 2
        %v1480 = vrot.slane %v202, 2
        %v1481 = vsel %vm333, %v1479, %v1480
        %v1482 = vrot.slane %v203, 2
        %v1483 = vsel %vm333, %v1480, %v1482
        %1484 = vrot.lane.b32.xlu0 %v352, 8
        %v1485 = vpop.permute.xlu0 %1484
        %1486 = vrot.lane.b32.xlu0 %v357, 8
        %v1487 = vpop.permute.xlu0 %1486
        %1488 = vrot.lane.b32.xlu0 %v362, 8
        %v1489 = vpop.permute.xlu0 %1488
        %1490 = vrot.lane.b32.xlu0 %v367, 8
        %v1491 = vpop.permute.xlu0 %1490
        %1492 = vrot.lane.b32.xlu0 %v372, 8
        %v1493 = vpop.permute.xlu0 %1492
        %1494 = vrot.lane.b32.xlu0 %v706, 8
        %v1495 = vpop.permute.xlu0 %1494
        %1496 = vrot.lane.b32.xlu0 %v708, 8
        %v1497 = vpop.permute.xlu0 %1496
        %1498 = vrot.lane.b32.xlu0 %v707, 8
        %v1499 = vpop.permute.xlu0 %1498
        %1500 = vrot.lane.b32.xlu0 %v969, 8
        %v1501 = vpop.permute.xlu0 %1500
        %1502 = vrot.lane.b32.xlu0 %v971, 8
        %v1503 = vpop.permute.xlu0 %1502
        %1504 = vrot.lane.b32.xlu0 %v970, 8
        %v1505 = vpop.permute.xlu0 %1504
        %1506 = vrot.lane.b32.xlu0 %v1481, 8
        %v1507 = vpop.permute.xlu0 %1506
        %1508 = vrot.lane.b32.xlu0 %v1483, 8
        %v1509 = vpop.permute.xlu0 %1508
        %1510 = vrot.lane.b32.xlu0 %v1482, 8
        %v1511 = vpop.permute.xlu0 %1510
        %v1526 = vrot.slane %v201, 3
        %v1527 = vrot.slane %v202, 3
        %v1528 = vsel %vm422, %v1526, %v1527
        %v1529 = vrot.slane %v203, 3
        %v1530 = vsel %vm422, %v1527, %v1529
        %1531 = vrot.lane.b32.xlu0 %v441, 12
        %v1532 = vpop.permute.xlu0 %1531
        %1533 = vrot.lane.b32.xlu0 %v446, 12
        %v1534 = vpop.permute.xlu0 %1533
        %1535 = vrot.lane.b32.xlu0 %v451, 12
        %v1536 = vpop.permute.xlu0 %1535
        %1537 = vrot.lane.b32.xlu0 %v456, 12
        %v1538 = vpop.permute.xlu0 %1537
        %1539 = vrot.lane.b32.xlu0 %v461, 12
        %v1540 = vpop.permute.xlu0 %1539
        %1541 = vrot.lane.b32.xlu0 %v759, 12
        %v1542 = vpop.permute.xlu0 %1541
        %1543 = vrot.lane.b32.xlu0 %v761, 12
        %v1544 = vpop.permute.xlu0 %1543
        %1545 = vrot.lane.b32.xlu0 %v760, 12
        %v1546 = vpop.permute.xlu0 %1545
        %1547 = vrot.lane.b32.xlu0 %v1022, 12
        %v1548 = vpop.permute.xlu0 %1547
        %1549 = vrot.lane.b32.xlu0 %v1024, 12
        %v1550 = vpop.permute.xlu0 %1549
        %1551 = vrot.lane.b32.xlu0 %v1023, 12
        %v1552 = vpop.permute.xlu0 %1551
        %1553 = vrot.lane.b32.xlu0 %v1528, 12
        %v1554 = vpop.permute.xlu0 %1553
        %1555 = vrot.lane.b32.xlu0 %v1530, 12
        %v1556 = vpop.permute.xlu0 %1555
        %1557 = vrot.lane.b32.xlu0 %v1529, 12
        %v1558 = vpop.permute.xlu0 %1557
        %vm1575 = vcmask 1040384
        %v1576 = vrot.slane %v183, 7
        %v1577 = vrot.slane %v184, 7
        %v1578 = vsel %vm1575, %v1576, %v1577
        %v1579 = vrot.slane %v186, 7
        %v1580 = vrot.slane %v187, 7
        %v1581 = vsel %vm1575, %v1579, %v1580
        %v1582 = vrot.slane %v189, 7
        %v1583 = vrot.slane %v190, 7
        %v1584 = vsel %vm1575, %v1582, %v1583
        %v1585 = vrot.slane %v192, 7
        %v1586 = vrot.slane %v193, 7
        %v1587 = vsel %vm1575, %v1585, %v1586
        %v1588 = vrot.slane %v195, 7
        %v1589 = vrot.slane %v196, 7
        %v1590 = vsel %vm1575, %v1588, %v1589
        %v1591 = vrot.slane %v198, 7
        %v1592 = vrot.slane %v199, 7
        %v1593 = vsel %vm1575, %v1591, %v1592
        %v1594 = vrot.slane %v201, 7
        %v1595 = vrot.slane %v202, 7
        %v1596 = vsel %vm1575, %v1594, %v1595
        %v1597 = vrot.slane %v204, 7
        %v1598 = vrot.slane %v205, 7
        %v1599 = vsel %vm1575, %v1597, %v1598
        %1600 = vrot.lane.b32.xlu0 %v1576, 16
        %v1601 = vpop.permute.xlu0 %1600
        %1602 = vrot.lane.b32.xlu0 %v1578, 16
        %v1603 = vpop.permute.xlu0 %1602
        %1604 = vrot.lane.b32.xlu0 %v1577, 16
        %v1605 = vpop.permute.xlu0 %1604
        %1606 = vrot.lane.b32.xlu0 %v1579, 16
        %v1607 = vpop.permute.xlu0 %1606
        %1608 = vrot.lane.b32.xlu0 %v1581, 16
        %v1609 = vpop.permute.xlu0 %1608
        %1610 = vrot.lane.b32.xlu0 %v1580, 16
        %v1611 = vpop.permute.xlu0 %1610
        %1612 = vrot.lane.b32.xlu0 %v1582, 16
        %v1613 = vpop.permute.xlu0 %1612
        %1614 = vrot.lane.b32.xlu0 %v1584, 16
        %v1615 = vpop.permute.xlu0 %1614
        %1616 = vrot.lane.b32.xlu0 %v1583, 16
        %v1617 = vpop.permute.xlu0 %1616
        %1618 = vrot.lane.b32.xlu0 %v1585, 16
        %v1619 = vpop.permute.xlu0 %1618
        %1620 = vrot.lane.b32.xlu0 %v1587, 16
        %v1621 = vpop.permute.xlu0 %1620
        %1622 = vrot.lane.b32.xlu0 %v1586, 16
        %v1623 = vpop.permute.xlu0 %1622
        %1624 = vrot.lane.b32.xlu0 %v1588, 16
        %v1625 = vpop.permute.xlu0 %1624
        %1626 = vrot.lane.b32.xlu0 %v1590, 16
        %v1627 = vpop.permute.xlu0 %1626
        %1628 = vrot.lane.b32.xlu0 %v1589, 16
        %v1629 = vpop.permute.xlu0 %1628
        %1630 = vrot.lane.b32.xlu0 %v1591, 16
        %v1631 = vpop.permute.xlu0 %1630
        %1632 = vrot.lane.b32.xlu0 %v1593, 16
        %v1633 = vpop.permute.xlu0 %1632
        %1634 = vrot.lane.b32.xlu0 %v1592, 16
        %v1635 = vpop.permute.xlu0 %1634
        %1636 = vrot.lane.b32.xlu0 %v1594, 16
        %v1637 = vpop.permute.xlu0 %1636
        %1638 = vrot.lane.b32.xlu0 %v1596, 16
        %v1639 = vpop.permute.xlu0 %1638
        %1640 = vrot.lane.b32.xlu0 %v1595, 16
        %v1641 = vpop.permute.xlu0 %1640
        %1642 = vrot.lane.b32.xlu0 %v1597, 16
        %v1643 = vpop.permute.xlu0 %1642
        %1644 = vrot.lane.b32.xlu0 %v1599, 16
        %v1645 = vpop.permute.xlu0 %1644
        %1646 = vrot.lane.b32.xlu0 %v1598, 16
        %v1647 = vpop.permute.xlu0 %1646
        %1673 = vrot.lane.b32.xlu0 %v185, 20
        %v1674 = vpop.permute.xlu0 %1673
        %1675 = vrot.lane.b32.xlu0 %v188, 20
        %v1676 = vpop.permute.xlu0 %1675
        %1677 = vrot.lane.b32.xlu0 %v191, 20
        %v1678 = vpop.permute.xlu0 %1677
        %1679 = vrot.lane.b32.xlu0 %v194, 20
        %v1680 = vpop.permute.xlu0 %1679
        %1681 = vrot.lane.b32.xlu0 %v197, 20
        %v1682 = vpop.permute.xlu0 %1681
        %1683 = vrot.lane.b32.xlu0 %v198, 20
        %v1684 = vpop.permute.xlu0 %1683
        %1685 = vrot.lane.b32.xlu0 %v199, 20
        %v1686 = vpop.permute.xlu0 %1685
        %1687 = vrot.lane.b32.xlu0 %v200, 20
        %v1688 = vpop.permute.xlu0 %1687
        %1689 = vrot.lane.b32.xlu0 %v201, 20
        %v1690 = vpop.permute.xlu0 %1689
        %1691 = vrot.lane.b32.xlu0 %v202, 20
        %v1692 = vpop.permute.xlu0 %1691
        %1693 = vrot.lane.b32.xlu0 %v203, 20
        %v1694 = vpop.permute.xlu0 %1693
        %1695 = vrot.lane.b32.xlu0 %v204, 20
        %v1696 = vpop.permute.xlu0 %1695
        %1697 = vrot.lane.b32.xlu0 %v205, 20
        %v1698 = vpop.permute.xlu0 %1697
        %1699 = vrot.lane.b32.xlu0 %v206, 20
        %v1700 = vpop.permute.xlu0 %1699
        %v1715 = vrot.slane %v204, 1
        %v1716 = vrot.slane %v205, 1
        %v1717 = vsel %vm244, %v1715, %v1716
        %v1718 = vrot.slane %v206, 1
        %v1719 = vsel %vm244, %v1716, %v1718
        %1720 = vrot.lane.b32.xlu0 %v268, 24
        %v1721 = vpop.permute.xlu0 %1720
        %1722 = vrot.lane.b32.xlu0 %v273, 24
        %v1723 = vpop.permute.xlu0 %1722
        %1724 = vrot.lane.b32.xlu0 %v278, 24
        %v1725 = vpop.permute.xlu0 %1724
        %1726 = vrot.lane.b32.xlu0 %v283, 24
        %v1727 = vpop.permute.xlu0 %1726
        %1728 = vrot.lane.b32.xlu0 %v654, 24
        %v1729 = vpop.permute.xlu0 %1728
        %1730 = vrot.lane.b32.xlu0 %v916, 24
        %v1731 = vpop.permute.xlu0 %1730
        %1732 = vrot.lane.b32.xlu0 %v918, 24
        %v1733 = vpop.permute.xlu0 %1732
        %1734 = vrot.lane.b32.xlu0 %v917, 24
        %v1735 = vpop.permute.xlu0 %1734
        %1736 = vrot.lane.b32.xlu0 %v1434, 24
        %v1737 = vpop.permute.xlu0 %1736
        %1738 = vrot.lane.b32.xlu0 %v1436, 24
        %v1739 = vpop.permute.xlu0 %1738
        %1740 = vrot.lane.b32.xlu0 %v1435, 24
        %v1741 = vpop.permute.xlu0 %1740
        %1742 = vrot.lane.b32.xlu0 %v1717, 24
        %v1743 = vpop.permute.xlu0 %1742
        %1744 = vrot.lane.b32.xlu0 %v1719, 24
        %v1745 = vpop.permute.xlu0 %1744
        %1746 = vrot.lane.b32.xlu0 %v1718, 24
        %v1747 = vpop.permute.xlu0 %1746
        %v1762 = vrot.slane %v204, 2
        %v1763 = vrot.slane %v205, 2
        %v1764 = vsel %vm333, %v1762, %v1763
        %v1765 = vrot.slane %v206, 2
        %v1766 = vsel %vm333, %v1763, %v1765
        %1767 = vrot.lane.b32.xlu0 %v357, 28
        %v1768 = vpop.permute.xlu0 %1767
        %1769 = vrot.lane.b32.xlu0 %v362, 28
        %v1770 = vpop.permute.xlu0 %1769
        %1771 = vrot.lane.b32.xlu0 %v367, 28
        %v1772 = vpop.permute.xlu0 %1771
        %1773 = vrot.lane.b32.xlu0 %v372, 28
        %v1774 = vpop.permute.xlu0 %1773
        %1775 = vrot.lane.b32.xlu0 %v707, 28
        %v1776 = vpop.permute.xlu0 %1775
        %1777 = vrot.lane.b32.xlu0 %v969, 28
        %v1778 = vpop.permute.xlu0 %1777
        %1779 = vrot.lane.b32.xlu0 %v971, 28
        %v1780 = vpop.permute.xlu0 %1779
        %1781 = vrot.lane.b32.xlu0 %v970, 28
        %v1782 = vpop.permute.xlu0 %1781
        %1783 = vrot.lane.b32.xlu0 %v1481, 28
        %v1784 = vpop.permute.xlu0 %1783
        %1785 = vrot.lane.b32.xlu0 %v1483, 28
        %v1786 = vpop.permute.xlu0 %1785
        %1787 = vrot.lane.b32.xlu0 %v1482, 28
        %v1788 = vpop.permute.xlu0 %1787
        %1789 = vrot.lane.b32.xlu0 %v1764, 28
        %v1790 = vpop.permute.xlu0 %1789
        %1791 = vrot.lane.b32.xlu0 %v1766, 28
        %v1792 = vpop.permute.xlu0 %1791
        %1793 = vrot.lane.b32.xlu0 %v1765, 28
        %v1794 = vpop.permute.xlu0 %1793
        %v1809 = vrot.slane %v204, 3
        %v1810 = vrot.slane %v205, 3
        %v1811 = vsel %vm422, %v1809, %v1810
        %v1812 = vrot.slane %v206, 3
        %v1813 = vsel %vm422, %v1810, %v1812
        %1814 = vrot.lane.b32.xlu0 %v446, 32
        %v1815 = vpop.permute.xlu0 %1814
        %1816 = vrot.lane.b32.xlu0 %v451, 32
        %v1817 = vpop.permute.xlu0 %1816
        %1818 = vrot.lane.b32.xlu0 %v456, 32
        %v1819 = vpop.permute.xlu0 %1818
        %1820 = vrot.lane.b32.xlu0 %v461, 32
        %v1821 = vpop.permute.xlu0 %1820
        %1822 = vrot.lane.b32.xlu0 %v760, 32
        %v1823 = vpop.permute.xlu0 %1822
        %1824 = vrot.lane.b32.xlu0 %v1022, 32
        %v1825 = vpop.permute.xlu0 %1824
        %1826 = vrot.lane.b32.xlu0 %v1024, 32
        %v1827 = vpop.permute.xlu0 %1826
        %1828 = vrot.lane.b32.xlu0 %v1023, 32
        %v1829 = vpop.permute.xlu0 %1828
        %1830 = vrot.lane.b32.xlu0 %v1528, 32
        %v1831 = vpop.permute.xlu0 %1830
        %1832 = vrot.lane.b32.xlu0 %v1530, 32
        %v1833 = vpop.permute.xlu0 %1832
        %1834 = vrot.lane.b32.xlu0 %v1529, 32
        %v1835 = vpop.permute.xlu0 %1834
        %1836 = vrot.lane.b32.xlu0 %v1811, 32
        %v1837 = vpop.permute.xlu0 %1836
        %1838 = vrot.lane.b32.xlu0 %v1813, 32
        %v1839 = vpop.permute.xlu0 %1838
        %1840 = vrot.lane.b32.xlu0 %v1812, 32
        %v1841 = vpop.permute.xlu0 %1840
        %v1856 = vsel %vm1176, %v182, %v1438
        %v1857 = vsel %vm1176, %v185, %v1440
        %v1858 = vsel %vm1176, %v188, %v1442
        %v1859 = vsel %vm1176, %v191, %v1444
        %v1860 = vsel %vm1176, %v194, %v1446
        %v1861 = vsel %vm1176, %v195, %v1448
        %v1862 = vsel %vm1176, %v196, %v1450
        %v1863 = vsel %vm1176, %v197, %v1452
        %v1864 = vsel %vm1176, %v198, %v1454
        %v1865 = vsel %vm1176, %v199, %v1456
        %v1866 = vsel %vm1176, %v200, %v1458
        %v1867 = vsel %vm1176, %v201, %v1460
        %v1868 = vsel %vm1176, %v202, %v1462
        %v1869 = vsel %vm1176, %v203, %v1464
        %v1870 = vsel %vm1193, %v1856, %v1485
        %v1871 = vsel %vm1193, %v1857, %v1487
        %v1872 = vsel %vm1193, %v1858, %v1489
        %v1873 = vsel %vm1193, %v1859, %v1491
        %v1874 = vsel %vm1193, %v1860, %v1493
        %v1875 = vsel %vm1193, %v1861, %v1495
        %v1876 = vsel %vm1193, %v1862, %v1497
        %v1877 = vsel %vm1193, %v1863, %v1499
        %v1878 = vsel %vm1193, %v1864, %v1501
        %v1879 = vsel %vm1193, %v1865, %v1503
        %v1880 = vsel %vm1193, %v1866, %v1505
        %v1881 = vsel %vm1193, %v1867, %v1507
        %v1882 = vsel %vm1193, %v1868, %v1509
        %v1883 = vsel %vm1193, %v1869, %v1511
        %v1884 = vsel %vm1210, %v1870, %v1532
        %v1885 = vsel %vm1210, %v1871, %v1534
        %v1886 = vsel %vm1210, %v1872, %v1536
        %v1887 = vsel %vm1210, %v1873, %v1538
        %v1888 = vsel %vm1210, %v1874, %v1540
        %v1889 = vsel %vm1210, %v1875, %v1542
        %v1890 = vsel %vm1210, %v1876, %v1544
        %v1891 = vsel %vm1210, %v1877, %v1546
        %v1892 = vsel %vm1210, %v1878, %v1548
        %v1893 = vsel %vm1210, %v1879, %v1550
        %v1894 = vsel %vm1210, %v1880, %v1552
        %v1895 = vsel %vm1210, %v1881, %v1554
        %v1896 = vsel %vm1210, %v1882, %v1556
        %v1897 = vsel %vm1210, %v1883, %v1558
        %v1898 = vsel %vm1227, %v1217, %v1601
        %v1899 = vsel %vm1227, %v1218, %v1603
        %v1900 = vsel %vm1227, %v1884, %v1605
        %v1901 = vsel %vm1227, %v1219, %v1607
        %v1902 = vsel %vm1227, %v1220, %v1609
        %v1903 = vsel %vm1227, %v1885, %v1611
        %v1904 = vsel %vm1227, %v1221, %v1613
        %v1905 = vsel %vm1227, %v1222, %v1615
        %v1906 = vsel %vm1227, %v1886, %v1617
        %v1907 = vsel %vm1227, %v1223, %v1619
        %v1908 = vsel %vm1227, %v1224, %v1621
        %v1909 = vsel %vm1227, %v1887, %v1623
        %v1910 = vsel %vm1227, %v1225, %v1625
        %v1911 = vsel %vm1227, %v1226, %v1627
        %v1912 = vsel %vm1227, %v1888, %v1629
        %v1913 = vsel %vm1227, %v1889, %v1631
        %v1914 = vsel %vm1227, %v1890, %v1633
        %v1915 = vsel %vm1227, %v1891, %v1635
        %v1916 = vsel %vm1227, %v1892, %v1637
        %v1917 = vsel %vm1227, %v1893, %v1639
        %v1918 = vsel %vm1227, %v1894, %v1641
        %v1919 = vsel %vm1227, %v1895, %v1643
        %v1920 = vsel %vm1227, %v1896, %v1645
        %v1921 = vsel %vm1227, %v1897, %v1647
        %v1922 = vsel %vm1244, %v1898, %v615
        %v1923 = vsel %vm1244, %v1899, %v617
        %v1924 = vsel %vm1244, %v1900, %v1674
        %v1925 = vsel %vm1244, %v1901, %v619
        %v1926 = vsel %vm1244, %v1902, %v621
        %v1927 = vsel %vm1244, %v1903, %v1676
        %v1928 = vsel %vm1244, %v1904, %v623
        %v1929 = vsel %vm1244, %v1905, %v625
        %v1930 = vsel %vm1244, %v1906, %v1678
        %v1931 = vsel %vm1244, %v1907, %v627
        %v1932 = vsel %vm1244, %v1908, %v629
        %v1933 = vsel %vm1244, %v1909, %v1680
        %v1934 = vsel %vm1244, %v1910, %v631
        %v1935 = vsel %vm1244, %v1911, %v633
        %v1936 = vsel %vm1244, %v1912, %v1682
        %v1937 = vsel %vm1244, %v1913, %v1684
        %v1938 = vsel %vm1244, %v1914, %v1686
        %v1939 = vsel %vm1244, %v1915, %v1688
        %v1940 = vsel %vm1244, %v1916, %v1690
        %v1941 = vsel %vm1244, %v1917, %v1692
        %v1942 = vsel %vm1244, %v1918, %v1694
        %v1943 = vsel %vm1244, %v1919, %v1696
        %v1944 = vsel %vm1244, %v1920, %v1698
        %v1945 = vsel %vm1244, %v1921, %v1700
        %v1946 = vsel %vm1261, %v1922, %v669
        %v1947 = vsel %vm1261, %v1923, %v671
        %v1948 = vsel %vm1261, %v1924, %v1721
        %v1949 = vsel %vm1261, %v1925, %v673
        %v1950 = vsel %vm1261, %v1926, %v675
        %v1951 = vsel %vm1261, %v1927, %v1723
        %v1952 = vsel %vm1261, %v1928, %v677
        %v1953 = vsel %vm1261, %v1929, %v679
        %v1954 = vsel %vm1261, %v1930, %v1725
        %v1955 = vsel %vm1261, %v1931, %v681
        %v1956 = vsel %vm1261, %v1932, %v683
        %v1957 = vsel %vm1261, %v1933, %v1727
        %v1958 = vsel %vm1261, %v1934, %v685
        %v1959 = vsel %vm1261, %v1935, %v687
        %v1960 = vsel %vm1261, %v1936, %v1729
        %v1961 = vsel %vm1261, %v1937, %v1731
        %v1962 = vsel %vm1261, %v1938, %v1733
        %v1963 = vsel %vm1261, %v1939, %v1735
        %v1964 = vsel %vm1261, %v1940, %v1737
        %v1965 = vsel %vm1261, %v1941, %v1739
        %v1966 = vsel %vm1261, %v1942, %v1741
        %v1967 = vsel %vm1261, %v1943, %v1743
        %v1968 = vsel %vm1261, %v1944, %v1745
        %v1969 = vsel %vm1261, %v1945, %v1747
        %v1970 = vsel %vm1278, %v1946, %v722
        %v1971 = vsel %vm1278, %v1947, %v724
        %v1972 = vsel %vm1278, %v1948, %v1768
        %v1973 = vsel %vm1278, %v1949, %v726
        %v1974 = vsel %vm1278, %v1950, %v728
        %v1975 = vsel %vm1278, %v1951, %v1770
        %v1976 = vsel %vm1278, %v1952, %v730
        %v1977 = vsel %vm1278, %v1953, %v732
        %v1978 = vsel %vm1278, %v1954, %v1772
        %v1979 = vsel %vm1278, %v1955, %v734
        %v1980 = vsel %vm1278, %v1956, %v736
        %v1981 = vsel %vm1278, %v1957, %v1774
        %v1982 = vsel %vm1278, %v1958, %v738
        %v1983 = vsel %vm1278, %v1959, %v740
        %v1984 = vsel %vm1278, %v1960, %v1776
        %v1985 = vsel %vm1278, %v1961, %v1778
        %v1986 = vsel %vm1278, %v1962, %v1780
        %v1987 = vsel %vm1278, %v1963, %v1782
        %v1988 = vsel %vm1278, %v1964, %v1784
        %v1989 = vsel %vm1278, %v1965, %v1786
        %v1990 = vsel %vm1278, %v1966, %v1788
        %v1991 = vsel %vm1278, %v1967, %v1790
        %v1992 = vsel %vm1278, %v1968, %v1792
        %v1993 = vsel %vm1278, %v1969, %v1794
        %v1994 = vsel %vm1295, %v1970, %v775
        %v1995 = vsel %vm1295, %v1971, %v777
        %v1996 = vsel %vm1295, %v1972, %v1815
        %v1997 = vsel %vm1295, %v1973, %v779
        %v1998 = vsel %vm1295, %v1974, %v781
        %v1999 = vsel %vm1295, %v1975, %v1817
        %v2000 = vsel %vm1295, %v1976, %v783
        %v2001 = vsel %vm1295, %v1977, %v785
        %v2002 = vsel %vm1295, %v1978, %v1819
        %v2003 = vsel %vm1295, %v1979, %v787
        %v2004 = vsel %vm1295, %v1980, %v789
        %v2005 = vsel %vm1295, %v1981, %v1821
        %v2006 = vsel %vm1295, %v1982, %v791
        %v2007 = vsel %vm1295, %v1983, %v793
        %v2008 = vsel %vm1295, %v1984, %v1823
        %v2009 = vsel %vm1295, %v1985, %v1825
        %v2010 = vsel %vm1295, %v1986, %v1827
        %v2011 = vsel %vm1295, %v1987, %v1829
        %v2012 = vsel %vm1295, %v1988, %v1831
        %v2013 = vsel %vm1295, %v1989, %v1833
        %v2014 = vsel %vm1295, %v1990, %v1835
        %v2015 = vsel %vm1295, %v1991, %v1837
        %v2016 = vsel %vm1295, %v1992, %v1839
        %v2017 = vsel %vm1295, %v1993, %v1841
        %v2042 = vrot.slane %v1994, 1
        %v2043 = vrot.slane %v1995, 1
        %v2044 = vsel %vm244, %v2042, %v2043
        %v2045 = vrot.slane %v1996, 1
        %v2046 = vsel %vm244, %v2043, %v2045
        %v2047 = vrot.slane %v1997, 1
        %v2048 = vrot.slane %v1998, 1
        %v2049 = vsel %vm244, %v2047, %v2048
        %v2050 = vrot.slane %v1999, 1
        %v2051 = vsel %vm244, %v2048, %v2050
        %v2052 = vrot.slane %v2000, 1
        %v2053 = vrot.slane %v2001, 1
        %v2054 = vsel %vm244, %v2052, %v2053
        %v2055 = vrot.slane %v2002, 1
        %v2056 = vsel %vm244, %v2053, %v2055
        %v2057 = vrot.slane %v2003, 1
        %v2058 = vrot.slane %v2004, 1
        %v2059 = vsel %vm244, %v2057, %v2058
        %v2060 = vrot.slane %v2005, 1
        %v2061 = vsel %vm244, %v2058, %v2060
        %v2062 = vrot.slane %v2006, 1
        %v2063 = vrot.slane %v2007, 1
        %v2064 = vsel %vm244, %v2062, %v2063
        %v2065 = vrot.slane %v2008, 1
        %v2066 = vsel %vm244, %v2063, %v2065
        %v2067 = vrot.slane %v2009, 1
        %v2068 = vrot.slane %v2010, 1
        %v2069 = vsel %vm244, %v2067, %v2068
        %v2070 = vrot.slane %v2011, 1
        %v2071 = vsel %vm244, %v2068, %v2070
        %v2072 = vrot.slane %v2012, 1
        %v2073 = vrot.slane %v2013, 1
        %v2074 = vsel %vm244, %v2072, %v2073
        %v2075 = vrot.slane %v2014, 1
        %v2076 = vsel %vm244, %v2073, %v2075
        %v2077 = vrot.slane %v2015, 1
        %v2078 = vrot.slane %v2016, 1
        %v2079 = vsel %vm244, %v2077, %v2078
        %v2080 = vrot.slane %v2017, 1
        %v2081 = vsel %vm244, %v2078, %v2080
        %2082 = vrot.lane.b32.xlu0 %v2044, 64
        %v2083 = vpop.permute.xlu0 %2082
        %2084 = vrot.lane.b32.xlu0 %v2046, 64
        %v2085 = vpop.permute.xlu0 %2084
        %2086 = vrot.lane.b32.xlu0 %v2049, 64
        %v2087 = vpop.permute.xlu0 %2086
        %2088 = vrot.lane.b32.xlu0 %v2051, 64
        %v2089 = vpop.permute.xlu0 %2088
        %2090 = vrot.lane.b32.xlu0 %v2054, 64
        %v2091 = vpop.permute.xlu0 %2090
        %2092 = vrot.lane.b32.xlu0 %v2056, 64
        %v2093 = vpop.permute.xlu0 %2092
        %2094 = vrot.lane.b32.xlu0 %v2059, 64
        %v2095 = vpop.permute.xlu0 %2094
        %2096 = vrot.lane.b32.xlu0 %v2061, 64
        %v2097 = vpop.permute.xlu0 %2096
        %2098 = vrot.lane.b32.xlu0 %v2064, 64
        %v2099 = vpop.permute.xlu0 %2098
        %2100 = vrot.lane.b32.xlu0 %v2066, 64
        %v2101 = vpop.permute.xlu0 %2100
        %2102 = vrot.lane.b32.xlu0 %v2069, 64
        %v2103 = vpop.permute.xlu0 %2102
        %2104 = vrot.lane.b32.xlu0 %v2071, 64
        %v2105 = vpop.permute.xlu0 %2104
        %2106 = vrot.lane.b32.xlu0 %v2074, 64
        %v2107 = vpop.permute.xlu0 %2106
        %2108 = vrot.lane.b32.xlu0 %v2076, 64
        %v2109 = vpop.permute.xlu0 %2108
        %2110 = vrot.lane.b32.xlu0 %v2079, 64
        %v2111 = vpop.permute.xlu0 %2110
        %2112 = vrot.lane.b32.xlu0 %v2081, 64
        %v2113 = vpop.permute.xlu0 %2112
        %vm2130 = vcmask 523264
        %v2131 = vsel %vm2130, %v1415, %v2083
        %v2132 = vsel %vm2130, %v1416, %v2085
        %v2133 = vsel %vm2130, %v1417, %v2087
        %v2134 = vsel %vm2130, %v1418, %v2089
        %v2135 = vsel %vm2130, %v1419, %v2091
        %v2136 = vsel %vm2130, %v1420, %v2093
        %v2137 = vsel %vm2130, %v1421, %v2095
        %v2138 = vsel %vm2130, %v1422, %v2097
        %v2139 = vsel %vm2130, %v1423, %v2099
        %v2140 = vsel %vm2130, %v1424, %v2101
        %v2141 = vsel %vm2130, %v1425, %v2103
        %v2142 = vsel %vm2130, %v1426, %v2105
        %v2143 = vsel %vm2130, %v1427, %v2107
        %v2144 = vsel %vm2130, %v1428, %v2109
        %v2145 = vsel %vm2130, %v1429, %v2111
        %v2146 = vsel %vm2130, %v1430, %v2113
        %vm2147 = vcmask 818176
        %v2149 = vsel %vm2147, %v2131, 0
        %v2152 = vsel %vm2147, %v2132, 0
        %v2155 = vsel %vm2147, %v2133, 0
        %v2158 = vsel %vm2147, %v2134, 0
        %v2161 = vsel %vm2147, %v2135, 0
        %v2164 = vsel %vm2147, %v2136, 0
        %v2167 = vsel %vm2147, %v2137, 0
        %v2170 = vsel %vm2147, %v2138, 0
        %v2173 = vsel %vm2147, %v2139, 0
        %v2176 = vsel %vm2147, %v2140, 0
        %v2179 = vsel %vm2147, %v2141, 0
        %v2182 = vsel %vm2147, %v2142, 0
        %v2185 = vsel %vm2147, %v2143, 0
        %v2188 = vsel %vm2147, %v2144, 0
        %v2191 = vsel %vm2147, %v2145, 0
        %v2194 = vsel %vm2147, %v2146, 0
        %v2197 = vsel %vm511, %v219, 0
        %2199 = vmatprep.subr.mxu0 0.0
        %2200 = vmatpush1.msra.mxu0 0.0
        %2201 = vmatprep.subr.mxu0 0.0
        %2202 = vmatpush1.msra.mxu0 0.0
        %2203 = vmatprep.subr.mxu0 0.0
        %2204 = vmatpush1.msra.mxu0 0.0
        %2205 = vmatprep.subr.mxu0 0.0
        %2206 = vmatpush1.msra.mxu0 %v2197
        %2207 = vmatprep.subr.mxu0 0.0
        %2208 = vmatpush1.msra.mxu0 %v218
        %2209 = vmatprep.subr.mxu0 0.0
        %2210 = vmatpush1.msra.mxu0 %v217
        %2211 = vmatprep.subr.mxu0 0.0
        %2212 = vmatpush1.msra.mxu0 %v216
        %2213 = vmatprep.subr.mxu0 0.0
        %2214 = vmatpush1.msra.mxu0 %v215
        %2215 = vmatprep.subr.mxu0 0.0
        %2216 = vmatpush1.msra.mxu0 %v214
        %2217 = vmatprep.subr.mxu0 0.0
        %2218 = vmatpush1.msra.mxu0 %v213
        %2219 = vmatprep.subr.mxu0 0.0
        %2220 = vmatpush1.msra.mxu0 %v212
        %2221 = vmatprep.subr.mxu0 0.0
        %2222 = vmatpush1.msra.mxu0 %v211
        %2223 = vmatprep.subr.mxu0 0.0
        %2224 = vmatpush1.msra.mxu0 %v210
        %2225 = vmatprep.subr.mxu0 0.0
        %2226 = vmatpush1.msra.mxu0 %v209
        %2227 = vmatprep.subr.mxu0 0.0
        %2228 = vmatpush1.msra.mxu0 %v208
        %2229 = vmatprep.subr.mxu0 0.0
        %2230 = vmatpush1.msra.mxu0 %v207
        %2231 = vmatprep.subr.mxu0 0.0
        %2232 = vmatpush2.msra.mxu0 0.0
        %2233 = vmatprep.subr.mxu0 0.0
        %2234 = vmatpush2.msra.mxu0 0.0
        %2235 = vmatprep.subr.mxu0 0.0
        %2236 = vmatpush2.msra.mxu0 0.0
        %2237 = vmatprep.subr.mxu0 0.0
        %2238 = vmatpush2.msra.mxu0 0.0
        %2239 = vmatprep.subr.mxu0 0.0
        %2240 = vmatpush2.msra.mxu0 0.0
        %2241 = vmatprep.subr.mxu0 0.0
        %2242 = vmatpush2.msra.mxu0 0.0
        %2243 = vmatprep.subr.mxu0 0.0
        %2244 = vmatpush2.msra.mxu0 0.0
        %2245 = vmatprep.subr.mxu0 0.0
        %2246 = vmatpush2.msra.mxu0 0.0
        %2247 = vmatprep.subr.mxu0 0.0
        %2248 = vmatpush2.msra.mxu0 0.0
        %2249 = vmatprep.subr.mxu0 0.0
        %2250 = vmatpush2.msra.mxu0 0.0
        %2251 = vmatprep.subr.mxu0 0.0
        %2252 = vmatpush2.msra.mxu0 0.0
        %2253 = vmatprep.subr.mxu0 0.0
        %2254 = vmatpush2.msra.mxu0 0.0
        %2255 = vmatprep.subr.mxu0 0.0
        %2256 = vmatpush2.msra.mxu0 0.0
        %2257 = vmatprep.subr.mxu0 0.0
        %2258 = vmatpush2.msra.mxu0 0.0
        %2259 = vmatprep.subr.mxu0 0.0
        %2260 = vmatpush2.msra.mxu0 0.0
        %2261 = vmatprep.subr.mxu0 0.0
        %2262 = vmatpush2.msra.mxu0 0.0
        %2263 = vmatprep.mubr.f32.mxu0 0.0
        %2264 = vmatmul.mubr.f32.gmra.mxu0 %v2149
        %v2265 = vpop.f32.mrf.mxu0
        %v2266 = vadd.f32 0.0, %v2265
        %v2267 = vpop.f32.mrf.mxu0
        %2268 = vmatprep.mubr.f32.mxu0 0.0
        %2269 = vmatmul.mubr.f32.gmra.mxu0 %v2152
        %v2270 = vpop.f32.mrf.mxu0
        %v2271 = vadd.f32 0.0, %v2270
        %v2272 = vpop.f32.mrf.mxu0
        %2273 = vmatprep.mubr.f32.mxu0 0.0
        %2274 = vmatmul.mubr.f32.gmra.mxu0 %v2155
        %v2275 = vpop.f32.mrf.mxu0
        %v2276 = vadd.f32 0.0, %v2275
        %v2277 = vpop.f32.mrf.mxu0
        %2278 = vmatprep.mubr.f32.mxu0 0.0
        %2279 = vmatmul.mubr.f32.gmra.mxu0 %v2158
        %v2280 = vpop.f32.mrf.mxu0
        %v2281 = vadd.f32 0.0, %v2280
        %v2282 = vpop.f32.mrf.mxu0
        %2283 = vmatprep.mubr.f32.mxu0 0.0
        %2284 = vmatmul.mubr.f32.gmra.mxu0 %v2161
        %v2285 = vpop.f32.mrf.mxu0
        %v2286 = vadd.f32 0.0, %v2285
        %v2287 = vpop.f32.mrf.mxu0
        %2288 = vmatprep.mubr.f32.mxu0 0.0
        %2289 = vmatmul.mubr.f32.gmra.mxu0 %v2164
        %v2290 = vpop.f32.mrf.mxu0
        %v2291 = vadd.f32 0.0, %v2290
        %v2292 = vpop.f32.mrf.mxu0
        %2293 = vmatprep.mubr.f32.mxu0 0.0
        %2294 = vmatmul.mubr.f32.gmra.mxu0 %v2167
        %v2295 = vpop.f32.mrf.mxu0
        %v2296 = vadd.f32 0.0, %v2295
        %v2297 = vpop.f32.mrf.mxu0
        %2298 = vmatprep.mubr.f32.mxu0 0.0
        %2299 = vmatmul.mubr.f32.gmra.mxu0 %v2170
        %v2300 = vpop.f32.mrf.mxu0
        %v2301 = vadd.f32 0.0, %v2300
        %v2302 = vpop.f32.mrf.mxu0
        %2303 = vmatprep.mubr.f32.mxu0 0.0
        %2304 = vmatmul.mubr.f32.gmra.mxu0 %v2173
        %v2305 = vpop.f32.mrf.mxu0
        %v2306 = vadd.f32 0.0, %v2305
        %v2307 = vpop.f32.mrf.mxu0
        %2308 = vmatprep.mubr.f32.mxu0 0.0
        %2309 = vmatmul.mubr.f32.gmra.mxu0 %v2176
        %v2310 = vpop.f32.mrf.mxu0
        %v2311 = vadd.f32 0.0, %v2310
        %v2312 = vpop.f32.mrf.mxu0
        %2313 = vmatprep.mubr.f32.mxu0 0.0
        %2314 = vmatmul.mubr.f32.gmra.mxu0 %v2179
        %v2315 = vpop.f32.mrf.mxu0
        %v2316 = vadd.f32 0.0, %v2315
        %v2317 = vpop.f32.mrf.mxu0
        %2318 = vmatprep.mubr.f32.mxu0 0.0
        %2319 = vmatmul.mubr.f32.gmra.mxu0 %v2182
        %v2320 = vpop.f32.mrf.mxu0
        %v2321 = vadd.f32 0.0, %v2320
        %v2322 = vpop.f32.mrf.mxu0
        %2323 = vmatprep.mubr.f32.mxu0 0.0
        %2324 = vmatmul.mubr.f32.gmra.mxu0 %v2185
        %v2325 = vpop.f32.mrf.mxu0
        %v2326 = vadd.f32 0.0, %v2325
        %v2327 = vpop.f32.mrf.mxu0
        %2328 = vmatprep.mubr.f32.mxu0 0.0
        %2329 = vmatmul.mubr.f32.gmra.mxu0 %v2188
        %v2330 = vpop.f32.mrf.mxu0
        %v2331 = vadd.f32 0.0, %v2330
        %v2332 = vpop.f32.mrf.mxu0
        %2333 = vmatprep.mubr.f32.mxu0 0.0
        %2334 = vmatmul.mubr.f32.gmra.mxu0 %v2191
        %v2335 = vpop.f32.mrf.mxu0
        %v2336 = vadd.f32 0.0, %v2335
        %v2337 = vpop.f32.mrf.mxu0
        %2338 = vmatprep.mubr.f32.mxu0 0.0
        %2339 = vmatmul.mubr.f32.gmra.mxu0 %v2194
        %v2340 = vpop.f32.mrf.mxu0
        %v2341 = vadd.f32 0.0, %v2340
        %v2342 = vpop.f32.mrf.mxu0
        %2343 = vdwg.mxu0
        %v2344 = vmax.f32 %v2266, 0.0
        %v2345 = vmax.f32 %v2271, 0.0
        %v2346 = vmax.f32 %v2276, 0.0
        %v2347 = vmax.f32 %v2281, 0.0
        %v2348 = vmax.f32 %v2286, 0.0
        %v2349 = vmax.f32 %v2291, 0.0
        %v2350 = vmax.f32 %v2296, 0.0
        %v2351 = vmax.f32 %v2301, 0.0
        %v2352 = vmax.f32 %v2306, 0.0
        %v2353 = vmax.f32 %v2311, 0.0
        %v2354 = vmax.f32 %v2316, 0.0
        %v2355 = vmax.f32 %v2321, 0.0
        %v2356 = vmax.f32 %v2326, 0.0
        %v2357 = vmax.f32 %v2331, 0.0
        %v2358 = vmax.f32 %v2336, 0.0
        %v2359 = vmax.f32 %v2341, 0.0
        %2360 = vst [vmem:[%s160] sm:$0xff] %v2344
        %2361 = vst [vmem:[%s160 + $0x8] sm:$0xff] %v2345
        %2362 = vst [vmem:[%s160 + $0x10] sm:$0xff] %v2346
        %2363 = vst [vmem:[%s160 + $0x18] sm:$0xff] %v2347
        %2364 = vst [vmem:[%s160 + $0x20] sm:$0xff] %v2348
        %2365 = vst [vmem:[%s160 + $0x28] sm:$0xff] %v2349
        %2366 = vst [vmem:[%s160 + $0x30] sm:$0xff] %v2350
        %2367 = vst [vmem:[%s160 + $0x38] sm:$0xff] %v2351
        %2368 = vst [vmem:[%s160 + $0x40] sm:$0xff] %v2352
        %2369 = vst [vmem:[%s160 + $0x48] sm:$0xff] %v2353
        %2370 = vst [vmem:[%s160 + $0x50] sm:$0xff] %v2354
        %2371 = vst [vmem:[%s160 + $0x58] sm:$0xff] %v2355
        %2372 = vst [vmem:[%s160 + $0x60] sm:$0xff] %v2356
        %2373 = vst [vmem:[%s160 + $0x68] sm:$0xff] %v2357
        %2374 = vst [vmem:[%s160 + $0x70] sm:$0xff] %v2358
        %2375 = vst [vmem:[%s160 + $0x78] sm:$0xff] %v2359
        %s2376 = sand.u32 %s89, 1
        %s2377 = scalar_lea.sflag [#allocation3], %s2376
        %s2378 = sand.u32 %s89, 1
        %s2379 = smul.addr %s2378, 128
        %s2380 = scalar_lea.vmem [#allocation2], %s2379
        // Predicated region
        $region29: #{tpu_custom_call.1} parent=27 // pred_check
          %p2381 = pneg %p99
        $region30: #{tpu_custom_call.1} parent=27 // pred_check_branch
          %2383 = sbr.rel (%p2381) target = $region32
        $region31: #{tpu_custom_call.1} parent=27 // pred_region
          %s2384 = smul.u32 8, %s21
          %s2386 = ssub.s32 2048, 2048
          %2387 = vsyncadd %s2377, %s2386
          %s2388 = smul.addr %s2384, 2
          %s2389 = smul.addr %s20, 32
          %s2390 = sadd.s32 %s2388, %s2389
          %s2391 = smul.addr %s2390, 128
          %s2392 = scalar_lea.hbm %s2, %s2391
          %s2393 = sshll.u32 %s2380, 4
          %s2394 = int_to_ptr.vmem [resolvable:$true] %s2393
          %2399 = dma.vmem_to_hbm [thread:$0]  %s2394, 2048, %s2392, %s2377, 128, 128, 8
        $region32: #{tpu_custom_call.1} parent=27 // pred_fallthru
          _
      $region28: #{tpu_custom_call.1} parent=5 // pred_fallthru
        _
      %p2400 = scmp.le.s32.totalorder 2, %s11
      // Predicated region
      $region33: #{tpu_custom_call.1} parent=5 // pred_check
        %p2401 = pneg %p2400
      $region34: #{tpu_custom_call.1} parent=5 // pred_check_branch
        %2403 = sbr.rel (%p2401) target = $region36
      $region35: #{tpu_custom_call.1} parent=5 // pred_region
        %s2404 = ssub.s32 %s11, 2
        // Predicated region
        $region37: #{tpu_custom_call.1} parent=35 // pred_check
          %p2405 = pneg %p105
        $region38: #{tpu_custom_call.1} parent=35 // pred_check_branch
          %2407 = sbr.rel (%p2405) target = $region40
        $region39: #{tpu_custom_call.1} parent=35 // pred_region
          %s2408 = sand.u32 %s90, 1
          %s2409 = scalar_lea.sflag [#allocation3], %s2408
          %s2410 = sand.u32 %s90, 1
          %s2411 = smul.addr %s2410, 128
          %s2412 = scalar_lea.vmem [#allocation2], %s2411
          %2413 = dma.done %s2409, 2048
        $region40: #{tpu_custom_call.1} parent=35 // pred_fallthru
          _
      $region36: #{tpu_custom_call.1} parent=5 // pred_fallthru
        _
    $region6: #{tpu_custom_call.1} parent=1 // loop_footer
      %s15 = sadd.s32 1, %s11
    $region7: #{tpu_custom_call.1} parent=1 // loop_footer_branch
      %10 = sbr.rel target = $region3
    $region8: #{tpu_custom_call.1} parent=1 // loop_exit
      _
    %2414 = vsyncpa [#allocation3], 1
    %s2415 = scalar_lea.sflag [#allocation3], 1
    %2416 = vsyncpa %s2415, 1

// kernel: tpu_custom_call.1
$region0: #{tpu_custom_call.1}
  #allocation0 [shape = 'u32[]', space=smem, size = 0x4, offset = 0x4, fixed_abs, tag = 'smem constant byte address 0x4 - core index']
  #allocation1 [shape = 'u32[144,128]{1,0:T(1,128)}', space=vmem, size = 0x12000, scoped, tag = 'internal scratch']
  %s0 = inlined_call_operand.vmem [shape: f32[4,12,20,4], index: 0, kind: input, shape index: {}]
  %s1 = inlined_call_operand.vmem [shape: f32[100,128], index: 1, kind: input, shape index: {}]
  %s2 = inlined_call_operand.hbm [shape: f32[2,16,16,128], index: 2, kind: output, shape index: {}]
  %s3 = sld [smem:[#allocation0]]
  $region41: #{tpu_custom_call.1} parent=0
    _
  %s5 = ssub.s32 1, %s3
  %s6 = scalar_select 0, %s5, %s3
  $region1: #{tpu_custom_call.1} parent=0
    #allocation2 [shape = 'u8[131072]{0}', space=vmem, size = 0x20000, scoped, tag = 'output window, operand 0']
    #allocation3 [shape = 's32[2]{0}', space=sflag, size = 0x8, scoped, tag = 'scoped memory for tpu_custom_call.1']
    %7 = vsyncpa [#allocation3], 0
    %s8 = scalar_lea.sflag [#allocation3], 1
    %9 = vsyncpa %s8, 0
    loop: start=0, step=1, limit=6
    $region2: #{tpu_custom_call.1} parent=1 // loop_pre_header
      _
    $region3: #{tpu_custom_call.1} parent=1 // loop_header
      %s11 = sphi 0, %s15
      %p12 = scmp.ge.s32.totalorder %s11, 6
      %s18 = sphi 0, %s30
      %s19 = sphi 0, %s26
      %s20 = sphi 0, %s18
      %s21 = sphi 0, %s19
      %s22 = sphi 0, %s20
      %s23 = sphi 0, %s21
      %s37 = sphi 0, %s39
      %s40 = sphi 0, %s37
      %s41 = sphi 0, %s40
      %s57 = sphi 0, %s41
      %s61 = sphi 0, %s61
      %s63 = sphi 0, %s61
      %s64 = sphi 0, %s63
      %s78 = sphi 0, %s64
      %s86 = sphi 0, %s88
      %s89 = sphi 0, %s86
      %s90 = sphi 0, %s89
      %s106 = sphi 0, %s90
    $region4: #{tpu_custom_call.1} parent=1 // loop_header_branch
      %14 = sbr.rel (%p12) target = $region8
    $region5: #{tpu_custom_call.1} parent=1 // loop_body
      %s16 = ssub.s32 %s11, 1
      %s17 = ssub.s32 %s11, 2
      %s24 = sadd.s32 1, %s19
      %p25 = scmp.ge.s32.totalorder %s24, 2
      %s26 = scalar_select %p25, 0, %s24
      %s27 = sadd.s32 1, %s18
      %s28 = scalar_select %p25, %s27, %s18
      %p29 = scmp.ge.s32.totalorder %s28, 2
      %s30 = scalar_select %p29, 0, %s28
      %s31 = smul.u32 %s18, 2
      %s32 = sadd.s32 %s31, %s19
      %s33 = smul.u32 %s30, 2
      %s34 = sadd.s32 %s33, %s26
      %s35 = ssub.s32 %s32, %s34
      %p36 = scmp.eq.s32.totalorder %s35, 0
      %s38 = sadd.s32 %s37, 1
      %s39 = scalar_select %p36, %s37, %s38
      %p42 = pneg %p36
      %p43 = scmp.eq.s32.totalorder %s11, 3
      %p44 = por %p42, %p43
      %p45 = scmp.ne.s32.totalorder %s37, %s40
      %p46 = scmp.eq.s32.totalorder %s11, 0
      %p47 = por %p45, %p46
      %p48 = scmp.ne.s32.totalorder %s37, %s40
      %p49 = scmp.eq.s32.totalorder %s16, 3
      %p50 = por %p48, %p49
      %p51 = scmp.ne.s32.totalorder %s40, %s41
      %p52 = scmp.eq.s32.totalorder %s16, 0
      %p53 = por %p51, %p52
      %p54 = scmp.ne.s32.totalorder %s40, %s41
      %p55 = scmp.eq.s32.totalorder %s17, 3
      %p56 = por %p54, %p55
      %p58 = scmp.ne.s32.totalorder %s41, %s57
      %p59 = scmp.eq.s32.totalorder %s17, 0
      %p60 = por %p58, %p59
      %s62 = sadd.s32 %s61, 1
      %p65 = scmp.eq.s32.totalorder %s11, 3
      %p66 = scmp.ne.s32.totalorder %s61, %s63
      %p67 = scmp.eq.s32.totalorder %s11, 0
      %p68 = por %p66, %p67
      %p69 = scmp.ne.s32.totalorder %s61, %s63
      %p70 = scmp.eq.s32.totalorder %s16, 3
      %p71 = por %p69, %p70
      %p72 = scmp.ne.s32.totalorder %s63, %s64
      %p73 = scmp.eq.s32.totalorder %s16, 0
      %p74 = por %p72, %p73
      %p75 = scmp.ne.s32.totalorder %s63, %s64
      %p76 = scmp.eq.s32.totalorder %s17, 3
      %p77 = por %p75, %p76
      %p79 = scmp.ne.s32.totalorder %s64, %s78
      %p80 = scmp.eq.s32.totalorder %s17, 0
      %p81 = por %p79, %p80
      %s82 = ssub.s32 %s18, %s30
      %s83 = ssub.s32 %s19, %s26
      %s84 = sor.u32 %s82, %s83
      %p85 = scmp.eq.s32.totalorder %s84, 0
      %s87 = sadd.s32 %s86, 1
      %s88 = scalar_select %p85, %s86, %s87
      %p91 = pneg %p85
      %p92 = scmp.eq.s32.totalorder %s11, 3
      %p93 = por %p91, %p92
      %p94 = scmp.ne.s32.totalorder %s86, %s89
      %p95 = scmp.eq.s32.totalorder %s11, 0
      %p96 = por %p94, %p95
      %p97 = scmp.ne.s32.totalorder %s86, %s89
      %p98 = scmp.eq.s32.totalorder %s16, 3
      %p99 = por %p97, %p98
      %p100 = scmp.ne.s32.totalorder %s89, %s90
      %p101 = scmp.eq.s32.totalorder %s16, 0
      %p102 = por %p100, %p101
      %p103 = scmp.ne.s32.totalorder %s89, %s90
      %p104 = scmp.eq.s32.totalorder %s17, 3
      %p105 = por %p103, %p104
      %p107 = scmp.ne.s32.totalorder %s90, %s106
      %p108 = scmp.eq.s32.totalorder %s17, 0
      %p109 = por %p107, %p108
      %p110 = scmp.le.s32.totalorder 1, %s11
      %p111 = scmp.lt.s32.totalorder %s11, 5
      %p112 = pnand %p110, %p111
      %p113 = pneg %p112
      // Predicated region
      $region9: #{tpu_custom_call.1} parent=5 // pred_check
        _
      $region10: #{tpu_custom_call.1} parent=5 // pred_check_branch
        %115 = sbr.rel (%p112) target = $region12
      $region11: #{tpu_custom_call.1} parent=5 // pred_region
        %s116 = ssub.s32 %s11, 1
        // Predicated region
        $region13: #{tpu_custom_call.1} parent=11 // pred_check
          %p117 = pneg %p74
        $region14: #{tpu_custom_call.1} parent=11 // pred_check_branch
          %119 = sbr.rel (%p117) target = $region16
        $region15: #{tpu_custom_call.1} parent=11 // pred_region
          _
        $region16: #{tpu_custom_call.1} parent=11 // pred_fallthru
          _
      $region12: #{tpu_custom_call.1} parent=5 // pred_fallthru
        _
      %p120 = scmp.lt.s32.totalorder %s11, 4
      // Predicated region
      $region17: #{tpu_custom_call.1} parent=5 // pred_check
        %p121 = pneg %p120
      $region18: #{tpu_custom_call.1} parent=5 // pred_check_branch
        %123 = sbr.rel (%p121) target = $region20
      $region19: #{tpu_custom_call.1} parent=5 // pred_region
        // Predicated region
        $region21: #{tpu_custom_call.1} parent=19 // pred_check
          %p124 = pneg %p47
        $region22: #{tpu_custom_call.1} parent=19 // pred_check_branch
          %126 = sbr.rel (%p124) target = $region24
        $region23: #{tpu_custom_call.1} parent=19 // pred_region
          %s127 = smul.u32 %s18, 2
          %s128 = sadd.s32 %s127, %s19
          %p129 = scmp.lt.s32.totalorder %s128, 3
          %s130 = scalar_select %p129, %s128, 3
          %s131 = smul.addr %s130, 36
          %s132 = smul.addr %s131, 8
          %s133 = scalar_lea.vmem %s0, %s132
          %s134 = smul.u32 %s18, 2
          %s135 = sadd.s32 %s134, %s19
        $region24: #{tpu_custom_call.1} parent=19 // pred_fallthru
          _
      $region20: #{tpu_custom_call.1} parent=5 // pred_fallthru
        _
      %p136 = scmp.le.s32.totalorder 1, %s11
      %p137 = scmp.lt.s32.totalorder %s11, 5
      %p138 = pnand %p136, %p137
      %p139 = pneg %p138
      // Predicated region
      $region25: #{tpu_custom_call.1} parent=5 // pred_check
        _
      $region26: #{tpu_custom_call.1} parent=5 // pred_check_branch
        %141 = sbr.rel (%p138) target = $region28
      $region27: #{tpu_custom_call.1} parent=5 // pred_region
        %s142 = ssub.s32 %s11, 1
        %s143 = smul.u32 %s20, 2
        %s144 = sadd.s32 %s143, %s21
        %p145 = scmp.lt.s32.totalorder %s144, 3
        %s146 = scalar_select %p145, %s144, 3
        %s147 = smul.addr %s146, 36
        %s148 = smul.addr %s147, 8
        %s149 = scalar_lea.vmem %s0, %s148
        %p150 = pneg %p53
        %p151 = pneg %p50
        %p152 = pneg %p74
        %p153 = pneg %p71
        %p154 = pneg %p102
        %p155 = pneg %p99
        %s156 = sand.u32 %s89, 1
        %s157 = scalar_lea.sflag [#allocation3], %s156
        %s158 = sand.u32 %s89, 1
        %s159 = smul.addr %s158, 128
        %s160 = scalar_lea.vmem [#allocation2], %s159
        %s161 = smul.u32 %s20, 2
        %s162 = sadd.s32 %s161, %s21
        %p163 = scmp.lt.s32.totalorder %s162, 3
        %s164 = scalar_select %p163, %s162, 3
        %s165 = smul.addr %s164, 36
        %s166 = smul.addr %s165, 8
        %s167 = scalar_lea.vmem %s0, %s166
        %s168 = smul.u32 %s20, 2
        %s169 = sadd.s32 %s168, %s21
        %s170 = smul.u32 8, %s21
        %v171 = vld [vmem:[%s167] sm:$0xff]
        %v172 = vld [vmem:[%s167 + $0x8] sm:$0xff]
        %v173 = vld [vmem:[%s167 + $0x10] sm:$0xf]
        %v174 = vld [vmem:[%s167 + $0x18] sm:$0xff]
        %v175 = vld [vmem:[%s167 + $0x20] sm:$0xff]
        %v176 = vld [vmem:[%s167 + $0x28] sm:$0xf]
        %v177 = vld [vmem:[%s167 + $0x30] sm:$0xff]
        %v178 = vld [vmem:[%s167 + $0x38] sm:$0xff]
        %v179 = vld [vmem:[%s167 + $0x40] sm:$0xf]
        %v180 = vld [vmem:[%s167 + $0x48] sm:$0xff]
        %v181 = vld [vmem:[%s167 + $0x50] sm:$0xff]
        %v182 = vld [vmem:[%s167 + $0x58] sm:$0xf]
        %v183 = vld [vmem:[%s167 + $0x60] sm:$0xff]
        %v184 = vld [vmem:[%s167 + $0x68] sm:$0xff]
        %v185 = vld [vmem:[%s167 + $0x70] sm:$0xf]
        %v186 = vld [vmem:[%s167 + $0x78] sm:$0xff]
        %v187 = vld [vmem:[%s167 + $0x80] sm:$0xff]
        %v188 = vld [vmem:[%s167 + $0x88] sm:$0xf]
        %v189 = vld [vmem:[%s167 + $0x90] sm:$0xff]
        %v190 = vld [vmem:[%s167 + $0x98] sm:$0xff]
        %v191 = vld [vmem:[%s167 + $0xa0] sm:$0xf]
        %v192 = vld [vmem:[%s167 + $0xa8] sm:$0xff]
        %v193 = vld [vmem:[%s167 + $0xb0] sm:$0xff]
        %v194 = vld [vmem:[%s167 + $0xb8] sm:$0xf]
        %v195 = vld [vmem:[%s167 + $0xc0] sm:$0xff]
        %v196 = vld [vmem:[%s167 + $0xc8] sm:$0xff]
        %v197 = vld [vmem:[%s167 + $0xd0] sm:$0xf]
        %v198 = vld [vmem:[%s167 + $0xd8] sm:$0xff]
        %v199 = vld [vmem:[%s167 + $0xe0] sm:$0xff]
        %v200 = vld [vmem:[%s167 + $0xe8] sm:$0xf]
        %v201 = vld [vmem:[%s167 + $0xf0] sm:$0xff]
        %v202 = vld [vmem:[%s167 + $0xf8] sm:$0xff]
        %v203 = vld [vmem:[%s167 + $0x100] sm:$0xf]
        %v204 = vld [vmem:[%s167 + $0x108] sm:$0xff]
        %v205 = vld [vmem:[%s167 + $0x110] sm:$0xff]
        %v206 = vld [vmem:[%s167 + $0x118] sm:$0xf]
        %v207 = vld [vmem:[%s1] sm:$0xff]
        %v208 = vld [vmem:[%s1 + $0x8] sm:$0xff]
        %v209 = vld [vmem:[%s1 + $0x10] sm:$0xff]
        %v210 = vld [vmem:[%s1 + $0x18] sm:$0xff]
        %v211 = vld [vmem:[%s1 + $0x20] sm:$0xff]
        %v212 = vld [vmem:[%s1 + $0x28] sm:$0xff]
        %v213 = vld [vmem:[%s1 + $0x30] sm:$0xff]
        %v214 = vld [vmem:[%s1 + $0x38] sm:$0xff]
        %v215 = vld [vmem:[%s1 + $0x40] sm:$0xff]
        %v216 = vld [vmem:[%s1 + $0x48] sm:$0xff]
        %v217 = vld [vmem:[%s1 + $0x50] sm:$0xff]
        %v218 = vld [vmem:[%s1 + $0x58] sm:$0xff]
        %v219 = vld [vmem:[%s1 + $0x60] sm:$0xf]
        %vm244 = vcmask 1046528
        %v245 = vrot.slane %v171, 1
        %v246 = vrot.slane %v172, 1
        %v247 = vsel %vm244, %v245, %v246
        %v248 = vrot.slane %v173, 1
        %v249 = vsel %vm244, %v246, %v248
        %v250 = vrot.slane %v174, 1
        %v251 = vrot.slane %v175, 1
        %v252 = vsel %vm244, %v250, %v251
        %v253 = vrot.slane %v176, 1
        %v254 = vsel %vm244, %v251, %v253
        %v255 = vrot.slane %v177, 1
        %v256 = vrot.slane %v178, 1
        %v257 = vsel %vm244, %v255, %v256
        %v258 = vrot.slane %v179, 1
        %v259 = vsel %vm244, %v256, %v258
        %v260 = vrot.slane %v180, 1
        %v261 = vrot.slane %v181, 1
        %v262 = vsel %vm244, %v260, %v261
        %v263 = vrot.slane %v182, 1
        %v264 = vsel %vm244, %v261, %v263
        %v265 = vrot.slane %v183, 1
        %v266 = vrot.slane %v184, 1
        %v267 = vsel %vm244, %v265, %v266
        %v268 = vrot.slane %v185, 1
        %v269 = vsel %vm244, %v266, %v268
        %v270 = vrot.slane %v186, 1
        %v271 = vrot.slane %v187, 1
        %v272 = vsel %vm244, %v270, %v271
        %v273 = vrot.slane %v188, 1
        %v274 = vsel %vm244, %v271, %v273
        %v275 = vrot.slane %v189, 1
        %v276 = vrot.slane %v190, 1
        %v277 = vsel %vm244, %v275, %v276
        %v278 = vrot.slane %v191, 1
        %v279 = vsel %vm244, %v276, %v278
        %v280 = vrot.slane %v192, 1
        %v281 = vrot.slane %v193, 1
        %v282 = vsel %vm244, %v280, %v281
        %v283 = vrot.slane %v194, 1
        %v284 = vsel %vm244, %v281, %v283
        %v286 = vrot.slane %v207, 4
        %vm287 = vcmask 31744
        %v288 = vsel %vm287, %v247, 0
        %v290 = vsel %vm287, %v249, 0
        %v292 = vsel %vm287, %v252, 0
        %v294 = vsel %vm287, %v254, 0
        %v296 = vsel %vm287, %v257, 0
        %v298 = vsel %vm287, %v259, 0
        %v300 = vsel %vm287, %v262, 0
        %v302 = vsel %vm287, %v264, 0
        %v304 = vsel %vm287, %v267, 0
        %v306 = vsel %vm287, %v269, 0
        %v308 = vsel %vm287, %v272, 0
        %v310 = vsel %vm287, %v274, 0
        %v312 = vsel %vm287, %v277, 0
        %v314 = vsel %vm287, %v279, 0
        %v316 = vsel %vm287, %v282, 0
        %v318 = vsel %vm287, %v284, 0
        %vm320 = vcmask 1043456
        %v321 = vsel %vm320, %v286, 0
        %323 = vmatprep.subr.mxu0 0.0
        %324 = vmatpush1.msra.mxu0 0.0
        %325 = vmatprep.subr.mxu0 0.0
        %326 = vmatpush1.msra.mxu0 0.0
        %327 = vmatprep.subr.mxu0 0.0
        %328 = vmatpush1.msra.mxu0 0.0
        %329 = vmatprep.subr.mxu0 0.0
        %330 = vmatpush1.msra.mxu0 0.0
        %331 = vmatprep.subr.mxu0 0.0
        %332 = vmatpush1.msra.mxu0 0.0
        %333 = vmatprep.subr.mxu0 0.0
        %334 = vmatpush1.msra.mxu0 0.0
        %335 = vmatprep.subr.mxu0 0.0
        %336 = vmatpush1.msra.mxu0 0.0
        %337 = vmatprep.subr.mxu0 0.0
        %338 = vmatpush1.msra.mxu0 0.0
        %339 = vmatprep.subr.mxu0 0.0
        %340 = vmatpush1.msra.mxu0 0.0
        %341 = vmatprep.subr.mxu0 0.0
        %342 = vmatpush1.msra.mxu0 0.0
        %343 = vmatprep.subr.mxu0 0.0
        %344 = vmatpush1.msra.mxu0 0.0
        %345 = vmatprep.subr.mxu0 0.0
        %346 = vmatpush1.msra.mxu0 0.0
        %347 = vmatprep.subr.mxu0 0.0
        %348 = vmatpush1.msra.mxu0 0.0
        %349 = vmatprep.subr.mxu0 0.0
        %350 = vmatpush1.msra.mxu0 0.0
        %351 = vmatprep.subr.mxu0 0.0
        %352 = vmatpush1.msra.mxu0 0.0
        %353 = vmatprep.subr.mxu0 0.0
        %354 = vmatpush1.msra.mxu0 %v321
        %355 = vmatprep.subr.mxu0 0.0
        %356 = vmatpush2.msra.mxu0 0.0
        %357 = vmatprep.subr.mxu0 0.0
        %358 = vmatpush2.msra.mxu0 0.0
        %359 = vmatprep.subr.mxu0 0.0
        %360 = vmatpush2.msra.mxu0 0.0
        %361 = vmatprep.subr.mxu0 0.0
        %362 = vmatpush2.msra.mxu0 0.0
        %363 = vmatprep.subr.mxu0 0.0
        %364 = vmatpush2.msra.mxu0 0.0
        %365 = vmatprep.subr.mxu0 0.0
        %366 = vmatpush2.msra.mxu0 0.0
        %367 = vmatprep.subr.mxu0 0.0
        %368 = vmatpush2.msra.mxu0 0.0
        %369 = vmatprep.subr.mxu0 0.0
        %370 = vmatpush2.msra.mxu0 0.0
        %371 = vmatprep.subr.mxu0 0.0
        %372 = vmatpush2.msra.mxu0 0.0
        %373 = vmatprep.subr.mxu0 0.0
        %374 = vmatpush2.msra.mxu0 0.0
        %375 = vmatprep.subr.mxu0 0.0
        %376 = vmatpush2.msra.mxu0 0.0
        %377 = vmatprep.subr.mxu0 0.0
        %378 = vmatpush2.msra.mxu0 0.0
        %379 = vmatprep.subr.mxu0 0.0
        %380 = vmatpush2.msra.mxu0 0.0
        %381 = vmatprep.subr.mxu0 0.0
        %382 = vmatpush2.msra.mxu0 0.0
        %383 = vmatprep.subr.mxu0 0.0
        %384 = vmatpush2.msra.mxu0 0.0
        %385 = vmatprep.subr.mxu0 0.0
        %386 = vmatpush2.msra.mxu0 0.0
        %387 = vmatprep.mubr.f32.mxu0 0.0
        %388 = vmatmul.mubr.f32.gmra.mxu0 %v288
        %v389 = vpop.f32.mrf.mxu0
        %v390 = vadd.f32 0.0, %v389
        %v391 = vpop.f32.mrf.mxu0
        %392 = vmatprep.mubr.f32.mxu0 0.0
        %393 = vmatmul.mubr.f32.gmra.mxu0 %v290
        %v394 = vpop.f32.mrf.mxu0
        %v395 = vadd.f32 0.0, %v394
        %v396 = vpop.f32.mrf.mxu0
        %397 = vmatprep.mubr.f32.mxu0 0.0
        %398 = vmatmul.mubr.f32.gmra.mxu0 %v292
        %v399 = vpop.f32.mrf.mxu0
        %v400 = vadd.f32 0.0, %v399
        %v401 = vpop.f32.mrf.mxu0
        %402 = vmatprep.mubr.f32.mxu0 0.0
        %403 = vmatmul.mubr.f32.gmra.mxu0 %v294
        %v404 = vpop.f32.mrf.mxu0
        %v405 = vadd.f32 0.0, %v404
        %v406 = vpop.f32.mrf.mxu0
        %407 = vmatprep.mubr.f32.mxu0 0.0
        %408 = vmatmul.mubr.f32.gmra.mxu0 %v296
        %v409 = vpop.f32.mrf.mxu0
        %v410 = vadd.f32 0.0, %v409
        %v411 = vpop.f32.mrf.mxu0
        %412 = vmatprep.mubr.f32.mxu0 0.0
        %413 = vmatmul.mubr.f32.gmra.mxu0 %v298
        %v414 = vpop.f32.mrf.mxu0
        %v415 = vadd.f32 0.0, %v414
        %v416 = vpop.f32.mrf.mxu0
        %417 = vmatprep.mubr.f32.mxu0 0.0
        %418 = vmatmul.mubr.f32.gmra.mxu0 %v300
        %v419 = vpop.f32.mrf.mxu0
        %v420 = vadd.f32 0.0, %v419
        %v421 = vpop.f32.mrf.mxu0
        %422 = vmatprep.mubr.f32.mxu0 0.0
        %423 = vmatmul.mubr.f32.gmra.mxu0 %v302
        %v424 = vpop.f32.mrf.mxu0
        %v425 = vadd.f32 0.0, %v424
        %v426 = vpop.f32.mrf.mxu0
        %427 = vmatprep.mubr.f32.mxu0 0.0
        %428 = vmatmul.mubr.f32.gmra.mxu0 %v304
        %v429 = vpop.f32.mrf.mxu0
        %v430 = vadd.f32 0.0, %v429
        %v431 = vpop.f32.mrf.mxu0
        %432 = vmatprep.mubr.f32.mxu0 0.0
        %433 = vmatmul.mubr.f32.gmra.mxu0 %v306
        %v434 = vpop.f32.mrf.mxu0
        %v435 = vadd.f32 0.0, %v434
        %v436 = vpop.f32.mrf.mxu0
        %437 = vmatprep.mubr.f32.mxu0 0.0
        %438 = vmatmul.mubr.f32.gmra.mxu0 %v308
        %v439 = vpop.f32.mrf.mxu0
        %v440 = vadd.f32 0.0, %v439
        %v441 = vpop.f32.mrf.mxu0
        %442 = vmatprep.mubr.f32.mxu0 0.0
        %443 = vmatmul.mubr.f32.gmra.mxu0 %v310
        %v444 = vpop.f32.mrf.mxu0
        %v445 = vadd.f32 0.0, %v444
        %v446 = vpop.f32.mrf.mxu0
        %447 = vmatprep.mubr.f32.mxu0 0.0
        %448 = vmatmul.mubr.f32.gmra.mxu0 %v312
        %v449 = vpop.f32.mrf.mxu0
        %v450 = vadd.f32 0.0, %v449
        %v451 = vpop.f32.mrf.mxu0
        %452 = vmatprep.mubr.f32.mxu0 0.0
        %453 = vmatmul.mubr.f32.gmra.mxu0 %v314
        %v454 = vpop.f32.mrf.mxu0
        %v455 = vadd.f32 0.0, %v454
        %v456 = vpop.f32.mrf.mxu0
        %457 = vmatprep.mubr.f32.mxu0 0.0
        %458 = vmatmul.mubr.f32.gmra.mxu0 %v316
        %v459 = vpop.f32.mrf.mxu0
        %v460 = vadd.f32 0.0, %v459
        %v461 = vpop.f32.mrf.mxu0
        %462 = vmatprep.mubr.f32.mxu0 0.0
        %463 = vmatmul.mubr.f32.gmra.mxu0 %v318
        %v464 = vpop.f32.mrf.mxu0
        %v465 = vadd.f32 0.0, %v464
        %v466 = vpop.f32.mrf.mxu0
        %467 = vdwg.mxu0
        %v468 = vsel %vm287, %v171, 0
        %v470 = vsel %vm287, %v172, 0
        %v472 = vsel %vm287, %v174, 0
        %v474 = vsel %vm287, %v175, 0
        %v476 = vsel %vm287, %v177, 0
        %v478 = vsel %vm287, %v178, 0
        %v480 = vsel %vm287, %v180, 0
        %v482 = vsel %vm287, %v181, 0
        %v484 = vsel %vm287, %v183, 0
        %v486 = vsel %vm287, %v184, 0
        %v488 = vsel %vm287, %v186, 0
        %v490 = vsel %vm287, %v187, 0
        %v492 = vsel %vm287, %v189, 0
        %v494 = vsel %vm287, %v190, 0
        %v496 = vsel %vm287, %v192, 0
        %v498 = vsel %vm287, %v193, 0
        %v500 = vsel %vm320, %v207, 0
        %502 = vmatprep.subr.mxu0 0.0
        %503 = vmatpush1.msra.mxu0 0.0
        %504 = vmatprep.subr.mxu0 0.0
        %505 = vmatpush1.msra.mxu0 0.0
        %506 = vmatprep.subr.mxu0 0.0
        %507 = vmatpush1.msra.mxu0 0.0
        %508 = vmatprep.subr.mxu0 0.0
        %509 = vmatpush1.msra.mxu0 0.0
        %510 = vmatprep.subr.mxu0 0.0
        %511 = vmatpush1.msra.mxu0 0.0
        %512 = vmatprep.subr.mxu0 0.0
        %513 = vmatpush1.msra.mxu0 0.0
        %514 = vmatprep.subr.mxu0 0.0
        %515 = vmatpush1.msra.mxu0 0.0
        %516 = vmatprep.subr.mxu0 0.0
        %517 = vmatpush1.msra.mxu0 0.0
        %518 = vmatprep.subr.mxu0 0.0
        %519 = vmatpush1.msra.mxu0 0.0
        %520 = vmatprep.subr.mxu0 0.0
        %521 = vmatpush1.msra.mxu0 0.0
        %522 = vmatprep.subr.mxu0 0.0
        %523 = vmatpush1.msra.mxu0 0.0
        %524 = vmatprep.subr.mxu0 0.0
        %525 = vmatpush1.msra.mxu0 0.0
        %526 = vmatprep.subr.mxu0 0.0
        %527 = vmatpush1.msra.mxu0 0.0
        %528 = vmatprep.subr.mxu0 0.0
        %529 = vmatpush1.msra.mxu0 0.0
        %530 = vmatprep.subr.mxu0 0.0
        %531 = vmatpush1.msra.mxu0 0.0
        %532 = vmatprep.subr.mxu0 0.0
        %533 = vmatpush1.msra.mxu0 %v500
        %534 = vmatprep.subr.mxu0 0.0
        %535 = vmatpush2.msra.mxu0 0.0
        %536 = vmatprep.subr.mxu0 0.0
        %537 = vmatpush2.msra.mxu0 0.0
        %538 = vmatprep.subr.mxu0 0.0
        %539 = vmatpush2.msra.mxu0 0.0
        %540 = vmatprep.subr.mxu0 0.0
        %541 = vmatpush2.msra.mxu0 0.0
        %542 = vmatprep.subr.mxu0 0.0
        %543 = vmatpush2.msra.mxu0 0.0
        %544 = vmatprep.subr.mxu0 0.0
        %545 = vmatpush2.msra.mxu0 0.0
        %546 = vmatprep.subr.mxu0 0.0
        %547 = vmatpush2.msra.mxu0 0.0
        %548 = vmatprep.subr.mxu0 0.0
        %549 = vmatpush2.msra.mxu0 0.0
        %550 = vmatprep.subr.mxu0 0.0
        %551 = vmatpush2.msra.mxu0 0.0
        %552 = vmatprep.subr.mxu0 0.0
        %553 = vmatpush2.msra.mxu0 0.0
        %554 = vmatprep.subr.mxu0 0.0
        %555 = vmatpush2.msra.mxu0 0.0
        %556 = vmatprep.subr.mxu0 0.0
        %557 = vmatpush2.msra.mxu0 0.0
        %558 = vmatprep.subr.mxu0 0.0
        %559 = vmatpush2.msra.mxu0 0.0
        %560 = vmatprep.subr.mxu0 0.0
        %561 = vmatpush2.msra.mxu0 0.0
        %562 = vmatprep.subr.mxu0 0.0
        %563 = vmatpush2.msra.mxu0 0.0
        %564 = vmatprep.subr.mxu0 0.0
        %565 = vmatpush2.msra.mxu0 0.0
        %566 = vmatprep.mubr.f32.mxu0 0.0
        %567 = vmatmul.mubr.f32.gmra.mxu0 %v468
        %v568 = vpop.f32.mrf.mxu0
        %v569 = vadd.f32 %v390, %v568
        %v570 = vpop.f32.mrf.mxu0
        %571 = vmatprep.mubr.f32.mxu0 0.0
        %572 = vmatmul.mubr.f32.gmra.mxu0 %v470
        %v573 = vpop.f32.mrf.mxu0
        %v574 = vadd.f32 %v395, %v573
        %v575 = vpop.f32.mrf.mxu0
        %576 = vmatprep.mubr.f32.mxu0 0.0
        %577 = vmatmul.mubr.f32.gmra.mxu0 %v472
        %v578 = vpop.f32.mrf.mxu0
        %v579 = vadd.f32 %v400, %v578
        %v580 = vpop.f32.mrf.mxu0
        %581 = vmatprep.mubr.f32.mxu0 0.0
        %582 = vmatmul.mubr.f32.gmra.mxu0 %v474
        %v583 = vpop.f32.mrf.mxu0
        %v584 = vadd.f32 %v405, %v583
        %v585 = vpop.f32.mrf.mxu0
        %586 = vmatprep.mubr.f32.mxu0 0.0
        %587 = vmatmul.mubr.f32.gmra.mxu0 %v476
        %v588 = vpop.f32.mrf.mxu0
        %v589 = vadd.f32 %v410, %v588
        %v590 = vpop.f32.mrf.mxu0
        %591 = vmatprep.mubr.f32.mxu0 0.0
        %592 = vmatmul.mubr.f32.gmra.mxu0 %v478
        %v593 = vpop.f32.mrf.mxu0
        %v594 = vadd.f32 %v415, %v593
        %v595 = vpop.f32.mrf.mxu0
        %596 = vmatprep.mubr.f32.mxu0 0.0
        %597 = vmatmul.mubr.f32.gmra.mxu0 %v480
        %v598 = vpop.f32.mrf.mxu0
        %v599 = vadd.f32 %v420, %v598
        %v600 = vpop.f32.mrf.mxu0
        %601 = vmatprep.mubr.f32.mxu0 0.0
        %602 = vmatmul.mubr.f32.gmra.mxu0 %v482
        %v603 = vpop.f32.mrf.mxu0
        %v604 = vadd.f32 %v425, %v603
        %v605 = vpop.f32.mrf.mxu0
        %606 = vmatprep.mubr.f32.mxu0 0.0
        %607 = vmatmul.mubr.f32.gmra.mxu0 %v484
        %v608 = vpop.f32.mrf.mxu0
        %v609 = vadd.f32 %v430, %v608
        %v610 = vpop.f32.mrf.mxu0
        %611 = vmatprep.mubr.f32.mxu0 0.0
        %612 = vmatmul.mubr.f32.gmra.mxu0 %v486
        %v613 = vpop.f32.mrf.mxu0
        %v614 = vadd.f32 %v435, %v613
        %v615 = vpop.f32.mrf.mxu0
        %616 = vmatprep.mubr.f32.mxu0 0.0
        %617 = vmatmul.mubr.f32.gmra.mxu0 %v488
        %v618 = vpop.f32.mrf.mxu0
        %v619 = vadd.f32 %v440, %v618
        %v620 = vpop.f32.mrf.mxu0
        %621 = vmatprep.mubr.f32.mxu0 0.0
        %622 = vmatmul.mubr.f32.gmra.mxu0 %v490
        %v623 = vpop.f32.mrf.mxu0
        %v624 = vadd.f32 %v445, %v623
        %v625 = vpop.f32.mrf.mxu0
        %626 = vmatprep.mubr.f32.mxu0 0.0
        %627 = vmatmul.mubr.f32.gmra.mxu0 %v492
        %v628 = vpop.f32.mrf.mxu0
        %v629 = vadd.f32 %v450, %v628
        %v630 = vpop.f32.mrf.mxu0
        %631 = vmatprep.mubr.f32.mxu0 0.0
        %632 = vmatmul.mubr.f32.gmra.mxu0 %v494
        %v633 = vpop.f32.mrf.mxu0
        %v634 = vadd.f32 %v455, %v633
        %v635 = vpop.f32.mrf.mxu0
        %636 = vmatprep.mubr.f32.mxu0 0.0
        %637 = vmatmul.mubr.f32.gmra.mxu0 %v496
        %v638 = vpop.f32.mrf.mxu0
        %v639 = vadd.f32 %v460, %v638
        %v640 = vpop.f32.mrf.mxu0
        %641 = vmatprep.mubr.f32.mxu0 0.0
        %642 = vmatmul.mubr.f32.gmra.mxu0 %v498
        %v643 = vpop.f32.mrf.mxu0
        %v644 = vadd.f32 %v465, %v643
        %v645 = vpop.f32.mrf.mxu0
        %646 = vdwg.mxu0
        %vm647 = vcmask 1045504
        %v648 = vrot.slane %v171, 2
        %v649 = vrot.slane %v172, 2
        %v650 = vsel %vm647, %v648, %v649
        %v651 = vrot.slane %v173, 2
        %v652 = vsel %vm647, %v649, %v651
        %v653 = vrot.slane %v174, 2
        %v654 = vrot.slane %v175, 2
        %v655 = vsel %vm647, %v653, %v654
        %v656 = vrot.slane %v176, 2
        %v657 = vsel %vm647, %v654, %v656
        %v658 = vrot.slane %v177, 2
        %v659 = vrot.slane %v178, 2
        %v660 = vsel %vm647, %v658, %v659
        %v661 = vrot.slane %v179, 2
        %v662 = vsel %vm647, %v659, %v661
        %v663 = vrot.slane %v180, 2
        %v664 = vrot.slane %v181, 2
        %v665 = vsel %vm647, %v663, %v664
        %v666 = vrot.slane %v182, 2
        %v667 = vsel %vm647, %v664, %v666
        %v668 = vrot.slane %v183, 2
        %v669 = vrot.slane %v184, 2
        %v670 = vsel %vm647, %v668, %v669
        %v671 = vrot.slane %v185, 2
        %v672 = vsel %vm647, %v669, %v671
        %v673 = vrot.slane %v186, 2
        %v674 = vrot.slane %v187, 2
        %v675 = vsel %vm647, %v673, %v674
        %v676 = vrot.slane %v188, 2
        %v677 = vsel %vm647, %v674, %v676
        %v678 = vrot.slane %v189, 2
        %v679 = vrot.slane %v190, 2
        %v680 = vsel %vm647, %v678, %v679
        %v681 = vrot.slane %v191, 2
        %v682 = vsel %vm647, %v679, %v681
        %v683 = vrot.slane %v192, 2
        %v684 = vrot.slane %v193, 2
        %v685 = vsel %vm647, %v683, %v684
        %v686 = vrot.slane %v194, 2
        %v687 = vsel %vm647, %v684, %v686
        %v688 = vsel %vm287, %v650, 0
        %v690 = vsel %vm287, %v652, 0
        %v692 = vsel %vm287, %v655, 0
        %v694 = vsel %vm287, %v657, 0
        %v696 = vsel %vm287, %v660, 0
        %v698 = vsel %vm287, %v662, 0
        %v700 = vsel %vm287, %v665, 0
        %v702 = vsel %vm287, %v667, 0
        %v704 = vsel %vm287, %v670, 0
        %v706 = vsel %vm287, %v672, 0
        %v708 = vsel %vm287, %v675, 0
        %v710 = vsel %vm287, %v677, 0
        %v712 = vsel %vm287, %v680, 0
        %v714 = vsel %vm287, %v682, 0
        %v716 = vsel %vm287, %v685, 0
        %v718 = vsel %vm287, %v687, 0
        %v721 = vsel %vm320, %v208, 0
        %723 = vmatprep.subr.mxu0 0.0
        %724 = vmatpush1.msra.mxu0 0.0
        %725 = vmatprep.subr.mxu0 0.0
        %726 = vmatpush1.msra.mxu0 0.0
        %727 = vmatprep.subr.mxu0 0.0
        %728 = vmatpush1.msra.mxu0 0.0
        %729 = vmatprep.subr.mxu0 0.0
        %730 = vmatpush1.msra.mxu0 0.0
        %731 = vmatprep.subr.mxu0 0.0
        %732 = vmatpush1.msra.mxu0 0.0
        %733 = vmatprep.subr.mxu0 0.0
        %734 = vmatpush1.msra.mxu0 0.0
        %735 = vmatprep.subr.mxu0 0.0
        %736 = vmatpush1.msra.mxu0 0.0
        %737 = vmatprep.subr.mxu0 0.0
        %738 = vmatpush1.msra.mxu0 0.0
        %739 = vmatprep.subr.mxu0 0.0
        %740 = vmatpush1.msra.mxu0 0.0
        %741 = vmatprep.subr.mxu0 0.0
        %742 = vmatpush1.msra.mxu0 0.0
        %743 = vmatprep.subr.mxu0 0.0
        %744 = vmatpush1.msra.mxu0 0.0
        %745 = vmatprep.subr.mxu0 0.0
        %746 = vmatpush1.msra.mxu0 0.0
        %747 = vmatprep.subr.mxu0 0.0
        %748 = vmatpush1.msra.mxu0 0.0
        %749 = vmatprep.subr.mxu0 0.0
        %750 = vmatpush1.msra.mxu0 0.0
        %751 = vmatprep.subr.mxu0 0.0
        %752 = vmatpush1.msra.mxu0 0.0
        %753 = vmatprep.subr.mxu0 0.0
        %754 = vmatpush1.msra.mxu0 %v721
        %755 = vmatprep.subr.mxu0 0.0
        %756 = vmatpush2.msra.mxu0 0.0
        %757 = vmatprep.subr.mxu0 0.0
        %758 = vmatpush2.msra.mxu0 0.0
        %759 = vmatprep.subr.mxu0 0.0
        %760 = vmatpush2.msra.mxu0 0.0
        %761 = vmatprep.subr.mxu0 0.0
        %762 = vmatpush2.msra.mxu0 0.0
        %763 = vmatprep.subr.mxu0 0.0
        %764 = vmatpush2.msra.mxu0 0.0
        %765 = vmatprep.subr.mxu0 0.0
        %766 = vmatpush2.msra.mxu0 0.0
        %767 = vmatprep.subr.mxu0 0.0
        %768 = vmatpush2.msra.mxu0 0.0
        %769 = vmatprep.subr.mxu0 0.0
        %770 = vmatpush2.msra.mxu0 0.0
        %771 = vmatprep.subr.mxu0 0.0
        %772 = vmatpush2.msra.mxu0 0.0
        %773 = vmatprep.subr.mxu0 0.0
        %774 = vmatpush2.msra.mxu0 0.0
        %775 = vmatprep.subr.mxu0 0.0
        %776 = vmatpush2.msra.mxu0 0.0
        %777 = vmatprep.subr.mxu0 0.0
        %778 = vmatpush2.msra.mxu0 0.0
        %779 = vmatprep.subr.mxu0 0.0
        %780 = vmatpush2.msra.mxu0 0.0
        %781 = vmatprep.subr.mxu0 0.0
        %782 = vmatpush2.msra.mxu0 0.0
        %783 = vmatprep.subr.mxu0 0.0
        %784 = vmatpush2.msra.mxu0 0.0
        %785 = vmatprep.subr.mxu0 0.0
        %786 = vmatpush2.msra.mxu0 0.0
        %787 = vmatprep.mubr.f32.mxu0 0.0
        %788 = vmatmul.mubr.f32.gmra.mxu0 %v688
        %v789 = vpop.f32.mrf.mxu0
        %v790 = vadd.f32 0.0, %v789
        %v791 = vpop.f32.mrf.mxu0
        %792 = vmatprep.mubr.f32.mxu0 0.0
        %793 = vmatmul.mubr.f32.gmra.mxu0 %v690
        %v794 = vpop.f32.mrf.mxu0
        %v795 = vadd.f32 0.0, %v794
        %v796 = vpop.f32.mrf.mxu0
        %797 = vmatprep.mubr.f32.mxu0 0.0
        %798 = vmatmul.mubr.f32.gmra.mxu0 %v692
        %v799 = vpop.f32.mrf.mxu0
        %v800 = vadd.f32 0.0, %v799
        %v801 = vpop.f32.mrf.mxu0
        %802 = vmatprep.mubr.f32.mxu0 0.0
        %803 = vmatmul.mubr.f32.gmra.mxu0 %v694
        %v804 = vpop.f32.mrf.mxu0
        %v805 = vadd.f32 0.0, %v804
        %v806 = vpop.f32.mrf.mxu0
        %807 = vmatprep.mubr.f32.mxu0 0.0
        %808 = vmatmul.mubr.f32.gmra.mxu0 %v696
        %v809 = vpop.f32.mrf.mxu0
        %v810 = vadd.f32 0.0, %v809
        %v811 = vpop.f32.mrf.mxu0
        %812 = vmatprep.mubr.f32.mxu0 0.0
        %813 = vmatmul.mubr.f32.gmra.mxu0 %v698
        %v814 = vpop.f32.mrf.mxu0
        %v815 = vadd.f32 0.0, %v814
        %v816 = vpop.f32.mrf.mxu0
        %817 = vmatprep.mubr.f32.mxu0 0.0
        %818 = vmatmul.mubr.f32.gmra.mxu0 %v700
        %v819 = vpop.f32.mrf.mxu0
        %v820 = vadd.f32 0.0, %v819
        %v821 = vpop.f32.mrf.mxu0
        %822 = vmatprep.mubr.f32.mxu0 0.0
        %823 = vmatmul.mubr.f32.gmra.mxu0 %v702
        %v824 = vpop.f32.mrf.mxu0
        %v825 = vadd.f32 0.0, %v824
        %v826 = vpop.f32.mrf.mxu0
        %827 = vmatprep.mubr.f32.mxu0 0.0
        %828 = vmatmul.mubr.f32.gmra.mxu0 %v704
        %v829 = vpop.f32.mrf.mxu0
        %v830 = vadd.f32 0.0, %v829
        %v831 = vpop.f32.mrf.mxu0
        %832 = vmatprep.mubr.f32.mxu0 0.0
        %833 = vmatmul.mubr.f32.gmra.mxu0 %v706
        %v834 = vpop.f32.mrf.mxu0
        %v835 = vadd.f32 0.0, %v834
        %v836 = vpop.f32.mrf.mxu0
        %837 = vmatprep.mubr.f32.mxu0 0.0
        %838 = vmatmul.mubr.f32.gmra.mxu0 %v708
        %v839 = vpop.f32.mrf.mxu0
        %v840 = vadd.f32 0.0, %v839
        %v841 = vpop.f32.mrf.mxu0
        %842 = vmatprep.mubr.f32.mxu0 0.0
        %843 = vmatmul.mubr.f32.gmra.mxu0 %v710
        %v844 = vpop.f32.mrf.mxu0
        %v845 = vadd.f32 0.0, %v844
        %v846 = vpop.f32.mrf.mxu0
        %847 = vmatprep.mubr.f32.mxu0 0.0
        %848 = vmatmul.mubr.f32.gmra.mxu0 %v712
        %v849 = vpop.f32.mrf.mxu0
        %v850 = vadd.f32 0.0, %v849
        %v851 = vpop.f32.mrf.mxu0
        %852 = vmatprep.mubr.f32.mxu0 0.0
        %853 = vmatmul.mubr.f32.gmra.mxu0 %v714
        %v854 = vpop.f32.mrf.mxu0
        %v855 = vadd.f32 0.0, %v854
        %v856 = vpop.f32.mrf.mxu0
        %857 = vmatprep.mubr.f32.mxu0 0.0
        %858 = vmatmul.mubr.f32.gmra.mxu0 %v716
        %v859 = vpop.f32.mrf.mxu0
        %v860 = vadd.f32 0.0, %v859
        %v861 = vpop.f32.mrf.mxu0
        %862 = vmatprep.mubr.f32.mxu0 0.0
        %863 = vmatmul.mubr.f32.gmra.mxu0 %v718
        %v864 = vpop.f32.mrf.mxu0
        %v865 = vadd.f32 0.0, %v864
        %v866 = vpop.f32.mrf.mxu0
        %867 = vdwg.mxu0
        %v868 = vadd.f32 %v569, %v790
        %v869 = vadd.f32 %v574, %v795
        %v870 = vadd.f32 %v579, %v800
        %v871 = vadd.f32 %v584, %v805
        %v872 = vadd.f32 %v589, %v810
        %v873 = vadd.f32 %v594, %v815
        %v874 = vadd.f32 %v599, %v820
        %v875 = vadd.f32 %v604, %v825
        %v876 = vadd.f32 %v609, %v830
        %v877 = vadd.f32 %v614, %v835
        %v878 = vadd.f32 %v619, %v840
        %v879 = vadd.f32 %v624, %v845
        %v880 = vadd.f32 %v629, %v850
        %v881 = vadd.f32 %v634, %v855
        %v882 = vadd.f32 %v639, %v860
        %v883 = vadd.f32 %v644, %v865
        %vm884 = vcmask 1044480
        %v885 = vrot.slane %v171, 3
        %v886 = vrot.slane %v172, 3
        %v887 = vsel %vm884, %v885, %v886
        %v888 = vrot.slane %v173, 3
        %v889 = vsel %vm884, %v886, %v888
        %v890 = vrot.slane %v174, 3
        %v891 = vrot.slane %v175, 3
        %v892 = vsel %vm884, %v890, %v891
        %v893 = vrot.slane %v176, 3
        %v894 = vsel %vm884, %v891, %v893
        %v895 = vrot.slane %v177, 3
        %v896 = vrot.slane %v178, 3
        %v897 = vsel %vm884, %v895, %v896
        %v898 = vrot.slane %v179, 3
        %v899 = vsel %vm884, %v896, %v898
        %v900 = vrot.slane %v180, 3
        %v901 = vrot.slane %v181, 3
        %v902 = vsel %vm884, %v900, %v901
        %v903 = vrot.slane %v182, 3
        %v904 = vsel %vm884, %v901, %v903
        %v905 = vrot.slane %v183, 3
        %v906 = vrot.slane %v184, 3
        %v907 = vsel %vm884, %v905, %v906
        %v908 = vrot.slane %v185, 3
        %v909 = vsel %vm884, %v906, %v908
        %v910 = vrot.slane %v186, 3
        %v911 = vrot.slane %v187, 3
        %v912 = vsel %vm884, %v910, %v911
        %v913 = vrot.slane %v188, 3
        %v914 = vsel %vm884, %v911, %v913
        %v915 = vrot.slane %v189, 3
        %v916 = vrot.slane %v190, 3
        %v917 = vsel %vm884, %v915, %v916
        %v918 = vrot.slane %v191, 3
        %v919 = vsel %vm884, %v916, %v918
        %v920 = vrot.slane %v192, 3
        %v921 = vrot.slane %v193, 3
        %v922 = vsel %vm884, %v920, %v921
        %v923 = vrot.slane %v194, 3
        %v924 = vsel %vm884, %v921, %v923
        %v925 = vrot.slane %v208, 4
        %v926 = vsel %vm287, %v887, 0
        %v928 = vsel %vm287, %v889, 0
        %v930 = vsel %vm287, %v892, 0
        %v932 = vsel %vm287, %v894, 0
        %v934 = vsel %vm287, %v897, 0
        %v936 = vsel %vm287, %v899, 0
        %v938 = vsel %vm287, %v902, 0
        %v940 = vsel %vm287, %v904, 0
        %v942 = vsel %vm287, %v907, 0
        %v944 = vsel %vm287, %v909, 0
        %v946 = vsel %vm287, %v912, 0
        %v948 = vsel %vm287, %v914, 0
        %v950 = vsel %vm287, %v917, 0
        %v952 = vsel %vm287, %v919, 0
        %v954 = vsel %vm287, %v922, 0
        %v956 = vsel %vm287, %v924, 0
        %v958 = vsel %vm320, %v925, 0
        %960 = vmatprep.subr.mxu0 0.0
        %961 = vmatpush1.msra.mxu0 0.0
        %962 = vmatprep.subr.mxu0 0.0
        %963 = vmatpush1.msra.mxu0 0.0
        %964 = vmatprep.subr.mxu0 0.0
        %965 = vmatpush1.msra.mxu0 0.0
        %966 = vmatprep.subr.mxu0 0.0
        %967 = vmatpush1.msra.mxu0 0.0
        %968 = vmatprep.subr.mxu0 0.0
        %969 = vmatpush1.msra.mxu0 0.0
        %970 = vmatprep.subr.mxu0 0.0
        %971 = vmatpush1.msra.mxu0 0.0
        %972 = vmatprep.subr.mxu0 0.0
        %973 = vmatpush1.msra.mxu0 0.0
        %974 = vmatprep.subr.mxu0 0.0
        %975 = vmatpush1.msra.mxu0 0.0
        %976 = vmatprep.subr.mxu0 0.0
        %977 = vmatpush1.msra.mxu0 0.0
        %978 = vmatprep.subr.mxu0 0.0
        %979 = vmatpush1.msra.mxu0 0.0
        %980 = vmatprep.subr.mxu0 0.0
        %981 = vmatpush1.msra.mxu0 0.0
        %982 = vmatprep.subr.mxu0 0.0
        %983 = vmatpush1.msra.mxu0 0.0
        %984 = vmatprep.subr.mxu0 0.0
        %985 = vmatpush1.msra.mxu0 0.0
        %986 = vmatprep.subr.mxu0 0.0
        %987 = vmatpush1.msra.mxu0 0.0
        %988 = vmatprep.subr.mxu0 0.0
        %989 = vmatpush1.msra.mxu0 0.0
        %990 = vmatprep.subr.mxu0 0.0
        %991 = vmatpush1.msra.mxu0 %v958
        %992 = vmatprep.subr.mxu0 0.0
        %993 = vmatpush2.msra.mxu0 0.0
        %994 = vmatprep.subr.mxu0 0.0
        %995 = vmatpush2.msra.mxu0 0.0
        %996 = vmatprep.subr.mxu0 0.0
        %997 = vmatpush2.msra.mxu0 0.0
        %998 = vmatprep.subr.mxu0 0.0
        %999 = vmatpush2.msra.mxu0 0.0
        %1000 = vmatprep.subr.mxu0 0.0
        %1001 = vmatpush2.msra.mxu0 0.0
        %1002 = vmatprep.subr.mxu0 0.0
        %1003 = vmatpush2.msra.mxu0 0.0
        %1004 = vmatprep.subr.mxu0 0.0
        %1005 = vmatpush2.msra.mxu0 0.0
        %1006 = vmatprep.subr.mxu0 0.0
        %1007 = vmatpush2.msra.mxu0 0.0
        %1008 = vmatprep.subr.mxu0 0.0
        %1009 = vmatpush2.msra.mxu0 0.0
        %1010 = vmatprep.subr.mxu0 0.0
        %1011 = vmatpush2.msra.mxu0 0.0
        %1012 = vmatprep.subr.mxu0 0.0
        %1013 = vmatpush2.msra.mxu0 0.0
        %1014 = vmatprep.subr.mxu0 0.0
        %1015 = vmatpush2.msra.mxu0 0.0
        %1016 = vmatprep.subr.mxu0 0.0
        %1017 = vmatpush2.msra.mxu0 0.0
        %1018 = vmatprep.subr.mxu0 0.0
        %1019 = vmatpush2.msra.mxu0 0.0
        %1020 = vmatprep.subr.mxu0 0.0
        %1021 = vmatpush2.msra.mxu0 0.0
        %1022 = vmatprep.subr.mxu0 0.0
        %1023 = vmatpush2.msra.mxu0 0.0
        %1024 = vmatprep.mubr.f32.mxu0 0.0
        %1025 = vmatmul.mubr.f32.gmra.mxu0 %v926
        %v1026 = vpop.f32.mrf.mxu0
        %v1027 = vadd.f32 0.0, %v1026
        %v1028 = vpop.f32.mrf.mxu0
        %1029 = vmatprep.mubr.f32.mxu0 0.0
        %1030 = vmatmul.mubr.f32.gmra.mxu0 %v928
        %v1031 = vpop.f32.mrf.mxu0
        %v1032 = vadd.f32 0.0, %v1031
        %v1033 = vpop.f32.mrf.mxu0
        %1034 = vmatprep.mubr.f32.mxu0 0.0
        %1035 = vmatmul.mubr.f32.gmra.mxu0 %v930
        %v1036 = vpop.f32.mrf.mxu0
        %v1037 = vadd.f32 0.0, %v1036
        %v1038 = vpop.f32.mrf.mxu0
        %1039 = vmatprep.mubr.f32.mxu0 0.0
        %1040 = vmatmul.mubr.f32.gmra.mxu0 %v932
        %v1041 = vpop.f32.mrf.mxu0
        %v1042 = vadd.f32 0.0, %v1041
        %v1043 = vpop.f32.mrf.mxu0
        %1044 = vmatprep.mubr.f32.mxu0 0.0
        %1045 = vmatmul.mubr.f32.gmra.mxu0 %v934
        %v1046 = vpop.f32.mrf.mxu0
        %v1047 = vadd.f32 0.0, %v1046
        %v1048 = vpop.f32.mrf.mxu0
        %1049 = vmatprep.mubr.f32.mxu0 0.0
        %1050 = vmatmul.mubr.f32.gmra.mxu0 %v936
        %v1051 = vpop.f32.mrf.mxu0
        %v1052 = vadd.f32 0.0, %v1051
        %v1053 = vpop.f32.mrf.mxu0
        %1054 = vmatprep.mubr.f32.mxu0 0.0
        %1055 = vmatmul.mubr.f32.gmra.mxu0 %v938
        %v1056 = vpop.f32.mrf.mxu0
        %v1057 = vadd.f32 0.0, %v1056
        %v1058 = vpop.f32.mrf.mxu0
        %1059 = vmatprep.mubr.f32.mxu0 0.0
        %1060 = vmatmul.mubr.f32.gmra.mxu0 %v940
        %v1061 = vpop.f32.mrf.mxu0
        %v1062 = vadd.f32 0.0, %v1061
        %v1063 = vpop.f32.mrf.mxu0
        %1064 = vmatprep.mubr.f32.mxu0 0.0
        %1065 = vmatmul.mubr.f32.gmra.mxu0 %v942
        %v1066 = vpop.f32.mrf.mxu0
        %v1067 = vadd.f32 0.0, %v1066
        %v1068 = vpop.f32.mrf.mxu0
        %1069 = vmatprep.mubr.f32.mxu0 0.0
        %1070 = vmatmul.mubr.f32.gmra.mxu0 %v944
        %v1071 = vpop.f32.mrf.mxu0
        %v1072 = vadd.f32 0.0, %v1071
        %v1073 = vpop.f32.mrf.mxu0
        %1074 = vmatprep.mubr.f32.mxu0 0.0
        %1075 = vmatmul.mubr.f32.gmra.mxu0 %v946
        %v1076 = vpop.f32.mrf.mxu0
        %v1077 = vadd.f32 0.0, %v1076
        %v1078 = vpop.f32.mrf.mxu0
        %1079 = vmatprep.mubr.f32.mxu0 0.0
        %1080 = vmatmul.mubr.f32.gmra.mxu0 %v948
        %v1081 = vpop.f32.mrf.mxu0
        %v1082 = vadd.f32 0.0, %v1081
        %v1083 = vpop.f32.mrf.mxu0
        %1084 = vmatprep.mubr.f32.mxu0 0.0
        %1085 = vmatmul.mubr.f32.gmra.mxu0 %v950
        %v1086 = vpop.f32.mrf.mxu0
        %v1087 = vadd.f32 0.0, %v1086
        %v1088 = vpop.f32.mrf.mxu0
        %1089 = vmatprep.mubr.f32.mxu0 0.0
        %1090 = vmatmul.mubr.f32.gmra.mxu0 %v952
        %v1091 = vpop.f32.mrf.mxu0
        %v1092 = vadd.f32 0.0, %v1091
        %v1093 = vpop.f32.mrf.mxu0
        %1094 = vmatprep.mubr.f32.mxu0 0.0
        %1095 = vmatmul.mubr.f32.gmra.mxu0 %v954
        %v1096 = vpop.f32.mrf.mxu0
        %v1097 = vadd.f32 0.0, %v1096
        %v1098 = vpop.f32.mrf.mxu0
        %1099 = vmatprep.mubr.f32.mxu0 0.0
        %1100 = vmatmul.mubr.f32.gmra.mxu0 %v956
        %v1101 = vpop.f32.mrf.mxu0
        %v1102 = vadd.f32 0.0, %v1101
        %v1103 = vpop.f32.mrf.mxu0
        %1104 = vdwg.mxu0
        %v1105 = vadd.f32 %v868, %v1027
        %v1106 = vadd.f32 %v869, %v1032
        %v1107 = vadd.f32 %v870, %v1037
        %v1108 = vadd.f32 %v871, %v1042
        %v1109 = vadd.f32 %v872, %v1047
        %v1110 = vadd.f32 %v873, %v1052
        %v1111 = vadd.f32 %v874, %v1057
        %v1112 = vadd.f32 %v875, %v1062
        %v1113 = vadd.f32 %v876, %v1067
        %v1114 = vadd.f32 %v877, %v1072
        %v1115 = vadd.f32 %v878, %v1077
        %v1116 = vadd.f32 %v879, %v1082
        %v1117 = vadd.f32 %v880, %v1087
        %v1118 = vadd.f32 %v881, %v1092
        %v1119 = vadd.f32 %v882, %v1097
        %v1120 = vadd.f32 %v883, %v1102
        %v1121 = vrot.slane %v171, 4
        %v1122 = vrot.slane %v172, 4
        %v1123 = vsel %vm320, %v1121, %v1122
        %v1124 = vrot.slane %v173, 4
        %v1125 = vsel %vm320, %v1122, %v1124
        %v1126 = vrot.slane %v174, 4
        %v1127 = vrot.slane %v175, 4
        %v1128 = vsel %vm320, %v1126, %v1127
        %v1129 = vrot.slane %v176, 4
        %v1130 = vsel %vm320, %v1127, %v1129
        %v1131 = vrot.slane %v177, 4
        %v1132 = vrot.slane %v178, 4
        %v1133 = vsel %vm320, %v1131, %v1132
        %v1134 = vrot.slane %v179, 4
        %v1135 = vsel %vm320, %v1132, %v1134
        %v1136 = vrot.slane %v180, 4
        %v1137 = vrot.slane %v181, 4
        %v1138 = vsel %vm320, %v1136, %v1137
        %v1139 = vrot.slane %v182, 4
        %v1140 = vsel %vm320, %v1137, %v1139
        %v1141 = vrot.slane %v183, 4
        %v1142 = vrot.slane %v184, 4
        %v1143 = vsel %vm320, %v1141, %v1142
        %v1144 = vrot.slane %v185, 4
        %v1145 = vsel %vm320, %v1142, %v1144
        %v1146 = vrot.slane %v186, 4
        %v1147 = vrot.slane %v187, 4
        %v1148 = vsel %vm320, %v1146, %v1147
        %v1149 = vrot.slane %v188, 4
        %v1150 = vsel %vm320, %v1147, %v1149
        %v1151 = vrot.slane %v189, 4
        %v1152 = vrot.slane %v190, 4
        %v1153 = vsel %vm320, %v1151, %v1152
        %v1154 = vrot.slane %v191, 4
        %v1155 = vsel %vm320, %v1152, %v1154
        %v1156 = vrot.slane %v192, 4
        %v1157 = vrot.slane %v193, 4
        %v1158 = vsel %vm320, %v1156, %v1157
        %v1159 = vrot.slane %v194, 4
        %v1160 = vsel %vm320, %v1157, %v1159
        %v1161 = vsel %vm287, %v1123, 0
        %v1163 = vsel %vm287, %v1125, 0
        %v1165 = vsel %vm287, %v1128, 0
        %v1167 = vsel %vm287, %v1130, 0
        %v1169 = vsel %vm287, %v1133, 0
        %v1171 = vsel %vm287, %v1135, 0
        %v1173 = vsel %vm287, %v1138, 0
        %v1175 = vsel %vm287, %v1140, 0
        %v1177 = vsel %vm287, %v1143, 0
        %v1179 = vsel %vm287, %v1145, 0
        %v1181 = vsel %vm287, %v1148, 0
        %v1183 = vsel %vm287, %v1150, 0
        %v1185 = vsel %vm287, %v1153, 0
        %v1187 = vsel %vm287, %v1155, 0
        %v1189 = vsel %vm287, %v1158, 0
        %v1191 = vsel %vm287, %v1160, 0
        %v1194 = vsel %vm320, %v209, 0
        %1196 = vmatprep.subr.mxu0 0.0
        %1197 = vmatpush1.msra.mxu0 0.0
        %1198 = vmatprep.subr.mxu0 0.0
        %1199 = vmatpush1.msra.mxu0 0.0
        %1200 = vmatprep.subr.mxu0 0.0
        %1201 = vmatpush1.msra.mxu0 0.0
        %1202 = vmatprep.subr.mxu0 0.0
        %1203 = vmatpush1.msra.mxu0 0.0
        %1204 = vmatprep.subr.mxu0 0.0
        %1205 = vmatpush1.msra.mxu0 0.0
        %1206 = vmatprep.subr.mxu0 0.0
        %1207 = vmatpush1.msra.mxu0 0.0
        %1208 = vmatprep.subr.mxu0 0.0
        %1209 = vmatpush1.msra.mxu0 0.0
        %1210 = vmatprep.subr.mxu0 0.0
        %1211 = vmatpush1.msra.mxu0 0.0
        %1212 = vmatprep.subr.mxu0 0.0
        %1213 = vmatpush1.msra.mxu0 0.0
        %1214 = vmatprep.subr.mxu0 0.0
        %1215 = vmatpush1.msra.mxu0 0.0
        %1216 = vmatprep.subr.mxu0 0.0
        %1217 = vmatpush1.msra.mxu0 0.0
        %1218 = vmatprep.subr.mxu0 0.0
        %1219 = vmatpush1.msra.mxu0 0.0
        %1220 = vmatprep.subr.mxu0 0.0
        %1221 = vmatpush1.msra.mxu0 0.0
        %1222 = vmatprep.subr.mxu0 0.0
        %1223 = vmatpush1.msra.mxu0 0.0
        %1224 = vmatprep.subr.mxu0 0.0
        %1225 = vmatpush1.msra.mxu0 0.0
        %1226 = vmatprep.subr.mxu0 0.0
        %1227 = vmatpush1.msra.mxu0 %v1194
        %1228 = vmatprep.subr.mxu0 0.0
        %1229 = vmatpush2.msra.mxu0 0.0
        %1230 = vmatprep.subr.mxu0 0.0
        %1231 = vmatpush2.msra.mxu0 0.0
        %1232 = vmatprep.subr.mxu0 0.0
        %1233 = vmatpush2.msra.mxu0 0.0
        %1234 = vmatprep.subr.mxu0 0.0
        %1235 = vmatpush2.msra.mxu0 0.0
        %1236 = vmatprep.subr.mxu0 0.0
        %1237 = vmatpush2.msra.mxu0 0.0
        %1238 = vmatprep.subr.mxu0 0.0
        %1239 = vmatpush2.msra.mxu0 0.0
        %1240 = vmatprep.subr.mxu0 0.0
        %1241 = vmatpush2.msra.mxu0 0.0
        %1242 = vmatprep.subr.mxu0 0.0
        %1243 = vmatpush2.msra.mxu0 0.0
        %1244 = vmatprep.subr.mxu0 0.0
        %1245 = vmatpush2.msra.mxu0 0.0
        %1246 = vmatprep.subr.mxu0 0.0
        %1247 = vmatpush2.msra.mxu0 0.0
        %1248 = vmatprep.subr.mxu0 0.0
        %1249 = vmatpush2.msra.mxu0 0.0
        %1250 = vmatprep.subr.mxu0 0.0
        %1251 = vmatpush2.msra.mxu0 0.0
        %1252 = vmatprep.subr.mxu0 0.0
        %1253 = vmatpush2.msra.mxu0 0.0
        %1254 = vmatprep.subr.mxu0 0.0
        %1255 = vmatpush2.msra.mxu0 0.0
        %1256 = vmatprep.subr.mxu0 0.0
        %1257 = vmatpush2.msra.mxu0 0.0
        %1258 = vmatprep.subr.mxu0 0.0
        %1259 = vmatpush2.msra.mxu0 0.0
        %1260 = vmatprep.mubr.f32.mxu0 0.0
        %1261 = vmatmul.mubr.f32.gmra.mxu0 %v1161
        %v1262 = vpop.f32.mrf.mxu0
        %v1263 = vadd.f32 0.0, %v1262
        %v1264 = vpop.f32.mrf.mxu0
        %1265 = vmatprep.mubr.f32.mxu0 0.0
        %1266 = vmatmul.mubr.f32.gmra.mxu0 %v1163
        %v1267 = vpop.f32.mrf.mxu0
        %v1268 = vadd.f32 0.0, %v1267
        %v1269 = vpop.f32.mrf.mxu0
        %1270 = vmatprep.mubr.f32.mxu0 0.0
        %1271 = vmatmul.mubr.f32.gmra.mxu0 %v1165
        %v1272 = vpop.f32.mrf.mxu0
        %v1273 = vadd.f32 0.0, %v1272
        %v1274 = vpop.f32.mrf.mxu0
        %1275 = vmatprep.mubr.f32.mxu0 0.0
        %1276 = vmatmul.mubr.f32.gmra.mxu0 %v1167
        %v1277 = vpop.f32.mrf.mxu0
        %v1278 = vadd.f32 0.0, %v1277
        %v1279 = vpop.f32.mrf.mxu0
        %1280 = vmatprep.mubr.f32.mxu0 0.0
        %1281 = vmatmul.mubr.f32.gmra.mxu0 %v1169
        %v1282 = vpop.f32.mrf.mxu0
        %v1283 = vadd.f32 0.0, %v1282
        %v1284 = vpop.f32.mrf.mxu0
        %1285 = vmatprep.mubr.f32.mxu0 0.0
        %1286 = vmatmul.mubr.f32.gmra.mxu0 %v1171
        %v1287 = vpop.f32.mrf.mxu0
        %v1288 = vadd.f32 0.0, %v1287
        %v1289 = vpop.f32.mrf.mxu0
        %1290 = vmatprep.mubr.f32.mxu0 0.0
        %1291 = vmatmul.mubr.f32.gmra.mxu0 %v1173
        %v1292 = vpop.f32.mrf.mxu0
        %v1293 = vadd.f32 0.0, %v1292
        %v1294 = vpop.f32.mrf.mxu0
        %1295 = vmatprep.mubr.f32.mxu0 0.0
        %1296 = vmatmul.mubr.f32.gmra.mxu0 %v1175
        %v1297 = vpop.f32.mrf.mxu0
        %v1298 = vadd.f32 0.0, %v1297
        %v1299 = vpop.f32.mrf.mxu0
        %1300 = vmatprep.mubr.f32.mxu0 0.0
        %1301 = vmatmul.mubr.f32.gmra.mxu0 %v1177
        %v1302 = vpop.f32.mrf.mxu0
        %v1303 = vadd.f32 0.0, %v1302
        %v1304 = vpop.f32.mrf.mxu0
        %1305 = vmatprep.mubr.f32.mxu0 0.0
        %1306 = vmatmul.mubr.f32.gmra.mxu0 %v1179
        %v1307 = vpop.f32.mrf.mxu0
        %v1308 = vadd.f32 0.0, %v1307
        %v1309 = vpop.f32.mrf.mxu0
        %1310 = vmatprep.mubr.f32.mxu0 0.0
        %1311 = vmatmul.mubr.f32.gmra.mxu0 %v1181
        %v1312 = vpop.f32.mrf.mxu0
        %v1313 = vadd.f32 0.0, %v1312
        %v1314 = vpop.f32.mrf.mxu0
        %1315 = vmatprep.mubr.f32.mxu0 0.0
        %1316 = vmatmul.mubr.f32.gmra.mxu0 %v1183
        %v1317 = vpop.f32.mrf.mxu0
        %v1318 = vadd.f32 0.0, %v1317
        %v1319 = vpop.f32.mrf.mxu0
        %1320 = vmatprep.mubr.f32.mxu0 0.0
        %1321 = vmatmul.mubr.f32.gmra.mxu0 %v1185
        %v1322 = vpop.f32.mrf.mxu0
        %v1323 = vadd.f32 0.0, %v1322
        %v1324 = vpop.f32.mrf.mxu0
        %1325 = vmatprep.mubr.f32.mxu0 0.0
        %1326 = vmatmul.mubr.f32.gmra.mxu0 %v1187
        %v1327 = vpop.f32.mrf.mxu0
        %v1328 = vadd.f32 0.0, %v1327
        %v1329 = vpop.f32.mrf.mxu0
        %1330 = vmatprep.mubr.f32.mxu0 0.0
        %1331 = vmatmul.mubr.f32.gmra.mxu0 %v1189
        %v1332 = vpop.f32.mrf.mxu0
        %v1333 = vadd.f32 0.0, %v1332
        %v1334 = vpop.f32.mrf.mxu0
        %1335 = vmatprep.mubr.f32.mxu0 0.0
        %1336 = vmatmul.mubr.f32.gmra.mxu0 %v1191
        %v1337 = vpop.f32.mrf.mxu0
        %v1338 = vadd.f32 0.0, %v1337
        %v1339 = vpop.f32.mrf.mxu0
        %1340 = vdwg.mxu0
        %v1341 = vadd.f32 %v1105, %v1263
        %v1342 = vadd.f32 %v1106, %v1268
        %v1343 = vadd.f32 %v1107, %v1273
        %v1344 = vadd.f32 %v1108, %v1278
        %v1345 = vadd.f32 %v1109, %v1283
        %v1346 = vadd.f32 %v1110, %v1288
        %v1347 = vadd.f32 %v1111, %v1293
        %v1348 = vadd.f32 %v1112, %v1298
        %v1349 = vadd.f32 %v1113, %v1303
        %v1350 = vadd.f32 %v1114, %v1308
        %v1351 = vadd.f32 %v1115, %v1313
        %v1352 = vadd.f32 %v1116, %v1318
        %v1353 = vadd.f32 %v1117, %v1323
        %v1354 = vadd.f32 %v1118, %v1328
        %v1355 = vadd.f32 %v1119, %v1333
        %v1356 = vadd.f32 %v1120, %v1338
        %v1357 = vrot.slane %v209, 4
        %v1359 = vsel %vm287, %v195, 0
        %v1362 = vsel %vm287, %v196, 0
        %v1364 = vsel %vm320, %v1357, 0
        %1366 = vmatprep.subr.mxu0 0.0
        %1367 = vmatpush1.msra.mxu0 0.0
        %1368 = vmatprep.subr.mxu0 0.0
        %1369 = vmatpush1.msra.mxu0 0.0
        %1370 = vmatprep.subr.mxu0 0.0
        %1371 = vmatpush1.msra.mxu0 0.0
        %1372 = vmatprep.subr.mxu0 0.0
        %1373 = vmatpush1.msra.mxu0 0.0
        %1374 = vmatprep.subr.mxu0 0.0
        %1375 = vmatpush1.msra.mxu0 0.0
        %1376 = vmatprep.subr.mxu0 0.0
        %1377 = vmatpush1.msra.mxu0 0.0
        %1378 = vmatprep.subr.mxu0 0.0
        %1379 = vmatpush1.msra.mxu0 0.0
        %1380 = vmatprep.subr.mxu0 0.0
        %1381 = vmatpush1.msra.mxu0 0.0
        %1382 = vmatprep.subr.mxu0 0.0
        %1383 = vmatpush1.msra.mxu0 0.0
        %1384 = vmatprep.subr.mxu0 0.0
        %1385 = vmatpush1.msra.mxu0 0.0
        %1386 = vmatprep.subr.mxu0 0.0
        %1387 = vmatpush1.msra.mxu0 0.0
        %1388 = vmatprep.subr.mxu0 0.0
        %1389 = vmatpush1.msra.mxu0 0.0
        %1390 = vmatprep.subr.mxu0 0.0
        %1391 = vmatpush1.msra.mxu0 0.0
        %1392 = vmatprep.subr.mxu0 0.0
        %1393 = vmatpush1.msra.mxu0 0.0
        %1394 = vmatprep.subr.mxu0 0.0
        %1395 = vmatpush1.msra.mxu0 0.0
        %1396 = vmatprep.subr.mxu0 0.0
        %1397 = vmatpush1.msra.mxu0 %v1364
        %1398 = vmatprep.subr.mxu0 0.0
        %1399 = vmatpush2.msra.mxu0 0.0
        %1400 = vmatprep.subr.mxu0 0.0
        %1401 = vmatpush2.msra.mxu0 0.0
        %1402 = vmatprep.subr.mxu0 0.0
        %1403 = vmatpush2.msra.mxu0 0.0
        %1404 = vmatprep.subr.mxu0 0.0
        %1405 = vmatpush2.msra.mxu0 0.0
        %1406 = vmatprep.subr.mxu0 0.0
        %1407 = vmatpush2.msra.mxu0 0.0
        %1408 = vmatprep.subr.mxu0 0.0
        %1409 = vmatpush2.msra.mxu0 0.0
        %1410 = vmatprep.subr.mxu0 0.0
        %1411 = vmatpush2.msra.mxu0 0.0
        %1412 = vmatprep.subr.mxu0 0.0
        %1413 = vmatpush2.msra.mxu0 0.0
        %1414 = vmatprep.subr.mxu0 0.0
        %1415 = vmatpush2.msra.mxu0 0.0
        %1416 = vmatprep.subr.mxu0 0.0
        %1417 = vmatpush2.msra.mxu0 0.0
        %1418 = vmatprep.subr.mxu0 0.0
        %1419 = vmatpush2.msra.mxu0 0.0
        %1420 = vmatprep.subr.mxu0 0.0
        %1421 = vmatpush2.msra.mxu0 0.0
        %1422 = vmatprep.subr.mxu0 0.0
        %1423 = vmatpush2.msra.mxu0 0.0
        %1424 = vmatprep.subr.mxu0 0.0
        %1425 = vmatpush2.msra.mxu0 0.0
        %1426 = vmatprep.subr.mxu0 0.0
        %1427 = vmatpush2.msra.mxu0 0.0
        %1428 = vmatprep.subr.mxu0 0.0
        %1429 = vmatpush2.msra.mxu0 0.0
        %1430 = vmatprep.mubr.f32.mxu0 0.0
        %1431 = vmatmul.mubr.f32.gmra.mxu0 %v472
        %v1432 = vpop.f32.mrf.mxu0
        %v1433 = vadd.f32 0.0, %v1432
        %v1434 = vpop.f32.mrf.mxu0
        %1435 = vmatprep.mubr.f32.mxu0 0.0
        %1436 = vmatmul.mubr.f32.gmra.mxu0 %v474
        %v1437 = vpop.f32.mrf.mxu0
        %v1438 = vadd.f32 0.0, %v1437
        %v1439 = vpop.f32.mrf.mxu0
        %1440 = vmatprep.mubr.f32.mxu0 0.0
        %1441 = vmatmul.mubr.f32.gmra.mxu0 %v476
        %v1442 = vpop.f32.mrf.mxu0
        %v1443 = vadd.f32 0.0, %v1442
        %v1444 = vpop.f32.mrf.mxu0
        %1445 = vmatprep.mubr.f32.mxu0 0.0
        %1446 = vmatmul.mubr.f32.gmra.mxu0 %v478
        %v1447 = vpop.f32.mrf.mxu0
        %v1448 = vadd.f32 0.0, %v1447
        %v1449 = vpop.f32.mrf.mxu0
        %1450 = vmatprep.mubr.f32.mxu0 0.0
        %1451 = vmatmul.mubr.f32.gmra.mxu0 %v480
        %v1452 = vpop.f32.mrf.mxu0
        %v1453 = vadd.f32 0.0, %v1452
        %v1454 = vpop.f32.mrf.mxu0
        %1455 = vmatprep.mubr.f32.mxu0 0.0
        %1456 = vmatmul.mubr.f32.gmra.mxu0 %v482
        %v1457 = vpop.f32.mrf.mxu0
        %v1458 = vadd.f32 0.0, %v1457
        %v1459 = vpop.f32.mrf.mxu0
        %1460 = vmatprep.mubr.f32.mxu0 0.0
        %1461 = vmatmul.mubr.f32.gmra.mxu0 %v484
        %v1462 = vpop.f32.mrf.mxu0
        %v1463 = vadd.f32 0.0, %v1462
        %v1464 = vpop.f32.mrf.mxu0
        %1465 = vmatprep.mubr.f32.mxu0 0.0
        %1466 = vmatmul.mubr.f32.gmra.mxu0 %v486
        %v1467 = vpop.f32.mrf.mxu0
        %v1468 = vadd.f32 0.0, %v1467
        %v1469 = vpop.f32.mrf.mxu0
        %1470 = vmatprep.mubr.f32.mxu0 0.0
        %1471 = vmatmul.mubr.f32.gmra.mxu0 %v488
        %v1472 = vpop.f32.mrf.mxu0
        %v1473 = vadd.f32 0.0, %v1472
        %v1474 = vpop.f32.mrf.mxu0
        %1475 = vmatprep.mubr.f32.mxu0 0.0
        %1476 = vmatmul.mubr.f32.gmra.mxu0 %v490
        %v1477 = vpop.f32.mrf.mxu0
        %v1478 = vadd.f32 0.0, %v1477
        %v1479 = vpop.f32.mrf.mxu0
        %1480 = vmatprep.mubr.f32.mxu0 0.0
        %1481 = vmatmul.mubr.f32.gmra.mxu0 %v492
        %v1482 = vpop.f32.mrf.mxu0
        %v1483 = vadd.f32 0.0, %v1482
        %v1484 = vpop.f32.mrf.mxu0
        %1485 = vmatprep.mubr.f32.mxu0 0.0
        %1486 = vmatmul.mubr.f32.gmra.mxu0 %v494
        %v1487 = vpop.f32.mrf.mxu0
        %v1488 = vadd.f32 0.0, %v1487
        %v1489 = vpop.f32.mrf.mxu0
        %1490 = vmatprep.mubr.f32.mxu0 0.0
        %1491 = vmatmul.mubr.f32.gmra.mxu0 %v496
        %v1492 = vpop.f32.mrf.mxu0
        %v1493 = vadd.f32 0.0, %v1492
        %v1494 = vpop.f32.mrf.mxu0
        %1495 = vmatprep.mubr.f32.mxu0 0.0
        %1496 = vmatmul.mubr.f32.gmra.mxu0 %v498
        %v1497 = vpop.f32.mrf.mxu0
        %v1498 = vadd.f32 0.0, %v1497
        %v1499 = vpop.f32.mrf.mxu0
        %1500 = vmatprep.mubr.f32.mxu0 0.0
        %1501 = vmatmul.mubr.f32.gmra.mxu0 %v1359
        %v1502 = vpop.f32.mrf.mxu0
        %v1503 = vadd.f32 0.0, %v1502
        %v1504 = vpop.f32.mrf.mxu0
        %1505 = vmatprep.mubr.f32.mxu0 0.0
        %1506 = vmatmul.mubr.f32.gmra.mxu0 %v1362
        %v1507 = vpop.f32.mrf.mxu0
        %v1508 = vadd.f32 0.0, %v1507
        %v1509 = vpop.f32.mrf.mxu0
        %1510 = vdwg.mxu0
        %v1511 = vadd.f32 %v1341, %v1433
        %v1512 = vadd.f32 %v1342, %v1438
        %v1513 = vadd.f32 %v1343, %v1443
        %v1514 = vadd.f32 %v1344, %v1448
        %v1515 = vadd.f32 %v1345, %v1453
        %v1516 = vadd.f32 %v1346, %v1458
        %v1517 = vadd.f32 %v1347, %v1463
        %v1518 = vadd.f32 %v1348, %v1468
        %v1519 = vadd.f32 %v1349, %v1473
        %v1520 = vadd.f32 %v1350, %v1478
        %v1521 = vadd.f32 %v1351, %v1483
        %v1522 = vadd.f32 %v1352, %v1488
        %v1523 = vadd.f32 %v1353, %v1493
        %v1524 = vadd.f32 %v1354, %v1498
        %v1525 = vadd.f32 %v1355, %v1503
        %v1526 = vadd.f32 %v1356, %v1508
        %v1528 = vrot.slane %v195, 1
        %v1529 = vrot.slane %v196, 1
        %v1530 = vsel %vm244, %v1528, %v1529
        %v1531 = vrot.slane %v197, 1
        %v1532 = vsel %vm244, %v1529, %v1531
        %v1533 = vsel %vm287, %v1530, 0
        %v1535 = vsel %vm287, %v1532, 0
        %v1538 = vsel %vm320, %v210, 0
        %1540 = vmatprep.subr.mxu0 0.0
        %1541 = vmatpush1.msra.mxu0 0.0
        %1542 = vmatprep.subr.mxu0 0.0
        %1543 = vmatpush1.msra.mxu0 0.0
        %1544 = vmatprep.subr.mxu0 0.0
        %1545 = vmatpush1.msra.mxu0 0.0
        %1546 = vmatprep.subr.mxu0 0.0
        %1547 = vmatpush1.msra.mxu0 0.0
        %1548 = vmatprep.subr.mxu0 0.0
        %1549 = vmatpush1.msra.mxu0 0.0
        %1550 = vmatprep.subr.mxu0 0.0
        %1551 = vmatpush1.msra.mxu0 0.0
        %1552 = vmatprep.subr.mxu0 0.0
        %1553 = vmatpush1.msra.mxu0 0.0
        %1554 = vmatprep.subr.mxu0 0.0
        %1555 = vmatpush1.msra.mxu0 0.0
        %1556 = vmatprep.subr.mxu0 0.0
        %1557 = vmatpush1.msra.mxu0 0.0
        %1558 = vmatprep.subr.mxu0 0.0
        %1559 = vmatpush1.msra.mxu0 0.0
        %1560 = vmatprep.subr.mxu0 0.0
        %1561 = vmatpush1.msra.mxu0 0.0
        %1562 = vmatprep.subr.mxu0 0.0
        %1563 = vmatpush1.msra.mxu0 0.0
        %1564 = vmatprep.subr.mxu0 0.0
        %1565 = vmatpush1.msra.mxu0 0.0
        %1566 = vmatprep.subr.mxu0 0.0
        %1567 = vmatpush1.msra.mxu0 0.0
        %1568 = vmatprep.subr.mxu0 0.0
        %1569 = vmatpush1.msra.mxu0 0.0
        %1570 = vmatprep.subr.mxu0 0.0
        %1571 = vmatpush1.msra.mxu0 %v1538
        %1572 = vmatprep.subr.mxu0 0.0
        %1573 = vmatpush2.msra.mxu0 0.0
        %1574 = vmatprep.subr.mxu0 0.0
        %1575 = vmatpush2.msra.mxu0 0.0
        %1576 = vmatprep.subr.mxu0 0.0
        %1577 = vmatpush2.msra.mxu0 0.0
        %1578 = vmatprep.subr.mxu0 0.0
        %1579 = vmatpush2.msra.mxu0 0.0
        %1580 = vmatprep.subr.mxu0 0.0
        %1581 = vmatpush2.msra.mxu0 0.0
        %1582 = vmatprep.subr.mxu0 0.0
        %1583 = vmatpush2.msra.mxu0 0.0
        %1584 = vmatprep.subr.mxu0 0.0
        %1585 = vmatpush2.msra.mxu0 0.0
        %1586 = vmatprep.subr.mxu0 0.0
        %1587 = vmatpush2.msra.mxu0 0.0
        %1588 = vmatprep.subr.mxu0 0.0
        %1589 = vmatpush2.msra.mxu0 0.0
        %1590 = vmatprep.subr.mxu0 0.0
        %1591 = vmatpush2.msra.mxu0 0.0
        %1592 = vmatprep.subr.mxu0 0.0
        %1593 = vmatpush2.msra.mxu0 0.0
        %1594 = vmatprep.subr.mxu0 0.0
        %1595 = vmatpush2.msra.mxu0 0.0
        %1596 = vmatprep.subr.mxu0 0.0
        %1597 = vmatpush2.msra.mxu0 0.0
        %1598 = vmatprep.subr.mxu0 0.0
        %1599 = vmatpush2.msra.mxu0 0.0
        %1600 = vmatprep.subr.mxu0 0.0
        %1601 = vmatpush2.msra.mxu0 0.0
        %1602 = vmatprep.subr.mxu0 0.0
        %1603 = vmatpush2.msra.mxu0 0.0
        %1604 = vmatprep.mubr.f32.mxu0 0.0
        %1605 = vmatmul.mubr.f32.gmra.mxu0 %v292
        %v1606 = vpop.f32.mrf.mxu0
        %v1607 = vadd.f32 0.0, %v1606
        %v1608 = vpop.f32.mrf.mxu0
        %1609 = vmatprep.mubr.f32.mxu0 0.0
        %1610 = vmatmul.mubr.f32.gmra.mxu0 %v294
        %v1611 = vpop.f32.mrf.mxu0
        %v1612 = vadd.f32 0.0, %v1611
        %v1613 = vpop.f32.mrf.mxu0
        %1614 = vmatprep.mubr.f32.mxu0 0.0
        %1615 = vmatmul.mubr.f32.gmra.mxu0 %v296
        %v1616 = vpop.f32.mrf.mxu0
        %v1617 = vadd.f32 0.0, %v1616
        %v1618 = vpop.f32.mrf.mxu0
        %1619 = vmatprep.mubr.f32.mxu0 0.0
        %1620 = vmatmul.mubr.f32.gmra.mxu0 %v298
        %v1621 = vpop.f32.mrf.mxu0
        %v1622 = vadd.f32 0.0, %v1621
        %v1623 = vpop.f32.mrf.mxu0
        %1624 = vmatprep.mubr.f32.mxu0 0.0
        %1625 = vmatmul.mubr.f32.gmra.mxu0 %v300
        %v1626 = vpop.f32.mrf.mxu0
        %v1627 = vadd.f32 0.0, %v1626
        %v1628 = vpop.f32.mrf.mxu0
        %1629 = vmatprep.mubr.f32.mxu0 0.0
        %1630 = vmatmul.mubr.f32.gmra.mxu0 %v302
        %v1631 = vpop.f32.mrf.mxu0
        %v1632 = vadd.f32 0.0, %v1631
        %v1633 = vpop.f32.mrf.mxu0
        %1634 = vmatprep.mubr.f32.mxu0 0.0
        %1635 = vmatmul.mubr.f32.gmra.mxu0 %v304
        %v1636 = vpop.f32.mrf.mxu0
        %v1637 = vadd.f32 0.0, %v1636
        %v1638 = vpop.f32.mrf.mxu0
        %1639 = vmatprep.mubr.f32.mxu0 0.0
        %1640 = vmatmul.mubr.f32.gmra.mxu0 %v306
        %v1641 = vpop.f32.mrf.mxu0
        %v1642 = vadd.f32 0.0, %v1641
        %v1643 = vpop.f32.mrf.mxu0
        %1644 = vmatprep.mubr.f32.mxu0 0.0
        %1645 = vmatmul.mubr.f32.gmra.mxu0 %v308
        %v1646 = vpop.f32.mrf.mxu0
        %v1647 = vadd.f32 0.0, %v1646
        %v1648 = vpop.f32.mrf.mxu0
        %1649 = vmatprep.mubr.f32.mxu0 0.0
        %1650 = vmatmul.mubr.f32.gmra.mxu0 %v310
        %v1651 = vpop.f32.mrf.mxu0
        %v1652 = vadd.f32 0.0, %v1651
        %v1653 = vpop.f32.mrf.mxu0
        %1654 = vmatprep.mubr.f32.mxu0 0.0
        %1655 = vmatmul.mubr.f32.gmra.mxu0 %v312
        %v1656 = vpop.f32.mrf.mxu0
        %v1657 = vadd.f32 0.0, %v1656
        %v1658 = vpop.f32.mrf.mxu0
        %1659 = vmatprep.mubr.f32.mxu0 0.0
        %1660 = vmatmul.mubr.f32.gmra.mxu0 %v314
        %v1661 = vpop.f32.mrf.mxu0
        %v1662 = vadd.f32 0.0, %v1661
        %v1663 = vpop.f32.mrf.mxu0
        %1664 = vmatprep.mubr.f32.mxu0 0.0
        %1665 = vmatmul.mubr.f32.gmra.mxu0 %v316
        %v1666 = vpop.f32.mrf.mxu0
        %v1667 = vadd.f32 0.0, %v1666
        %v1668 = vpop.f32.mrf.mxu0
        %1669 = vmatprep.mubr.f32.mxu0 0.0
        %1670 = vmatmul.mubr.f32.gmra.mxu0 %v318
        %v1671 = vpop.f32.mrf.mxu0
        %v1672 = vadd.f32 0.0, %v1671
        %v1673 = vpop.f32.mrf.mxu0
        %1674 = vmatprep.mubr.f32.mxu0 0.0
        %1675 = vmatmul.mubr.f32.gmra.mxu0 %v1533
        %v1676 = vpop.f32.mrf.mxu0
        %v1677 = vadd.f32 0.0, %v1676
        %v1678 = vpop.f32.mrf.mxu0
        %1679 = vmatprep.mubr.f32.mxu0 0.0
        %1680 = vmatmul.mubr.f32.gmra.mxu0 %v1535
        %v1681 = vpop.f32.mrf.mxu0
        %v1682 = vadd.f32 0.0, %v1681
        %v1683 = vpop.f32.mrf.mxu0
        %1684 = vdwg.mxu0
        %v1685 = vadd.f32 %v1511, %v1607
        %v1686 = vadd.f32 %v1512, %v1612
        %v1687 = vadd.f32 %v1513, %v1617
        %v1688 = vadd.f32 %v1514, %v1622
        %v1689 = vadd.f32 %v1515, %v1627
        %v1690 = vadd.f32 %v1516, %v1632
        %v1691 = vadd.f32 %v1517, %v1637
        %v1692 = vadd.f32 %v1518, %v1642
        %v1693 = vadd.f32 %v1519, %v1647
        %v1694 = vadd.f32 %v1520, %v1652
        %v1695 = vadd.f32 %v1521, %v1657
        %v1696 = vadd.f32 %v1522, %v1662
        %v1697 = vadd.f32 %v1523, %v1667
        %v1698 = vadd.f32 %v1524, %v1672
        %v1699 = vadd.f32 %v1525, %v1677
        %v1700 = vadd.f32 %v1526, %v1682
        %v1701 = vrot.slane %v195, 2
        %v1702 = vrot.slane %v196, 2
        %v1703 = vsel %vm647, %v1701, %v1702
        %v1704 = vrot.slane %v197, 2
        %v1705 = vsel %vm647, %v1702, %v1704
        %v1706 = vrot.slane %v210, 4
        %v1707 = vsel %vm287, %v1703, 0
        %v1709 = vsel %vm287, %v1705, 0
        %v1711 = vsel %vm320, %v1706, 0
        %1713 = vmatprep.subr.mxu0 0.0
        %1714 = vmatpush1.msra.mxu0 0.0
        %1715 = vmatprep.subr.mxu0 0.0
        %1716 = vmatpush1.msra.mxu0 0.0
        %1717 = vmatprep.subr.mxu0 0.0
        %1718 = vmatpush1.msra.mxu0 0.0
        %1719 = vmatprep.subr.mxu0 0.0
        %1720 = vmatpush1.msra.mxu0 0.0
        %1721 = vmatprep.subr.mxu0 0.0
        %1722 = vmatpush1.msra.mxu0 0.0
        %1723 = vmatprep.subr.mxu0 0.0
        %1724 = vmatpush1.msra.mxu0 0.0
        %1725 = vmatprep.subr.mxu0 0.0
        %1726 = vmatpush1.msra.mxu0 0.0
        %1727 = vmatprep.subr.mxu0 0.0
        %1728 = vmatpush1.msra.mxu0 0.0
        %1729 = vmatprep.subr.mxu0 0.0
        %1730 = vmatpush1.msra.mxu0 0.0
        %1731 = vmatprep.subr.mxu0 0.0
        %1732 = vmatpush1.msra.mxu0 0.0
        %1733 = vmatprep.subr.mxu0 0.0
        %1734 = vmatpush1.msra.mxu0 0.0
        %1735 = vmatprep.subr.mxu0 0.0
        %1736 = vmatpush1.msra.mxu0 0.0
        %1737 = vmatprep.subr.mxu0 0.0
        %1738 = vmatpush1.msra.mxu0 0.0
        %1739 = vmatprep.subr.mxu0 0.0
        %1740 = vmatpush1.msra.mxu0 0.0
        %1741 = vmatprep.subr.mxu0 0.0
        %1742 = vmatpush1.msra.mxu0 0.0
        %1743 = vmatprep.subr.mxu0 0.0
        %1744 = vmatpush1.msra.mxu0 %v1711
        %1745 = vmatprep.subr.mxu0 0.0
        %1746 = vmatpush2.msra.mxu0 0.0
        %1747 = vmatprep.subr.mxu0 0.0
        %1748 = vmatpush2.msra.mxu0 0.0
        %1749 = vmatprep.subr.mxu0 0.0
        %1750 = vmatpush2.msra.mxu0 0.0
        %1751 = vmatprep.subr.mxu0 0.0
        %1752 = vmatpush2.msra.mxu0 0.0
        %1753 = vmatprep.subr.mxu0 0.0
        %1754 = vmatpush2.msra.mxu0 0.0
        %1755 = vmatprep.subr.mxu0 0.0
        %1756 = vmatpush2.msra.mxu0 0.0
        %1757 = vmatprep.subr.mxu0 0.0
        %1758 = vmatpush2.msra.mxu0 0.0
        %1759 = vmatprep.subr.mxu0 0.0
        %1760 = vmatpush2.msra.mxu0 0.0
        %1761 = vmatprep.subr.mxu0 0.0
        %1762 = vmatpush2.msra.mxu0 0.0
        %1763 = vmatprep.subr.mxu0 0.0
        %1764 = vmatpush2.msra.mxu0 0.0
        %1765 = vmatprep.subr.mxu0 0.0
        %1766 = vmatpush2.msra.mxu0 0.0
        %1767 = vmatprep.subr.mxu0 0.0
        %1768 = vmatpush2.msra.mxu0 0.0
        %1769 = vmatprep.subr.mxu0 0.0
        %1770 = vmatpush2.msra.mxu0 0.0
        %1771 = vmatprep.subr.mxu0 0.0
        %1772 = vmatpush2.msra.mxu0 0.0
        %1773 = vmatprep.subr.mxu0 0.0
        %1774 = vmatpush2.msra.mxu0 0.0
        %1775 = vmatprep.subr.mxu0 0.0
        %1776 = vmatpush2.msra.mxu0 0.0
        %1777 = vmatprep.mubr.f32.mxu0 0.0
        %1778 = vmatmul.mubr.f32.gmra.mxu0 %v692
        %v1779 = vpop.f32.mrf.mxu0
        %v1780 = vadd.f32 0.0, %v1779
        %v1781 = vpop.f32.mrf.mxu0
        %1782 = vmatprep.mubr.f32.mxu0 0.0
        %1783 = vmatmul.mubr.f32.gmra.mxu0 %v694
        %v1784 = vpop.f32.mrf.mxu0
        %v1785 = vadd.f32 0.0, %v1784
        %v1786 = vpop.f32.mrf.mxu0
        %1787 = vmatprep.mubr.f32.mxu0 0.0
        %1788 = vmatmul.mubr.f32.gmra.mxu0 %v696
        %v1789 = vpop.f32.mrf.mxu0
        %v1790 = vadd.f32 0.0, %v1789
        %v1791 = vpop.f32.mrf.mxu0
        %1792 = vmatprep.mubr.f32.mxu0 0.0
        %1793 = vmatmul.mubr.f32.gmra.mxu0 %v698
        %v1794 = vpop.f32.mrf.mxu0
        %v1795 = vadd.f32 0.0, %v1794
        %v1796 = vpop.f32.mrf.mxu0
        %1797 = vmatprep.mubr.f32.mxu0 0.0
        %1798 = vmatmul.mubr.f32.gmra.mxu0 %v700
        %v1799 = vpop.f32.mrf.mxu0
        %v1800 = vadd.f32 0.0, %v1799
        %v1801 = vpop.f32.mrf.mxu0
        %1802 = vmatprep.mubr.f32.mxu0 0.0
        %1803 = vmatmul.mubr.f32.gmra.mxu0 %v702
        %v1804 = vpop.f32.mrf.mxu0
        %v1805 = vadd.f32 0.0, %v1804
        %v1806 = vpop.f32.mrf.mxu0
        %1807 = vmatprep.mubr.f32.mxu0 0.0
        %1808 = vmatmul.mubr.f32.gmra.mxu0 %v704
        %v1809 = vpop.f32.mrf.mxu0
        %v1810 = vadd.f32 0.0, %v1809
        %v1811 = vpop.f32.mrf.mxu0
        %1812 = vmatprep.mubr.f32.mxu0 0.0
        %1813 = vmatmul.mubr.f32.gmra.mxu0 %v706
        %v1814 = vpop.f32.mrf.mxu0
        %v1815 = vadd.f32 0.0, %v1814
        %v1816 = vpop.f32.mrf.mxu0
        %1817 = vmatprep.mubr.f32.mxu0 0.0
        %1818 = vmatmul.mubr.f32.gmra.mxu0 %v708
        %v1819 = vpop.f32.mrf.mxu0
        %v1820 = vadd.f32 0.0, %v1819
        %v1821 = vpop.f32.mrf.mxu0
        %1822 = vmatprep.mubr.f32.mxu0 0.0
        %1823 = vmatmul.mubr.f32.gmra.mxu0 %v710
        %v1824 = vpop.f32.mrf.mxu0
        %v1825 = vadd.f32 0.0, %v1824
        %v1826 = vpop.f32.mrf.mxu0
        %1827 = vmatprep.mubr.f32.mxu0 0.0
        %1828 = vmatmul.mubr.f32.gmra.mxu0 %v712
        %v1829 = vpop.f32.mrf.mxu0
        %v1830 = vadd.f32 0.0, %v1829
        %v1831 = vpop.f32.mrf.mxu0
        %1832 = vmatprep.mubr.f32.mxu0 0.0
        %1833 = vmatmul.mubr.f32.gmra.mxu0 %v714
        %v1834 = vpop.f32.mrf.mxu0
        %v1835 = vadd.f32 0.0, %v1834
        %v1836 = vpop.f32.mrf.mxu0
        %1837 = vmatprep.mubr.f32.mxu0 0.0
        %1838 = vmatmul.mubr.f32.gmra.mxu0 %v716
        %v1839 = vpop.f32.mrf.mxu0
        %v1840 = vadd.f32 0.0, %v1839
        %v1841 = vpop.f32.mrf.mxu0
        %1842 = vmatprep.mubr.f32.mxu0 0.0
        %1843 = vmatmul.mubr.f32.gmra.mxu0 %v718
        %v1844 = vpop.f32.mrf.mxu0
        %v1845 = vadd.f32 0.0, %v1844
        %v1846 = vpop.f32.mrf.mxu0
        %1847 = vmatprep.mubr.f32.mxu0 0.0
        %1848 = vmatmul.mubr.f32.gmra.mxu0 %v1707
        %v1849 = vpop.f32.mrf.mxu0
        %v1850 = vadd.f32 0.0, %v1849
        %v1851 = vpop.f32.mrf.mxu0
        %1852 = vmatprep.mubr.f32.mxu0 0.0
        %1853 = vmatmul.mubr.f32.gmra.mxu0 %v1709
        %v1854 = vpop.f32.mrf.mxu0
        %v1855 = vadd.f32 0.0, %v1854
        %v1856 = vpop.f32.mrf.mxu0
        %1857 = vdwg.mxu0
        %v1858 = vadd.f32 %v1685, %v1780
        %v1859 = vadd.f32 %v1686, %v1785
        %v1860 = vadd.f32 %v1687, %v1790
        %v1861 = vadd.f32 %v1688, %v1795
        %v1862 = vadd.f32 %v1689, %v1800
        %v1863 = vadd.f32 %v1690, %v1805
        %v1864 = vadd.f32 %v1691, %v1810
        %v1865 = vadd.f32 %v1692, %v1815
        %v1866 = vadd.f32 %v1693, %v1820
        %v1867 = vadd.f32 %v1694, %v1825
        %v1868 = vadd.f32 %v1695, %v1830
        %v1869 = vadd.f32 %v1696, %v1835
        %v1870 = vadd.f32 %v1697, %v1840
        %v1871 = vadd.f32 %v1698, %v1845
        %v1872 = vadd.f32 %v1699, %v1850
        %v1873 = vadd.f32 %v1700, %v1855
        %v1874 = vrot.slane %v195, 3
        %v1875 = vrot.slane %v196, 3
        %v1876 = vsel %vm884, %v1874, %v1875
        %v1877 = vrot.slane %v197, 3
        %v1878 = vsel %vm884, %v1875, %v1877
        %v1879 = vsel %vm287, %v1876, 0
        %v1881 = vsel %vm287, %v1878, 0
        %v1884 = vsel %vm320, %v211, 0
        %1886 = vmatprep.subr.mxu0 0.0
        %1887 = vmatpush1.msra.mxu0 0.0
        %1888 = vmatprep.subr.mxu0 0.0
        %1889 = vmatpush1.msra.mxu0 0.0
        %1890 = vmatprep.subr.mxu0 0.0
        %1891 = vmatpush1.msra.mxu0 0.0
        %1892 = vmatprep.subr.mxu0 0.0
        %1893 = vmatpush1.msra.mxu0 0.0
        %1894 = vmatprep.subr.mxu0 0.0
        %1895 = vmatpush1.msra.mxu0 0.0
        %1896 = vmatprep.subr.mxu0 0.0
        %1897 = vmatpush1.msra.mxu0 0.0
        %1898 = vmatprep.subr.mxu0 0.0
        %1899 = vmatpush1.msra.mxu0 0.0
        %1900 = vmatprep.subr.mxu0 0.0
        %1901 = vmatpush1.msra.mxu0 0.0
        %1902 = vmatprep.subr.mxu0 0.0
        %1903 = vmatpush1.msra.mxu0 0.0
        %1904 = vmatprep.subr.mxu0 0.0
        %1905 = vmatpush1.msra.mxu0 0.0
        %1906 = vmatprep.subr.mxu0 0.0
        %1907 = vmatpush1.msra.mxu0 0.0
        %1908 = vmatprep.subr.mxu0 0.0
        %1909 = vmatpush1.msra.mxu0 0.0
        %1910 = vmatprep.subr.mxu0 0.0
        %1911 = vmatpush1.msra.mxu0 0.0
        %1912 = vmatprep.subr.mxu0 0.0
        %1913 = vmatpush1.msra.mxu0 0.0
        %1914 = vmatprep.subr.mxu0 0.0
        %1915 = vmatpush1.msra.mxu0 0.0
        %1916 = vmatprep.subr.mxu0 0.0
        %1917 = vmatpush1.msra.mxu0 %v1884
        %1918 = vmatprep.subr.mxu0 0.0
        %1919 = vmatpush2.msra.mxu0 0.0
        %1920 = vmatprep.subr.mxu0 0.0
        %1921 = vmatpush2.msra.mxu0 0.0
        %1922 = vmatprep.subr.mxu0 0.0
        %1923 = vmatpush2.msra.mxu0 0.0
        %1924 = vmatprep.subr.mxu0 0.0
        %1925 = vmatpush2.msra.mxu0 0.0
        %1926 = vmatprep.subr.mxu0 0.0
        %1927 = vmatpush2.msra.mxu0 0.0
        %1928 = vmatprep.subr.mxu0 0.0
        %1929 = vmatpush2.msra.mxu0 0.0
        %1930 = vmatprep.subr.mxu0 0.0
        %1931 = vmatpush2.msra.mxu0 0.0
        %1932 = vmatprep.subr.mxu0 0.0
        %1933 = vmatpush2.msra.mxu0 0.0
        %1934 = vmatprep.subr.mxu0 0.0
        %1935 = vmatpush2.msra.mxu0 0.0
        %1936 = vmatprep.subr.mxu0 0.0
        %1937 = vmatpush2.msra.mxu0 0.0
        %1938 = vmatprep.subr.mxu0 0.0
        %1939 = vmatpush2.msra.mxu0 0.0
        %1940 = vmatprep.subr.mxu0 0.0
        %1941 = vmatpush2.msra.mxu0 0.0
        %1942 = vmatprep.subr.mxu0 0.0
        %1943 = vmatpush2.msra.mxu0 0.0
        %1944 = vmatprep.subr.mxu0 0.0
        %1945 = vmatpush2.msra.mxu0 0.0
        %1946 = vmatprep.subr.mxu0 0.0
        %1947 = vmatpush2.msra.mxu0 0.0
        %1948 = vmatprep.subr.mxu0 0.0
        %1949 = vmatpush2.msra.mxu0 0.0
        %1950 = vmatprep.mubr.f32.mxu0 0.0
        %1951 = vmatmul.mubr.f32.gmra.mxu0 %v930
        %v1952 = vpop.f32.mrf.mxu0
        %v1953 = vadd.f32 0.0, %v1952
        %v1954 = vpop.f32.mrf.mxu0
        %1955 = vmatprep.mubr.f32.mxu0 0.0
        %1956 = vmatmul.mubr.f32.gmra.mxu0 %v932
        %v1957 = vpop.f32.mrf.mxu0
        %v1958 = vadd.f32 0.0, %v1957
        %v1959 = vpop.f32.mrf.mxu0
        %1960 = vmatprep.mubr.f32.mxu0 0.0
        %1961 = vmatmul.mubr.f32.gmra.mxu0 %v934
        %v1962 = vpop.f32.mrf.mxu0
        %v1963 = vadd.f32 0.0, %v1962
        %v1964 = vpop.f32.mrf.mxu0
        %1965 = vmatprep.mubr.f32.mxu0 0.0
        %1966 = vmatmul.mubr.f32.gmra.mxu0 %v936
        %v1967 = vpop.f32.mrf.mxu0
        %v1968 = vadd.f32 0.0, %v1967
        %v1969 = vpop.f32.mrf.mxu0
        %1970 = vmatprep.mubr.f32.mxu0 0.0
        %1971 = vmatmul.mubr.f32.gmra.mxu0 %v938
        %v1972 = vpop.f32.mrf.mxu0
        %v1973 = vadd.f32 0.0, %v1972
        %v1974 = vpop.f32.mrf.mxu0
        %1975 = vmatprep.mubr.f32.mxu0 0.0
        %1976 = vmatmul.mubr.f32.gmra.mxu0 %v940
        %v1977 = vpop.f32.mrf.mxu0
        %v1978 = vadd.f32 0.0, %v1977
        %v1979 = vpop.f32.mrf.mxu0
        %1980 = vmatprep.mubr.f32.mxu0 0.0
        %1981 = vmatmul.mubr.f32.gmra.mxu0 %v942
        %v1982 = vpop.f32.mrf.mxu0
        %v1983 = vadd.f32 0.0, %v1982
        %v1984 = vpop.f32.mrf.mxu0
        %1985 = vmatprep.mubr.f32.mxu0 0.0
        %1986 = vmatmul.mubr.f32.gmra.mxu0 %v944
        %v1987 = vpop.f32.mrf.mxu0
        %v1988 = vadd.f32 0.0, %v1987
        %v1989 = vpop.f32.mrf.mxu0
        %1990 = vmatprep.mubr.f32.mxu0 0.0
        %1991 = vmatmul.mubr.f32.gmra.mxu0 %v946
        %v1992 = vpop.f32.mrf.mxu0
        %v1993 = vadd.f32 0.0, %v1992
        %v1994 = vpop.f32.mrf.mxu0
        %1995 = vmatprep.mubr.f32.mxu0 0.0
        %1996 = vmatmul.mubr.f32.gmra.mxu0 %v948
        %v1997 = vpop.f32.mrf.mxu0
        %v1998 = vadd.f32 0.0, %v1997
        %v1999 = vpop.f32.mrf.mxu0
        %2000 = vmatprep.mubr.f32.mxu0 0.0
        %2001 = vmatmul.mubr.f32.gmra.mxu0 %v950
        %v2002 = vpop.f32.mrf.mxu0
        %v2003 = vadd.f32 0.0, %v2002
        %v2004 = vpop.f32.mrf.mxu0
        %2005 = vmatprep.mubr.f32.mxu0 0.0
        %2006 = vmatmul.mubr.f32.gmra.mxu0 %v952
        %v2007 = vpop.f32.mrf.mxu0
        %v2008 = vadd.f32 0.0, %v2007
        %v2009 = vpop.f32.mrf.mxu0
        %2010 = vmatprep.mubr.f32.mxu0 0.0
        %2011 = vmatmul.mubr.f32.gmra.mxu0 %v954
        %v2012 = vpop.f32.mrf.mxu0
        %v2013 = vadd.f32 0.0, %v2012
        %v2014 = vpop.f32.mrf.mxu0
        %2015 = vmatprep.mubr.f32.mxu0 0.0
        %2016 = vmatmul.mubr.f32.gmra.mxu0 %v956
        %v2017 = vpop.f32.mrf.mxu0
        %v2018 = vadd.f32 0.0, %v2017
        %v2019 = vpop.f32.mrf.mxu0
        %2020 = vmatprep.mubr.f32.mxu0 0.0
        %2021 = vmatmul.mubr.f32.gmra.mxu0 %v1879
        %v2022 = vpop.f32.mrf.mxu0
        %v2023 = vadd.f32 0.0, %v2022
        %v2024 = vpop.f32.mrf.mxu0
        %2025 = vmatprep.mubr.f32.mxu0 0.0
        %2026 = vmatmul.mubr.f32.gmra.mxu0 %v1881
        %v2027 = vpop.f32.mrf.mxu0
        %v2028 = vadd.f32 0.0, %v2027
        %v2029 = vpop.f32.mrf.mxu0
        %2030 = vdwg.mxu0
        %v2031 = vadd.f32 %v1858, %v1953
        %v2032 = vadd.f32 %v1859, %v1958
        %v2033 = vadd.f32 %v1860, %v1963
        %v2034 = vadd.f32 %v1861, %v1968
        %v2035 = vadd.f32 %v1862, %v1973
        %v2036 = vadd.f32 %v1863, %v1978
        %v2037 = vadd.f32 %v1864, %v1983
        %v2038 = vadd.f32 %v1865, %v1988
        %v2039 = vadd.f32 %v1866, %v1993
        %v2040 = vadd.f32 %v1867, %v1998
        %v2041 = vadd.f32 %v1868, %v2003
        %v2042 = vadd.f32 %v1869, %v2008
        %v2043 = vadd.f32 %v1870, %v2013
        %v2044 = vadd.f32 %v1871, %v2018
        %v2045 = vadd.f32 %v1872, %v2023
        %v2046 = vadd.f32 %v1873, %v2028
        %v2047 = vrot.slane %v195, 4
        %v2048 = vrot.slane %v196, 4
        %v2049 = vsel %vm320, %v2047, %v2048
        %v2050 = vrot.slane %v197, 4
        %v2051 = vsel %vm320, %v2048, %v2050
        %v2052 = vrot.slane %v211, 4
        %v2053 = vsel %vm287, %v2049, 0
        %v2055 = vsel %vm287, %v2051, 0
        %v2057 = vsel %vm320, %v2052, 0
        %2059 = vmatprep.subr.mxu0 0.0
        %2060 = vmatpush1.msra.mxu0 0.0
        %2061 = vmatprep.subr.mxu0 0.0
        %2062 = vmatpush1.msra.mxu0 0.0
        %2063 = vmatprep.subr.mxu0 0.0
        %2064 = vmatpush1.msra.mxu0 0.0
        %2065 = vmatprep.subr.mxu0 0.0
        %2066 = vmatpush1.msra.mxu0 0.0
        %2067 = vmatprep.subr.mxu0 0.0
        %2068 = vmatpush1.msra.mxu0 0.0
        %2069 = vmatprep.subr.mxu0 0.0
        %2070 = vmatpush1.msra.mxu0 0.0
        %2071 = vmatprep.subr.mxu0 0.0
        %2072 = vmatpush1.msra.mxu0 0.0
        %2073 = vmatprep.subr.mxu0 0.0
        %2074 = vmatpush1.msra.mxu0 0.0
        %2075 = vmatprep.subr.mxu0 0.0
        %2076 = vmatpush1.msra.mxu0 0.0
        %2077 = vmatprep.subr.mxu0 0.0
        %2078 = vmatpush1.msra.mxu0 0.0
        %2079 = vmatprep.subr.mxu0 0.0
        %2080 = vmatpush1.msra.mxu0 0.0
        %2081 = vmatprep.subr.mxu0 0.0
        %2082 = vmatpush1.msra.mxu0 0.0
        %2083 = vmatprep.subr.mxu0 0.0
        %2084 = vmatpush1.msra.mxu0 0.0
        %2085 = vmatprep.subr.mxu0 0.0
        %2086 = vmatpush1.msra.mxu0 0.0
        %2087 = vmatprep.subr.mxu0 0.0
        %2088 = vmatpush1.msra.mxu0 0.0
        %2089 = vmatprep.subr.mxu0 0.0
        %2090 = vmatpush1.msra.mxu0 %v2057
        %2091 = vmatprep.subr.mxu0 0.0
        %2092 = vmatpush2.msra.mxu0 0.0
        %2093 = vmatprep.subr.mxu0 0.0
        %2094 = vmatpush2.msra.mxu0 0.0
        %2095 = vmatprep.subr.mxu0 0.0
        %2096 = vmatpush2.msra.mxu0 0.0
        %2097 = vmatprep.subr.mxu0 0.0
        %2098 = vmatpush2.msra.mxu0 0.0
        %2099 = vmatprep.subr.mxu0 0.0
        %2100 = vmatpush2.msra.mxu0 0.0
        %2101 = vmatprep.subr.mxu0 0.0
        %2102 = vmatpush2.msra.mxu0 0.0
        %2103 = vmatprep.subr.mxu0 0.0
        %2104 = vmatpush2.msra.mxu0 0.0
        %2105 = vmatprep.subr.mxu0 0.0
        %2106 = vmatpush2.msra.mxu0 0.0
        %2107 = vmatprep.subr.mxu0 0.0
        %2108 = vmatpush2.msra.mxu0 0.0
        %2109 = vmatprep.subr.mxu0 0.0
        %2110 = vmatpush2.msra.mxu0 0.0
        %2111 = vmatprep.subr.mxu0 0.0
        %2112 = vmatpush2.msra.mxu0 0.0
        %2113 = vmatprep.subr.mxu0 0.0
        %2114 = vmatpush2.msra.mxu0 0.0
        %2115 = vmatprep.subr.mxu0 0.0
        %2116 = vmatpush2.msra.mxu0 0.0
        %2117 = vmatprep.subr.mxu0 0.0
        %2118 = vmatpush2.msra.mxu0 0.0
        %2119 = vmatprep.subr.mxu0 0.0
        %2120 = vmatpush2.msra.mxu0 0.0
        %2121 = vmatprep.subr.mxu0 0.0
        %2122 = vmatpush2.msra.mxu0 0.0
        %2123 = vmatprep.mubr.f32.mxu0 0.0
        %2124 = vmatmul.mubr.f32.gmra.mxu0 %v1165
        %v2125 = vpop.f32.mrf.mxu0
        %v2126 = vadd.f32 0.0, %v2125
        %v2127 = vpop.f32.mrf.mxu0
        %2128 = vmatprep.mubr.f32.mxu0 0.0
        %2129 = vmatmul.mubr.f32.gmra.mxu0 %v1167
        %v2130 = vpop.f32.mrf.mxu0
        %v2131 = vadd.f32 0.0, %v2130
        %v2132 = vpop.f32.mrf.mxu0
        %2133 = vmatprep.mubr.f32.mxu0 0.0
        %2134 = vmatmul.mubr.f32.gmra.mxu0 %v1169
        %v2135 = vpop.f32.mrf.mxu0
        %v2136 = vadd.f32 0.0, %v2135
        %v2137 = vpop.f32.mrf.mxu0
        %2138 = vmatprep.mubr.f32.mxu0 0.0
        %2139 = vmatmul.mubr.f32.gmra.mxu0 %v1171
        %v2140 = vpop.f32.mrf.mxu0
        %v2141 = vadd.f32 0.0, %v2140
        %v2142 = vpop.f32.mrf.mxu0
        %2143 = vmatprep.mubr.f32.mxu0 0.0
        %2144 = vmatmul.mubr.f32.gmra.mxu0 %v1173
        %v2145 = vpop.f32.mrf.mxu0
        %v2146 = vadd.f32 0.0, %v2145
        %v2147 = vpop.f32.mrf.mxu0
        %2148 = vmatprep.mubr.f32.mxu0 0.0
        %2149 = vmatmul.mubr.f32.gmra.mxu0 %v1175
        %v2150 = vpop.f32.mrf.mxu0
        %v2151 = vadd.f32 0.0, %v2150
        %v2152 = vpop.f32.mrf.mxu0
        %2153 = vmatprep.mubr.f32.mxu0 0.0
        %2154 = vmatmul.mubr.f32.gmra.mxu0 %v1177
        %v2155 = vpop.f32.mrf.mxu0
        %v2156 = vadd.f32 0.0, %v2155
        %v2157 = vpop.f32.mrf.mxu0
        %2158 = vmatprep.mubr.f32.mxu0 0.0
        %2159 = vmatmul.mubr.f32.gmra.mxu0 %v1179
        %v2160 = vpop.f32.mrf.mxu0
        %v2161 = vadd.f32 0.0, %v2160
        %v2162 = vpop.f32.mrf.mxu0
        %2163 = vmatprep.mubr.f32.mxu0 0.0
        %2164 = vmatmul.mubr.f32.gmra.mxu0 %v1181
        %v2165 = vpop.f32.mrf.mxu0
        %v2166 = vadd.f32 0.0, %v2165
        %v2167 = vpop.f32.mrf.mxu0
        %2168 = vmatprep.mubr.f32.mxu0 0.0
        %2169 = vmatmul.mubr.f32.gmra.mxu0 %v1183
        %v2170 = vpop.f32.mrf.mxu0
        %v2171 = vadd.f32 0.0, %v2170
        %v2172 = vpop.f32.mrf.mxu0
        %2173 = vmatprep.mubr.f32.mxu0 0.0
        %2174 = vmatmul.mubr.f32.gmra.mxu0 %v1185
        %v2175 = vpop.f32.mrf.mxu0
        %v2176 = vadd.f32 0.0, %v2175
        %v2177 = vpop.f32.mrf.mxu0
        %2178 = vmatprep.mubr.f32.mxu0 0.0
        %2179 = vmatmul.mubr.f32.gmra.mxu0 %v1187
        %v2180 = vpop.f32.mrf.mxu0
        %v2181 = vadd.f32 0.0, %v2180
        %v2182 = vpop.f32.mrf.mxu0
        %2183 = vmatprep.mubr.f32.mxu0 0.0
        %2184 = vmatmul.mubr.f32.gmra.mxu0 %v1189
        %v2185 = vpop.f32.mrf.mxu0
        %v2186 = vadd.f32 0.0, %v2185
        %v2187 = vpop.f32.mrf.mxu0
        %2188 = vmatprep.mubr.f32.mxu0 0.0
        %2189 = vmatmul.mubr.f32.gmra.mxu0 %v1191
        %v2190 = vpop.f32.mrf.mxu0
        %v2191 = vadd.f32 0.0, %v2190
        %v2192 = vpop.f32.mrf.mxu0
        %2193 = vmatprep.mubr.f32.mxu0 0.0
        %2194 = vmatmul.mubr.f32.gmra.mxu0 %v2053
        %v2195 = vpop.f32.mrf.mxu0
        %v2196 = vadd.f32 0.0, %v2195
        %v2197 = vpop.f32.mrf.mxu0
        %2198 = vmatprep.mubr.f32.mxu0 0.0
        %2199 = vmatmul.mubr.f32.gmra.mxu0 %v2055
        %v2200 = vpop.f32.mrf.mxu0
        %v2201 = vadd.f32 0.0, %v2200
        %v2202 = vpop.f32.mrf.mxu0
        %2203 = vdwg.mxu0
        %v2204 = vadd.f32 %v2031, %v2126
        %v2205 = vadd.f32 %v2032, %v2131
        %v2206 = vadd.f32 %v2033, %v2136
        %v2207 = vadd.f32 %v2034, %v2141
        %v2208 = vadd.f32 %v2035, %v2146
        %v2209 = vadd.f32 %v2036, %v2151
        %v2210 = vadd.f32 %v2037, %v2156
        %v2211 = vadd.f32 %v2038, %v2161
        %v2212 = vadd.f32 %v2039, %v2166
        %v2213 = vadd.f32 %v2040, %v2171
        %v2214 = vadd.f32 %v2041, %v2176
        %v2215 = vadd.f32 %v2042, %v2181
        %v2216 = vadd.f32 %v2043, %v2186
        %v2217 = vadd.f32 %v2044, %v2191
        %v2218 = vadd.f32 %v2045, %v2196
        %v2219 = vadd.f32 %v2046, %v2201
        %v2221 = vsel %vm287, %v198, 0
        %v2224 = vsel %vm287, %v199, 0
        %v2227 = vsel %vm320, %v212, 0
        %2229 = vmatprep.subr.mxu0 0.0
        %2230 = vmatpush1.msra.mxu0 0.0
        %2231 = vmatprep.subr.mxu0 0.0
        %2232 = vmatpush1.msra.mxu0 0.0
        %2233 = vmatprep.subr.mxu0 0.0
        %2234 = vmatpush1.msra.mxu0 0.0
        %2235 = vmatprep.subr.mxu0 0.0
        %2236 = vmatpush1.msra.mxu0 0.0
        %2237 = vmatprep.subr.mxu0 0.0
        %2238 = vmatpush1.msra.mxu0 0.0
        %2239 = vmatprep.subr.mxu0 0.0
        %2240 = vmatpush1.msra.mxu0 0.0
        %2241 = vmatprep.subr.mxu0 0.0
        %2242 = vmatpush1.msra.mxu0 0.0
        %2243 = vmatprep.subr.mxu0 0.0
        %2244 = vmatpush1.msra.mxu0 0.0
        %2245 = vmatprep.subr.mxu0 0.0
        %2246 = vmatpush1.msra.mxu0 0.0
        %2247 = vmatprep.subr.mxu0 0.0
        %2248 = vmatpush1.msra.mxu0 0.0
        %2249 = vmatprep.subr.mxu0 0.0
        %2250 = vmatpush1.msra.mxu0 0.0
        %2251 = vmatprep.subr.mxu0 0.0
        %2252 = vmatpush1.msra.mxu0 0.0
        %2253 = vmatprep.subr.mxu0 0.0
        %2254 = vmatpush1.msra.mxu0 0.0
        %2255 = vmatprep.subr.mxu0 0.0
        %2256 = vmatpush1.msra.mxu0 0.0
        %2257 = vmatprep.subr.mxu0 0.0
        %2258 = vmatpush1.msra.mxu0 0.0
        %2259 = vmatprep.subr.mxu0 0.0
        %2260 = vmatpush1.msra.mxu0 %v2227
        %2261 = vmatprep.subr.mxu0 0.0
        %2262 = vmatpush2.msra.mxu0 0.0
        %2263 = vmatprep.subr.mxu0 0.0
        %2264 = vmatpush2.msra.mxu0 0.0
        %2265 = vmatprep.subr.mxu0 0.0
        %2266 = vmatpush2.msra.mxu0 0.0
        %2267 = vmatprep.subr.mxu0 0.0
        %2268 = vmatpush2.msra.mxu0 0.0
        %2269 = vmatprep.subr.mxu0 0.0
        %2270 = vmatpush2.msra.mxu0 0.0
        %2271 = vmatprep.subr.mxu0 0.0
        %2272 = vmatpush2.msra.mxu0 0.0
        %2273 = vmatprep.subr.mxu0 0.0
        %2274 = vmatpush2.msra.mxu0 0.0
        %2275 = vmatprep.subr.mxu0 0.0
        %2276 = vmatpush2.msra.mxu0 0.0
        %2277 = vmatprep.subr.mxu0 0.0
        %2278 = vmatpush2.msra.mxu0 0.0
        %2279 = vmatprep.subr.mxu0 0.0
        %2280 = vmatpush2.msra.mxu0 0.0
        %2281 = vmatprep.subr.mxu0 0.0
        %2282 = vmatpush2.msra.mxu0 0.0
        %2283 = vmatprep.subr.mxu0 0.0
        %2284 = vmatpush2.msra.mxu0 0.0
        %2285 = vmatprep.subr.mxu0 0.0
        %2286 = vmatpush2.msra.mxu0 0.0
        %2287 = vmatprep.subr.mxu0 0.0
        %2288 = vmatpush2.msra.mxu0 0.0
        %2289 = vmatprep.subr.mxu0 0.0
        %2290 = vmatpush2.msra.mxu0 0.0
        %2291 = vmatprep.subr.mxu0 0.0
        %2292 = vmatpush2.msra.mxu0 0.0
        %2293 = vmatprep.mubr.f32.mxu0 0.0
        %2294 = vmatmul.mubr.f32.gmra.mxu0 %v476
        %v2295 = vpop.f32.mrf.mxu0
        %v2296 = vadd.f32 0.0, %v2295
        %v2297 = vpop.f32.mrf.mxu0
        %2298 = vmatprep.mubr.f32.mxu0 0.0
        %2299 = vmatmul.mubr.f32.gmra.mxu0 %v478
        %v2300 = vpop.f32.mrf.mxu0
        %v2301 = vadd.f32 0.0, %v2300
        %v2302 = vpop.f32.mrf.mxu0
        %2303 = vmatprep.mubr.f32.mxu0 0.0
        %2304 = vmatmul.mubr.f32.gmra.mxu0 %v480
        %v2305 = vpop.f32.mrf.mxu0
        %v2306 = vadd.f32 0.0, %v2305
        %v2307 = vpop.f32.mrf.mxu0
        %2308 = vmatprep.mubr.f32.mxu0 0.0
        %2309 = vmatmul.mubr.f32.gmra.mxu0 %v482
        %v2310 = vpop.f32.mrf.mxu0
        %v2311 = vadd.f32 0.0, %v2310
        %v2312 = vpop.f32.mrf.mxu0
        %2313 = vmatprep.mubr.f32.mxu0 0.0
        %2314 = vmatmul.mubr.f32.gmra.mxu0 %v484
        %v2315 = vpop.f32.mrf.mxu0
        %v2316 = vadd.f32 0.0, %v2315
        %v2317 = vpop.f32.mrf.mxu0
        %2318 = vmatprep.mubr.f32.mxu0 0.0
        %2319 = vmatmul.mubr.f32.gmra.mxu0 %v486
        %v2320 = vpop.f32.mrf.mxu0
        %v2321 = vadd.f32 0.0, %v2320
        %v2322 = vpop.f32.mrf.mxu0
        %2323 = vmatprep.mubr.f32.mxu0 0.0
        %2324 = vmatmul.mubr.f32.gmra.mxu0 %v488
        %v2325 = vpop.f32.mrf.mxu0
        %v2326 = vadd.f32 0.0, %v2325
        %v2327 = vpop.f32.mrf.mxu0
        %2328 = vmatprep.mubr.f32.mxu0 0.0
        %2329 = vmatmul.mubr.f32.gmra.mxu0 %v490
        %v2330 = vpop.f32.mrf.mxu0
        %v2331 = vadd.f32 0.0, %v2330
        %v2332 = vpop.f32.mrf.mxu0
        %2333 = vmatprep.mubr.f32.mxu0 0.0
        %2334 = vmatmul.mubr.f32.gmra.mxu0 %v492
        %v2335 = vpop.f32.mrf.mxu0
        %v2336 = vadd.f32 0.0, %v2335
        %v2337 = vpop.f32.mrf.mxu0
        %2338 = vmatprep.mubr.f32.mxu0 0.0
        %2339 = vmatmul.mubr.f32.gmra.mxu0 %v494
        %v2340 = vpop.f32.mrf.mxu0
        %v2341 = vadd.f32 0.0, %v2340
        %v2342 = vpop.f32.mrf.mxu0
        %2343 = vmatprep.mubr.f32.mxu0 0.0
        %2344 = vmatmul.mubr.f32.gmra.mxu0 %v496
        %v2345 = vpop.f32.mrf.mxu0
        %v2346 = vadd.f32 0.0, %v2345
        %v2347 = vpop.f32.mrf.mxu0
        %2348 = vmatprep.mubr.f32.mxu0 0.0
        %2349 = vmatmul.mubr.f32.gmra.mxu0 %v498
        %v2350 = vpop.f32.mrf.mxu0
        %v2351 = vadd.f32 0.0, %v2350
        %v2352 = vpop.f32.mrf.mxu0
        %2353 = vmatprep.mubr.f32.mxu0 0.0
        %2354 = vmatmul.mubr.f32.gmra.mxu0 %v1359
        %v2355 = vpop.f32.mrf.mxu0
        %v2356 = vadd.f32 0.0, %v2355
        %v2357 = vpop.f32.mrf.mxu0
        %2358 = vmatprep.mubr.f32.mxu0 0.0
        %2359 = vmatmul.mubr.f32.gmra.mxu0 %v1362
        %v2360 = vpop.f32.mrf.mxu0
        %v2361 = vadd.f32 0.0, %v2360
        %v2362 = vpop.f32.mrf.mxu0
        %2363 = vmatprep.mubr.f32.mxu0 0.0
        %2364 = vmatmul.mubr.f32.gmra.mxu0 %v2221
        %v2365 = vpop.f32.mrf.mxu0
        %v2366 = vadd.f32 0.0, %v2365
        %v2367 = vpop.f32.mrf.mxu0
        %2368 = vmatprep.mubr.f32.mxu0 0.0
        %2369 = vmatmul.mubr.f32.gmra.mxu0 %v2224
        %v2370 = vpop.f32.mrf.mxu0
        %v2371 = vadd.f32 0.0, %v2370
        %v2372 = vpop.f32.mrf.mxu0
        %2373 = vdwg.mxu0
        %v2374 = vadd.f32 %v2204, %v2296
        %v2375 = vadd.f32 %v2205, %v2301
        %v2376 = vadd.f32 %v2206, %v2306
        %v2377 = vadd.f32 %v2207, %v2311
        %v2378 = vadd.f32 %v2208, %v2316
        %v2379 = vadd.f32 %v2209, %v2321
        %v2380 = vadd.f32 %v2210, %v2326
        %v2381 = vadd.f32 %v2211, %v2331
        %v2382 = vadd.f32 %v2212, %v2336
        %v2383 = vadd.f32 %v2213, %v2341
        %v2384 = vadd.f32 %v2214, %v2346
        %v2385 = vadd.f32 %v2215, %v2351
        %v2386 = vadd.f32 %v2216, %v2356
        %v2387 = vadd.f32 %v2217, %v2361
        %v2388 = vadd.f32 %v2218, %v2366
        %v2389 = vadd.f32 %v2219, %v2371
        %v2391 = vrot.slane %v198, 1
        %v2392 = vrot.slane %v199, 1
        %v2393 = vsel %vm244, %v2391, %v2392
        %v2394 = vrot.slane %v200, 1
        %v2395 = vsel %vm244, %v2392, %v2394
        %v2396 = vrot.slane %v212, 4
        %v2397 = vsel %vm287, %v2393, 0
        %v2399 = vsel %vm287, %v2395, 0
        %v2401 = vsel %vm320, %v2396, 0
        %2403 = vmatprep.subr.mxu0 0.0
        %2404 = vmatpush1.msra.mxu0 0.0
        %2405 = vmatprep.subr.mxu0 0.0
        %2406 = vmatpush1.msra.mxu0 0.0
        %2407 = vmatprep.subr.mxu0 0.0
        %2408 = vmatpush1.msra.mxu0 0.0
        %2409 = vmatprep.subr.mxu0 0.0
        %2410 = vmatpush1.msra.mxu0 0.0
        %2411 = vmatprep.subr.mxu0 0.0
        %2412 = vmatpush1.msra.mxu0 0.0
        %2413 = vmatprep.subr.mxu0 0.0
        %2414 = vmatpush1.msra.mxu0 0.0
        %2415 = vmatprep.subr.mxu0 0.0
        %2416 = vmatpush1.msra.mxu0 0.0
        %2417 = vmatprep.subr.mxu0 0.0
        %2418 = vmatpush1.msra.mxu0 0.0
        %2419 = vmatprep.subr.mxu0 0.0
        %2420 = vmatpush1.msra.mxu0 0.0
        %2421 = vmatprep.subr.mxu0 0.0
        %2422 = vmatpush1.msra.mxu0 0.0
        %2423 = vmatprep.subr.mxu0 0.0
        %2424 = vmatpush1.msra.mxu0 0.0
        %2425 = vmatprep.subr.mxu0 0.0
        %2426 = vmatpush1.msra.mxu0 0.0
        %2427 = vmatprep.subr.mxu0 0.0
        %2428 = vmatpush1.msra.mxu0 0.0
        %2429 = vmatprep.subr.mxu0 0.0
        %2430 = vmatpush1.msra.mxu0 0.0
        %2431 = vmatprep.subr.mxu0 0.0
        %2432 = vmatpush1.msra.mxu0 0.0
        %2433 = vmatprep.subr.mxu0 0.0
        %2434 = vmatpush1.msra.mxu0 %v2401
        %2435 = vmatprep.subr.mxu0 0.0
        %2436 = vmatpush2.msra.mxu0 0.0
        %2437 = vmatprep.subr.mxu0 0.0
        %2438 = vmatpush2.msra.mxu0 0.0
        %2439 = vmatprep.subr.mxu0 0.0
        %2440 = vmatpush2.msra.mxu0 0.0
        %2441 = vmatprep.subr.mxu0 0.0
        %2442 = vmatpush2.msra.mxu0 0.0
        %2443 = vmatprep.subr.mxu0 0.0
        %2444 = vmatpush2.msra.mxu0 0.0
        %2445 = vmatprep.subr.mxu0 0.0
        %2446 = vmatpush2.msra.mxu0 0.0
        %2447 = vmatprep.subr.mxu0 0.0
        %2448 = vmatpush2.msra.mxu0 0.0
        %2449 = vmatprep.subr.mxu0 0.0
        %2450 = vmatpush2.msra.mxu0 0.0
        %2451 = vmatprep.subr.mxu0 0.0
        %2452 = vmatpush2.msra.mxu0 0.0
        %2453 = vmatprep.subr.mxu0 0.0
        %2454 = vmatpush2.msra.mxu0 0.0
        %2455 = vmatprep.subr.mxu0 0.0
        %2456 = vmatpush2.msra.mxu0 0.0
        %2457 = vmatprep.subr.mxu0 0.0
        %2458 = vmatpush2.msra.mxu0 0.0
        %2459 = vmatprep.subr.mxu0 0.0
        %2460 = vmatpush2.msra.mxu0 0.0
        %2461 = vmatprep.subr.mxu0 0.0
        %2462 = vmatpush2.msra.mxu0 0.0
        %2463 = vmatprep.subr.mxu0 0.0
        %2464 = vmatpush2.msra.mxu0 0.0
        %2465 = vmatprep.subr.mxu0 0.0
        %2466 = vmatpush2.msra.mxu0 0.0
        %2467 = vmatprep.mubr.f32.mxu0 0.0
        %2468 = vmatmul.mubr.f32.gmra.mxu0 %v296
        %v2469 = vpop.f32.mrf.mxu0
        %v2470 = vadd.f32 0.0, %v2469
        %v2471 = vpop.f32.mrf.mxu0
        %2472 = vmatprep.mubr.f32.mxu0 0.0
        %2473 = vmatmul.mubr.f32.gmra.mxu0 %v298
        %v2474 = vpop.f32.mrf.mxu0
        %v2475 = vadd.f32 0.0, %v2474
        %v2476 = vpop.f32.mrf.mxu0
        %2477 = vmatprep.mubr.f32.mxu0 0.0
        %2478 = vmatmul.mubr.f32.gmra.mxu0 %v300
        %v2479 = vpop.f32.mrf.mxu0
        %v2480 = vadd.f32 0.0, %v2479
        %v2481 = vpop.f32.mrf.mxu0
        %2482 = vmatprep.mubr.f32.mxu0 0.0
        %2483 = vmatmul.mubr.f32.gmra.mxu0 %v302
        %v2484 = vpop.f32.mrf.mxu0
        %v2485 = vadd.f32 0.0, %v2484
        %v2486 = vpop.f32.mrf.mxu0
        %2487 = vmatprep.mubr.f32.mxu0 0.0
        %2488 = vmatmul.mubr.f32.gmra.mxu0 %v304
        %v2489 = vpop.f32.mrf.mxu0
        %v2490 = vadd.f32 0.0, %v2489
        %v2491 = vpop.f32.mrf.mxu0
        %2492 = vmatprep.mubr.f32.mxu0 0.0
        %2493 = vmatmul.mubr.f32.gmra.mxu0 %v306
        %v2494 = vpop.f32.mrf.mxu0
        %v2495 = vadd.f32 0.0, %v2494
        %v2496 = vpop.f32.mrf.mxu0
        %2497 = vmatprep.mubr.f32.mxu0 0.0
        %2498 = vmatmul.mubr.f32.gmra.mxu0 %v308
        %v2499 = vpop.f32.mrf.mxu0
        %v2500 = vadd.f32 0.0, %v2499
        %v2501 = vpop.f32.mrf.mxu0
        %2502 = vmatprep.mubr.f32.mxu0 0.0
        %2503 = vmatmul.mubr.f32.gmra.mxu0 %v310
        %v2504 = vpop.f32.mrf.mxu0
        %v2505 = vadd.f32 0.0, %v2504
        %v2506 = vpop.f32.mrf.mxu0
        %2507 = vmatprep.mubr.f32.mxu0 0.0
        %2508 = vmatmul.mubr.f32.gmra.mxu0 %v312
        %v2509 = vpop.f32.mrf.mxu0
        %v2510 = vadd.f32 0.0, %v2509
        %v2511 = vpop.f32.mrf.mxu0
        %2512 = vmatprep.mubr.f32.mxu0 0.0
        %2513 = vmatmul.mubr.f32.gmra.mxu0 %v314
        %v2514 = vpop.f32.mrf.mxu0
        %v2515 = vadd.f32 0.0, %v2514
        %v2516 = vpop.f32.mrf.mxu0
        %2517 = vmatprep.mubr.f32.mxu0 0.0
        %2518 = vmatmul.mubr.f32.gmra.mxu0 %v316
        %v2519 = vpop.f32.mrf.mxu0
        %v2520 = vadd.f32 0.0, %v2519
        %v2521 = vpop.f32.mrf.mxu0
        %2522 = vmatprep.mubr.f32.mxu0 0.0
        %2523 = vmatmul.mubr.f32.gmra.mxu0 %v318
        %v2524 = vpop.f32.mrf.mxu0
        %v2525 = vadd.f32 0.0, %v2524
        %v2526 = vpop.f32.mrf.mxu0
        %2527 = vmatprep.mubr.f32.mxu0 0.0
        %2528 = vmatmul.mubr.f32.gmra.mxu0 %v1533
        %v2529 = vpop.f32.mrf.mxu0
        %v2530 = vadd.f32 0.0, %v2529
        %v2531 = vpop.f32.mrf.mxu0
        %2532 = vmatprep.mubr.f32.mxu0 0.0
        %2533 = vmatmul.mubr.f32.gmra.mxu0 %v1535
        %v2534 = vpop.f32.mrf.mxu0
        %v2535 = vadd.f32 0.0, %v2534
        %v2536 = vpop.f32.mrf.mxu0
        %2537 = vmatprep.mubr.f32.mxu0 0.0
        %2538 = vmatmul.mubr.f32.gmra.mxu0 %v2397
        %v2539 = vpop.f32.mrf.mxu0
        %v2540 = vadd.f32 0.0, %v2539
        %v2541 = vpop.f32.mrf.mxu0
        %2542 = vmatprep.mubr.f32.mxu0 0.0
        %2543 = vmatmul.mubr.f32.gmra.mxu0 %v2399
        %v2544 = vpop.f32.mrf.mxu0
        %v2545 = vadd.f32 0.0, %v2544
        %v2546 = vpop.f32.mrf.mxu0
        %2547 = vdwg.mxu0
        %v2548 = vadd.f32 %v2374, %v2470
        %v2549 = vadd.f32 %v2375, %v2475
        %v2550 = vadd.f32 %v2376, %v2480
        %v2551 = vadd.f32 %v2377, %v2485
        %v2552 = vadd.f32 %v2378, %v2490
        %v2553 = vadd.f32 %v2379, %v2495
        %v2554 = vadd.f32 %v2380, %v2500
        %v2555 = vadd.f32 %v2381, %v2505
        %v2556 = vadd.f32 %v2382, %v2510
        %v2557 = vadd.f32 %v2383, %v2515
        %v2558 = vadd.f32 %v2384, %v2520
        %v2559 = vadd.f32 %v2385, %v2525
        %v2560 = vadd.f32 %v2386, %v2530
        %v2561 = vadd.f32 %v2387, %v2535
        %v2562 = vadd.f32 %v2388, %v2540
        %v2563 = vadd.f32 %v2389, %v2545
        %v2564 = vrot.slane %v198, 2
        %v2565 = vrot.slane %v199, 2
        %v2566 = vsel %vm647, %v2564, %v2565
        %v2567 = vrot.slane %v200, 2
        %v2568 = vsel %vm647, %v2565, %v2567
        %v2569 = vsel %vm287, %v2566, 0
        %v2571 = vsel %vm287, %v2568, 0
        %v2574 = vsel %vm320, %v213, 0
        %2576 = vmatprep.subr.mxu0 0.0
        %2577 = vmatpush1.msra.mxu0 0.0
        %2578 = vmatprep.subr.mxu0 0.0
        %2579 = vmatpush1.msra.mxu0 0.0
        %2580 = vmatprep.subr.mxu0 0.0
        %2581 = vmatpush1.msra.mxu0 0.0
        %2582 = vmatprep.subr.mxu0 0.0
        %2583 = vmatpush1.msra.mxu0 0.0
        %2584 = vmatprep.subr.mxu0 0.0
        %2585 = vmatpush1.msra.mxu0 0.0
        %2586 = vmatprep.subr.mxu0 0.0
        %2587 = vmatpush1.msra.mxu0 0.0
        %2588 = vmatprep.subr.mxu0 0.0
        %2589 = vmatpush1.msra.mxu0 0.0
        %2590 = vmatprep.subr.mxu0 0.0
        %2591 = vmatpush1.msra.mxu0 0.0
        %2592 = vmatprep.subr.mxu0 0.0
        %2593 = vmatpush1.msra.mxu0 0.0
        %2594 = vmatprep.subr.mxu0 0.0
        %2595 = vmatpush1.msra.mxu0 0.0
        %2596 = vmatprep.subr.mxu0 0.0
        %2597 = vmatpush1.msra.mxu0 0.0
        %2598 = vmatprep.subr.mxu0 0.0
        %2599 = vmatpush1.msra.mxu0 0.0
        %2600 = vmatprep.subr.mxu0 0.0
        %2601 = vmatpush1.msra.mxu0 0.0
        %2602 = vmatprep.subr.mxu0 0.0
        %2603 = vmatpush1.msra.mxu0 0.0
        %2604 = vmatprep.subr.mxu0 0.0
        %2605 = vmatpush1.msra.mxu0 0.0
        %2606 = vmatprep.subr.mxu0 0.0
        %2607 = vmatpush1.msra.mxu0 %v2574
        %2608 = vmatprep.subr.mxu0 0.0
        %2609 = vmatpush2.msra.mxu0 0.0
        %2610 = vmatprep.subr.mxu0 0.0
        %2611 = vmatpush2.msra.mxu0 0.0
        %2612 = vmatprep.subr.mxu0 0.0
        %2613 = vmatpush2.msra.mxu0 0.0
        %2614 = vmatprep.subr.mxu0 0.0
        %2615 = vmatpush2.msra.mxu0 0.0
        %2616 = vmatprep.subr.mxu0 0.0
        %2617 = vmatpush2.msra.mxu0 0.0
        %2618 = vmatprep.subr.mxu0 0.0
        %2619 = vmatpush2.msra.mxu0 0.0
        %2620 = vmatprep.subr.mxu0 0.0
        %2621 = vmatpush2.msra.mxu0 0.0
        %2622 = vmatprep.subr.mxu0 0.0
        %2623 = vmatpush2.msra.mxu0 0.0
        %2624 = vmatprep.subr.mxu0 0.0
        %2625 = vmatpush2.msra.mxu0 0.0
        %2626 = vmatprep.subr.mxu0 0.0
        %2627 = vmatpush2.msra.mxu0 0.0
        %2628 = vmatprep.subr.mxu0 0.0
        %2629 = vmatpush2.msra.mxu0 0.0
        %2630 = vmatprep.subr.mxu0 0.0
        %2631 = vmatpush2.msra.mxu0 0.0
        %2632 = vmatprep.subr.mxu0 0.0
        %2633 = vmatpush2.msra.mxu0 0.0
        %2634 = vmatprep.subr.mxu0 0.0
        %2635 = vmatpush2.msra.mxu0 0.0
        %2636 = vmatprep.subr.mxu0 0.0
        %2637 = vmatpush2.msra.mxu0 0.0
        %2638 = vmatprep.subr.mxu0 0.0
        %2639 = vmatpush2.msra.mxu0 0.0
        %2640 = vmatprep.mubr.f32.mxu0 0.0
        %2641 = vmatmul.mubr.f32.gmra.mxu0 %v696
        %v2642 = vpop.f32.mrf.mxu0
        %v2643 = vadd.f32 0.0, %v2642
        %v2644 = vpop.f32.mrf.mxu0
        %2645 = vmatprep.mubr.f32.mxu0 0.0
        %2646 = vmatmul.mubr.f32.gmra.mxu0 %v698
        %v2647 = vpop.f32.mrf.mxu0
        %v2648 = vadd.f32 0.0, %v2647
        %v2649 = vpop.f32.mrf.mxu0
        %2650 = vmatprep.mubr.f32.mxu0 0.0
        %2651 = vmatmul.mubr.f32.gmra.mxu0 %v700
        %v2652 = vpop.f32.mrf.mxu0
        %v2653 = vadd.f32 0.0, %v2652
        %v2654 = vpop.f32.mrf.mxu0
        %2655 = vmatprep.mubr.f32.mxu0 0.0
        %2656 = vmatmul.mubr.f32.gmra.mxu0 %v702
        %v2657 = vpop.f32.mrf.mxu0
        %v2658 = vadd.f32 0.0, %v2657
        %v2659 = vpop.f32.mrf.mxu0
        %2660 = vmatprep.mubr.f32.mxu0 0.0
        %2661 = vmatmul.mubr.f32.gmra.mxu0 %v704
        %v2662 = vpop.f32.mrf.mxu0
        %v2663 = vadd.f32 0.0, %v2662
        %v2664 = vpop.f32.mrf.mxu0
        %2665 = vmatprep.mubr.f32.mxu0 0.0
        %2666 = vmatmul.mubr.f32.gmra.mxu0 %v706
        %v2667 = vpop.f32.mrf.mxu0
        %v2668 = vadd.f32 0.0, %v2667
        %v2669 = vpop.f32.mrf.mxu0
        %2670 = vmatprep.mubr.f32.mxu0 0.0
        %2671 = vmatmul.mubr.f32.gmra.mxu0 %v708
        %v2672 = vpop.f32.mrf.mxu0
        %v2673 = vadd.f32 0.0, %v2672
        %v2674 = vpop.f32.mrf.mxu0
        %2675 = vmatprep.mubr.f32.mxu0 0.0
        %2676 = vmatmul.mubr.f32.gmra.mxu0 %v710
        %v2677 = vpop.f32.mrf.mxu0
        %v2678 = vadd.f32 0.0, %v2677
        %v2679 = vpop.f32.mrf.mxu0
        %2680 = vmatprep.mubr.f32.mxu0 0.0
        %2681 = vmatmul.mubr.f32.gmra.mxu0 %v712
        %v2682 = vpop.f32.mrf.mxu0
        %v2683 = vadd.f32 0.0, %v2682
        %v2684 = vpop.f32.mrf.mxu0
        %2685 = vmatprep.mubr.f32.mxu0 0.0
        %2686 = vmatmul.mubr.f32.gmra.mxu0 %v714
        %v2687 = vpop.f32.mrf.mxu0
        %v2688 = vadd.f32 0.0, %v2687
        %v2689 = vpop.f32.mrf.mxu0
        %2690 = vmatprep.mubr.f32.mxu0 0.0
        %2691 = vmatmul.mubr.f32.gmra.mxu0 %v716
        %v2692 = vpop.f32.mrf.mxu0
        %v2693 = vadd.f32 0.0, %v2692
        %v2694 = vpop.f32.mrf.mxu0
        %2695 = vmatprep.mubr.f32.mxu0 0.0
        %2696 = vmatmul.mubr.f32.gmra.mxu0 %v718
        %v2697 = vpop.f32.mrf.mxu0
        %v2698 = vadd.f32 0.0, %v2697
        %v2699 = vpop.f32.mrf.mxu0
        %2700 = vmatprep.mubr.f32.mxu0 0.0
        %2701 = vmatmul.mubr.f32.gmra.mxu0 %v1707
        %v2702 = vpop.f32.mrf.mxu0
        %v2703 = vadd.f32 0.0, %v2702
        %v2704 = vpop.f32.mrf.mxu0
        %2705 = vmatprep.mubr.f32.mxu0 0.0
        %2706 = vmatmul.mubr.f32.gmra.mxu0 %v1709
        %v2707 = vpop.f32.mrf.mxu0
        %v2708 = vadd.f32 0.0, %v2707
        %v2709 = vpop.f32.mrf.mxu0
        %2710 = vmatprep.mubr.f32.mxu0 0.0
        %2711 = vmatmul.mubr.f32.gmra.mxu0 %v2569
        %v2712 = vpop.f32.mrf.mxu0
        %v2713 = vadd.f32 0.0, %v2712
        %v2714 = vpop.f32.mrf.mxu0
        %2715 = vmatprep.mubr.f32.mxu0 0.0
        %2716 = vmatmul.mubr.f32.gmra.mxu0 %v2571
        %v2717 = vpop.f32.mrf.mxu0
        %v2718 = vadd.f32 0.0, %v2717
        %v2719 = vpop.f32.mrf.mxu0
        %2720 = vdwg.mxu0
        %v2721 = vadd.f32 %v2548, %v2643
        %v2722 = vadd.f32 %v2549, %v2648
        %v2723 = vadd.f32 %v2550, %v2653
        %v2724 = vadd.f32 %v2551, %v2658
        %v2725 = vadd.f32 %v2552, %v2663
        %v2726 = vadd.f32 %v2553, %v2668
        %v2727 = vadd.f32 %v2554, %v2673
        %v2728 = vadd.f32 %v2555, %v2678
        %v2729 = vadd.f32 %v2556, %v2683
        %v2730 = vadd.f32 %v2557, %v2688
        %v2731 = vadd.f32 %v2558, %v2693
        %v2732 = vadd.f32 %v2559, %v2698
        %v2733 = vadd.f32 %v2560, %v2703
        %v2734 = vadd.f32 %v2561, %v2708
        %v2735 = vadd.f32 %v2562, %v2713
        %v2736 = vadd.f32 %v2563, %v2718
        %v2737 = vrot.slane %v198, 3
        %v2738 = vrot.slane %v199, 3
        %v2739 = vsel %vm884, %v2737, %v2738
        %v2740 = vrot.slane %v200, 3
        %v2741 = vsel %vm884, %v2738, %v2740
        %v2742 = vrot.slane %v213, 4
        %v2743 = vsel %vm287, %v2739, 0
        %v2745 = vsel %vm287, %v2741, 0
        %v2747 = vsel %vm320, %v2742, 0
        %2749 = vmatprep.subr.mxu0 0.0
        %2750 = vmatpush1.msra.mxu0 0.0
        %2751 = vmatprep.subr.mxu0 0.0
        %2752 = vmatpush1.msra.mxu0 0.0
        %2753 = vmatprep.subr.mxu0 0.0
        %2754 = vmatpush1.msra.mxu0 0.0
        %2755 = vmatprep.subr.mxu0 0.0
        %2756 = vmatpush1.msra.mxu0 0.0
        %2757 = vmatprep.subr.mxu0 0.0
        %2758 = vmatpush1.msra.mxu0 0.0
        %2759 = vmatprep.subr.mxu0 0.0
        %2760 = vmatpush1.msra.mxu0 0.0
        %2761 = vmatprep.subr.mxu0 0.0
        %2762 = vmatpush1.msra.mxu0 0.0
        %2763 = vmatprep.subr.mxu0 0.0
        %2764 = vmatpush1.msra.mxu0 0.0
        %2765 = vmatprep.subr.mxu0 0.0
        %2766 = vmatpush1.msra.mxu0 0.0
        %2767 = vmatprep.subr.mxu0 0.0
        %2768 = vmatpush1.msra.mxu0 0.0
        %2769 = vmatprep.subr.mxu0 0.0
        %2770 = vmatpush1.msra.mxu0 0.0
        %2771 = vmatprep.subr.mxu0 0.0
        %2772 = vmatpush1.msra.mxu0 0.0
        %2773 = vmatprep.subr.mxu0 0.0
        %2774 = vmatpush1.msra.mxu0 0.0
        %2775 = vmatprep.subr.mxu0 0.0
        %2776 = vmatpush1.msra.mxu0 0.0
        %2777 = vmatprep.subr.mxu0 0.0
        %2778 = vmatpush1.msra.mxu0 0.0
        %2779 = vmatprep.subr.mxu0 0.0
        %2780 = vmatpush1.msra.mxu0 %v2747
        %2781 = vmatprep.subr.mxu0 0.0
        %2782 = vmatpush2.msra.mxu0 0.0
        %2783 = vmatprep.subr.mxu0 0.0
        %2784 = vmatpush2.msra.mxu0 0.0
        %2785 = vmatprep.subr.mxu0 0.0
        %2786 = vmatpush2.msra.mxu0 0.0
        %2787 = vmatprep.subr.mxu0 0.0
        %2788 = vmatpush2.msra.mxu0 0.0
        %2789 = vmatprep.subr.mxu0 0.0
        %2790 = vmatpush2.msra.mxu0 0.0
        %2791 = vmatprep.subr.mxu0 0.0
        %2792 = vmatpush2.msra.mxu0 0.0
        %2793 = vmatprep.subr.mxu0 0.0
        %2794 = vmatpush2.msra.mxu0 0.0
        %2795 = vmatprep.subr.mxu0 0.0
        %2796 = vmatpush2.msra.mxu0 0.0
        %2797 = vmatprep.subr.mxu0 0.0
        %2798 = vmatpush2.msra.mxu0 0.0
        %2799 = vmatprep.subr.mxu0 0.0
        %2800 = vmatpush2.msra.mxu0 0.0
        %2801 = vmatprep.subr.mxu0 0.0
        %2802 = vmatpush2.msra.mxu0 0.0
        %2803 = vmatprep.subr.mxu0 0.0
        %2804 = vmatpush2.msra.mxu0 0.0
        %2805 = vmatprep.subr.mxu0 0.0
        %2806 = vmatpush2.msra.mxu0 0.0
        %2807 = vmatprep.subr.mxu0 0.0
        %2808 = vmatpush2.msra.mxu0 0.0
        %2809 = vmatprep.subr.mxu0 0.0
        %2810 = vmatpush2.msra.mxu0 0.0
        %2811 = vmatprep.subr.mxu0 0.0
        %2812 = vmatpush2.msra.mxu0 0.0
        %2813 = vmatprep.mubr.f32.mxu0 0.0
        %2814 = vmatmul.mubr.f32.gmra.mxu0 %v934
        %v2815 = vpop.f32.mrf.mxu0
        %v2816 = vadd.f32 0.0, %v2815
        %v2817 = vpop.f32.mrf.mxu0
        %2818 = vmatprep.mubr.f32.mxu0 0.0
        %2819 = vmatmul.mubr.f32.gmra.mxu0 %v936
        %v2820 = vpop.f32.mrf.mxu0
        %v2821 = vadd.f32 0.0, %v2820
        %v2822 = vpop.f32.mrf.mxu0
        %2823 = vmatprep.mubr.f32.mxu0 0.0
        %2824 = vmatmul.mubr.f32.gmra.mxu0 %v938
        %v2825 = vpop.f32.mrf.mxu0
        %v2826 = vadd.f32 0.0, %v2825
        %v2827 = vpop.f32.mrf.mxu0
        %2828 = vmatprep.mubr.f32.mxu0 0.0
        %2829 = vmatmul.mubr.f32.gmra.mxu0 %v940
        %v2830 = vpop.f32.mrf.mxu0
        %v2831 = vadd.f32 0.0, %v2830
        %v2832 = vpop.f32.mrf.mxu0
        %2833 = vmatprep.mubr.f32.mxu0 0.0
        %2834 = vmatmul.mubr.f32.gmra.mxu0 %v942
        %v2835 = vpop.f32.mrf.mxu0
        %v2836 = vadd.f32 0.0, %v2835
        %v2837 = vpop.f32.mrf.mxu0
        %2838 = vmatprep.mubr.f32.mxu0 0.0
        %2839 = vmatmul.mubr.f32.gmra.mxu0 %v944
        %v2840 = vpop.f32.mrf.mxu0
        %v2841 = vadd.f32 0.0, %v2840
        %v2842 = vpop.f32.mrf.mxu0
        %2843 = vmatprep.mubr.f32.mxu0 0.0
        %2844 = vmatmul.mubr.f32.gmra.mxu0 %v946
        %v2845 = vpop.f32.mrf.mxu0
        %v2846 = vadd.f32 0.0, %v2845
        %v2847 = vpop.f32.mrf.mxu0
        %2848 = vmatprep.mubr.f32.mxu0 0.0
        %2849 = vmatmul.mubr.f32.gmra.mxu0 %v948
        %v2850 = vpop.f32.mrf.mxu0
        %v2851 = vadd.f32 0.0, %v2850
        %v2852 = vpop.f32.mrf.mxu0
        %2853 = vmatprep.mubr.f32.mxu0 0.0
        %2854 = vmatmul.mubr.f32.gmra.mxu0 %v950
        %v2855 = vpop.f32.mrf.mxu0
        %v2856 = vadd.f32 0.0, %v2855
        %v2857 = vpop.f32.mrf.mxu0
        %2858 = vmatprep.mubr.f32.mxu0 0.0
        %2859 = vmatmul.mubr.f32.gmra.mxu0 %v952
        %v2860 = vpop.f32.mrf.mxu0
        %v2861 = vadd.f32 0.0, %v2860
        %v2862 = vpop.f32.mrf.mxu0
        %2863 = vmatprep.mubr.f32.mxu0 0.0
        %2864 = vmatmul.mubr.f32.gmra.mxu0 %v954
        %v2865 = vpop.f32.mrf.mxu0
        %v2866 = vadd.f32 0.0, %v2865
        %v2867 = vpop.f32.mrf.mxu0
        %2868 = vmatprep.mubr.f32.mxu0 0.0
        %2869 = vmatmul.mubr.f32.gmra.mxu0 %v956
        %v2870 = vpop.f32.mrf.mxu0
        %v2871 = vadd.f32 0.0, %v2870
        %v2872 = vpop.f32.mrf.mxu0
        %2873 = vmatprep.mubr.f32.mxu0 0.0
        %2874 = vmatmul.mubr.f32.gmra.mxu0 %v1879
        %v2875 = vpop.f32.mrf.mxu0
        %v2876 = vadd.f32 0.0, %v2875
        %v2877 = vpop.f32.mrf.mxu0
        %2878 = vmatprep.mubr.f32.mxu0 0.0
        %2879 = vmatmul.mubr.f32.gmra.mxu0 %v1881
        %v2880 = vpop.f32.mrf.mxu0
        %v2881 = vadd.f32 0.0, %v2880
        %v2882 = vpop.f32.mrf.mxu0
        %2883 = vmatprep.mubr.f32.mxu0 0.0
        %2884 = vmatmul.mubr.f32.gmra.mxu0 %v2743
        %v2885 = vpop.f32.mrf.mxu0
        %v2886 = vadd.f32 0.0, %v2885
        %v2887 = vpop.f32.mrf.mxu0
        %2888 = vmatprep.mubr.f32.mxu0 0.0
        %2889 = vmatmul.mubr.f32.gmra.mxu0 %v2745
        %v2890 = vpop.f32.mrf.mxu0
        %v2891 = vadd.f32 0.0, %v2890
        %v2892 = vpop.f32.mrf.mxu0
        %2893 = vdwg.mxu0
        %v2894 = vadd.f32 %v2721, %v2816
        %v2895 = vadd.f32 %v2722, %v2821
        %v2896 = vadd.f32 %v2723, %v2826
        %v2897 = vadd.f32 %v2724, %v2831
        %v2898 = vadd.f32 %v2725, %v2836
        %v2899 = vadd.f32 %v2726, %v2841
        %v2900 = vadd.f32 %v2727, %v2846
        %v2901 = vadd.f32 %v2728, %v2851
        %v2902 = vadd.f32 %v2729, %v2856
        %v2903 = vadd.f32 %v2730, %v2861
        %v2904 = vadd.f32 %v2731, %v2866
        %v2905 = vadd.f32 %v2732, %v2871
        %v2906 = vadd.f32 %v2733, %v2876
        %v2907 = vadd.f32 %v2734, %v2881
        %v2908 = vadd.f32 %v2735, %v2886
        %v2909 = vadd.f32 %v2736, %v2891
        %v2910 = vrot.slane %v198, 4
        %v2911 = vrot.slane %v199, 4
        %v2912 = vsel %vm320, %v2910, %v2911
        %v2913 = vrot.slane %v200, 4
        %v2914 = vsel %vm320, %v2911, %v2913
        %v2915 = vsel %vm287, %v2912, 0
        %v2917 = vsel %vm287, %v2914, 0
        %v2920 = vsel %vm320, %v214, 0
        %2922 = vmatprep.subr.mxu0 0.0
        %2923 = vmatpush1.msra.mxu0 0.0
        %2924 = vmatprep.subr.mxu0 0.0
        %2925 = vmatpush1.msra.mxu0 0.0
        %2926 = vmatprep.subr.mxu0 0.0
        %2927 = vmatpush1.msra.mxu0 0.0
        %2928 = vmatprep.subr.mxu0 0.0
        %2929 = vmatpush1.msra.mxu0 0.0
        %2930 = vmatprep.subr.mxu0 0.0
        %2931 = vmatpush1.msra.mxu0 0.0
        %2932 = vmatprep.subr.mxu0 0.0
        %2933 = vmatpush1.msra.mxu0 0.0
        %2934 = vmatprep.subr.mxu0 0.0
        %2935 = vmatpush1.msra.mxu0 0.0
        %2936 = vmatprep.subr.mxu0 0.0
        %2937 = vmatpush1.msra.mxu0 0.0
        %2938 = vmatprep.subr.mxu0 0.0
        %2939 = vmatpush1.msra.mxu0 0.0
        %2940 = vmatprep.subr.mxu0 0.0
        %2941 = vmatpush1.msra.mxu0 0.0
        %2942 = vmatprep.subr.mxu0 0.0
        %2943 = vmatpush1.msra.mxu0 0.0
        %2944 = vmatprep.subr.mxu0 0.0
        %2945 = vmatpush1.msra.mxu0 0.0
        %2946 = vmatprep.subr.mxu0 0.0
        %2947 = vmatpush1.msra.mxu0 0.0
        %2948 = vmatprep.subr.mxu0 0.0
        %2949 = vmatpush1.msra.mxu0 0.0
        %2950 = vmatprep.subr.mxu0 0.0
        %2951 = vmatpush1.msra.mxu0 0.0
        %2952 = vmatprep.subr.mxu0 0.0
        %2953 = vmatpush1.msra.mxu0 %v2920
        %2954 = vmatprep.subr.mxu0 0.0
        %2955 = vmatpush2.msra.mxu0 0.0
        %2956 = vmatprep.subr.mxu0 0.0
        %2957 = vmatpush2.msra.mxu0 0.0
        %2958 = vmatprep.subr.mxu0 0.0
        %2959 = vmatpush2.msra.mxu0 0.0
        %2960 = vmatprep.subr.mxu0 0.0
        %2961 = vmatpush2.msra.mxu0 0.0
        %2962 = vmatprep.subr.mxu0 0.0
        %2963 = vmatpush2.msra.mxu0 0.0
        %2964 = vmatprep.subr.mxu0 0.0
        %2965 = vmatpush2.msra.mxu0 0.0
        %2966 = vmatprep.subr.mxu0 0.0
        %2967 = vmatpush2.msra.mxu0 0.0
        %2968 = vmatprep.subr.mxu0 0.0
        %2969 = vmatpush2.msra.mxu0 0.0
        %2970 = vmatprep.subr.mxu0 0.0
        %2971 = vmatpush2.msra.mxu0 0.0
        %2972 = vmatprep.subr.mxu0 0.0
        %2973 = vmatpush2.msra.mxu0 0.0
        %2974 = vmatprep.subr.mxu0 0.0
        %2975 = vmatpush2.msra.mxu0 0.0
        %2976 = vmatprep.subr.mxu0 0.0
        %2977 = vmatpush2.msra.mxu0 0.0
        %2978 = vmatprep.subr.mxu0 0.0
        %2979 = vmatpush2.msra.mxu0 0.0
        %2980 = vmatprep.subr.mxu0 0.0
        %2981 = vmatpush2.msra.mxu0 0.0
        %2982 = vmatprep.subr.mxu0 0.0
        %2983 = vmatpush2.msra.mxu0 0.0
        %2984 = vmatprep.subr.mxu0 0.0
        %2985 = vmatpush2.msra.mxu0 0.0
        %2986 = vmatprep.mubr.f32.mxu0 0.0
        %2987 = vmatmul.mubr.f32.gmra.mxu0 %v1169
        %v2988 = vpop.f32.mrf.mxu0
        %v2989 = vadd.f32 0.0, %v2988
        %v2990 = vpop.f32.mrf.mxu0
        %2991 = vmatprep.mubr.f32.mxu0 0.0
        %2992 = vmatmul.mubr.f32.gmra.mxu0 %v1171
        %v2993 = vpop.f32.mrf.mxu0
        %v2994 = vadd.f32 0.0, %v2993
        %v2995 = vpop.f32.mrf.mxu0
        %2996 = vmatprep.mubr.f32.mxu0 0.0
        %2997 = vmatmul.mubr.f32.gmra.mxu0 %v1173
        %v2998 = vpop.f32.mrf.mxu0
        %v2999 = vadd.f32 0.0, %v2998
        %v3000 = vpop.f32.mrf.mxu0
        %3001 = vmatprep.mubr.f32.mxu0 0.0
        %3002 = vmatmul.mubr.f32.gmra.mxu0 %v1175
        %v3003 = vpop.f32.mrf.mxu0
        %v3004 = vadd.f32 0.0, %v3003
        %v3005 = vpop.f32.mrf.mxu0
        %3006 = vmatprep.mubr.f32.mxu0 0.0
        %3007 = vmatmul.mubr.f32.gmra.mxu0 %v1177
        %v3008 = vpop.f32.mrf.mxu0
        %v3009 = vadd.f32 0.0, %v3008
        %v3010 = vpop.f32.mrf.mxu0
        %3011 = vmatprep.mubr.f32.mxu0 0.0
        %3012 = vmatmul.mubr.f32.gmra.mxu0 %v1179
        %v3013 = vpop.f32.mrf.mxu0
        %v3014 = vadd.f32 0.0, %v3013
        %v3015 = vpop.f32.mrf.mxu0
        %3016 = vmatprep.mubr.f32.mxu0 0.0
        %3017 = vmatmul.mubr.f32.gmra.mxu0 %v1181
        %v3018 = vpop.f32.mrf.mxu0
        %v3019 = vadd.f32 0.0, %v3018
        %v3020 = vpop.f32.mrf.mxu0
        %3021 = vmatprep.mubr.f32.mxu0 0.0
        %3022 = vmatmul.mubr.f32.gmra.mxu0 %v1183
        %v3023 = vpop.f32.mrf.mxu0
        %v3024 = vadd.f32 0.0, %v3023
        %v3025 = vpop.f32.mrf.mxu0
        %3026 = vmatprep.mubr.f32.mxu0 0.0
        %3027 = vmatmul.mubr.f32.gmra.mxu0 %v1185
        %v3028 = vpop.f32.mrf.mxu0
        %v3029 = vadd.f32 0.0, %v3028
        %v3030 = vpop.f32.mrf.mxu0
        %3031 = vmatprep.mubr.f32.mxu0 0.0
        %3032 = vmatmul.mubr.f32.gmra.mxu0 %v1187
        %v3033 = vpop.f32.mrf.mxu0
        %v3034 = vadd.f32 0.0, %v3033
        %v3035 = vpop.f32.mrf.mxu0
        %3036 = vmatprep.mubr.f32.mxu0 0.0
        %3037 = vmatmul.mubr.f32.gmra.mxu0 %v1189
        %v3038 = vpop.f32.mrf.mxu0
        %v3039 = vadd.f32 0.0, %v3038
        %v3040 = vpop.f32.mrf.mxu0
        %3041 = vmatprep.mubr.f32.mxu0 0.0
        %3042 = vmatmul.mubr.f32.gmra.mxu0 %v1191
        %v3043 = vpop.f32.mrf.mxu0
        %v3044 = vadd.f32 0.0, %v3043
        %v3045 = vpop.f32.mrf.mxu0
        %3046 = vmatprep.mubr.f32.mxu0 0.0
        %3047 = vmatmul.mubr.f32.gmra.mxu0 %v2053
        %v3048 = vpop.f32.mrf.mxu0
        %v3049 = vadd.f32 0.0, %v3048
        %v3050 = vpop.f32.mrf.mxu0
        %3051 = vmatprep.mubr.f32.mxu0 0.0
        %3052 = vmatmul.mubr.f32.gmra.mxu0 %v2055
        %v3053 = vpop.f32.mrf.mxu0
        %v3054 = vadd.f32 0.0, %v3053
        %v3055 = vpop.f32.mrf.mxu0
        %3056 = vmatprep.mubr.f32.mxu0 0.0
        %3057 = vmatmul.mubr.f32.gmra.mxu0 %v2915
        %v3058 = vpop.f32.mrf.mxu0
        %v3059 = vadd.f32 0.0, %v3058
        %v3060 = vpop.f32.mrf.mxu0
        %3061 = vmatprep.mubr.f32.mxu0 0.0
        %3062 = vmatmul.mubr.f32.gmra.mxu0 %v2917
        %v3063 = vpop.f32.mrf.mxu0
        %v3064 = vadd.f32 0.0, %v3063
        %v3065 = vpop.f32.mrf.mxu0
        %3066 = vdwg.mxu0
        %v3067 = vadd.f32 %v2894, %v2989
        %v3068 = vadd.f32 %v2895, %v2994
        %v3069 = vadd.f32 %v2896, %v2999
        %v3070 = vadd.f32 %v2897, %v3004
        %v3071 = vadd.f32 %v2898, %v3009
        %v3072 = vadd.f32 %v2899, %v3014
        %v3073 = vadd.f32 %v2900, %v3019
        %v3074 = vadd.f32 %v2901, %v3024
        %v3075 = vadd.f32 %v2902, %v3029
        %v3076 = vadd.f32 %v2903, %v3034
        %v3077 = vadd.f32 %v2904, %v3039
        %v3078 = vadd.f32 %v2905, %v3044
        %v3079 = vadd.f32 %v2906, %v3049
        %v3080 = vadd.f32 %v2907, %v3054
        %v3081 = vadd.f32 %v2908, %v3059
        %v3082 = vadd.f32 %v2909, %v3064
        %v3083 = vrot.slane %v214, 4
        %v3085 = vsel %vm287, %v201, 0
        %v3088 = vsel %vm287, %v202, 0
        %v3090 = vsel %vm320, %v3083, 0
        %3092 = vmatprep.subr.mxu0 0.0
        %3093 = vmatpush1.msra.mxu0 0.0
        %3094 = vmatprep.subr.mxu0 0.0
        %3095 = vmatpush1.msra.mxu0 0.0
        %3096 = vmatprep.subr.mxu0 0.0
        %3097 = vmatpush1.msra.mxu0 0.0
        %3098 = vmatprep.subr.mxu0 0.0
        %3099 = vmatpush1.msra.mxu0 0.0
        %3100 = vmatprep.subr.mxu0 0.0
        %3101 = vmatpush1.msra.mxu0 0.0
        %3102 = vmatprep.subr.mxu0 0.0
        %3103 = vmatpush1.msra.mxu0 0.0
        %3104 = vmatprep.subr.mxu0 0.0
        %3105 = vmatpush1.msra.mxu0 0.0
        %3106 = vmatprep.subr.mxu0 0.0
        %3107 = vmatpush1.msra.mxu0 0.0
        %3108 = vmatprep.subr.mxu0 0.0
        %3109 = vmatpush1.msra.mxu0 0.0
        %3110 = vmatprep.subr.mxu0 0.0
        %3111 = vmatpush1.msra.mxu0 0.0
        %3112 = vmatprep.subr.mxu0 0.0
        %3113 = vmatpush1.msra.mxu0 0.0
        %3114 = vmatprep.subr.mxu0 0.0
        %3115 = vmatpush1.msra.mxu0 0.0
        %3116 = vmatprep.subr.mxu0 0.0
        %3117 = vmatpush1.msra.mxu0 0.0
        %3118 = vmatprep.subr.mxu0 0.0
        %3119 = vmatpush1.msra.mxu0 0.0
        %3120 = vmatprep.subr.mxu0 0.0
        %3121 = vmatpush1.msra.mxu0 0.0
        %3122 = vmatprep.subr.mxu0 0.0
        %3123 = vmatpush1.msra.mxu0 %v3090
        %3124 = vmatprep.subr.mxu0 0.0
        %3125 = vmatpush2.msra.mxu0 0.0
        %3126 = vmatprep.subr.mxu0 0.0
        %3127 = vmatpush2.msra.mxu0 0.0
        %3128 = vmatprep.subr.mxu0 0.0
        %3129 = vmatpush2.msra.mxu0 0.0
        %3130 = vmatprep.subr.mxu0 0.0
        %3131 = vmatpush2.msra.mxu0 0.0
        %3132 = vmatprep.subr.mxu0 0.0
        %3133 = vmatpush2.msra.mxu0 0.0
        %3134 = vmatprep.subr.mxu0 0.0
        %3135 = vmatpush2.msra.mxu0 0.0
        %3136 = vmatprep.subr.mxu0 0.0
        %3137 = vmatpush2.msra.mxu0 0.0
        %3138 = vmatprep.subr.mxu0 0.0
        %3139 = vmatpush2.msra.mxu0 0.0
        %3140 = vmatprep.subr.mxu0 0.0
        %3141 = vmatpush2.msra.mxu0 0.0
        %3142 = vmatprep.subr.mxu0 0.0
        %3143 = vmatpush2.msra.mxu0 0.0
        %3144 = vmatprep.subr.mxu0 0.0
        %3145 = vmatpush2.msra.mxu0 0.0
        %3146 = vmatprep.subr.mxu0 0.0
        %3147 = vmatpush2.msra.mxu0 0.0
        %3148 = vmatprep.subr.mxu0 0.0
        %3149 = vmatpush2.msra.mxu0 0.0
        %3150 = vmatprep.subr.mxu0 0.0
        %3151 = vmatpush2.msra.mxu0 0.0
        %3152 = vmatprep.subr.mxu0 0.0
        %3153 = vmatpush2.msra.mxu0 0.0
        %3154 = vmatprep.subr.mxu0 0.0
        %3155 = vmatpush2.msra.mxu0 0.0
        %3156 = vmatprep.mubr.f32.mxu0 0.0
        %3157 = vmatmul.mubr.f32.gmra.mxu0 %v480
        %v3158 = vpop.f32.mrf.mxu0
        %v3159 = vadd.f32 0.0, %v3158
        %v3160 = vpop.f32.mrf.mxu0
        %3161 = vmatprep.mubr.f32.mxu0 0.0
        %3162 = vmatmul.mubr.f32.gmra.mxu0 %v482
        %v3163 = vpop.f32.mrf.mxu0
        %v3164 = vadd.f32 0.0, %v3163
        %v3165 = vpop.f32.mrf.mxu0
        %3166 = vmatprep.mubr.f32.mxu0 0.0
        %3167 = vmatmul.mubr.f32.gmra.mxu0 %v484
        %v3168 = vpop.f32.mrf.mxu0
        %v3169 = vadd.f32 0.0, %v3168
        %v3170 = vpop.f32.mrf.mxu0
        %3171 = vmatprep.mubr.f32.mxu0 0.0
        %3172 = vmatmul.mubr.f32.gmra.mxu0 %v486
        %v3173 = vpop.f32.mrf.mxu0
        %v3174 = vadd.f32 0.0, %v3173
        %v3175 = vpop.f32.mrf.mxu0
        %3176 = vmatprep.mubr.f32.mxu0 0.0
        %3177 = vmatmul.mubr.f32.gmra.mxu0 %v488
        %v3178 = vpop.f32.mrf.mxu0
        %v3179 = vadd.f32 0.0, %v3178
        %v3180 = vpop.f32.mrf.mxu0
        %3181 = vmatprep.mubr.f32.mxu0 0.0
        %3182 = vmatmul.mubr.f32.gmra.mxu0 %v490
        %v3183 = vpop.f32.mrf.mxu0
        %v3184 = vadd.f32 0.0, %v3183
        %v3185 = vpop.f32.mrf.mxu0
        %3186 = vmatprep.mubr.f32.mxu0 0.0
        %3187 = vmatmul.mubr.f32.gmra.mxu0 %v492
        %v3188 = vpop.f32.mrf.mxu0
        %v3189 = vadd.f32 0.0, %v3188
        %v3190 = vpop.f32.mrf.mxu0
        %3191 = vmatprep.mubr.f32.mxu0 0.0
        %3192 = vmatmul.mubr.f32.gmra.mxu0 %v494
        %v3193 = vpop.f32.mrf.mxu0
        %v3194 = vadd.f32 0.0, %v3193
        %v3195 = vpop.f32.mrf.mxu0
        %3196 = vmatprep.mubr.f32.mxu0 0.0
        %3197 = vmatmul.mubr.f32.gmra.mxu0 %v496
        %v3198 = vpop.f32.mrf.mxu0
        %v3199 = vadd.f32 0.0, %v3198
        %v3200 = vpop.f32.mrf.mxu0
        %3201 = vmatprep.mubr.f32.mxu0 0.0
        %3202 = vmatmul.mubr.f32.gmra.mxu0 %v498
        %v3203 = vpop.f32.mrf.mxu0
        %v3204 = vadd.f32 0.0, %v3203
        %v3205 = vpop.f32.mrf.mxu0
        %3206 = vmatprep.mubr.f32.mxu0 0.0
        %3207 = vmatmul.mubr.f32.gmra.mxu0 %v1359
        %v3208 = vpop.f32.mrf.mxu0
        %v3209 = vadd.f32 0.0, %v3208
        %v3210 = vpop.f32.mrf.mxu0
        %3211 = vmatprep.mubr.f32.mxu0 0.0
        %3212 = vmatmul.mubr.f32.gmra.mxu0 %v1362
        %v3213 = vpop.f32.mrf.mxu0
        %v3214 = vadd.f32 0.0, %v3213
        %v3215 = vpop.f32.mrf.mxu0
        %3216 = vmatprep.mubr.f32.mxu0 0.0
        %3217 = vmatmul.mubr.f32.gmra.mxu0 %v2221
        %v3218 = vpop.f32.mrf.mxu0
        %v3219 = vadd.f32 0.0, %v3218
        %v3220 = vpop.f32.mrf.mxu0
        %3221 = vmatprep.mubr.f32.mxu0 0.0
        %3222 = vmatmul.mubr.f32.gmra.mxu0 %v2224
        %v3223 = vpop.f32.mrf.mxu0
        %v3224 = vadd.f32 0.0, %v3223
        %v3225 = vpop.f32.mrf.mxu0
        %3226 = vmatprep.mubr.f32.mxu0 0.0
        %3227 = vmatmul.mubr.f32.gmra.mxu0 %v3085
        %v3228 = vpop.f32.mrf.mxu0
        %v3229 = vadd.f32 0.0, %v3228
        %v3230 = vpop.f32.mrf.mxu0
        %3231 = vmatprep.mubr.f32.mxu0 0.0
        %3232 = vmatmul.mubr.f32.gmra.mxu0 %v3088
        %v3233 = vpop.f32.mrf.mxu0
        %v3234 = vadd.f32 0.0, %v3233
        %v3235 = vpop.f32.mrf.mxu0
        %3236 = vdwg.mxu0
        %v3237 = vadd.f32 %v3067, %v3159
        %v3238 = vadd.f32 %v3068, %v3164
        %v3239 = vadd.f32 %v3069, %v3169
        %v3240 = vadd.f32 %v3070, %v3174
        %v3241 = vadd.f32 %v3071, %v3179
        %v3242 = vadd.f32 %v3072, %v3184
        %v3243 = vadd.f32 %v3073, %v3189
        %v3244 = vadd.f32 %v3074, %v3194
        %v3245 = vadd.f32 %v3075, %v3199
        %v3246 = vadd.f32 %v3076, %v3204
        %v3247 = vadd.f32 %v3077, %v3209
        %v3248 = vadd.f32 %v3078, %v3214
        %v3249 = vadd.f32 %v3079, %v3219
        %v3250 = vadd.f32 %v3080, %v3224
        %v3251 = vadd.f32 %v3081, %v3229
        %v3252 = vadd.f32 %v3082, %v3234
        %v3254 = vrot.slane %v201, 1
        %v3255 = vrot.slane %v202, 1
        %v3256 = vsel %vm244, %v3254, %v3255
        %v3257 = vrot.slane %v203, 1
        %v3258 = vsel %vm244, %v3255, %v3257
        %v3259 = vsel %vm287, %v3256, 0
        %v3261 = vsel %vm287, %v3258, 0
        %v3264 = vsel %vm320, %v215, 0
        %3266 = vmatprep.subr.mxu0 0.0
        %3267 = vmatpush1.msra.mxu0 0.0
        %3268 = vmatprep.subr.mxu0 0.0
        %3269 = vmatpush1.msra.mxu0 0.0
        %3270 = vmatprep.subr.mxu0 0.0
        %3271 = vmatpush1.msra.mxu0 0.0
        %3272 = vmatprep.subr.mxu0 0.0
        %3273 = vmatpush1.msra.mxu0 0.0
        %3274 = vmatprep.subr.mxu0 0.0
        %3275 = vmatpush1.msra.mxu0 0.0
        %3276 = vmatprep.subr.mxu0 0.0
        %3277 = vmatpush1.msra.mxu0 0.0
        %3278 = vmatprep.subr.mxu0 0.0
        %3279 = vmatpush1.msra.mxu0 0.0
        %3280 = vmatprep.subr.mxu0 0.0
        %3281 = vmatpush1.msra.mxu0 0.0
        %3282 = vmatprep.subr.mxu0 0.0
        %3283 = vmatpush1.msra.mxu0 0.0
        %3284 = vmatprep.subr.mxu0 0.0
        %3285 = vmatpush1.msra.mxu0 0.0
        %3286 = vmatprep.subr.mxu0 0.0
        %3287 = vmatpush1.msra.mxu0 0.0
        %3288 = vmatprep.subr.mxu0 0.0
        %3289 = vmatpush1.msra.mxu0 0.0
        %3290 = vmatprep.subr.mxu0 0.0
        %3291 = vmatpush1.msra.mxu0 0.0
        %3292 = vmatprep.subr.mxu0 0.0
        %3293 = vmatpush1.msra.mxu0 0.0
        %3294 = vmatprep.subr.mxu0 0.0
        %3295 = vmatpush1.msra.mxu0 0.0
        %3296 = vmatprep.subr.mxu0 0.0
        %3297 = vmatpush1.msra.mxu0 %v3264
        %3298 = vmatprep.subr.mxu0 0.0
        %3299 = vmatpush2.msra.mxu0 0.0
        %3300 = vmatprep.subr.mxu0 0.0
        %3301 = vmatpush2.msra.mxu0 0.0
        %3302 = vmatprep.subr.mxu0 0.0
        %3303 = vmatpush2.msra.mxu0 0.0
        %3304 = vmatprep.subr.mxu0 0.0
        %3305 = vmatpush2.msra.mxu0 0.0
        %3306 = vmatprep.subr.mxu0 0.0
        %3307 = vmatpush2.msra.mxu0 0.0
        %3308 = vmatprep.subr.mxu0 0.0
        %3309 = vmatpush2.msra.mxu0 0.0
        %3310 = vmatprep.subr.mxu0 0.0
        %3311 = vmatpush2.msra.mxu0 0.0
        %3312 = vmatprep.subr.mxu0 0.0
        %3313 = vmatpush2.msra.mxu0 0.0
        %3314 = vmatprep.subr.mxu0 0.0
        %3315 = vmatpush2.msra.mxu0 0.0
        %3316 = vmatprep.subr.mxu0 0.0
        %3317 = vmatpush2.msra.mxu0 0.0
        %3318 = vmatprep.subr.mxu0 0.0
        %3319 = vmatpush2.msra.mxu0 0.0
        %3320 = vmatprep.subr.mxu0 0.0
        %3321 = vmatpush2.msra.mxu0 0.0
        %3322 = vmatprep.subr.mxu0 0.0
        %3323 = vmatpush2.msra.mxu0 0.0
        %3324 = vmatprep.subr.mxu0 0.0
        %3325 = vmatpush2.msra.mxu0 0.0
        %3326 = vmatprep.subr.mxu0 0.0
        %3327 = vmatpush2.msra.mxu0 0.0
        %3328 = vmatprep.subr.mxu0 0.0
        %3329 = vmatpush2.msra.mxu0 0.0
        %3330 = vmatprep.mubr.f32.mxu0 0.0
        %3331 = vmatmul.mubr.f32.gmra.mxu0 %v300
        %v3332 = vpop.f32.mrf.mxu0
        %v3333 = vadd.f32 0.0, %v3332
        %v3334 = vpop.f32.mrf.mxu0
        %3335 = vmatprep.mubr.f32.mxu0 0.0
        %3336 = vmatmul.mubr.f32.gmra.mxu0 %v302
        %v3337 = vpop.f32.mrf.mxu0
        %v3338 = vadd.f32 0.0, %v3337
        %v3339 = vpop.f32.mrf.mxu0
        %3340 = vmatprep.mubr.f32.mxu0 0.0
        %3341 = vmatmul.mubr.f32.gmra.mxu0 %v304
        %v3342 = vpop.f32.mrf.mxu0
        %v3343 = vadd.f32 0.0, %v3342
        %v3344 = vpop.f32.mrf.mxu0
        %3345 = vmatprep.mubr.f32.mxu0 0.0
        %3346 = vmatmul.mubr.f32.gmra.mxu0 %v306
        %v3347 = vpop.f32.mrf.mxu0
        %v3348 = vadd.f32 0.0, %v3347
        %v3349 = vpop.f32.mrf.mxu0
        %3350 = vmatprep.mubr.f32.mxu0 0.0
        %3351 = vmatmul.mubr.f32.gmra.mxu0 %v308
        %v3352 = vpop.f32.mrf.mxu0
        %v3353 = vadd.f32 0.0, %v3352
        %v3354 = vpop.f32.mrf.mxu0
        %3355 = vmatprep.mubr.f32.mxu0 0.0
        %3356 = vmatmul.mubr.f32.gmra.mxu0 %v310
        %v3357 = vpop.f32.mrf.mxu0
        %v3358 = vadd.f32 0.0, %v3357
        %v3359 = vpop.f32.mrf.mxu0
        %3360 = vmatprep.mubr.f32.mxu0 0.0
        %3361 = vmatmul.mubr.f32.gmra.mxu0 %v312
        %v3362 = vpop.f32.mrf.mxu0
        %v3363 = vadd.f32 0.0, %v3362
        %v3364 = vpop.f32.mrf.mxu0
        %3365 = vmatprep.mubr.f32.mxu0 0.0
        %3366 = vmatmul.mubr.f32.gmra.mxu0 %v314
        %v3367 = vpop.f32.mrf.mxu0
        %v3368 = vadd.f32 0.0, %v3367
        %v3369 = vpop.f32.mrf.mxu0
        %3370 = vmatprep.mubr.f32.mxu0 0.0
        %3371 = vmatmul.mubr.f32.gmra.mxu0 %v316
        %v3372 = vpop.f32.mrf.mxu0
        %v3373 = vadd.f32 0.0, %v3372
        %v3374 = vpop.f32.mrf.mxu0
        %3375 = vmatprep.mubr.f32.mxu0 0.0
        %3376 = vmatmul.mubr.f32.gmra.mxu0 %v318
        %v3377 = vpop.f32.mrf.mxu0
        %v3378 = vadd.f32 0.0, %v3377
        %v3379 = vpop.f32.mrf.mxu0
        %3380 = vmatprep.mubr.f32.mxu0 0.0
        %3381 = vmatmul.mubr.f32.gmra.mxu0 %v1533
        %v3382 = vpop.f32.mrf.mxu0
        %v3383 = vadd.f32 0.0, %v3382
        %v3384 = vpop.f32.mrf.mxu0
        %3385 = vmatprep.mubr.f32.mxu0 0.0
        %3386 = vmatmul.mubr.f32.gmra.mxu0 %v1535
        %v3387 = vpop.f32.mrf.mxu0
        %v3388 = vadd.f32 0.0, %v3387
        %v3389 = vpop.f32.mrf.mxu0
        %3390 = vmatprep.mubr.f32.mxu0 0.0
        %3391 = vmatmul.mubr.f32.gmra.mxu0 %v2397
        %v3392 = vpop.f32.mrf.mxu0
        %v3393 = vadd.f32 0.0, %v3392
        %v3394 = vpop.f32.mrf.mxu0
        %3395 = vmatprep.mubr.f32.mxu0 0.0
        %3396 = vmatmul.mubr.f32.gmra.mxu0 %v2399
        %v3397 = vpop.f32.mrf.mxu0
        %v3398 = vadd.f32 0.0, %v3397
        %v3399 = vpop.f32.mrf.mxu0
        %3400 = vmatprep.mubr.f32.mxu0 0.0
        %3401 = vmatmul.mubr.f32.gmra.mxu0 %v3259
        %v3402 = vpop.f32.mrf.mxu0
        %v3403 = vadd.f32 0.0, %v3402
        %v3404 = vpop.f32.mrf.mxu0
        %3405 = vmatprep.mubr.f32.mxu0 0.0
        %3406 = vmatmul.mubr.f32.gmra.mxu0 %v3261
        %v3407 = vpop.f32.mrf.mxu0
        %v3408 = vadd.f32 0.0, %v3407
        %v3409 = vpop.f32.mrf.mxu0
        %3410 = vdwg.mxu0
        %v3411 = vadd.f32 %v3237, %v3333
        %v3412 = vadd.f32 %v3238, %v3338
        %v3413 = vadd.f32 %v3239, %v3343
        %v3414 = vadd.f32 %v3240, %v3348
        %v3415 = vadd.f32 %v3241, %v3353
        %v3416 = vadd.f32 %v3242, %v3358
        %v3417 = vadd.f32 %v3243, %v3363
        %v3418 = vadd.f32 %v3244, %v3368
        %v3419 = vadd.f32 %v3245, %v3373
        %v3420 = vadd.f32 %v3246, %v3378
        %v3421 = vadd.f32 %v3247, %v3383
        %v3422 = vadd.f32 %v3248, %v3388
        %v3423 = vadd.f32 %v3249, %v3393
        %v3424 = vadd.f32 %v3250, %v3398
        %v3425 = vadd.f32 %v3251, %v3403
        %v3426 = vadd.f32 %v3252, %v3408
        %v3427 = vrot.slane %v201, 2
        %v3428 = vrot.slane %v202, 2
        %v3429 = vsel %vm647, %v3427, %v3428
        %v3430 = vrot.slane %v203, 2
        %v3431 = vsel %vm647, %v3428, %v3430
        %v3432 = vrot.slane %v215, 4
        %v3433 = vsel %vm287, %v3429, 0
        %v3435 = vsel %vm287, %v3431, 0
        %v3437 = vsel %vm320, %v3432, 0
        %3439 = vmatprep.subr.mxu0 0.0
        %3440 = vmatpush1.msra.mxu0 0.0
        %3441 = vmatprep.subr.mxu0 0.0
        %3442 = vmatpush1.msra.mxu0 0.0
        %3443 = vmatprep.subr.mxu0 0.0
        %3444 = vmatpush1.msra.mxu0 0.0
        %3445 = vmatprep.subr.mxu0 0.0
        %3446 = vmatpush1.msra.mxu0 0.0
        %3447 = vmatprep.subr.mxu0 0.0
        %3448 = vmatpush1.msra.mxu0 0.0
        %3449 = vmatprep.subr.mxu0 0.0
        %3450 = vmatpush1.msra.mxu0 0.0
        %3451 = vmatprep.subr.mxu0 0.0
        %3452 = vmatpush1.msra.mxu0 0.0
        %3453 = vmatprep.subr.mxu0 0.0
        %3454 = vmatpush1.msra.mxu0 0.0
        %3455 = vmatprep.subr.mxu0 0.0
        %3456 = vmatpush1.msra.mxu0 0.0
        %3457 = vmatprep.subr.mxu0 0.0
        %3458 = vmatpush1.msra.mxu0 0.0
        %3459 = vmatprep.subr.mxu0 0.0
        %3460 = vmatpush1.msra.mxu0 0.0
        %3461 = vmatprep.subr.mxu0 0.0
        %3462 = vmatpush1.msra.mxu0 0.0
        %3463 = vmatprep.subr.mxu0 0.0
        %3464 = vmatpush1.msra.mxu0 0.0
        %3465 = vmatprep.subr.mxu0 0.0
        %3466 = vmatpush1.msra.mxu0 0.0
        %3467 = vmatprep.subr.mxu0 0.0
        %3468 = vmatpush1.msra.mxu0 0.0
        %3469 = vmatprep.subr.mxu0 0.0
        %3470 = vmatpush1.msra.mxu0 %v3437
        %3471 = vmatprep.subr.mxu0 0.0
        %3472 = vmatpush2.msra.mxu0 0.0
        %3473 = vmatprep.subr.mxu0 0.0
        %3474 = vmatpush2.msra.mxu0 0.0
        %3475 = vmatprep.subr.mxu0 0.0
        %3476 = vmatpush2.msra.mxu0 0.0
        %3477 = vmatprep.subr.mxu0 0.0
        %3478 = vmatpush2.msra.mxu0 0.0
        %3479 = vmatprep.subr.mxu0 0.0
        %3480 = vmatpush2.msra.mxu0 0.0
        %3481 = vmatprep.subr.mxu0 0.0
        %3482 = vmatpush2.msra.mxu0 0.0
        %3483 = vmatprep.subr.mxu0 0.0
        %3484 = vmatpush2.msra.mxu0 0.0
        %3485 = vmatprep.subr.mxu0 0.0
        %3486 = vmatpush2.msra.mxu0 0.0
        %3487 = vmatprep.subr.mxu0 0.0
        %3488 = vmatpush2.msra.mxu0 0.0
        %3489 = vmatprep.subr.mxu0 0.0
        %3490 = vmatpush2.msra.mxu0 0.0
        %3491 = vmatprep.subr.mxu0 0.0
        %3492 = vmatpush2.msra.mxu0 0.0
        %3493 = vmatprep.subr.mxu0 0.0
        %3494 = vmatpush2.msra.mxu0 0.0
        %3495 = vmatprep.subr.mxu0 0.0
        %3496 = vmatpush2.msra.mxu0 0.0
        %3497 = vmatprep.subr.mxu0 0.0
        %3498 = vmatpush2.msra.mxu0 0.0
        %3499 = vmatprep.subr.mxu0 0.0
        %3500 = vmatpush2.msra.mxu0 0.0
        %3501 = vmatprep.subr.mxu0 0.0
        %3502 = vmatpush2.msra.mxu0 0.0
        %3503 = vmatprep.mubr.f32.mxu0 0.0
        %3504 = vmatmul.mubr.f32.gmra.mxu0 %v700
        %v3505 = vpop.f32.mrf.mxu0
        %v3506 = vadd.f32 0.0, %v3505
        %v3507 = vpop.f32.mrf.mxu0
        %3508 = vmatprep.mubr.f32.mxu0 0.0
        %3509 = vmatmul.mubr.f32.gmra.mxu0 %v702
        %v3510 = vpop.f32.mrf.mxu0
        %v3511 = vadd.f32 0.0, %v3510
        %v3512 = vpop.f32.mrf.mxu0
        %3513 = vmatprep.mubr.f32.mxu0 0.0
        %3514 = vmatmul.mubr.f32.gmra.mxu0 %v704
        %v3515 = vpop.f32.mrf.mxu0
        %v3516 = vadd.f32 0.0, %v3515
        %v3517 = vpop.f32.mrf.mxu0
        %3518 = vmatprep.mubr.f32.mxu0 0.0
        %3519 = vmatmul.mubr.f32.gmra.mxu0 %v706
        %v3520 = vpop.f32.mrf.mxu0
        %v3521 = vadd.f32 0.0, %v3520
        %v3522 = vpop.f32.mrf.mxu0
        %3523 = vmatprep.mubr.f32.mxu0 0.0
        %3524 = vmatmul.mubr.f32.gmra.mxu0 %v708
        %v3525 = vpop.f32.mrf.mxu0
        %v3526 = vadd.f32 0.0, %v3525
        %v3527 = vpop.f32.mrf.mxu0
        %3528 = vmatprep.mubr.f32.mxu0 0.0
        %3529 = vmatmul.mubr.f32.gmra.mxu0 %v710
        %v3530 = vpop.f32.mrf.mxu0
        %v3531 = vadd.f32 0.0, %v3530
        %v3532 = vpop.f32.mrf.mxu0
        %3533 = vmatprep.mubr.f32.mxu0 0.0
        %3534 = vmatmul.mubr.f32.gmra.mxu0 %v712
        %v3535 = vpop.f32.mrf.mxu0
        %v3536 = vadd.f32 0.0, %v3535
        %v3537 = vpop.f32.mrf.mxu0
        %3538 = vmatprep.mubr.f32.mxu0 0.0
        %3539 = vmatmul.mubr.f32.gmra.mxu0 %v714
        %v3540 = vpop.f32.mrf.mxu0
        %v3541 = vadd.f32 0.0, %v3540
        %v3542 = vpop.f32.mrf.mxu0
        %3543 = vmatprep.mubr.f32.mxu0 0.0
        %3544 = vmatmul.mubr.f32.gmra.mxu0 %v716
        %v3545 = vpop.f32.mrf.mxu0
        %v3546 = vadd.f32 0.0, %v3545
        %v3547 = vpop.f32.mrf.mxu0
        %3548 = vmatprep.mubr.f32.mxu0 0.0
        %3549 = vmatmul.mubr.f32.gmra.mxu0 %v718
        %v3550 = vpop.f32.mrf.mxu0
        %v3551 = vadd.f32 0.0, %v3550
        %v3552 = vpop.f32.mrf.mxu0
        %3553 = vmatprep.mubr.f32.mxu0 0.0
        %3554 = vmatmul.mubr.f32.gmra.mxu0 %v1707
        %v3555 = vpop.f32.mrf.mxu0
        %v3556 = vadd.f32 0.0, %v3555
        %v3557 = vpop.f32.mrf.mxu0
        %3558 = vmatprep.mubr.f32.mxu0 0.0
        %3559 = vmatmul.mubr.f32.gmra.mxu0 %v1709
        %v3560 = vpop.f32.mrf.mxu0
        %v3561 = vadd.f32 0.0, %v3560
        %v3562 = vpop.f32.mrf.mxu0
        %3563 = vmatprep.mubr.f32.mxu0 0.0
        %3564 = vmatmul.mubr.f32.gmra.mxu0 %v2569
        %v3565 = vpop.f32.mrf.mxu0
        %v3566 = vadd.f32 0.0, %v3565
        %v3567 = vpop.f32.mrf.mxu0
        %3568 = vmatprep.mubr.f32.mxu0 0.0
        %3569 = vmatmul.mubr.f32.gmra.mxu0 %v2571
        %v3570 = vpop.f32.mrf.mxu0
        %v3571 = vadd.f32 0.0, %v3570
        %v3572 = vpop.f32.mrf.mxu0
        %3573 = vmatprep.mubr.f32.mxu0 0.0
        %3574 = vmatmul.mubr.f32.gmra.mxu0 %v3433
        %v3575 = vpop.f32.mrf.mxu0
        %v3576 = vadd.f32 0.0, %v3575
        %v3577 = vpop.f32.mrf.mxu0
        %3578 = vmatprep.mubr.f32.mxu0 0.0
        %3579 = vmatmul.mubr.f32.gmra.mxu0 %v3435
        %v3580 = vpop.f32.mrf.mxu0
        %v3581 = vadd.f32 0.0, %v3580
        %v3582 = vpop.f32.mrf.mxu0
        %3583 = vdwg.mxu0
        %v3584 = vadd.f32 %v3411, %v3506
        %v3585 = vadd.f32 %v3412, %v3511
        %v3586 = vadd.f32 %v3413, %v3516
        %v3587 = vadd.f32 %v3414, %v3521
        %v3588 = vadd.f32 %v3415, %v3526
        %v3589 = vadd.f32 %v3416, %v3531
        %v3590 = vadd.f32 %v3417, %v3536
        %v3591 = vadd.f32 %v3418, %v3541
        %v3592 = vadd.f32 %v3419, %v3546
        %v3593 = vadd.f32 %v3420, %v3551
        %v3594 = vadd.f32 %v3421, %v3556
        %v3595 = vadd.f32 %v3422, %v3561
        %v3596 = vadd.f32 %v3423, %v3566
        %v3597 = vadd.f32 %v3424, %v3571
        %v3598 = vadd.f32 %v3425, %v3576
        %v3599 = vadd.f32 %v3426, %v3581
        %v3600 = vrot.slane %v201, 3
        %v3601 = vrot.slane %v202, 3
        %v3602 = vsel %vm884, %v3600, %v3601
        %v3603 = vrot.slane %v203, 3
        %v3604 = vsel %vm884, %v3601, %v3603
        %v3605 = vsel %vm287, %v3602, 0
        %v3607 = vsel %vm287, %v3604, 0
        %v3610 = vsel %vm320, %v216, 0
        %3612 = vmatprep.subr.mxu0 0.0
        %3613 = vmatpush1.msra.mxu0 0.0
        %3614 = vmatprep.subr.mxu0 0.0
        %3615 = vmatpush1.msra.mxu0 0.0
        %3616 = vmatprep.subr.mxu0 0.0
        %3617 = vmatpush1.msra.mxu0 0.0
        %3618 = vmatprep.subr.mxu0 0.0
        %3619 = vmatpush1.msra.mxu0 0.0
        %3620 = vmatprep.subr.mxu0 0.0
        %3621 = vmatpush1.msra.mxu0 0.0
        %3622 = vmatprep.subr.mxu0 0.0
        %3623 = vmatpush1.msra.mxu0 0.0
        %3624 = vmatprep.subr.mxu0 0.0
        %3625 = vmatpush1.msra.mxu0 0.0
        %3626 = vmatprep.subr.mxu0 0.0
        %3627 = vmatpush1.msra.mxu0 0.0
        %3628 = vmatprep.subr.mxu0 0.0
        %3629 = vmatpush1.msra.mxu0 0.0
        %3630 = vmatprep.subr.mxu0 0.0
        %3631 = vmatpush1.msra.mxu0 0.0
        %3632 = vmatprep.subr.mxu0 0.0
        %3633 = vmatpush1.msra.mxu0 0.0
        %3634 = vmatprep.subr.mxu0 0.0
        %3635 = vmatpush1.msra.mxu0 0.0
        %3636 = vmatprep.subr.mxu0 0.0
        %3637 = vmatpush1.msra.mxu0 0.0
        %3638 = vmatprep.subr.mxu0 0.0
        %3639 = vmatpush1.msra.mxu0 0.0
        %3640 = vmatprep.subr.mxu0 0.0
        %3641 = vmatpush1.msra.mxu0 0.0
        %3642 = vmatprep.subr.mxu0 0.0
        %3643 = vmatpush1.msra.mxu0 %v3610
        %3644 = vmatprep.subr.mxu0 0.0
        %3645 = vmatpush2.msra.mxu0 0.0
        %3646 = vmatprep.subr.mxu0 0.0
        %3647 = vmatpush2.msra.mxu0 0.0
        %3648 = vmatprep.subr.mxu0 0.0
        %3649 = vmatpush2.msra.mxu0 0.0
        %3650 = vmatprep.subr.mxu0 0.0
        %3651 = vmatpush2.msra.mxu0 0.0
        %3652 = vmatprep.subr.mxu0 0.0
        %3653 = vmatpush2.msra.mxu0 0.0
        %3654 = vmatprep.subr.mxu0 0.0
        %3655 = vmatpush2.msra.mxu0 0.0
        %3656 = vmatprep.subr.mxu0 0.0
        %3657 = vmatpush2.msra.mxu0 0.0
        %3658 = vmatprep.subr.mxu0 0.0
        %3659 = vmatpush2.msra.mxu0 0.0
        %3660 = vmatprep.subr.mxu0 0.0
        %3661 = vmatpush2.msra.mxu0 0.0
        %3662 = vmatprep.subr.mxu0 0.0
        %3663 = vmatpush2.msra.mxu0 0.0
        %3664 = vmatprep.subr.mxu0 0.0
        %3665 = vmatpush2.msra.mxu0 0.0
        %3666 = vmatprep.subr.mxu0 0.0
        %3667 = vmatpush2.msra.mxu0 0.0
        %3668 = vmatprep.subr.mxu0 0.0
        %3669 = vmatpush2.msra.mxu0 0.0
        %3670 = vmatprep.subr.mxu0 0.0
        %3671 = vmatpush2.msra.mxu0 0.0
        %3672 = vmatprep.subr.mxu0 0.0
        %3673 = vmatpush2.msra.mxu0 0.0
        %3674 = vmatprep.subr.mxu0 0.0
        %3675 = vmatpush2.msra.mxu0 0.0
        %3676 = vmatprep.mubr.f32.mxu0 0.0
        %3677 = vmatmul.mubr.f32.gmra.mxu0 %v938
        %v3678 = vpop.f32.mrf.mxu0
        %v3679 = vadd.f32 0.0, %v3678
        %v3680 = vpop.f32.mrf.mxu0
        %3681 = vmatprep.mubr.f32.mxu0 0.0
        %3682 = vmatmul.mubr.f32.gmra.mxu0 %v940
        %v3683 = vpop.f32.mrf.mxu0
        %v3684 = vadd.f32 0.0, %v3683
        %v3685 = vpop.f32.mrf.mxu0
        %3686 = vmatprep.mubr.f32.mxu0 0.0
        %3687 = vmatmul.mubr.f32.gmra.mxu0 %v942
        %v3688 = vpop.f32.mrf.mxu0
        %v3689 = vadd.f32 0.0, %v3688
        %v3690 = vpop.f32.mrf.mxu0
        %3691 = vmatprep.mubr.f32.mxu0 0.0
        %3692 = vmatmul.mubr.f32.gmra.mxu0 %v944
        %v3693 = vpop.f32.mrf.mxu0
        %v3694 = vadd.f32 0.0, %v3693
        %v3695 = vpop.f32.mrf.mxu0
        %3696 = vmatprep.mubr.f32.mxu0 0.0
        %3697 = vmatmul.mubr.f32.gmra.mxu0 %v946
        %v3698 = vpop.f32.mrf.mxu0
        %v3699 = vadd.f32 0.0, %v3698
        %v3700 = vpop.f32.mrf.mxu0
        %3701 = vmatprep.mubr.f32.mxu0 0.0
        %3702 = vmatmul.mubr.f32.gmra.mxu0 %v948
        %v3703 = vpop.f32.mrf.mxu0
        %v3704 = vadd.f32 0.0, %v3703
        %v3705 = vpop.f32.mrf.mxu0
        %3706 = vmatprep.mubr.f32.mxu0 0.0
        %3707 = vmatmul.mubr.f32.gmra.mxu0 %v950
        %v3708 = vpop.f32.mrf.mxu0
        %v3709 = vadd.f32 0.0, %v3708
        %v3710 = vpop.f32.mrf.mxu0
        %3711 = vmatprep.mubr.f32.mxu0 0.0
        %3712 = vmatmul.mubr.f32.gmra.mxu0 %v952
        %v3713 = vpop.f32.mrf.mxu0
        %v3714 = vadd.f32 0.0, %v3713
        %v3715 = vpop.f32.mrf.mxu0
        %3716 = vmatprep.mubr.f32.mxu0 0.0
        %3717 = vmatmul.mubr.f32.gmra.mxu0 %v954
        %v3718 = vpop.f32.mrf.mxu0
        %v3719 = vadd.f32 0.0, %v3718
        %v3720 = vpop.f32.mrf.mxu0
        %3721 = vmatprep.mubr.f32.mxu0 0.0
        %3722 = vmatmul.mubr.f32.gmra.mxu0 %v956
        %v3723 = vpop.f32.mrf.mxu0
        %v3724 = vadd.f32 0.0, %v3723
        %v3725 = vpop.f32.mrf.mxu0
        %3726 = vmatprep.mubr.f32.mxu0 0.0
        %3727 = vmatmul.mubr.f32.gmra.mxu0 %v1879
        %v3728 = vpop.f32.mrf.mxu0
        %v3729 = vadd.f32 0.0, %v3728
        %v3730 = vpop.f32.mrf.mxu0
        %3731 = vmatprep.mubr.f32.mxu0 0.0
        %3732 = vmatmul.mubr.f32.gmra.mxu0 %v1881
        %v3733 = vpop.f32.mrf.mxu0
        %v3734 = vadd.f32 0.0, %v3733
        %v3735 = vpop.f32.mrf.mxu0
        %3736 = vmatprep.mubr.f32.mxu0 0.0
        %3737 = vmatmul.mubr.f32.gmra.mxu0 %v2743
        %v3738 = vpop.f32.mrf.mxu0
        %v3739 = vadd.f32 0.0, %v3738
        %v3740 = vpop.f32.mrf.mxu0
        %3741 = vmatprep.mubr.f32.mxu0 0.0
        %3742 = vmatmul.mubr.f32.gmra.mxu0 %v2745
        %v3743 = vpop.f32.mrf.mxu0
        %v3744 = vadd.f32 0.0, %v3743
        %v3745 = vpop.f32.mrf.mxu0
        %3746 = vmatprep.mubr.f32.mxu0 0.0
        %3747 = vmatmul.mubr.f32.gmra.mxu0 %v3605
        %v3748 = vpop.f32.mrf.mxu0
        %v3749 = vadd.f32 0.0, %v3748
        %v3750 = vpop.f32.mrf.mxu0
        %3751 = vmatprep.mubr.f32.mxu0 0.0
        %3752 = vmatmul.mubr.f32.gmra.mxu0 %v3607
        %v3753 = vpop.f32.mrf.mxu0
        %v3754 = vadd.f32 0.0, %v3753
        %v3755 = vpop.f32.mrf.mxu0
        %3756 = vdwg.mxu0
        %v3757 = vadd.f32 %v3584, %v3679
        %v3758 = vadd.f32 %v3585, %v3684
        %v3759 = vadd.f32 %v3586, %v3689
        %v3760 = vadd.f32 %v3587, %v3694
        %v3761 = vadd.f32 %v3588, %v3699
        %v3762 = vadd.f32 %v3589, %v3704
        %v3763 = vadd.f32 %v3590, %v3709
        %v3764 = vadd.f32 %v3591, %v3714
        %v3765 = vadd.f32 %v3592, %v3719
        %v3766 = vadd.f32 %v3593, %v3724
        %v3767 = vadd.f32 %v3594, %v3729
        %v3768 = vadd.f32 %v3595, %v3734
        %v3769 = vadd.f32 %v3596, %v3739
        %v3770 = vadd.f32 %v3597, %v3744
        %v3771 = vadd.f32 %v3598, %v3749
        %v3772 = vadd.f32 %v3599, %v3754
        %v3773 = vrot.slane %v201, 4
        %v3774 = vrot.slane %v202, 4
        %v3775 = vsel %vm320, %v3773, %v3774
        %v3776 = vrot.slane %v203, 4
        %v3777 = vsel %vm320, %v3774, %v3776
        %v3778 = vrot.slane %v216, 4
        %v3779 = vsel %vm287, %v3775, 0
        %v3781 = vsel %vm287, %v3777, 0
        %v3783 = vsel %vm320, %v3778, 0
        %3785 = vmatprep.subr.mxu0 0.0
        %3786 = vmatpush1.msra.mxu0 0.0
        %3787 = vmatprep.subr.mxu0 0.0
        %3788 = vmatpush1.msra.mxu0 0.0
        %3789 = vmatprep.subr.mxu0 0.0
        %3790 = vmatpush1.msra.mxu0 0.0
        %3791 = vmatprep.subr.mxu0 0.0
        %3792 = vmatpush1.msra.mxu0 0.0
        %3793 = vmatprep.subr.mxu0 0.0
        %3794 = vmatpush1.msra.mxu0 0.0
        %3795 = vmatprep.subr.mxu0 0.0
        %3796 = vmatpush1.msra.mxu0 0.0
        %3797 = vmatprep.subr.mxu0 0.0
        %3798 = vmatpush1.msra.mxu0 0.0
        %3799 = vmatprep.subr.mxu0 0.0
        %3800 = vmatpush1.msra.mxu0 0.0
        %3801 = vmatprep.subr.mxu0 0.0
        %3802 = vmatpush1.msra.mxu0 0.0
        %3803 = vmatprep.subr.mxu0 0.0
        %3804 = vmatpush1.msra.mxu0 0.0
        %3805 = vmatprep.subr.mxu0 0.0
        %3806 = vmatpush1.msra.mxu0 0.0
        %3807 = vmatprep.subr.mxu0 0.0
        %3808 = vmatpush1.msra.mxu0 0.0
        %3809 = vmatprep.subr.mxu0 0.0
        %3810 = vmatpush1.msra.mxu0 0.0
        %3811 = vmatprep.subr.mxu0 0.0
        %3812 = vmatpush1.msra.mxu0 0.0
        %3813 = vmatprep.subr.mxu0 0.0
        %3814 = vmatpush1.msra.mxu0 0.0
        %3815 = vmatprep.subr.mxu0 0.0
        %3816 = vmatpush1.msra.mxu0 %v3783
        %3817 = vmatprep.subr.mxu0 0.0
        %3818 = vmatpush2.msra.mxu0 0.0
        %3819 = vmatprep.subr.mxu0 0.0
        %3820 = vmatpush2.msra.mxu0 0.0
        %3821 = vmatprep.subr.mxu0 0.0
        %3822 = vmatpush2.msra.mxu0 0.0
        %3823 = vmatprep.subr.mxu0 0.0
        %3824 = vmatpush2.msra.mxu0 0.0
        %3825 = vmatprep.subr.mxu0 0.0
        %3826 = vmatpush2.msra.mxu0 0.0
        %3827 = vmatprep.subr.mxu0 0.0
        %3828 = vmatpush2.msra.mxu0 0.0
        %3829 = vmatprep.subr.mxu0 0.0
        %3830 = vmatpush2.msra.mxu0 0.0
        %3831 = vmatprep.subr.mxu0 0.0
        %3832 = vmatpush2.msra.mxu0 0.0
        %3833 = vmatprep.subr.mxu0 0.0
        %3834 = vmatpush2.msra.mxu0 0.0
        %3835 = vmatprep.subr.mxu0 0.0
        %3836 = vmatpush2.msra.mxu0 0.0
        %3837 = vmatprep.subr.mxu0 0.0
        %3838 = vmatpush2.msra.mxu0 0.0
        %3839 = vmatprep.subr.mxu0 0.0
        %3840 = vmatpush2.msra.mxu0 0.0
        %3841 = vmatprep.subr.mxu0 0.0
        %3842 = vmatpush2.msra.mxu0 0.0
        %3843 = vmatprep.subr.mxu0 0.0
        %3844 = vmatpush2.msra.mxu0 0.0
        %3845 = vmatprep.subr.mxu0 0.0
        %3846 = vmatpush2.msra.mxu0 0.0
        %3847 = vmatprep.subr.mxu0 0.0
        %3848 = vmatpush2.msra.mxu0 0.0
        %3849 = vmatprep.mubr.f32.mxu0 0.0
        %3850 = vmatmul.mubr.f32.gmra.mxu0 %v1173
        %v3851 = vpop.f32.mrf.mxu0
        %v3852 = vadd.f32 0.0, %v3851
        %v3853 = vpop.f32.mrf.mxu0
        %3854 = vmatprep.mubr.f32.mxu0 0.0
        %3855 = vmatmul.mubr.f32.gmra.mxu0 %v1175
        %v3856 = vpop.f32.mrf.mxu0
        %v3857 = vadd.f32 0.0, %v3856
        %v3858 = vpop.f32.mrf.mxu0
        %3859 = vmatprep.mubr.f32.mxu0 0.0
        %3860 = vmatmul.mubr.f32.gmra.mxu0 %v1177
        %v3861 = vpop.f32.mrf.mxu0
        %v3862 = vadd.f32 0.0, %v3861
        %v3863 = vpop.f32.mrf.mxu0
        %3864 = vmatprep.mubr.f32.mxu0 0.0
        %3865 = vmatmul.mubr.f32.gmra.mxu0 %v1179
        %v3866 = vpop.f32.mrf.mxu0
        %v3867 = vadd.f32 0.0, %v3866
        %v3868 = vpop.f32.mrf.mxu0
        %3869 = vmatprep.mubr.f32.mxu0 0.0
        %3870 = vmatmul.mubr.f32.gmra.mxu0 %v1181
        %v3871 = vpop.f32.mrf.mxu0
        %v3872 = vadd.f32 0.0, %v3871
        %v3873 = vpop.f32.mrf.mxu0
        %3874 = vmatprep.mubr.f32.mxu0 0.0
        %3875 = vmatmul.mubr.f32.gmra.mxu0 %v1183
        %v3876 = vpop.f32.mrf.mxu0
        %v3877 = vadd.f32 0.0, %v3876
        %v3878 = vpop.f32.mrf.mxu0
        %3879 = vmatprep.mubr.f32.mxu0 0.0
        %3880 = vmatmul.mubr.f32.gmra.mxu0 %v1185
        %v3881 = vpop.f32.mrf.mxu0
        %v3882 = vadd.f32 0.0, %v3881
        %v3883 = vpop.f32.mrf.mxu0
        %3884 = vmatprep.mubr.f32.mxu0 0.0
        %3885 = vmatmul.mubr.f32.gmra.mxu0 %v1187
        %v3886 = vpop.f32.mrf.mxu0
        %v3887 = vadd.f32 0.0, %v3886
        %v3888 = vpop.f32.mrf.mxu0
        %3889 = vmatprep.mubr.f32.mxu0 0.0
        %3890 = vmatmul.mubr.f32.gmra.mxu0 %v1189
        %v3891 = vpop.f32.mrf.mxu0
        %v3892 = vadd.f32 0.0, %v3891
        %v3893 = vpop.f32.mrf.mxu0
        %3894 = vmatprep.mubr.f32.mxu0 0.0
        %3895 = vmatmul.mubr.f32.gmra.mxu0 %v1191
        %v3896 = vpop.f32.mrf.mxu0
        %v3897 = vadd.f32 0.0, %v3896
        %v3898 = vpop.f32.mrf.mxu0
        %3899 = vmatprep.mubr.f32.mxu0 0.0
        %3900 = vmatmul.mubr.f32.gmra.mxu0 %v2053
        %v3901 = vpop.f32.mrf.mxu0
        %v3902 = vadd.f32 0.0, %v3901
        %v3903 = vpop.f32.mrf.mxu0
        %3904 = vmatprep.mubr.f32.mxu0 0.0
        %3905 = vmatmul.mubr.f32.gmra.mxu0 %v2055
        %v3906 = vpop.f32.mrf.mxu0
        %v3907 = vadd.f32 0.0, %v3906
        %v3908 = vpop.f32.mrf.mxu0
        %3909 = vmatprep.mubr.f32.mxu0 0.0
        %3910 = vmatmul.mubr.f32.gmra.mxu0 %v2915
        %v3911 = vpop.f32.mrf.mxu0
        %v3912 = vadd.f32 0.0, %v3911
        %v3913 = vpop.f32.mrf.mxu0
        %3914 = vmatprep.mubr.f32.mxu0 0.0
        %3915 = vmatmul.mubr.f32.gmra.mxu0 %v2917
        %v3916 = vpop.f32.mrf.mxu0
        %v3917 = vadd.f32 0.0, %v3916
        %v3918 = vpop.f32.mrf.mxu0
        %3919 = vmatprep.mubr.f32.mxu0 0.0
        %3920 = vmatmul.mubr.f32.gmra.mxu0 %v3779
        %v3921 = vpop.f32.mrf.mxu0
        %v3922 = vadd.f32 0.0, %v3921
        %v3923 = vpop.f32.mrf.mxu0
        %3924 = vmatprep.mubr.f32.mxu0 0.0
        %3925 = vmatmul.mubr.f32.gmra.mxu0 %v3781
        %v3926 = vpop.f32.mrf.mxu0
        %v3927 = vadd.f32 0.0, %v3926
        %v3928 = vpop.f32.mrf.mxu0
        %3929 = vdwg.mxu0
        %v3930 = vadd.f32 %v3757, %v3852
        %v3931 = vadd.f32 %v3758, %v3857
        %v3932 = vadd.f32 %v3759, %v3862
        %v3933 = vadd.f32 %v3760, %v3867
        %v3934 = vadd.f32 %v3761, %v3872
        %v3935 = vadd.f32 %v3762, %v3877
        %v3936 = vadd.f32 %v3763, %v3882
        %v3937 = vadd.f32 %v3764, %v3887
        %v3938 = vadd.f32 %v3765, %v3892
        %v3939 = vadd.f32 %v3766, %v3897
        %v3940 = vadd.f32 %v3767, %v3902
        %v3941 = vadd.f32 %v3768, %v3907
        %v3942 = vadd.f32 %v3769, %v3912
        %v3943 = vadd.f32 %v3770, %v3917
        %v3944 = vadd.f32 %v3771, %v3922
        %v3945 = vadd.f32 %v3772, %v3927
        %v3947 = vsel %vm287, %v204, 0
        %v3950 = vsel %vm287, %v205, 0
        %v3953 = vsel %vm320, %v217, 0
        %3955 = vmatprep.subr.mxu0 0.0
        %3956 = vmatpush1.msra.mxu0 0.0
        %3957 = vmatprep.subr.mxu0 0.0
        %3958 = vmatpush1.msra.mxu0 0.0
        %3959 = vmatprep.subr.mxu0 0.0
        %3960 = vmatpush1.msra.mxu0 0.0
        %3961 = vmatprep.subr.mxu0 0.0
        %3962 = vmatpush1.msra.mxu0 0.0
        %3963 = vmatprep.subr.mxu0 0.0
        %3964 = vmatpush1.msra.mxu0 0.0
        %3965 = vmatprep.subr.mxu0 0.0
        %3966 = vmatpush1.msra.mxu0 0.0
        %3967 = vmatprep.subr.mxu0 0.0
        %3968 = vmatpush1.msra.mxu0 0.0
        %3969 = vmatprep.subr.mxu0 0.0
        %3970 = vmatpush1.msra.mxu0 0.0
        %3971 = vmatprep.subr.mxu0 0.0
        %3972 = vmatpush1.msra.mxu0 0.0
        %3973 = vmatprep.subr.mxu0 0.0
        %3974 = vmatpush1.msra.mxu0 0.0
        %3975 = vmatprep.subr.mxu0 0.0
        %3976 = vmatpush1.msra.mxu0 0.0
        %3977 = vmatprep.subr.mxu0 0.0
        %3978 = vmatpush1.msra.mxu0 0.0
        %3979 = vmatprep.subr.mxu0 0.0
        %3980 = vmatpush1.msra.mxu0 0.0
        %3981 = vmatprep.subr.mxu0 0.0
        %3982 = vmatpush1.msra.mxu0 0.0
        %3983 = vmatprep.subr.mxu0 0.0
        %3984 = vmatpush1.msra.mxu0 0.0
        %3985 = vmatprep.subr.mxu0 0.0
        %3986 = vmatpush1.msra.mxu0 %v3953
        %3987 = vmatprep.subr.mxu0 0.0
        %3988 = vmatpush2.msra.mxu0 0.0
        %3989 = vmatprep.subr.mxu0 0.0
        %3990 = vmatpush2.msra.mxu0 0.0
        %3991 = vmatprep.subr.mxu0 0.0
        %3992 = vmatpush2.msra.mxu0 0.0
        %3993 = vmatprep.subr.mxu0 0.0
        %3994 = vmatpush2.msra.mxu0 0.0
        %3995 = vmatprep.subr.mxu0 0.0
        %3996 = vmatpush2.msra.mxu0 0.0
        %3997 = vmatprep.subr.mxu0 0.0
        %3998 = vmatpush2.msra.mxu0 0.0
        %3999 = vmatprep.subr.mxu0 0.0
        %4000 = vmatpush2.msra.mxu0 0.0
        %4001 = vmatprep.subr.mxu0 0.0
        %4002 = vmatpush2.msra.mxu0 0.0
        %4003 = vmatprep.subr.mxu0 0.0
        %4004 = vmatpush2.msra.mxu0 0.0
        %4005 = vmatprep.subr.mxu0 0.0
        %4006 = vmatpush2.msra.mxu0 0.0
        %4007 = vmatprep.subr.mxu0 0.0
        %4008 = vmatpush2.msra.mxu0 0.0
        %4009 = vmatprep.subr.mxu0 0.0
        %4010 = vmatpush2.msra.mxu0 0.0
        %4011 = vmatprep.subr.mxu0 0.0
        %4012 = vmatpush2.msra.mxu0 0.0
        %4013 = vmatprep.subr.mxu0 0.0
        %4014 = vmatpush2.msra.mxu0 0.0
        %4015 = vmatprep.subr.mxu0 0.0
        %4016 = vmatpush2.msra.mxu0 0.0
        %4017 = vmatprep.subr.mxu0 0.0
        %4018 = vmatpush2.msra.mxu0 0.0
        %4019 = vmatprep.mubr.f32.mxu0 0.0
        %4020 = vmatmul.mubr.f32.gmra.mxu0 %v484
        %v4021 = vpop.f32.mrf.mxu0
        %v4022 = vadd.f32 0.0, %v4021
        %v4023 = vpop.f32.mrf.mxu0
        %4024 = vmatprep.mubr.f32.mxu0 0.0
        %4025 = vmatmul.mubr.f32.gmra.mxu0 %v486
        %v4026 = vpop.f32.mrf.mxu0
        %v4027 = vadd.f32 0.0, %v4026
        %v4028 = vpop.f32.mrf.mxu0
        %4029 = vmatprep.mubr.f32.mxu0 0.0
        %4030 = vmatmul.mubr.f32.gmra.mxu0 %v488
        %v4031 = vpop.f32.mrf.mxu0
        %v4032 = vadd.f32 0.0, %v4031
        %v4033 = vpop.f32.mrf.mxu0
        %4034 = vmatprep.mubr.f32.mxu0 0.0
        %4035 = vmatmul.mubr.f32.gmra.mxu0 %v490
        %v4036 = vpop.f32.mrf.mxu0
        %v4037 = vadd.f32 0.0, %v4036
        %v4038 = vpop.f32.mrf.mxu0
        %4039 = vmatprep.mubr.f32.mxu0 0.0
        %4040 = vmatmul.mubr.f32.gmra.mxu0 %v492
        %v4041 = vpop.f32.mrf.mxu0
        %v4042 = vadd.f32 0.0, %v4041
        %v4043 = vpop.f32.mrf.mxu0
        %4044 = vmatprep.mubr.f32.mxu0 0.0
        %4045 = vmatmul.mubr.f32.gmra.mxu0 %v494
        %v4046 = vpop.f32.mrf.mxu0
        %v4047 = vadd.f32 0.0, %v4046
        %v4048 = vpop.f32.mrf.mxu0
        %4049 = vmatprep.mubr.f32.mxu0 0.0
        %4050 = vmatmul.mubr.f32.gmra.mxu0 %v496
        %v4051 = vpop.f32.mrf.mxu0
        %v4052 = vadd.f32 0.0, %v4051
        %v4053 = vpop.f32.mrf.mxu0
        %4054 = vmatprep.mubr.f32.mxu0 0.0
        %4055 = vmatmul.mubr.f32.gmra.mxu0 %v498
        %v4056 = vpop.f32.mrf.mxu0
        %v4057 = vadd.f32 0.0, %v4056
        %v4058 = vpop.f32.mrf.mxu0
        %4059 = vmatprep.mubr.f32.mxu0 0.0
        %4060 = vmatmul.mubr.f32.gmra.mxu0 %v1359
        %v4061 = vpop.f32.mrf.mxu0
        %v4062 = vadd.f32 0.0, %v4061
        %v4063 = vpop.f32.mrf.mxu0
        %4064 = vmatprep.mubr.f32.mxu0 0.0
        %4065 = vmatmul.mubr.f32.gmra.mxu0 %v1362
        %v4066 = vpop.f32.mrf.mxu0
        %v4067 = vadd.f32 0.0, %v4066
        %v4068 = vpop.f32.mrf.mxu0
        %4069 = vmatprep.mubr.f32.mxu0 0.0
        %4070 = vmatmul.mubr.f32.gmra.mxu0 %v2221
        %v4071 = vpop.f32.mrf.mxu0
        %v4072 = vadd.f32 0.0, %v4071
        %v4073 = vpop.f32.mrf.mxu0
        %4074 = vmatprep.mubr.f32.mxu0 0.0
        %4075 = vmatmul.mubr.f32.gmra.mxu0 %v2224
        %v4076 = vpop.f32.mrf.mxu0
        %v4077 = vadd.f32 0.0, %v4076
        %v4078 = vpop.f32.mrf.mxu0
        %4079 = vmatprep.mubr.f32.mxu0 0.0
        %4080 = vmatmul.mubr.f32.gmra.mxu0 %v3085
        %v4081 = vpop.f32.mrf.mxu0
        %v4082 = vadd.f32 0.0, %v4081
        %v4083 = vpop.f32.mrf.mxu0
        %4084 = vmatprep.mubr.f32.mxu0 0.0
        %4085 = vmatmul.mubr.f32.gmra.mxu0 %v3088
        %v4086 = vpop.f32.mrf.mxu0
        %v4087 = vadd.f32 0.0, %v4086
        %v4088 = vpop.f32.mrf.mxu0
        %4089 = vmatprep.mubr.f32.mxu0 0.0
        %4090 = vmatmul.mubr.f32.gmra.mxu0 %v3947
        %v4091 = vpop.f32.mrf.mxu0
        %v4092 = vadd.f32 0.0, %v4091
        %v4093 = vpop.f32.mrf.mxu0
        %4094 = vmatprep.mubr.f32.mxu0 0.0
        %4095 = vmatmul.mubr.f32.gmra.mxu0 %v3950
        %v4096 = vpop.f32.mrf.mxu0
        %v4097 = vadd.f32 0.0, %v4096
        %v4098 = vpop.f32.mrf.mxu0
        %4099 = vdwg.mxu0
        %v4100 = vadd.f32 %v3930, %v4022
        %v4101 = vadd.f32 %v3931, %v4027
        %v4102 = vadd.f32 %v3932, %v4032
        %v4103 = vadd.f32 %v3933, %v4037
        %v4104 = vadd.f32 %v3934, %v4042
        %v4105 = vadd.f32 %v3935, %v4047
        %v4106 = vadd.f32 %v3936, %v4052
        %v4107 = vadd.f32 %v3937, %v4057
        %v4108 = vadd.f32 %v3938, %v4062
        %v4109 = vadd.f32 %v3939, %v4067
        %v4110 = vadd.f32 %v3940, %v4072
        %v4111 = vadd.f32 %v3941, %v4077
        %v4112 = vadd.f32 %v3942, %v4082
        %v4113 = vadd.f32 %v3943, %v4087
        %v4114 = vadd.f32 %v3944, %v4092
        %v4115 = vadd.f32 %v3945, %v4097
        %v4117 = vrot.slane %v204, 1
        %v4118 = vrot.slane %v205, 1
        %v4119 = vsel %vm244, %v4117, %v4118
        %v4120 = vrot.slane %v206, 1
        %v4121 = vsel %vm244, %v4118, %v4120
        %v4122 = vrot.slane %v217, 4
        %v4123 = vsel %vm287, %v4119, 0
        %v4125 = vsel %vm287, %v4121, 0
        %v4127 = vsel %vm320, %v4122, 0
        %4129 = vmatprep.subr.mxu0 0.0
        %4130 = vmatpush1.msra.mxu0 0.0
        %4131 = vmatprep.subr.mxu0 0.0
        %4132 = vmatpush1.msra.mxu0 0.0
        %4133 = vmatprep.subr.mxu0 0.0
        %4134 = vmatpush1.msra.mxu0 0.0
        %4135 = vmatprep.subr.mxu0 0.0
        %4136 = vmatpush1.msra.mxu0 0.0
        %4137 = vmatprep.subr.mxu0 0.0
        %4138 = vmatpush1.msra.mxu0 0.0
        %4139 = vmatprep.subr.mxu0 0.0
        %4140 = vmatpush1.msra.mxu0 0.0
        %4141 = vmatprep.subr.mxu0 0.0
        %4142 = vmatpush1.msra.mxu0 0.0
        %4143 = vmatprep.subr.mxu0 0.0
        %4144 = vmatpush1.msra.mxu0 0.0
        %4145 = vmatprep.subr.mxu0 0.0
        %4146 = vmatpush1.msra.mxu0 0.0
        %4147 = vmatprep.subr.mxu0 0.0
        %4148 = vmatpush1.msra.mxu0 0.0
        %4149 = vmatprep.subr.mxu0 0.0
        %4150 = vmatpush1.msra.mxu0 0.0
        %4151 = vmatprep.subr.mxu0 0.0
        %4152 = vmatpush1.msra.mxu0 0.0
        %4153 = vmatprep.subr.mxu0 0.0
        %4154 = vmatpush1.msra.mxu0 0.0
        %4155 = vmatprep.subr.mxu0 0.0
        %4156 = vmatpush1.msra.mxu0 0.0
        %4157 = vmatprep.subr.mxu0 0.0
        %4158 = vmatpush1.msra.mxu0 0.0
        %4159 = vmatprep.subr.mxu0 0.0
        %4160 = vmatpush1.msra.mxu0 %v4127
        %4161 = vmatprep.subr.mxu0 0.0
        %4162 = vmatpush2.msra.mxu0 0.0
        %4163 = vmatprep.subr.mxu0 0.0
        %4164 = vmatpush2.msra.mxu0 0.0
        %4165 = vmatprep.subr.mxu0 0.0
        %4166 = vmatpush2.msra.mxu0 0.0
        %4167 = vmatprep.subr.mxu0 0.0
        %4168 = vmatpush2.msra.mxu0 0.0
        %4169 = vmatprep.subr.mxu0 0.0
        %4170 = vmatpush2.msra.mxu0 0.0
        %4171 = vmatprep.subr.mxu0 0.0
        %4172 = vmatpush2.msra.mxu0 0.0
        %4173 = vmatprep.subr.mxu0 0.0
        %4174 = vmatpush2.msra.mxu0 0.0
        %4175 = vmatprep.subr.mxu0 0.0
        %4176 = vmatpush2.msra.mxu0 0.0
        %4177 = vmatprep.subr.mxu0 0.0
        %4178 = vmatpush2.msra.mxu0 0.0
        %4179 = vmatprep.subr.mxu0 0.0
        %4180 = vmatpush2.msra.mxu0 0.0
        %4181 = vmatprep.subr.mxu0 0.0
        %4182 = vmatpush2.msra.mxu0 0.0
        %4183 = vmatprep.subr.mxu0 0.0
        %4184 = vmatpush2.msra.mxu0 0.0
        %4185 = vmatprep.subr.mxu0 0.0
        %4186 = vmatpush2.msra.mxu0 0.0
        %4187 = vmatprep.subr.mxu0 0.0
        %4188 = vmatpush2.msra.mxu0 0.0
        %4189 = vmatprep.subr.mxu0 0.0
        %4190 = vmatpush2.msra.mxu0 0.0
        %4191 = vmatprep.subr.mxu0 0.0
        %4192 = vmatpush2.msra.mxu0 0.0
        %4193 = vmatprep.mubr.f32.mxu0 0.0
        %4194 = vmatmul.mubr.f32.gmra.mxu0 %v304
        %v4195 = vpop.f32.mrf.mxu0
        %v4196 = vadd.f32 0.0, %v4195
        %v4197 = vpop.f32.mrf.mxu0
        %4198 = vmatprep.mubr.f32.mxu0 0.0
        %4199 = vmatmul.mubr.f32.gmra.mxu0 %v306
        %v4200 = vpop.f32.mrf.mxu0
        %v4201 = vadd.f32 0.0, %v4200
        %v4202 = vpop.f32.mrf.mxu0
        %4203 = vmatprep.mubr.f32.mxu0 0.0
        %4204 = vmatmul.mubr.f32.gmra.mxu0 %v308
        %v4205 = vpop.f32.mrf.mxu0
        %v4206 = vadd.f32 0.0, %v4205
        %v4207 = vpop.f32.mrf.mxu0
        %4208 = vmatprep.mubr.f32.mxu0 0.0
        %4209 = vmatmul.mubr.f32.gmra.mxu0 %v310
        %v4210 = vpop.f32.mrf.mxu0
        %v4211 = vadd.f32 0.0, %v4210
        %v4212 = vpop.f32.mrf.mxu0
        %4213 = vmatprep.mubr.f32.mxu0 0.0
        %4214 = vmatmul.mubr.f32.gmra.mxu0 %v312
        %v4215 = vpop.f32.mrf.mxu0
        %v4216 = vadd.f32 0.0, %v4215
        %v4217 = vpop.f32.mrf.mxu0
        %4218 = vmatprep.mubr.f32.mxu0 0.0
        %4219 = vmatmul.mubr.f32.gmra.mxu0 %v314
        %v4220 = vpop.f32.mrf.mxu0
        %v4221 = vadd.f32 0.0, %v4220
        %v4222 = vpop.f32.mrf.mxu0
        %4223 = vmatprep.mubr.f32.mxu0 0.0
        %4224 = vmatmul.mubr.f32.gmra.mxu0 %v316
        %v4225 = vpop.f32.mrf.mxu0
        %v4226 = vadd.f32 0.0, %v4225
        %v4227 = vpop.f32.mrf.mxu0
        %4228 = vmatprep.mubr.f32.mxu0 0.0
        %4229 = vmatmul.mubr.f32.gmra.mxu0 %v318
        %v4230 = vpop.f32.mrf.mxu0
        %v4231 = vadd.f32 0.0, %v4230
        %v4232 = vpop.f32.mrf.mxu0
        %4233 = vmatprep.mubr.f32.mxu0 0.0
        %4234 = vmatmul.mubr.f32.gmra.mxu0 %v1533
        %v4235 = vpop.f32.mrf.mxu0
        %v4236 = vadd.f32 0.0, %v4235
        %v4237 = vpop.f32.mrf.mxu0
        %4238 = vmatprep.mubr.f32.mxu0 0.0
        %4239 = vmatmul.mubr.f32.gmra.mxu0 %v1535
        %v4240 = vpop.f32.mrf.mxu0
        %v4241 = vadd.f32 0.0, %v4240
        %v4242 = vpop.f32.mrf.mxu0
        %4243 = vmatprep.mubr.f32.mxu0 0.0
        %4244 = vmatmul.mubr.f32.gmra.mxu0 %v2397
        %v4245 = vpop.f32.mrf.mxu0
        %v4246 = vadd.f32 0.0, %v4245
        %v4247 = vpop.f32.mrf.mxu0
        %4248 = vmatprep.mubr.f32.mxu0 0.0
        %4249 = vmatmul.mubr.f32.gmra.mxu0 %v2399
        %v4250 = vpop.f32.mrf.mxu0
        %v4251 = vadd.f32 0.0, %v4250
        %v4252 = vpop.f32.mrf.mxu0
        %4253 = vmatprep.mubr.f32.mxu0 0.0
        %4254 = vmatmul.mubr.f32.gmra.mxu0 %v3259
        %v4255 = vpop.f32.mrf.mxu0
        %v4256 = vadd.f32 0.0, %v4255
        %v4257 = vpop.f32.mrf.mxu0
        %4258 = vmatprep.mubr.f32.mxu0 0.0
        %4259 = vmatmul.mubr.f32.gmra.mxu0 %v3261
        %v4260 = vpop.f32.mrf.mxu0
        %v4261 = vadd.f32 0.0, %v4260
        %v4262 = vpop.f32.mrf.mxu0
        %4263 = vmatprep.mubr.f32.mxu0 0.0
        %4264 = vmatmul.mubr.f32.gmra.mxu0 %v4123
        %v4265 = vpop.f32.mrf.mxu0
        %v4266 = vadd.f32 0.0, %v4265
        %v4267 = vpop.f32.mrf.mxu0
        %4268 = vmatprep.mubr.f32.mxu0 0.0
        %4269 = vmatmul.mubr.f32.gmra.mxu0 %v4125
        %v4270 = vpop.f32.mrf.mxu0
        %v4271 = vadd.f32 0.0, %v4270
        %v4272 = vpop.f32.mrf.mxu0
        %4273 = vdwg.mxu0
        %v4274 = vadd.f32 %v4100, %v4196
        %v4275 = vadd.f32 %v4101, %v4201
        %v4276 = vadd.f32 %v4102, %v4206
        %v4277 = vadd.f32 %v4103, %v4211
        %v4278 = vadd.f32 %v4104, %v4216
        %v4279 = vadd.f32 %v4105, %v4221
        %v4280 = vadd.f32 %v4106, %v4226
        %v4281 = vadd.f32 %v4107, %v4231
        %v4282 = vadd.f32 %v4108, %v4236
        %v4283 = vadd.f32 %v4109, %v4241
        %v4284 = vadd.f32 %v4110, %v4246
        %v4285 = vadd.f32 %v4111, %v4251
        %v4286 = vadd.f32 %v4112, %v4256
        %v4287 = vadd.f32 %v4113, %v4261
        %v4288 = vadd.f32 %v4114, %v4266
        %v4289 = vadd.f32 %v4115, %v4271
        %v4290 = vrot.slane %v204, 2
        %v4291 = vrot.slane %v205, 2
        %v4292 = vsel %vm647, %v4290, %v4291
        %v4293 = vrot.slane %v206, 2
        %v4294 = vsel %vm647, %v4291, %v4293
        %v4295 = vsel %vm287, %v4292, 0
        %v4297 = vsel %vm287, %v4294, 0
        %v4300 = vsel %vm320, %v218, 0
        %4302 = vmatprep.subr.mxu0 0.0
        %4303 = vmatpush1.msra.mxu0 0.0
        %4304 = vmatprep.subr.mxu0 0.0
        %4305 = vmatpush1.msra.mxu0 0.0
        %4306 = vmatprep.subr.mxu0 0.0
        %4307 = vmatpush1.msra.mxu0 0.0
        %4308 = vmatprep.subr.mxu0 0.0
        %4309 = vmatpush1.msra.mxu0 0.0
        %4310 = vmatprep.subr.mxu0 0.0
        %4311 = vmatpush1.msra.mxu0 0.0
        %4312 = vmatprep.subr.mxu0 0.0
        %4313 = vmatpush1.msra.mxu0 0.0
        %4314 = vmatprep.subr.mxu0 0.0
        %4315 = vmatpush1.msra.mxu0 0.0
        %4316 = vmatprep.subr.mxu0 0.0
        %4317 = vmatpush1.msra.mxu0 0.0
        %4318 = vmatprep.subr.mxu0 0.0
        %4319 = vmatpush1.msra.mxu0 0.0
        %4320 = vmatprep.subr.mxu0 0.0
        %4321 = vmatpush1.msra.mxu0 0.0
        %4322 = vmatprep.subr.mxu0 0.0
        %4323 = vmatpush1.msra.mxu0 0.0
        %4324 = vmatprep.subr.mxu0 0.0
        %4325 = vmatpush1.msra.mxu0 0.0
        %4326 = vmatprep.subr.mxu0 0.0
        %4327 = vmatpush1.msra.mxu0 0.0
        %4328 = vmatprep.subr.mxu0 0.0
        %4329 = vmatpush1.msra.mxu0 0.0
        %4330 = vmatprep.subr.mxu0 0.0
        %4331 = vmatpush1.msra.mxu0 0.0
        %4332 = vmatprep.subr.mxu0 0.0
        %4333 = vmatpush1.msra.mxu0 %v4300
        %4334 = vmatprep.subr.mxu0 0.0
        %4335 = vmatpush2.msra.mxu0 0.0
        %4336 = vmatprep.subr.mxu0 0.0
        %4337 = vmatpush2.msra.mxu0 0.0
        %4338 = vmatprep.subr.mxu0 0.0
        %4339 = vmatpush2.msra.mxu0 0.0
        %4340 = vmatprep.subr.mxu0 0.0
        %4341 = vmatpush2.msra.mxu0 0.0
        %4342 = vmatprep.subr.mxu0 0.0
        %4343 = vmatpush2.msra.mxu0 0.0
        %4344 = vmatprep.subr.mxu0 0.0
        %4345 = vmatpush2.msra.mxu0 0.0
        %4346 = vmatprep.subr.mxu0 0.0
        %4347 = vmatpush2.msra.mxu0 0.0
        %4348 = vmatprep.subr.mxu0 0.0
        %4349 = vmatpush2.msra.mxu0 0.0
        %4350 = vmatprep.subr.mxu0 0.0
        %4351 = vmatpush2.msra.mxu0 0.0
        %4352 = vmatprep.subr.mxu0 0.0
        %4353 = vmatpush2.msra.mxu0 0.0
        %4354 = vmatprep.subr.mxu0 0.0
        %4355 = vmatpush2.msra.mxu0 0.0
        %4356 = vmatprep.subr.mxu0 0.0
        %4357 = vmatpush2.msra.mxu0 0.0
        %4358 = vmatprep.subr.mxu0 0.0
        %4359 = vmatpush2.msra.mxu0 0.0
        %4360 = vmatprep.subr.mxu0 0.0
        %4361 = vmatpush2.msra.mxu0 0.0
        %4362 = vmatprep.subr.mxu0 0.0
        %4363 = vmatpush2.msra.mxu0 0.0
        %4364 = vmatprep.subr.mxu0 0.0
        %4365 = vmatpush2.msra.mxu0 0.0
        %4366 = vmatprep.mubr.f32.mxu0 0.0
        %4367 = vmatmul.mubr.f32.gmra.mxu0 %v704
        %v4368 = vpop.f32.mrf.mxu0
        %v4369 = vadd.f32 0.0, %v4368
        %v4370 = vpop.f32.mrf.mxu0
        %4371 = vmatprep.mubr.f32.mxu0 0.0
        %4372 = vmatmul.mubr.f32.gmra.mxu0 %v706
        %v4373 = vpop.f32.mrf.mxu0
        %v4374 = vadd.f32 0.0, %v4373
        %v4375 = vpop.f32.mrf.mxu0
        %4376 = vmatprep.mubr.f32.mxu0 0.0
        %4377 = vmatmul.mubr.f32.gmra.mxu0 %v708
        %v4378 = vpop.f32.mrf.mxu0
        %v4379 = vadd.f32 0.0, %v4378
        %v4380 = vpop.f32.mrf.mxu0
        %4381 = vmatprep.mubr.f32.mxu0 0.0
        %4382 = vmatmul.mubr.f32.gmra.mxu0 %v710
        %v4383 = vpop.f32.mrf.mxu0
        %v4384 = vadd.f32 0.0, %v4383
        %v4385 = vpop.f32.mrf.mxu0
        %4386 = vmatprep.mubr.f32.mxu0 0.0
        %4387 = vmatmul.mubr.f32.gmra.mxu0 %v712
        %v4388 = vpop.f32.mrf.mxu0
        %v4389 = vadd.f32 0.0, %v4388
        %v4390 = vpop.f32.mrf.mxu0
        %4391 = vmatprep.mubr.f32.mxu0 0.0
        %4392 = vmatmul.mubr.f32.gmra.mxu0 %v714
        %v4393 = vpop.f32.mrf.mxu0
        %v4394 = vadd.f32 0.0, %v4393
        %v4395 = vpop.f32.mrf.mxu0
        %4396 = vmatprep.mubr.f32.mxu0 0.0
        %4397 = vmatmul.mubr.f32.gmra.mxu0 %v716
        %v4398 = vpop.f32.mrf.mxu0
        %v4399 = vadd.f32 0.0, %v4398
        %v4400 = vpop.f32.mrf.mxu0
        %4401 = vmatprep.mubr.f32.mxu0 0.0
        %4402 = vmatmul.mubr.f32.gmra.mxu0 %v718
        %v4403 = vpop.f32.mrf.mxu0
        %v4404 = vadd.f32 0.0, %v4403
        %v4405 = vpop.f32.mrf.mxu0
        %4406 = vmatprep.mubr.f32.mxu0 0.0
        %4407 = vmatmul.mubr.f32.gmra.mxu0 %v1707
        %v4408 = vpop.f32.mrf.mxu0
        %v4409 = vadd.f32 0.0, %v4408
        %v4410 = vpop.f32.mrf.mxu0
        %4411 = vmatprep.mubr.f32.mxu0 0.0
        %4412 = vmatmul.mubr.f32.gmra.mxu0 %v1709
        %v4413 = vpop.f32.mrf.mxu0
        %v4414 = vadd.f32 0.0, %v4413
        %v4415 = vpop.f32.mrf.mxu0
        %4416 = vmatprep.mubr.f32.mxu0 0.0
        %4417 = vmatmul.mubr.f32.gmra.mxu0 %v2569
        %v4418 = vpop.f32.mrf.mxu0
        %v4419 = vadd.f32 0.0, %v4418
        %v4420 = vpop.f32.mrf.mxu0
        %4421 = vmatprep.mubr.f32.mxu0 0.0
        %4422 = vmatmul.mubr.f32.gmra.mxu0 %v2571
        %v4423 = vpop.f32.mrf.mxu0
        %v4424 = vadd.f32 0.0, %v4423
        %v4425 = vpop.f32.mrf.mxu0
        %4426 = vmatprep.mubr.f32.mxu0 0.0
        %4427 = vmatmul.mubr.f32.gmra.mxu0 %v3433
        %v4428 = vpop.f32.mrf.mxu0
        %v4429 = vadd.f32 0.0, %v4428
        %v4430 = vpop.f32.mrf.mxu0
        %4431 = vmatprep.mubr.f32.mxu0 0.0
        %4432 = vmatmul.mubr.f32.gmra.mxu0 %v3435
        %v4433 = vpop.f32.mrf.mxu0
        %v4434 = vadd.f32 0.0, %v4433
        %v4435 = vpop.f32.mrf.mxu0
        %4436 = vmatprep.mubr.f32.mxu0 0.0
        %4437 = vmatmul.mubr.f32.gmra.mxu0 %v4295
        %v4438 = vpop.f32.mrf.mxu0
        %v4439 = vadd.f32 0.0, %v4438
        %v4440 = vpop.f32.mrf.mxu0
        %4441 = vmatprep.mubr.f32.mxu0 0.0
        %4442 = vmatmul.mubr.f32.gmra.mxu0 %v4297
        %v4443 = vpop.f32.mrf.mxu0
        %v4444 = vadd.f32 0.0, %v4443
        %v4445 = vpop.f32.mrf.mxu0
        %4446 = vdwg.mxu0
        %v4447 = vadd.f32 %v4274, %v4369
        %v4448 = vadd.f32 %v4275, %v4374
        %v4449 = vadd.f32 %v4276, %v4379
        %v4450 = vadd.f32 %v4277, %v4384
        %v4451 = vadd.f32 %v4278, %v4389
        %v4452 = vadd.f32 %v4279, %v4394
        %v4453 = vadd.f32 %v4280, %v4399
        %v4454 = vadd.f32 %v4281, %v4404
        %v4455 = vadd.f32 %v4282, %v4409
        %v4456 = vadd.f32 %v4283, %v4414
        %v4457 = vadd.f32 %v4284, %v4419
        %v4458 = vadd.f32 %v4285, %v4424
        %v4459 = vadd.f32 %v4286, %v4429
        %v4460 = vadd.f32 %v4287, %v4434
        %v4461 = vadd.f32 %v4288, %v4439
        %v4462 = vadd.f32 %v4289, %v4444
        %v4463 = vrot.slane %v204, 3
        %v4464 = vrot.slane %v205, 3
        %v4465 = vsel %vm884, %v4463, %v4464
        %v4466 = vrot.slane %v206, 3
        %v4467 = vsel %vm884, %v4464, %v4466
        %v4468 = vrot.slane %v218, 4
        %v4469 = vsel %vm287, %v4465, 0
        %v4471 = vsel %vm287, %v4467, 0
        %v4473 = vsel %vm320, %v4468, 0
        %4475 = vmatprep.subr.mxu0 0.0
        %4476 = vmatpush1.msra.mxu0 0.0
        %4477 = vmatprep.subr.mxu0 0.0
        %4478 = vmatpush1.msra.mxu0 0.0
        %4479 = vmatprep.subr.mxu0 0.0
        %4480 = vmatpush1.msra.mxu0 0.0
        %4481 = vmatprep.subr.mxu0 0.0
        %4482 = vmatpush1.msra.mxu0 0.0
        %4483 = vmatprep.subr.mxu0 0.0
        %4484 = vmatpush1.msra.mxu0 0.0
        %4485 = vmatprep.subr.mxu0 0.0
        %4486 = vmatpush1.msra.mxu0 0.0
        %4487 = vmatprep.subr.mxu0 0.0
        %4488 = vmatpush1.msra.mxu0 0.0
        %4489 = vmatprep.subr.mxu0 0.0
        %4490 = vmatpush1.msra.mxu0 0.0
        %4491 = vmatprep.subr.mxu0 0.0
        %4492 = vmatpush1.msra.mxu0 0.0
        %4493 = vmatprep.subr.mxu0 0.0
        %4494 = vmatpush1.msra.mxu0 0.0
        %4495 = vmatprep.subr.mxu0 0.0
        %4496 = vmatpush1.msra.mxu0 0.0
        %4497 = vmatprep.subr.mxu0 0.0
        %4498 = vmatpush1.msra.mxu0 0.0
        %4499 = vmatprep.subr.mxu0 0.0
        %4500 = vmatpush1.msra.mxu0 0.0
        %4501 = vmatprep.subr.mxu0 0.0
        %4502 = vmatpush1.msra.mxu0 0.0
        %4503 = vmatprep.subr.mxu0 0.0
        %4504 = vmatpush1.msra.mxu0 0.0
        %4505 = vmatprep.subr.mxu0 0.0
        %4506 = vmatpush1.msra.mxu0 %v4473
        %4507 = vmatprep.subr.mxu0 0.0
        %4508 = vmatpush2.msra.mxu0 0.0
        %4509 = vmatprep.subr.mxu0 0.0
        %4510 = vmatpush2.msra.mxu0 0.0
        %4511 = vmatprep.subr.mxu0 0.0
        %4512 = vmatpush2.msra.mxu0 0.0
        %4513 = vmatprep.subr.mxu0 0.0
        %4514 = vmatpush2.msra.mxu0 0.0
        %4515 = vmatprep.subr.mxu0 0.0
        %4516 = vmatpush2.msra.mxu0 0.0
        %4517 = vmatprep.subr.mxu0 0.0
        %4518 = vmatpush2.msra.mxu0 0.0
        %4519 = vmatprep.subr.mxu0 0.0
        %4520 = vmatpush2.msra.mxu0 0.0
        %4521 = vmatprep.subr.mxu0 0.0
        %4522 = vmatpush2.msra.mxu0 0.0
        %4523 = vmatprep.subr.mxu0 0.0
        %4524 = vmatpush2.msra.mxu0 0.0
        %4525 = vmatprep.subr.mxu0 0.0
        %4526 = vmatpush2.msra.mxu0 0.0
        %4527 = vmatprep.subr.mxu0 0.0
        %4528 = vmatpush2.msra.mxu0 0.0
        %4529 = vmatprep.subr.mxu0 0.0
        %4530 = vmatpush2.msra.mxu0 0.0
        %4531 = vmatprep.subr.mxu0 0.0
        %4532 = vmatpush2.msra.mxu0 0.0
        %4533 = vmatprep.subr.mxu0 0.0
        %4534 = vmatpush2.msra.mxu0 0.0
        %4535 = vmatprep.subr.mxu0 0.0
        %4536 = vmatpush2.msra.mxu0 0.0
        %4537 = vmatprep.subr.mxu0 0.0
        %4538 = vmatpush2.msra.mxu0 0.0
        %4539 = vmatprep.mubr.f32.mxu0 0.0
        %4540 = vmatmul.mubr.f32.gmra.mxu0 %v942
        %v4541 = vpop.f32.mrf.mxu0
        %v4542 = vadd.f32 0.0, %v4541
        %v4543 = vpop.f32.mrf.mxu0
        %4544 = vmatprep.mubr.f32.mxu0 0.0
        %4545 = vmatmul.mubr.f32.gmra.mxu0 %v944
        %v4546 = vpop.f32.mrf.mxu0
        %v4547 = vadd.f32 0.0, %v4546
        %v4548 = vpop.f32.mrf.mxu0
        %4549 = vmatprep.mubr.f32.mxu0 0.0
        %4550 = vmatmul.mubr.f32.gmra.mxu0 %v946
        %v4551 = vpop.f32.mrf.mxu0
        %v4552 = vadd.f32 0.0, %v4551
        %v4553 = vpop.f32.mrf.mxu0
        %4554 = vmatprep.mubr.f32.mxu0 0.0
        %4555 = vmatmul.mubr.f32.gmra.mxu0 %v948
        %v4556 = vpop.f32.mrf.mxu0
        %v4557 = vadd.f32 0.0, %v4556
        %v4558 = vpop.f32.mrf.mxu0
        %4559 = vmatprep.mubr.f32.mxu0 0.0
        %4560 = vmatmul.mubr.f32.gmra.mxu0 %v950
        %v4561 = vpop.f32.mrf.mxu0
        %v4562 = vadd.f32 0.0, %v4561
        %v4563 = vpop.f32.mrf.mxu0
        %4564 = vmatprep.mubr.f32.mxu0 0.0
        %4565 = vmatmul.mubr.f32.gmra.mxu0 %v952
        %v4566 = vpop.f32.mrf.mxu0
        %v4567 = vadd.f32 0.0, %v4566
        %v4568 = vpop.f32.mrf.mxu0
        %4569 = vmatprep.mubr.f32.mxu0 0.0
        %4570 = vmatmul.mubr.f32.gmra.mxu0 %v954
        %v4571 = vpop.f32.mrf.mxu0
        %v4572 = vadd.f32 0.0, %v4571
        %v4573 = vpop.f32.mrf.mxu0
        %4574 = vmatprep.mubr.f32.mxu0 0.0
        %4575 = vmatmul.mubr.f32.gmra.mxu0 %v956
        %v4576 = vpop.f32.mrf.mxu0
        %v4577 = vadd.f32 0.0, %v4576
        %v4578 = vpop.f32.mrf.mxu0
        %4579 = vmatprep.mubr.f32.mxu0 0.0
        %4580 = vmatmul.mubr.f32.gmra.mxu0 %v1879
        %v4581 = vpop.f32.mrf.mxu0
        %v4582 = vadd.f32 0.0, %v4581
        %v4583 = vpop.f32.mrf.mxu0
        %4584 = vmatprep.mubr.f32.mxu0 0.0
        %4585 = vmatmul.mubr.f32.gmra.mxu0 %v1881
        %v4586 = vpop.f32.mrf.mxu0
        %v4587 = vadd.f32 0.0, %v4586
        %v4588 = vpop.f32.mrf.mxu0
        %4589 = vmatprep.mubr.f32.mxu0 0.0
        %4590 = vmatmul.mubr.f32.gmra.mxu0 %v2743
        %v4591 = vpop.f32.mrf.mxu0
        %v4592 = vadd.f32 0.0, %v4591
        %v4593 = vpop.f32.mrf.mxu0
        %4594 = vmatprep.mubr.f32.mxu0 0.0
        %4595 = vmatmul.mubr.f32.gmra.mxu0 %v2745
        %v4596 = vpop.f32.mrf.mxu0
        %v4597 = vadd.f32 0.0, %v4596
        %v4598 = vpop.f32.mrf.mxu0
        %4599 = vmatprep.mubr.f32.mxu0 0.0
        %4600 = vmatmul.mubr.f32.gmra.mxu0 %v3605
        %v4601 = vpop.f32.mrf.mxu0
        %v4602 = vadd.f32 0.0, %v4601
        %v4603 = vpop.f32.mrf.mxu0
        %4604 = vmatprep.mubr.f32.mxu0 0.0
        %4605 = vmatmul.mubr.f32.gmra.mxu0 %v3607
        %v4606 = vpop.f32.mrf.mxu0
        %v4607 = vadd.f32 0.0, %v4606
        %v4608 = vpop.f32.mrf.mxu0
        %4609 = vmatprep.mubr.f32.mxu0 0.0
        %4610 = vmatmul.mubr.f32.gmra.mxu0 %v4469
        %v4611 = vpop.f32.mrf.mxu0
        %v4612 = vadd.f32 0.0, %v4611
        %v4613 = vpop.f32.mrf.mxu0
        %4614 = vmatprep.mubr.f32.mxu0 0.0
        %4615 = vmatmul.mubr.f32.gmra.mxu0 %v4471
        %v4616 = vpop.f32.mrf.mxu0
        %v4617 = vadd.f32 0.0, %v4616
        %v4618 = vpop.f32.mrf.mxu0
        %4619 = vdwg.mxu0
        %v4620 = vadd.f32 %v4447, %v4542
        %v4621 = vadd.f32 %v4448, %v4547
        %v4622 = vadd.f32 %v4449, %v4552
        %v4623 = vadd.f32 %v4450, %v4557
        %v4624 = vadd.f32 %v4451, %v4562
        %v4625 = vadd.f32 %v4452, %v4567
        %v4626 = vadd.f32 %v4453, %v4572
        %v4627 = vadd.f32 %v4454, %v4577
        %v4628 = vadd.f32 %v4455, %v4582
        %v4629 = vadd.f32 %v4456, %v4587
        %v4630 = vadd.f32 %v4457, %v4592
        %v4631 = vadd.f32 %v4458, %v4597
        %v4632 = vadd.f32 %v4459, %v4602
        %v4633 = vadd.f32 %v4460, %v4607
        %v4634 = vadd.f32 %v4461, %v4612
        %v4635 = vadd.f32 %v4462, %v4617
        %v4636 = vrot.slane %v204, 4
        %v4637 = vrot.slane %v205, 4
        %v4638 = vsel %vm320, %v4636, %v4637
        %v4639 = vrot.slane %v206, 4
        %v4640 = vsel %vm320, %v4637, %v4639
        %v4641 = vsel %vm287, %v4638, 0
        %v4643 = vsel %vm287, %v4640, 0
        %v4646 = vsel %vm320, %v219, 0
        %4648 = vmatprep.subr.mxu0 0.0
        %4649 = vmatpush1.msra.mxu0 0.0
        %4650 = vmatprep.subr.mxu0 0.0
        %4651 = vmatpush1.msra.mxu0 0.0
        %4652 = vmatprep.subr.mxu0 0.0
        %4653 = vmatpush1.msra.mxu0 0.0
        %4654 = vmatprep.subr.mxu0 0.0
        %4655 = vmatpush1.msra.mxu0 0.0
        %4656 = vmatprep.subr.mxu0 0.0
        %4657 = vmatpush1.msra.mxu0 0.0
        %4658 = vmatprep.subr.mxu0 0.0
        %4659 = vmatpush1.msra.mxu0 0.0
        %4660 = vmatprep.subr.mxu0 0.0
        %4661 = vmatpush1.msra.mxu0 0.0
        %4662 = vmatprep.subr.mxu0 0.0
        %4663 = vmatpush1.msra.mxu0 0.0
        %4664 = vmatprep.subr.mxu0 0.0
        %4665 = vmatpush1.msra.mxu0 0.0
        %4666 = vmatprep.subr.mxu0 0.0
        %4667 = vmatpush1.msra.mxu0 0.0
        %4668 = vmatprep.subr.mxu0 0.0
        %4669 = vmatpush1.msra.mxu0 0.0
        %4670 = vmatprep.subr.mxu0 0.0
        %4671 = vmatpush1.msra.mxu0 0.0
        %4672 = vmatprep.subr.mxu0 0.0
        %4673 = vmatpush1.msra.mxu0 0.0
        %4674 = vmatprep.subr.mxu0 0.0
        %4675 = vmatpush1.msra.mxu0 0.0
        %4676 = vmatprep.subr.mxu0 0.0
        %4677 = vmatpush1.msra.mxu0 0.0
        %4678 = vmatprep.subr.mxu0 0.0
        %4679 = vmatpush1.msra.mxu0 %v4646
        %4680 = vmatprep.subr.mxu0 0.0
        %4681 = vmatpush2.msra.mxu0 0.0
        %4682 = vmatprep.subr.mxu0 0.0
        %4683 = vmatpush2.msra.mxu0 0.0
        %4684 = vmatprep.subr.mxu0 0.0
        %4685 = vmatpush2.msra.mxu0 0.0
        %4686 = vmatprep.subr.mxu0 0.0
        %4687 = vmatpush2.msra.mxu0 0.0
        %4688 = vmatprep.subr.mxu0 0.0
        %4689 = vmatpush2.msra.mxu0 0.0
        %4690 = vmatprep.subr.mxu0 0.0
        %4691 = vmatpush2.msra.mxu0 0.0
        %4692 = vmatprep.subr.mxu0 0.0
        %4693 = vmatpush2.msra.mxu0 0.0
        %4694 = vmatprep.subr.mxu0 0.0
        %4695 = vmatpush2.msra.mxu0 0.0
        %4696 = vmatprep.subr.mxu0 0.0
        %4697 = vmatpush2.msra.mxu0 0.0
        %4698 = vmatprep.subr.mxu0 0.0
        %4699 = vmatpush2.msra.mxu0 0.0
        %4700 = vmatprep.subr.mxu0 0.0
        %4701 = vmatpush2.msra.mxu0 0.0
        %4702 = vmatprep.subr.mxu0 0.0
        %4703 = vmatpush2.msra.mxu0 0.0
        %4704 = vmatprep.subr.mxu0 0.0
        %4705 = vmatpush2.msra.mxu0 0.0
        %4706 = vmatprep.subr.mxu0 0.0
        %4707 = vmatpush2.msra.mxu0 0.0
        %4708 = vmatprep.subr.mxu0 0.0
        %4709 = vmatpush2.msra.mxu0 0.0
        %4710 = vmatprep.subr.mxu0 0.0
        %4711 = vmatpush2.msra.mxu0 0.0
        %4712 = vmatprep.mubr.f32.mxu0 0.0
        %4713 = vmatmul.mubr.f32.gmra.mxu0 %v1177
        %v4714 = vpop.f32.mrf.mxu0
        %v4715 = vadd.f32 0.0, %v4714
        %v4716 = vpop.f32.mrf.mxu0
        %4717 = vmatprep.mubr.f32.mxu0 0.0
        %4718 = vmatmul.mubr.f32.gmra.mxu0 %v1179
        %v4719 = vpop.f32.mrf.mxu0
        %v4720 = vadd.f32 0.0, %v4719
        %v4721 = vpop.f32.mrf.mxu0
        %4722 = vmatprep.mubr.f32.mxu0 0.0
        %4723 = vmatmul.mubr.f32.gmra.mxu0 %v1181
        %v4724 = vpop.f32.mrf.mxu0
        %v4725 = vadd.f32 0.0, %v4724
        %v4726 = vpop.f32.mrf.mxu0
        %4727 = vmatprep.mubr.f32.mxu0 0.0
        %4728 = vmatmul.mubr.f32.gmra.mxu0 %v1183
        %v4729 = vpop.f32.mrf.mxu0
        %v4730 = vadd.f32 0.0, %v4729
        %v4731 = vpop.f32.mrf.mxu0
        %4732 = vmatprep.mubr.f32.mxu0 0.0
        %4733 = vmatmul.mubr.f32.gmra.mxu0 %v1185
        %v4734 = vpop.f32.mrf.mxu0
        %v4735 = vadd.f32 0.0, %v4734
        %v4736 = vpop.f32.mrf.mxu0
        %4737 = vmatprep.mubr.f32.mxu0 0.0
        %4738 = vmatmul.mubr.f32.gmra.mxu0 %v1187
        %v4739 = vpop.f32.mrf.mxu0
        %v4740 = vadd.f32 0.0, %v4739
        %v4741 = vpop.f32.mrf.mxu0
        %4742 = vmatprep.mubr.f32.mxu0 0.0
        %4743 = vmatmul.mubr.f32.gmra.mxu0 %v1189
        %v4744 = vpop.f32.mrf.mxu0
        %v4745 = vadd.f32 0.0, %v4744
        %v4746 = vpop.f32.mrf.mxu0
        %4747 = vmatprep.mubr.f32.mxu0 0.0
        %4748 = vmatmul.mubr.f32.gmra.mxu0 %v1191
        %v4749 = vpop.f32.mrf.mxu0
        %v4750 = vadd.f32 0.0, %v4749
        %v4751 = vpop.f32.mrf.mxu0
        %4752 = vmatprep.mubr.f32.mxu0 0.0
        %4753 = vmatmul.mubr.f32.gmra.mxu0 %v2053
        %v4754 = vpop.f32.mrf.mxu0
        %v4755 = vadd.f32 0.0, %v4754
        %v4756 = vpop.f32.mrf.mxu0
        %4757 = vmatprep.mubr.f32.mxu0 0.0
        %4758 = vmatmul.mubr.f32.gmra.mxu0 %v2055
        %v4759 = vpop.f32.mrf.mxu0
        %v4760 = vadd.f32 0.0, %v4759
        %v4761 = vpop.f32.mrf.mxu0
        %4762 = vmatprep.mubr.f32.mxu0 0.0
        %4763 = vmatmul.mubr.f32.gmra.mxu0 %v2915
        %v4764 = vpop.f32.mrf.mxu0
        %v4765 = vadd.f32 0.0, %v4764
        %v4766 = vpop.f32.mrf.mxu0
        %4767 = vmatprep.mubr.f32.mxu0 0.0
        %4768 = vmatmul.mubr.f32.gmra.mxu0 %v2917
        %v4769 = vpop.f32.mrf.mxu0
        %v4770 = vadd.f32 0.0, %v4769
        %v4771 = vpop.f32.mrf.mxu0
        %4772 = vmatprep.mubr.f32.mxu0 0.0
        %4773 = vmatmul.mubr.f32.gmra.mxu0 %v3779
        %v4774 = vpop.f32.mrf.mxu0
        %v4775 = vadd.f32 0.0, %v4774
        %v4776 = vpop.f32.mrf.mxu0
        %4777 = vmatprep.mubr.f32.mxu0 0.0
        %4778 = vmatmul.mubr.f32.gmra.mxu0 %v3781
        %v4779 = vpop.f32.mrf.mxu0
        %v4780 = vadd.f32 0.0, %v4779
        %v4781 = vpop.f32.mrf.mxu0
        %4782 = vmatprep.mubr.f32.mxu0 0.0
        %4783 = vmatmul.mubr.f32.gmra.mxu0 %v4641
        %v4784 = vpop.f32.mrf.mxu0
        %v4785 = vadd.f32 0.0, %v4784
        %v4786 = vpop.f32.mrf.mxu0
        %4787 = vmatprep.mubr.f32.mxu0 0.0
        %4788 = vmatmul.mubr.f32.gmra.mxu0 %v4643
        %v4789 = vpop.f32.mrf.mxu0
        %v4790 = vadd.f32 0.0, %v4789
        %v4791 = vpop.f32.mrf.mxu0
        %4792 = vdwg.mxu0
        %v4793 = vadd.f32 %v4620, %v4715
        %v4794 = vadd.f32 %v4621, %v4720
        %v4795 = vadd.f32 %v4622, %v4725
        %v4796 = vadd.f32 %v4623, %v4730
        %v4797 = vadd.f32 %v4624, %v4735
        %v4798 = vadd.f32 %v4625, %v4740
        %v4799 = vadd.f32 %v4626, %v4745
        %v4800 = vadd.f32 %v4627, %v4750
        %v4801 = vadd.f32 %v4628, %v4755
        %v4802 = vadd.f32 %v4629, %v4760
        %v4803 = vadd.f32 %v4630, %v4765
        %v4804 = vadd.f32 %v4631, %v4770
        %v4805 = vadd.f32 %v4632, %v4775
        %v4806 = vadd.f32 %v4633, %v4780
        %v4807 = vadd.f32 %v4634, %v4785
        %v4808 = vadd.f32 %v4635, %v4790
        %v4809 = vmax.f32 %v4793, 0.0
        %v4810 = vmax.f32 %v4794, 0.0
        %v4811 = vmax.f32 %v4795, 0.0
        %v4812 = vmax.f32 %v4796, 0.0
        %v4813 = vmax.f32 %v4797, 0.0
        %v4814 = vmax.f32 %v4798, 0.0
        %v4815 = vmax.f32 %v4799, 0.0
        %v4816 = vmax.f32 %v4800, 0.0
        %v4817 = vmax.f32 %v4801, 0.0
        %v4818 = vmax.f32 %v4802, 0.0
        %v4819 = vmax.f32 %v4803, 0.0
        %v4820 = vmax.f32 %v4804, 0.0
        %v4821 = vmax.f32 %v4805, 0.0
        %v4822 = vmax.f32 %v4806, 0.0
        %v4823 = vmax.f32 %v4807, 0.0
        %v4824 = vmax.f32 %v4808, 0.0
        %4825 = vst [vmem:[%s160] sm:$0xff] %v4809
        %4826 = vst [vmem:[%s160 + $0x8] sm:$0xff] %v4810
        %4827 = vst [vmem:[%s160 + $0x10] sm:$0xff] %v4811
        %4828 = vst [vmem:[%s160 + $0x18] sm:$0xff] %v4812
        %4829 = vst [vmem:[%s160 + $0x20] sm:$0xff] %v4813
        %4830 = vst [vmem:[%s160 + $0x28] sm:$0xff] %v4814
        %4831 = vst [vmem:[%s160 + $0x30] sm:$0xff] %v4815
        %4832 = vst [vmem:[%s160 + $0x38] sm:$0xff] %v4816
        %4833 = vst [vmem:[%s160 + $0x40] sm:$0xff] %v4817
        %4834 = vst [vmem:[%s160 + $0x48] sm:$0xff] %v4818
        %4835 = vst [vmem:[%s160 + $0x50] sm:$0xff] %v4819
        %4836 = vst [vmem:[%s160 + $0x58] sm:$0xff] %v4820
        %4837 = vst [vmem:[%s160 + $0x60] sm:$0xff] %v4821
        %4838 = vst [vmem:[%s160 + $0x68] sm:$0xff] %v4822
        %4839 = vst [vmem:[%s160 + $0x70] sm:$0xff] %v4823
        %4840 = vst [vmem:[%s160 + $0x78] sm:$0xff] %v4824
        %s4841 = sand.u32 %s89, 1
        %s4842 = scalar_lea.sflag [#allocation3], %s4841
        %s4843 = sand.u32 %s89, 1
        %s4844 = smul.addr %s4843, 128
        %s4845 = scalar_lea.vmem [#allocation2], %s4844
        // Predicated region
        $region29: #{tpu_custom_call.1} parent=27 // pred_check
          %p4846 = pneg %p99
        $region30: #{tpu_custom_call.1} parent=27 // pred_check_branch
          %4848 = sbr.rel (%p4846) target = $region32
        $region31: #{tpu_custom_call.1} parent=27 // pred_region
          %s4849 = smul.u32 8, %s21
          %s4851 = ssub.s32 2048, 2048
          %4852 = vsyncadd %s4842, %s4851
          %s4853 = smul.addr %s4849, 2
          %s4854 = smul.addr %s20, 32
          %s4855 = sadd.s32 %s4853, %s4854
          %s4856 = smul.addr %s4855, 128
          %s4857 = scalar_lea.hbm %s2, %s4856
          %s4858 = sshll.u32 %s4845, 4
          %s4859 = int_to_ptr.vmem [resolvable:$true] %s4858
          %4864 = dma.vmem_to_hbm [thread:$0]  %s4859, 2048, %s4857, %s4842, 128, 128, 8
        $region32: #{tpu_custom_call.1} parent=27 // pred_fallthru
          _
      $region28: #{tpu_custom_call.1} parent=5 // pred_fallthru
        _
      %p4865 = scmp.le.s32.totalorder 2, %s11
      // Predicated region
      $region33: #{tpu_custom_call.1} parent=5 // pred_check
        %p4866 = pneg %p4865
      $region34: #{tpu_custom_call.1} parent=5 // pred_check_branch
        %4868 = sbr.rel (%p4866) target = $region36
      $region35: #{tpu_custom_call.1} parent=5 // pred_region
        %s4869 = ssub.s32 %s11, 2
        // Predicated region
        $region37: #{tpu_custom_call.1} parent=35 // pred_check
          %p4870 = pneg %p105
        $region38: #{tpu_custom_call.1} parent=35 // pred_check_branch
          %4872 = sbr.rel (%p4870) target = $region40
        $region39: #{tpu_custom_call.1} parent=35 // pred_region
          %s4873 = sand.u32 %s90, 1
          %s4874 = scalar_lea.sflag [#allocation3], %s4873
          %s4875 = sand.u32 %s90, 1
          %s4876 = smul.addr %s4875, 128
          %s4877 = scalar_lea.vmem [#allocation2], %s4876
          %4878 = dma.done %s4874, 2048
        $region40: #{tpu_custom_call.1} parent=35 // pred_fallthru
          _
      $region36: #{tpu_custom_call.1} parent=5 // pred_fallthru
        _
    $region6: #{tpu_custom_call.1} parent=1 // loop_footer
      %s15 = sadd.s32 1, %s11
    $region7: #{tpu_custom_call.1} parent=1 // loop_footer_branch
      %10 = sbr.rel target = $region3
    $region8: #{tpu_custom_call.1} parent=1 // loop_exit
      _
    %4879 = vsyncpa [#allocation3], 1
    %s4880 = scalar_lea.sflag [#allocation3], 1
    %4881 = vsyncpa %s4880, 1

</llo_original>
